<compile_context>
chip_gen: v7x
topology: tpu7x:2x2x1
jax: 0.10.0
libtpu: 0.0.40
codegen_flags: <defaults>
</compile_context>

<pallas_src>
import functools
import math

import jax
import jax.numpy as jnp
from jax import lax
from jax.experimental import pallas as pl
from jax.experimental.pallas import tpu as pltpu


def _cross_attention_kernel(x_ref, mask_ref,
                            wqkv_ref, bqkv_ref,
                            wo_ref, bo_ref,
                            gamma_ref, beta_ref,
                            o_ref, *,
                            num_heads, head_dim, eps):
    # x_ref: (1, S, H)   mask_ref: (1, 1, S)
    # wqkv_ref: (H, 3H)  bqkv_ref: (1, 3H)  wo_ref: (H, H)
    # bo/gamma/beta: (1, H)
    x = x_ref[0].astype(jnp.float32)            # (S, H)
    mask = mask_ref[0].astype(jnp.float32)      # (1, S) — broadcasts over queries

    seq, hidden = x.shape

    # Fused QKV projection on the MXU (f32 accumulation): (S,H)@(H,3H).
    qkv = jnp.dot(x, wqkv_ref[...], preferred_element_type=jnp.float32)
    qkv = qkv + bqkv_ref[...]
    q = qkv[:, 0 * hidden:1 * hidden]            # (S, H)
    k = qkv[:, 1 * hidden:2 * hidden]            # (S, H)
    v = qkv[:, 2 * hidden:3 * hidden]            # (S, H)

    wo = wo_ref[...]                             # (H, H), loaded once
    scale = 1.0 / math.sqrt(head_dim)

    # Per-head attention (statically unrolled). The output-dense contribution
    # of each head is accumulated directly so per-head contexts never need a
    # concatenation or extra (S, H) buffer.
    acc = jnp.zeros((seq, hidden), dtype=jnp.float32)
    for h in range(num_heads):
        sl = slice(h * head_dim, (h + 1) * head_dim)
        qh = q[:, sl]                            # (S, d)
        kh = k[:, sl]                            # (S, d)
        vh = v[:, sl]                            # (S, d)

        # scores = (qh @ kh^T) / sqrt(d) + mask   -> (S, S)
        scores = lax.dot_general(qh, kh, (((1,), (1,)), ((), ())),
                                 preferred_element_type=jnp.float32)
        scores = scores * scale + mask

        # Numerically stable softmax over keys.
        m = jnp.max(scores, axis=-1, keepdims=True)
        e = jnp.exp(scores - m)
        p = e / jnp.sum(e, axis=-1, keepdims=True)
        # TODO(synk): attention-prob dropout omitted (identity in eval mode).

        ctx_h = jnp.dot(p, vh, preferred_element_type=jnp.float32)       # (S, d)
        # Output dense: rows h*d:(h+1)*d of Wo^T multiply this head's context.
        acc = acc + jnp.dot(ctx_h, wo[sl, :],
                            preferred_element_type=jnp.float32)

    # Output bias + residual + LayerNorm (eps=1e-12, biased variance).
    y = acc + bo_ref[...] + x
    mu = jnp.mean(y, axis=-1, keepdims=True)
    var = jnp.mean(jnp.square(y - mu), axis=-1, keepdims=True)
    normed = (y - mu) * lax.rsqrt(var + eps)
    out = normed * gamma_ref[...] + beta_ref[...]
    o_ref[0] = out.astype(o_ref.dtype)


def cross_attention(input_tensor, attention_mask, params, *, num_heads):
    """Fused CrossAttention forward.

    input_tensor:   [B, S, H]
    attention_mask: additive mask broadcastable to [B, 1, 1, S] (0 / -1e4)
    params: PyTorch-layout parameters:
        wq, wk, wv, wo: [H, H]  (nn.Linear.weight, out x in)
        bq, bk, bv, bo: [H]
        gamma, beta:    [H]     (LayerNorm weight / bias)
    """
    B, S, H = input_tensor.shape
    assert H % num_heads == 0
    head_dim = H // num_heads

    # Glue reshapes/transposes in plain JAX: lane-dense [H_in, H_out] weights,
    # QKV fused into a single (H, 3H) weight and (1, 3H) bias.
    wqkv_t = jnp.concatenate(
        [params["wq"].T, params["wk"].T, params["wv"].T], axis=1)   # (H, 3H)
    bqkv = jnp.concatenate(
        [params["bq"], params["bk"], params["bv"]]).reshape(1, 3 * H)
    wo_t = params["wo"].T                                            # (H, H)
    bo = params["bo"].reshape(1, H)
    gamma = params["gamma"].reshape(1, H)
    beta = params["beta"].reshape(1, H)
    mask = jnp.broadcast_to(attention_mask, (B, 1, 1, S)).reshape(B, 1, S)
    mask = mask.astype(jnp.float32)

    kernel = functools.partial(_cross_attention_kernel,
                               num_heads=num_heads, head_dim=head_dim,
                               eps=1e-12)

    const2d = lambda b: (0, 0)   # weights/biases: block-index invariant (DMA once)
    return pl.pallas_call(
        kernel,
        out_shape=jax.ShapeDtypeStruct((B, S, H), input_tensor.dtype),
        grid_spec=pltpu.PrefetchScalarGridSpec(
            num_scalar_prefetch=0,
            grid=(B,),
            in_specs=[
                pl.BlockSpec((1, S, H), lambda b: (b, 0, 0)),   # x
                pl.BlockSpec((1, 1, S), lambda b: (b, 0, 0)),   # additive mask
                pl.BlockSpec((H, 3 * H), const2d),              # [Wq|Wk|Wv]^T
                pl.BlockSpec((1, 3 * H), const2d),              # [bq|bk|bv]
                pl.BlockSpec((H, H), const2d),                  # Wo^T
                pl.BlockSpec((1, H), const2d),                  # bo
                pl.BlockSpec((1, H), const2d),                  # gamma
                pl.BlockSpec((1, H), const2d),                  # beta
            ],
            out_specs=pl.BlockSpec((1, S, H), lambda b: (b, 0, 0)),
        ),
        compiler_params=pltpu.CompilerParams(
            dimension_semantics=("parallel",)),
    )(input_tensor, mask, wqkv_t, bqkv, wo_t, bo, gamma, beta)


def _reference(x, attention_mask, params, *, num_heads):
    """Pure-JAX mirror of the PyTorch CrossAttention forward (eval mode)."""
    B, S, H = x.shape
    d = H // num_heads

    def split(t):   # (B,S,H) -> (B,nH,S,d)
        return t.reshape(B, S, num_heads, d).transpose(0, 2, 1, 3)

    q = split(x @ params["wq"].T + params["bq"])
    k = split(x @ params["wk"].T + params["bk"])
    v = split(x @ params["wv"].T + params["bv"])
    scores = jnp.einsum("bhqd,bhkd->bhqk", q, k) / math.sqrt(d)
    scores = scores + jnp.broadcast_to(attention_mask, (B, 1, 1, S))
    probs = jax.nn.softmax(scores, axis=-1)
    ctx = jnp.einsum("bhqk,bhkd->bhqd", probs, v)
    ctx = ctx.transpose(0, 2, 1, 3).reshape(B, S, H)
    h = ctx @ params["wo"].T + params["bo"]
    y = h + x
    mu = y.mean(-1, keepdims=True)
    var = ((y - mu) ** 2).mean(-1, keepdims=True)
    return (y - mu) / jnp.sqrt(var + 1e-12) * params["gamma"] + params["beta"]


if __name__ == "__main__":
    # Match f32 matmul precision between the kernel and the XLA reference.
    jax.config.update("jax_default_matmul_precision", "highest")

    key = jax.random.PRNGKey(0)
    ks = jax.random.split(key, 11)

    batch, seq, hidden, num_heads = 2, 8, 32, 4

    x = jax.random.normal(ks[0], (batch, seq, hidden), dtype=jnp.float32)
    params = {
        "wq": jax.random.normal(ks[1], (hidden, hidden), jnp.float32) * 0.05,
        "wk": jax.random.normal(ks[2], (hidden, hidden), jnp.float32) * 0.05,
        "wv": jax.random.normal(ks[3], (hidden, hidden), jnp.float32) * 0.05,
        "wo": jax.random.normal(ks[4], (hidden, hidden), jnp.float32) * 0.05,
        "bq": jax.random.normal(ks[5], (hidden,), jnp.float32) * 0.02,
        "bk": jax.random.normal(ks[6], (hidden,), jnp.float32) * 0.02,
        "bv": jax.random.normal(ks[7], (hidden,), jnp.float32) * 0.02,
        "bo": jax.random.normal(ks[8], (hidden,), jnp.float32) * 0.02,
        "gamma": 1.0 + jax.random.normal(ks[9], (hidden,), jnp.float32) * 0.02,
        "beta": jax.random.normal(ks[10], (hidden,), jnp.float32) * 0.02,
    }
    # BERT-style additive extended mask [B, 1, 1, S]: 0 for valid, -1e4 for pad.
    valid = jnp.array([[1.0] * seq, [1.0] * 6 + [0.0] * 2], dtype=jnp.float32)
    attention_mask = (1.0 - valid)[:, None, None, :] * -10000.0

    out = cross_attention(x, attention_mask, params, num_heads=num_heads)
    out = jax.block_until_ready(out)

    ref = _reference(x, attention_mask, params, num_heads=num_heads)
    assert out.shape == (batch, seq, hidden)
    assert jnp.allclose(out, ref, atol=1e-3, rtol=1e-3), float(
        jnp.max(jnp.abs(out - ref)))

    print("KERNEL_OK")
</pallas_src>

<mosaic_0001>
module attributes {stable_mosaic.version = 11 : i64} {
  func.func @_cross_attention_kernel(%arg0: i32, %arg1: memref<1x8x32xf32, #tpu.memory_space<vmem>>, %arg2: memref<1x1x8xf32, #tpu.memory_space<vmem>>, %arg3: memref<32x96xf32, #tpu.memory_space<vmem>>, %arg4: memref<1x96xf32, #tpu.memory_space<vmem>>, %arg5: memref<32x32xf32, #tpu.memory_space<vmem>>, %arg6: memref<1x32xf32, #tpu.memory_space<vmem>>, %arg7: memref<1x32xf32, #tpu.memory_space<vmem>>, %arg8: memref<1x32xf32, #tpu.memory_space<vmem>>, %arg9: memref<1x8x32xf32, #tpu.memory_space<vmem>>) attributes {dimension_semantics = [#tpu.dimension_semantics<parallel>], iteration_bounds = array<i64: 2>, scalar_prefetch = 0 : i64, scratch_operands = 0 : i64, tpu.core_type = #tpu.core_type<tc>, window_params = [{transform_indices = @transform_0, window_bounds = array<i64: 1, 8, 32>}, {transform_indices = @transform_1, window_bounds = array<i64: 1, 1, 8>}, {pipeline_mode = #tpu.pipeline_mode<synchronous>, transform_indices = @transform_2, window_bounds = array<i64: 32, 96>}, {pipeline_mode = #tpu.pipeline_mode<synchronous>, transform_indices = @transform_3, window_bounds = array<i64: 1, 96>}, {pipeline_mode = #tpu.pipeline_mode<synchronous>, transform_indices = @transform_4, window_bounds = array<i64: 32, 32>}, {pipeline_mode = #tpu.pipeline_mode<synchronous>, transform_indices = @transform_5, window_bounds = array<i64: 1, 32>}, {pipeline_mode = #tpu.pipeline_mode<synchronous>, transform_indices = @transform_6, window_bounds = array<i64: 1, 32>}, {pipeline_mode = #tpu.pipeline_mode<synchronous>, transform_indices = @transform_7, window_bounds = array<i64: 1, 32>}, {transform_indices = @transform_8, window_bounds = array<i64: 1, 8, 32>}]} {
    %c0 = arith.constant 0 : index
    %c0_0 = arith.constant 0 : index
    %c0_1 = arith.constant 0 : index
    %0 = vector.load %arg1[%c0, %c0_0, %c0_1] : memref<1x8x32xf32, #tpu.memory_space<vmem>>, vector<1x8x32xf32>
    %1 = vector.shape_cast %0 : vector<1x8x32xf32> to vector<8x32xf32>
    %c0_2 = arith.constant 0 : index
    %c0_3 = arith.constant 0 : index
    %c0_4 = arith.constant 0 : index
    %2 = vector.load %arg2[%c0_2, %c0_3, %c0_4] : memref<1x1x8xf32, #tpu.memory_space<vmem>>, vector<1x1x8xf32>
    %3 = vector.shape_cast %2 : vector<1x1x8xf32> to vector<1x8xf32>
    %c0_5 = arith.constant 0 : index
    %c0_6 = arith.constant 0 : index
    %4 = vector.load %arg3[%c0_5, %c0_6] : memref<32x96xf32, #tpu.memory_space<vmem>>, vector<32x96xf32>
    %cst = arith.constant dense<0.000000e+00> : vector<8x96xf32>
    %5 = tpu.matmul %1, %4, %cst {dimension_numbers = #tpu.dot_dimension_numbers<[1], [0], [0], [1], [0, 0, 1, 1], [], []>, precision = #tpu.contract_precision<fp32>} : vector<8x32xf32>, vector<32x96xf32>, vector<8x96xf32> -> vector<8x96xf32>
    %c0_7 = arith.constant 0 : index
    %c0_8 = arith.constant 0 : index
    %6 = vector.load %arg4[%c0_7, %c0_8] : memref<1x96xf32, #tpu.memory_space<vmem>>, vector<1x96xf32>
    %7 = vector.broadcast %6 : vector<1x96xf32> to vector<8x96xf32>
    %8 = arith.addf %5, %7 : vector<8x96xf32>
    %9 = vector.extract_strided_slice %8 {offsets = [0, 0], sizes = [8, 32], strides = [1, 1]} : vector<8x96xf32> to vector<8x32xf32>
    %10 = vector.extract_strided_slice %8 {offsets = [0, 32], sizes = [8, 32], strides = [1, 1]} : vector<8x96xf32> to vector<8x32xf32>
    %11 = vector.extract_strided_slice %8 {offsets = [0, 64], sizes = [8, 32], strides = [1, 1]} : vector<8x96xf32> to vector<8x32xf32>
    %c0_9 = arith.constant 0 : index
    %c0_10 = arith.constant 0 : index
    %12 = vector.load %arg5[%c0_9, %c0_10] : memref<32x32xf32, #tpu.memory_space<vmem>>, vector<32x32xf32>
    %cst_11 = arith.constant 0.000000e+00 : f32
    %13 = vector.broadcast %cst_11 : f32 to vector<8x32xf32>
    %14 = vector.extract_strided_slice %9 {offsets = [0, 0], sizes = [8, 8], strides = [1, 1]} : vector<8x32xf32> to vector<8x8xf32>
    %15 = vector.extract_strided_slice %10 {offsets = [0, 0], sizes = [8, 8], strides = [1, 1]} : vector<8x32xf32> to vector<8x8xf32>
    %16 = vector.extract_strided_slice %11 {offsets = [0, 0], sizes = [8, 8], strides = [1, 1]} : vector<8x32xf32> to vector<8x8xf32>
    %cst_12 = arith.constant dense<0.000000e+00> : vector<8x8xf32>
    %17 = tpu.matmul %14, %15, %cst_12 {dimension_numbers = #tpu.dot_dimension_numbers<[1], [1], [0], [0], [0, 0, 1, 0], [], []>, precision = #tpu.contract_precision<fp32>} : vector<8x8xf32>, vector<8x8xf32>, vector<8x8xf32> -> vector<8x8xf32>
    %cst_13 = arith.constant 0.353553385 : f32
    %18 = vector.broadcast %cst_13 : f32 to vector<8x8xf32>
    %19 = arith.mulf %17, %18 : vector<8x8xf32>
    %20 = vector.broadcast %3 : vector<1x8xf32> to vector<8x8xf32>
    %21 = arith.addf %19, %20 : vector<8x8xf32>
    %cst_14 = arith.constant dense<0xFF800000> : vector<8xf32>
    %22 = vector.multi_reduction <maximumf>, %21, %cst_14 [1] : vector<8x8xf32> to vector<8xf32>
    %23 = vector.shape_cast %22 : vector<8xf32> to vector<8x1xf32>
    %24 = vector.broadcast %23 : vector<8x1xf32> to vector<8x8xf32>
    %25 = arith.subf %21, %24 : vector<8x8xf32>
    %26 = math.exp %25 : vector<8x8xf32>
    %cst_15 = arith.constant dense<0.000000e+00> : vector<8xf32>
    %27 = vector.multi_reduction <add>, %26, %cst_15 [1] : vector<8x8xf32> to vector<8xf32>
    %28 = vector.shape_cast %27 : vector<8xf32> to vector<8x1xf32>
    %29 = vector.broadcast %28 : vector<8x1xf32> to vector<8x8xf32>
    %30 = arith.divf %26, %29 : vector<8x8xf32>
    %cst_16 = arith.constant dense<0.000000e+00> : vector<8x8xf32>
    %31 = tpu.matmul %30, %16, %cst_16 {dimension_numbers = #tpu.dot_dimension_numbers<[1], [0], [0], [1], [0, 0, 1, 1], [], []>, precision = #tpu.contract_precision<fp32>} : vector<8x8xf32>, vector<8x8xf32>, vector<8x8xf32> -> vector<8x8xf32>
    %32 = vector.extract_strided_slice %12 {offsets = [0, 0], sizes = [8, 32], strides = [1, 1]} : vector<32x32xf32> to vector<8x32xf32>
    %cst_17 = arith.constant dense<0.000000e+00> : vector<8x32xf32>
    %33 = tpu.matmul %31, %32, %cst_17 {dimension_numbers = #tpu.dot_dimension_numbers<[1], [0], [0], [1], [0, 0, 1, 1], [], []>, precision = #tpu.contract_precision<fp32>} : vector<8x8xf32>, vector<8x32xf32>, vector<8x32xf32> -> vector<8x32xf32>
    %34 = arith.addf %13, %33 : vector<8x32xf32>
    %35 = vector.extract_strided_slice %9 {offsets = [0, 8], sizes = [8, 8], strides = [1, 1]} : vector<8x32xf32> to vector<8x8xf32>
    %36 = vector.extract_strided_slice %10 {offsets = [0, 8], sizes = [8, 8], strides = [1, 1]} : vector<8x32xf32> to vector<8x8xf32>
    %37 = vector.extract_strided_slice %11 {offsets = [0, 8], sizes = [8, 8], strides = [1, 1]} : vector<8x32xf32> to vector<8x8xf32>
    %cst_18 = arith.constant dense<0.000000e+00> : vector<8x8xf32>
    %38 = tpu.matmul %35, %36, %cst_18 {dimension_numbers = #tpu.dot_dimension_numbers<[1], [1], [0], [0], [0, 0, 1, 0], [], []>, precision = #tpu.contract_precision<fp32>} : vector<8x8xf32>, vector<8x8xf32>, vector<8x8xf32> -> vector<8x8xf32>
    %cst_19 = arith.constant 0.353553385 : f32
    %39 = vector.broadcast %cst_19 : f32 to vector<8x8xf32>
    %40 = arith.mulf %38, %39 : vector<8x8xf32>
    %41 = vector.broadcast %3 : vector<1x8xf32> to vector<8x8xf32>
    %42 = arith.addf %40, %41 : vector<8x8xf32>
    %cst_20 = arith.constant dense<0xFF800000> : vector<8xf32>
    %43 = vector.multi_reduction <maximumf>, %42, %cst_20 [1] : vector<8x8xf32> to vector<8xf32>
    %44 = vector.shape_cast %43 : vector<8xf32> to vector<8x1xf32>
    %45 = vector.broadcast %44 : vector<8x1xf32> to vector<8x8xf32>
    %46 = arith.subf %42, %45 : vector<8x8xf32>
    %47 = math.exp %46 : vector<8x8xf32>
    %cst_21 = arith.constant dense<0.000000e+00> : vector<8xf32>
    %48 = vector.multi_reduction <add>, %47, %cst_21 [1] : vector<8x8xf32> to vector<8xf32>
    %49 = vector.shape_cast %48 : vector<8xf32> to vector<8x1xf32>
    %50 = vector.broadcast %49 : vector<8x1xf32> to vector<8x8xf32>
    %51 = arith.divf %47, %50 : vector<8x8xf32>
    %cst_22 = arith.constant dense<0.000000e+00> : vector<8x8xf32>
    %52 = tpu.matmul %51, %37, %cst_22 {dimension_numbers = #tpu.dot_dimension_numbers<[1], [0], [0], [1], [0, 0, 1, 1], [], []>, precision = #tpu.contract_precision<fp32>} : vector<8x8xf32>, vector<8x8xf32>, vector<8x8xf32> -> vector<8x8xf32>
    %53 = vector.extract_strided_slice %12 {offsets = [8, 0], sizes = [8, 32], strides = [1, 1]} : vector<32x32xf32> to vector<8x32xf32>
    %cst_23 = arith.constant dense<0.000000e+00> : vector<8x32xf32>
    %54 = tpu.matmul %52, %53, %cst_23 {dimension_numbers = #tpu.dot_dimension_numbers<[1], [0], [0], [1], [0, 0, 1, 1], [], []>, precision = #tpu.contract_precision<fp32>} : vector<8x8xf32>, vector<8x32xf32>, vector<8x32xf32> -> vector<8x32xf32>
    %55 = arith.addf %34, %54 : vector<8x32xf32>
    %56 = vector.extract_strided_slice %9 {offsets = [0, 16], sizes = [8, 8], strides = [1, 1]} : vector<8x32xf32> to vector<8x8xf32>
    %57 = vector.extract_strided_slice %10 {offsets = [0, 16], sizes = [8, 8], strides = [1, 1]} : vector<8x32xf32> to vector<8x8xf32>
    %58 = vector.extract_strided_slice %11 {offsets = [0, 16], sizes = [8, 8], strides = [1, 1]} : vector<8x32xf32> to vector<8x8xf32>
    %cst_24 = arith.constant dense<0.000000e+00> : vector<8x8xf32>
    %59 = tpu.matmul %56, %57, %cst_24 {dimension_numbers = #tpu.dot_dimension_numbers<[1], [1], [0], [0], [0, 0, 1, 0], [], []>, precision = #tpu.contract_precision<fp32>} : vector<8x8xf32>, vector<8x8xf32>, vector<8x8xf32> -> vector<8x8xf32>
    %cst_25 = arith.constant 0.353553385 : f32
    %60 = vector.broadcast %cst_25 : f32 to vector<8x8xf32>
    %61 = arith.mulf %59, %60 : vector<8x8xf32>
    %62 = vector.broadcast %3 : vector<1x8xf32> to vector<8x8xf32>
    %63 = arith.addf %61, %62 : vector<8x8xf32>
    %cst_26 = arith.constant dense<0xFF800000> : vector<8xf32>
    %64 = vector.multi_reduction <maximumf>, %63, %cst_26 [1] : vector<8x8xf32> to vector<8xf32>
    %65 = vector.shape_cast %64 : vector<8xf32> to vector<8x1xf32>
    %66 = vector.broadcast %65 : vector<8x1xf32> to vector<8x8xf32>
    %67 = arith.subf %63, %66 : vector<8x8xf32>
    %68 = math.exp %67 : vector<8x8xf32>
    %cst_27 = arith.constant dense<0.000000e+00> : vector<8xf32>
    %69 = vector.multi_reduction <add>, %68, %cst_27 [1] : vector<8x8xf32> to vector<8xf32>
    %70 = vector.shape_cast %69 : vector<8xf32> to vector<8x1xf32>
    %71 = vector.broadcast %70 : vector<8x1xf32> to vector<8x8xf32>
    %72 = arith.divf %68, %71 : vector<8x8xf32>
    %cst_28 = arith.constant dense<0.000000e+00> : vector<8x8xf32>
    %73 = tpu.matmul %72, %58, %cst_28 {dimension_numbers = #tpu.dot_dimension_numbers<[1], [0], [0], [1], [0, 0, 1, 1], [], []>, precision = #tpu.contract_precision<fp32>} : vector<8x8xf32>, vector<8x8xf32>, vector<8x8xf32> -> vector<8x8xf32>
    %74 = vector.extract_strided_slice %12 {offsets = [16, 0], sizes = [8, 32], strides = [1, 1]} : vector<32x32xf32> to vector<8x32xf32>
    %cst_29 = arith.constant dense<0.000000e+00> : vector<8x32xf32>
    %75 = tpu.matmul %73, %74, %cst_29 {dimension_numbers = #tpu.dot_dimension_numbers<[1], [0], [0], [1], [0, 0, 1, 1], [], []>, precision = #tpu.contract_precision<fp32>} : vector<8x8xf32>, vector<8x32xf32>, vector<8x32xf32> -> vector<8x32xf32>
    %76 = arith.addf %55, %75 : vector<8x32xf32>
    %77 = vector.extract_strided_slice %9 {offsets = [0, 24], sizes = [8, 8], strides = [1, 1]} : vector<8x32xf32> to vector<8x8xf32>
    %78 = vector.extract_strided_slice %10 {offsets = [0, 24], sizes = [8, 8], strides = [1, 1]} : vector<8x32xf32> to vector<8x8xf32>
    %79 = vector.extract_strided_slice %11 {offsets = [0, 24], sizes = [8, 8], strides = [1, 1]} : vector<8x32xf32> to vector<8x8xf32>
    %cst_30 = arith.constant dense<0.000000e+00> : vector<8x8xf32>
    %80 = tpu.matmul %77, %78, %cst_30 {dimension_numbers = #tpu.dot_dimension_numbers<[1], [1], [0], [0], [0, 0, 1, 0], [], []>, precision = #tpu.contract_precision<fp32>} : vector<8x8xf32>, vector<8x8xf32>, vector<8x8xf32> -> vector<8x8xf32>
    %cst_31 = arith.constant 0.353553385 : f32
    %81 = vector.broadcast %cst_31 : f32 to vector<8x8xf32>
    %82 = arith.mulf %80, %81 : vector<8x8xf32>
    %83 = vector.broadcast %3 : vector<1x8xf32> to vector<8x8xf32>
    %84 = arith.addf %82, %83 : vector<8x8xf32>
    %cst_32 = arith.constant dense<0xFF800000> : vector<8xf32>
    %85 = vector.multi_reduction <maximumf>, %84, %cst_32 [1] : vector<8x8xf32> to vector<8xf32>
    %86 = vector.shape_cast %85 : vector<8xf32> to vector<8x1xf32>
    %87 = vector.broadcast %86 : vector<8x1xf32> to vector<8x8xf32>
    %88 = arith.subf %84, %87 : vector<8x8xf32>
    %89 = math.exp %88 : vector<8x8xf32>
    %cst_33 = arith.constant dense<0.000000e+00> : vector<8xf32>
    %90 = vector.multi_reduction <add>, %89, %cst_33 [1] : vector<8x8xf32> to vector<8xf32>
    %91 = vector.shape_cast %90 : vector<8xf32> to vector<8x1xf32>
    %92 = vector.broadcast %91 : vector<8x1xf32> to vector<8x8xf32>
    %93 = arith.divf %89, %92 : vector<8x8xf32>
    %cst_34 = arith.constant dense<0.000000e+00> : vector<8x8xf32>
    %94 = tpu.matmul %93, %79, %cst_34 {dimension_numbers = #tpu.dot_dimension_numbers<[1], [0], [0], [1], [0, 0, 1, 1], [], []>, precision = #tpu.contract_precision<fp32>} : vector<8x8xf32>, vector<8x8xf32>, vector<8x8xf32> -> vector<8x8xf32>
    %95 = vector.extract_strided_slice %12 {offsets = [24, 0], sizes = [8, 32], strides = [1, 1]} : vector<32x32xf32> to vector<8x32xf32>
    %cst_35 = arith.constant dense<0.000000e+00> : vector<8x32xf32>
    %96 = tpu.matmul %94, %95, %cst_35 {dimension_numbers = #tpu.dot_dimension_numbers<[1], [0], [0], [1], [0, 0, 1, 1], [], []>, precision = #tpu.contract_precision<fp32>} : vector<8x8xf32>, vector<8x32xf32>, vector<8x32xf32> -> vector<8x32xf32>
    %97 = arith.addf %76, %96 : vector<8x32xf32>
    %c0_36 = arith.constant 0 : index
    %c0_37 = arith.constant 0 : index
    %98 = vector.load %arg6[%c0_36, %c0_37] : memref<1x32xf32, #tpu.memory_space<vmem>>, vector<1x32xf32>
    %99 = vector.broadcast %98 : vector<1x32xf32> to vector<8x32xf32>
    %100 = arith.addf %97, %99 : vector<8x32xf32>
    %101 = arith.addf %100, %1 : vector<8x32xf32>
    %cst_38 = arith.constant dense<0.000000e+00> : vector<8xf32>
    %102 = vector.multi_reduction <add>, %101, %cst_38 [1] : vector<8x32xf32> to vector<8xf32>
    %103 = vector.shape_cast %102 : vector<8xf32> to vector<8x1xf32>
    %cst_39 = arith.constant 3.200000e+01 : f32
    %104 = vector.broadcast %cst_39 : f32 to vector<8x1xf32>
    %105 = arith.divf %103, %104 : vector<8x1xf32>
    %106 = vector.broadcast %105 : vector<8x1xf32> to vector<8x32xf32>
    %107 = arith.subf %101, %106 : vector<8x32xf32>
    %108 = arith.mulf %107, %107 : vector<8x32xf32>
    %cst_40 = arith.constant dense<0.000000e+00> : vector<8xf32>
    %109 = vector.multi_reduction <add>, %108, %cst_40 [1] : vector<8x32xf32> to vector<8xf32>
    %110 = vector.shape_cast %109 : vector<8xf32> to vector<8x1xf32>
    %cst_41 = arith.constant 3.200000e+01 : f32
    %111 = vector.broadcast %cst_41 : f32 to vector<8x1xf32>
    %112 = arith.divf %110, %111 : vector<8x1xf32>
    %113 = vector.broadcast %105 : vector<8x1xf32> to vector<8x32xf32>
    %114 = arith.subf %101, %113 : vector<8x32xf32>
    %cst_42 = arith.constant 9.99999996E-13 : f32
    %115 = vector.broadcast %cst_42 : f32 to vector<8x1xf32>
    %116 = arith.addf %112, %115 : vector<8x1xf32>
    %117 = math.rsqrt %116 : vector<8x1xf32>
    %118 = vector.broadcast %117 : vector<8x1xf32> to vector<8x32xf32>
    %119 = arith.mulf %114, %118 : vector<8x32xf32>
    %c0_43 = arith.constant 0 : index
    %c0_44 = arith.constant 0 : index
    %120 = vector.load %arg7[%c0_43, %c0_44] : memref<1x32xf32, #tpu.memory_space<vmem>>, vector<1x32xf32>
    %121 = vector.broadcast %120 : vector<1x32xf32> to vector<8x32xf32>
    %122 = arith.mulf %119, %121 : vector<8x32xf32>
    %c0_45 = arith.constant 0 : index
    %c0_46 = arith.constant 0 : index
    %123 = vector.load %arg8[%c0_45, %c0_46] : memref<1x32xf32, #tpu.memory_space<vmem>>, vector<1x32xf32>
    %124 = vector.broadcast %123 : vector<1x32xf32> to vector<8x32xf32>
    %125 = arith.addf %122, %124 : vector<8x32xf32>
    %c0_47 = arith.constant 0 : index
    %c0_48 = arith.constant 0 : index
    %c0_49 = arith.constant 0 : index
    %126 = vector.load %arg9[%c0_47, %c0_48, %c0_49] : memref<1x8x32xf32, #tpu.memory_space<vmem>>, vector<1x8x32xf32>
    %127 = vector.shape_cast %126 : vector<1x8x32xf32> to vector<8x32xf32>
    %128 = vector.shape_cast %125 : vector<8x32xf32> to vector<1x8x32xf32>
    tpu.vector_store %arg9[%c0_47, %c0_48, %c0_49], %128 {strides = array<i32>} : memref<1x8x32xf32, #tpu.memory_space<vmem>>, vector<1x8x32xf32>,
    return
  }
  func.func @transform_0(%arg0: i32) -> (i32, i32, i32) {
    %c0_i32 = arith.constant 0 : i32
    %c0_i32_0 = arith.constant 0 : i32
    %c0_i32_1 = arith.constant 0 : i32
    return %arg0, %c0_i32, %c0_i32_0 : i32, i32, i32
  }
  func.func @transform_1(%arg0: i32) -> (i32, i32, i32) {
    %c0_i32 = arith.constant 0 : i32
    %c0_i32_0 = arith.constant 0 : i32
    %c0_i32_1 = arith.constant 0 : i32
    return %arg0, %c0_i32, %c0_i32_0 : i32, i32, i32
  }
  func.func @transform_2(%arg0: i32) -> (i32, i32) {
    %c0_i32 = arith.constant 0 : i32
    %c0_i32_0 = arith.constant 0 : i32
    %c0_i32_1 = arith.constant 0 : i32
    return %c0_i32, %c0_i32_0 : i32, i32
  }
  func.func @transform_3(%arg0: i32) -> (i32, i32) {
    %c0_i32 = arith.constant 0 : i32
    %c0_i32_0 = arith.constant 0 : i32
    %c0_i32_1 = arith.constant 0 : i32
    return %c0_i32, %c0_i32_0 : i32, i32
  }
  func.func @transform_4(%arg0: i32) -> (i32, i32) {
    %c0_i32 = arith.constant 0 : i32
    %c0_i32_0 = arith.constant 0 : i32
    %c0_i32_1 = arith.constant 0 : i32
    return %c0_i32, %c0_i32_0 : i32, i32
  }
  func.func @transform_5(%arg0: i32) -> (i32, i32) {
    %c0_i32 = arith.constant 0 : i32
    %c0_i32_0 = arith.constant 0 : i32
    %c0_i32_1 = arith.constant 0 : i32
    return %c0_i32, %c0_i32_0 : i32, i32
  }
  func.func @transform_6(%arg0: i32) -> (i32, i32) {
    %c0_i32 = arith.constant 0 : i32
    %c0_i32_0 = arith.constant 0 : i32
    %c0_i32_1 = arith.constant 0 : i32
    return %c0_i32, %c0_i32_0 : i32, i32
  }
  func.func @transform_7(%arg0: i32) -> (i32, i32) {
    %c0_i32 = arith.constant 0 : i32
    %c0_i32_0 = arith.constant 0 : i32
    %c0_i32_1 = arith.constant 0 : i32
    return %c0_i32, %c0_i32_0 : i32, i32
  }
  func.func @transform_8(%arg0: i32) -> (i32, i32, i32) {
    %c0_i32 = arith.constant 0 : i32
    %c0_i32_0 = arith.constant 0 : i32
    %c0_i32_1 = arith.constant 0 : i32
    return %arg0, %c0_i32, %c0_i32_0 : i32, i32, i32
  }
}

</mosaic_0001>

<llo_original>
// kernel: tpu_custom_call.1
$region0: #{tpu_custom_call.1}
  #allocation0 [shape = 'u32[]', space=smem, size = 0x4, offset = 0x4, fixed_abs, tag = 'smem constant byte address 0x4 - core index']
  #allocation1 [shape = 'u32[144,128]{1,0:T(1,128)}', space=vmem, size = 0x12000, scoped, tag = 'internal scratch']
  %s0 = inlined_call_operand.hbm [shape: f32[2,8,32], index: 0, kind: input, shape index: {}]
  %s1 = inlined_call_operand.vmem [shape: f32[2,1,8], index: 1, kind: input, shape index: {}]
  %s2 = inlined_call_operand.hbm [shape: f32[32,96], index: 2, kind: input, shape index: {}]
  %s3 = inlined_call_operand.vmem [shape: f32[1,96], index: 3, kind: input, shape index: {}]
  %s4 = inlined_call_operand.hbm [shape: f32[32,32], index: 4, kind: input, shape index: {}]
  %s5 = inlined_call_operand.vmem [shape: f32[1,32], index: 5, kind: input, shape index: {}]
  %s6 = inlined_call_operand.vmem [shape: f32[1,32], index: 6, kind: input, shape index: {}]
  %s7 = inlined_call_operand.vmem [shape: f32[1,32], index: 7, kind: input, shape index: {}]
  %s8 = inlined_call_operand.hbm [shape: f32[2,8,32], index: 8, kind: output, shape index: {}]
  %s9 = sld [smem:[#allocation0]]
  $region77: #{tpu_custom_call.1} parent=0
    _
  %s11 = ssub.s32 1, %s9
  %s12 = scalar_select 0, %s11, %s9
  $region1: #{tpu_custom_call.1} parent=0
    #allocation2 [shape = 'u8[8192]{0}', space=vmem, size = 0x2000, scoped, tag = 'input window, operand 0']
    #allocation3 [shape = 's32[2]{0}', space=sflag, size = 0x8, scoped, tag = 'scoped memory for tpu_custom_call.1']
    #allocation4 [shape = 's32[2]{0}', space=sflag, size = 0x8, scoped, tag = 'scoped memory for tpu_custom_call.1']
    #allocation5 [shape = 'u8[16384]{0}', space=vmem, size = 0x4000, scoped, tag = 'input window, operand 2, single buffered']
    #allocation6 [shape = 's32[1]{0}', space=sflag, size = 0x4, scoped, tag = 'scoped memory for tpu_custom_call.1']
    #allocation7 [shape = 'u8[16384]{0}', space=vmem, size = 0x4000, scoped, tag = 'input window, operand 4, single buffered']
    #allocation8 [shape = 'u8[8192]{0}', space=vmem, size = 0x2000, scoped, tag = 'output window, operand 0']
    %13 = vsyncpa [#allocation3], 0
    %s14 = scalar_lea.sflag [#allocation3], 1
    %15 = vsyncpa %s14, 0
    %16 = vsyncpa [#allocation6], 0
    %17 = vsyncpa [#allocation4], 0
    %s18 = scalar_lea.sflag [#allocation4], 1
    %19 = vsyncpa %s18, 0
    loop: start=0, step=1, limit=4
    $region2: #{tpu_custom_call.1} parent=1 // loop_pre_header
      _
    $region3: #{tpu_custom_call.1} parent=1 // loop_header
      %s21 = sphi 0, %s25
      %p22 = scmp.ge.s32.totalorder %s21, 4
      %s31 = sphi 0, %s33
      %s34 = sphi 0, %s31
      %s35 = sphi 0, %s34
      %s51 = sphi 0, %s35
      %s57 = sphi 0, %s59
      %s60 = sphi 0, %s57
      %s61 = sphi 0, %s60
      %s77 = sphi 0, %s61
      %s81 = sphi 0, %s81
      %s83 = sphi 0, %s81
      %s84 = sphi 0, %s83
      %s98 = sphi 0, %s84
      %s102 = sphi 0, %s102
      %s104 = sphi 0, %s102
      %s105 = sphi 0, %s104
      %s119 = sphi 0, %s105
      %s123 = sphi 0, %s123
      %s125 = sphi 0, %s123
      %s126 = sphi 0, %s125
      %s140 = sphi 0, %s126
      %s144 = sphi 0, %s144
      %s146 = sphi 0, %s144
      %s147 = sphi 0, %s146
      %s161 = sphi 0, %s147
      %s165 = sphi 0, %s165
      %s167 = sphi 0, %s165
      %s168 = sphi 0, %s167
      %s182 = sphi 0, %s168
      %s186 = sphi 0, %s186
      %s188 = sphi 0, %s186
      %s189 = sphi 0, %s188
      %s203 = sphi 0, %s189
      %s209 = sphi 0, %s211
      %s212 = sphi 0, %s209
      %s213 = sphi 0, %s212
      %s229 = sphi 0, %s213
    $region4: #{tpu_custom_call.1} parent=1 // loop_header_branch
      %24 = sbr.rel (%p22) target = $region8
    $region5: #{tpu_custom_call.1} parent=1 // loop_body
      %s26 = ssub.s32 %s21, 1
      %s27 = ssub.s32 %s21, 2
      %s28 = sadd.s32 %s21, 1
      %s29 = ssub.s32 %s21, %s28
      %p30 = scmp.eq.s32.totalorder %s29, 0
      %s32 = sadd.s32 %s31, 1
      %s33 = scalar_select %p30, %s31, %s32
      %p36 = pneg %p30
      %p37 = scmp.eq.s32.totalorder %s21, 1
      %p38 = por %p36, %p37
      %p39 = scmp.ne.s32.totalorder %s31, %s34
      %p40 = scmp.eq.s32.totalorder %s21, 0
      %p41 = por %p39, %p40
      %p42 = scmp.ne.s32.totalorder %s31, %s34
      %p43 = scmp.eq.s32.totalorder %s26, 1
      %p44 = por %p42, %p43
      %p45 = scmp.ne.s32.totalorder %s34, %s35
      %p46 = scmp.eq.s32.totalorder %s26, 0
      %p47 = por %p45, %p46
      %p48 = scmp.ne.s32.totalorder %s34, %s35
      %p49 = scmp.eq.s32.totalorder %s27, 1
      %p50 = por %p48, %p49
      %p52 = scmp.ne.s32.totalorder %s35, %s51
      %p53 = scmp.eq.s32.totalorder %s27, 0
      %p54 = por %p52, %p53
      %s55 = ssub.s32 %s21, %s28
      %p56 = scmp.eq.s32.totalorder %s55, 0
      %s58 = sadd.s32 %s57, 1
      %s59 = scalar_select %p56, %s57, %s58
      %p62 = pneg %p56
      %p63 = scmp.eq.s32.totalorder %s21, 1
      %p64 = por %p62, %p63
      %p65 = scmp.ne.s32.totalorder %s57, %s60
      %p66 = scmp.eq.s32.totalorder %s21, 0
      %p67 = por %p65, %p66
      %p68 = scmp.ne.s32.totalorder %s57, %s60
      %p69 = scmp.eq.s32.totalorder %s26, 1
      %p70 = por %p68, %p69
      %p71 = scmp.ne.s32.totalorder %s60, %s61
      %p72 = scmp.eq.s32.totalorder %s26, 0
      %p73 = por %p71, %p72
      %p74 = scmp.ne.s32.totalorder %s60, %s61
      %p75 = scmp.eq.s32.totalorder %s27, 1
      %p76 = por %p74, %p75
      %p78 = scmp.ne.s32.totalorder %s61, %s77
      %p79 = scmp.eq.s32.totalorder %s27, 0
      %p80 = por %p78, %p79
      %s82 = sadd.s32 %s81, 1
      %p85 = scmp.eq.s32.totalorder %s21, 1
      %p86 = scmp.ne.s32.totalorder %s81, %s83
      %p87 = scmp.eq.s32.totalorder %s21, 0
      %p88 = por %p86, %p87
      %p89 = scmp.ne.s32.totalorder %s81, %s83
      %p90 = scmp.eq.s32.totalorder %s26, 1
      %p91 = por %p89, %p90
      %p92 = scmp.ne.s32.totalorder %s83, %s84
      %p93 = scmp.eq.s32.totalorder %s26, 0
      %p94 = por %p92, %p93
      %p95 = scmp.ne.s32.totalorder %s83, %s84
      %p96 = scmp.eq.s32.totalorder %s27, 1
      %p97 = por %p95, %p96
      %p99 = scmp.ne.s32.totalorder %s84, %s98
      %p100 = scmp.eq.s32.totalorder %s27, 0
      %p101 = por %p99, %p100
      %s103 = sadd.s32 %s102, 1
      %p106 = scmp.eq.s32.totalorder %s21, 1
      %p107 = scmp.ne.s32.totalorder %s102, %s104
      %p108 = scmp.eq.s32.totalorder %s21, 0
      %p109 = por %p107, %p108
      %p110 = scmp.ne.s32.totalorder %s102, %s104
      %p111 = scmp.eq.s32.totalorder %s26, 1
      %p112 = por %p110, %p111
      %p113 = scmp.ne.s32.totalorder %s104, %s105
      %p114 = scmp.eq.s32.totalorder %s26, 0
      %p115 = por %p113, %p114
      %p116 = scmp.ne.s32.totalorder %s104, %s105
      %p117 = scmp.eq.s32.totalorder %s27, 1
      %p118 = por %p116, %p117
      %p120 = scmp.ne.s32.totalorder %s105, %s119
      %p121 = scmp.eq.s32.totalorder %s27, 0
      %p122 = por %p120, %p121
      %s124 = sadd.s32 %s123, 1
      %p127 = scmp.eq.s32.totalorder %s21, 1
      %p128 = scmp.ne.s32.totalorder %s123, %s125
      %p129 = scmp.eq.s32.totalorder %s21, 0
      %p130 = por %p128, %p129
      %p131 = scmp.ne.s32.totalorder %s123, %s125
      %p132 = scmp.eq.s32.totalorder %s26, 1
      %p133 = por %p131, %p132
      %p134 = scmp.ne.s32.totalorder %s125, %s126
      %p135 = scmp.eq.s32.totalorder %s26, 0
      %p136 = por %p134, %p135
      %p137 = scmp.ne.s32.totalorder %s125, %s126
      %p138 = scmp.eq.s32.totalorder %s27, 1
      %p139 = por %p137, %p138
      %p141 = scmp.ne.s32.totalorder %s126, %s140
      %p142 = scmp.eq.s32.totalorder %s27, 0
      %p143 = por %p141, %p142
      %s145 = sadd.s32 %s144, 1
      %p148 = scmp.eq.s32.totalorder %s21, 1
      %p149 = scmp.ne.s32.totalorder %s144, %s146
      %p150 = scmp.eq.s32.totalorder %s21, 0
      %p151 = por %p149, %p150
      %p152 = scmp.ne.s32.totalorder %s144, %s146
      %p153 = scmp.eq.s32.totalorder %s26, 1
      %p154 = por %p152, %p153
      %p155 = scmp.ne.s32.totalorder %s146, %s147
      %p156 = scmp.eq.s32.totalorder %s26, 0
      %p157 = por %p155, %p156
      %p158 = scmp.ne.s32.totalorder %s146, %s147
      %p159 = scmp.eq.s32.totalorder %s27, 1
      %p160 = por %p158, %p159
      %p162 = scmp.ne.s32.totalorder %s147, %s161
      %p163 = scmp.eq.s32.totalorder %s27, 0
      %p164 = por %p162, %p163
      %s166 = sadd.s32 %s165, 1
      %p169 = scmp.eq.s32.totalorder %s21, 1
      %p170 = scmp.ne.s32.totalorder %s165, %s167
      %p171 = scmp.eq.s32.totalorder %s21, 0
      %p172 = por %p170, %p171
      %p173 = scmp.ne.s32.totalorder %s165, %s167
      %p174 = scmp.eq.s32.totalorder %s26, 1
      %p175 = por %p173, %p174
      %p176 = scmp.ne.s32.totalorder %s167, %s168
      %p177 = scmp.eq.s32.totalorder %s26, 0
      %p178 = por %p176, %p177
      %p179 = scmp.ne.s32.totalorder %s167, %s168
      %p180 = scmp.eq.s32.totalorder %s27, 1
      %p181 = por %p179, %p180
      %p183 = scmp.ne.s32.totalorder %s168, %s182
      %p184 = scmp.eq.s32.totalorder %s27, 0
      %p185 = por %p183, %p184
      %s187 = sadd.s32 %s186, 1
      %p190 = scmp.eq.s32.totalorder %s21, 1
      %p191 = scmp.ne.s32.totalorder %s186, %s188
      %p192 = scmp.eq.s32.totalorder %s21, 0
      %p193 = por %p191, %p192
      %p194 = scmp.ne.s32.totalorder %s186, %s188
      %p195 = scmp.eq.s32.totalorder %s26, 1
      %p196 = por %p194, %p195
      %p197 = scmp.ne.s32.totalorder %s188, %s189
      %p198 = scmp.eq.s32.totalorder %s26, 0
      %p199 = por %p197, %p198
      %p200 = scmp.ne.s32.totalorder %s188, %s189
      %p201 = scmp.eq.s32.totalorder %s27, 1
      %p202 = por %p200, %p201
      %p204 = scmp.ne.s32.totalorder %s189, %s203
      %p205 = scmp.eq.s32.totalorder %s27, 0
      %p206 = por %p204, %p205
      %s207 = ssub.s32 %s21, %s28
      %p208 = scmp.eq.s32.totalorder %s207, 0
      %s210 = sadd.s32 %s209, 1
      %s211 = scalar_select %p208, %s209, %s210
      %p214 = pneg %p208
      %p215 = scmp.eq.s32.totalorder %s21, 1
      %p216 = por %p214, %p215
      %p217 = scmp.ne.s32.totalorder %s209, %s212
      %p218 = scmp.eq.s32.totalorder %s21, 0
      %p219 = por %p217, %p218
      %p220 = scmp.ne.s32.totalorder %s209, %s212
      %p221 = scmp.eq.s32.totalorder %s26, 1
      %p222 = por %p220, %p221
      %p223 = scmp.ne.s32.totalorder %s212, %s213
      %p224 = scmp.eq.s32.totalorder %s26, 0
      %p225 = por %p223, %p224
      %p226 = scmp.ne.s32.totalorder %s212, %s213
      %p227 = scmp.eq.s32.totalorder %s27, 1
      %p228 = por %p226, %p227
      %p230 = scmp.ne.s32.totalorder %s213, %s229
      %p231 = scmp.eq.s32.totalorder %s27, 0
      %p232 = por %p230, %p231
      %p233 = scmp.le.s32.totalorder 1, %s21
      %p234 = scmp.lt.s32.totalorder %s21, 3
      %p235 = pnand %p233, %p234
      %p236 = pneg %p235
      // Predicated region
      $region9: #{tpu_custom_call.1} parent=5 // pred_check
        _
      $region10: #{tpu_custom_call.1} parent=5 // pred_check_branch
        %238 = sbr.rel (%p235) target = $region12
      $region11: #{tpu_custom_call.1} parent=5 // pred_region
        %s239 = ssub.s32 %s21, 1
        // Predicated region
        $region13: #{tpu_custom_call.1} parent=11 // pred_check
          %p240 = pneg %p94
        $region14: #{tpu_custom_call.1} parent=11 // pred_check_branch
          %242 = sbr.rel (%p240) target = $region16
        $region15: #{tpu_custom_call.1} parent=11 // pred_region
          %s244 = ssub.s32 512, 512
          %245 = vsyncadd [#allocation6], %s244
          %s246 = sshll.u32 [#allocation5], 4
          %s247 = int_to_ptr.vmem [resolvable:$true] %s246
          %252 = dma.hbm_to_vmem [thread:$0]  %s2, 512, %s247, [#allocation6], 128, 128, 8
        $region16: #{tpu_custom_call.1} parent=11 // pred_fallthru
          _
        // Predicated region
        $region17: #{tpu_custom_call.1} parent=11 // pred_check
          %p253 = pneg %p115
        $region18: #{tpu_custom_call.1} parent=11 // pred_check_branch
          %255 = sbr.rel (%p253) target = $region20
        $region19: #{tpu_custom_call.1} parent=11 // pred_region
          _
        $region20: #{tpu_custom_call.1} parent=11 // pred_fallthru
          _
        // Predicated region
        $region21: #{tpu_custom_call.1} parent=11 // pred_check
          %p256 = pneg %p136
        $region22: #{tpu_custom_call.1} parent=11 // pred_check_branch
          %258 = sbr.rel (%p256) target = $region24
        $region23: #{tpu_custom_call.1} parent=11 // pred_region
          %s260 = ssub.s32 512, 512
          %261 = vsyncadd [#allocation6], %s260
          %s262 = sshll.u32 [#allocation7], 4
          %s263 = int_to_ptr.vmem [resolvable:$true] %s262
          %268 = dma.hbm_to_vmem [thread:$0]  %s4, 512, %s263, [#allocation6], 128, 128, 8
        $region24: #{tpu_custom_call.1} parent=11 // pred_fallthru
          _
        // Predicated region
        $region25: #{tpu_custom_call.1} parent=11 // pred_check
          %p269 = pneg %p157
        $region26: #{tpu_custom_call.1} parent=11 // pred_check_branch
          %271 = sbr.rel (%p269) target = $region28
        $region27: #{tpu_custom_call.1} parent=11 // pred_region
          _
        $region28: #{tpu_custom_call.1} parent=11 // pred_fallthru
          _
        // Predicated region
        $region29: #{tpu_custom_call.1} parent=11 // pred_check
          %p272 = pneg %p178
        $region30: #{tpu_custom_call.1} parent=11 // pred_check_branch
          %274 = sbr.rel (%p272) target = $region32
        $region31: #{tpu_custom_call.1} parent=11 // pred_region
          _
        $region32: #{tpu_custom_call.1} parent=11 // pred_fallthru
          _
        // Predicated region
        $region33: #{tpu_custom_call.1} parent=11 // pred_check
          %p275 = pneg %p199
        $region34: #{tpu_custom_call.1} parent=11 // pred_check_branch
          %277 = sbr.rel (%p275) target = $region36
        $region35: #{tpu_custom_call.1} parent=11 // pred_region
          _
        $region36: #{tpu_custom_call.1} parent=11 // pred_fallthru
          _
      $region12: #{tpu_custom_call.1} parent=5 // pred_fallthru
        _
      %p278 = scmp.lt.s32.totalorder %s21, 2
      // Predicated region
      $region37: #{tpu_custom_call.1} parent=5 // pred_check
        %p279 = pneg %p278
      $region38: #{tpu_custom_call.1} parent=5 // pred_check_branch
        %281 = sbr.rel (%p279) target = $region40
      $region39: #{tpu_custom_call.1} parent=5 // pred_region
        // Predicated region
        $region41: #{tpu_custom_call.1} parent=39 // pred_check
          %p282 = pneg %p41
        $region42: #{tpu_custom_call.1} parent=39 // pred_check_branch
          %284 = sbr.rel (%p282) target = $region44
        $region43: #{tpu_custom_call.1} parent=39 // pred_region
          %s285 = sand.u32 %s31, 1
          %s286 = scalar_lea.sflag [#allocation3], %s285
          %s287 = sand.u32 %s31, 1
          %s288 = smul.addr %s287, 8
          %s289 = scalar_lea.vmem [#allocation2], %s288
          %s291 = ssub.s32 128, 128
          %292 = vsyncadd %s286, %s291
          %s293 = smul.addr %s21, 128
          %s294 = scalar_lea.hbm %s0, %s293
          %s296 = sshll.u32 %s289, 4
          %s297 = int_to_ptr.vmem [resolvable:$true] %s296
          %299 = dma.hbm_to_vmem [thread:$0]  %s294, 128, %s297, %s286
        $region44: #{tpu_custom_call.1} parent=39 // pred_fallthru
          _
        // Predicated region
        $region45: #{tpu_custom_call.1} parent=39 // pred_check
          %p300 = pneg %p67
        $region46: #{tpu_custom_call.1} parent=39 // pred_check_branch
          %302 = sbr.rel (%p300) target = $region48
        $region47: #{tpu_custom_call.1} parent=39 // pred_region
          %p303 = scmp.lt.s32.totalorder %s21, 1
          %s304 = scalar_select %p303, %s21, 1
          %s305 = scalar_lea.vmem %s1, %s304
        $region48: #{tpu_custom_call.1} parent=39 // pred_fallthru
          _
      $region40: #{tpu_custom_call.1} parent=5 // pred_fallthru
        _
      %p306 = scmp.le.s32.totalorder 1, %s21
      %p307 = scmp.lt.s32.totalorder %s21, 3
      %p308 = pnand %p306, %p307
      %p309 = pneg %p308
      // Predicated region
      $region49: #{tpu_custom_call.1} parent=5 // pred_check
        _
      $region50: #{tpu_custom_call.1} parent=5 // pred_check_branch
        %311 = sbr.rel (%p308) target = $region52
      $region51: #{tpu_custom_call.1} parent=5 // pred_region
        %s312 = ssub.s32 %s21, 1
        %s313 = sand.u32 %s34, 1
        %s314 = scalar_lea.sflag [#allocation3], %s313
        %s315 = sand.u32 %s34, 1
        %s316 = smul.addr %s315, 8
        %s317 = scalar_lea.vmem [#allocation2], %s316
        // Predicated region
        $region53: #{tpu_custom_call.1} parent=51 // pred_check
          %p318 = pneg %p47
        $region54: #{tpu_custom_call.1} parent=51 // pred_check_branch
          %320 = sbr.rel (%p318) target = $region56
        $region55: #{tpu_custom_call.1} parent=51 // pred_region
          %321 = dma.done %s314, 128
        $region56: #{tpu_custom_call.1} parent=51 // pred_fallthru
          _
        // Predicated region
        $region57: #{tpu_custom_call.1} parent=51 // pred_check
          %p322 = pneg %p94
        $region58: #{tpu_custom_call.1} parent=51 // pred_check_branch
          %324 = sbr.rel (%p322) target = $region60
        $region59: #{tpu_custom_call.1} parent=51 // pred_region
          %325 = dma.done [#allocation6], 512
        $region60: #{tpu_custom_call.1} parent=51 // pred_fallthru
          _
        // Predicated region
        $region61: #{tpu_custom_call.1} parent=51 // pred_check
          %p326 = pneg %p136
        $region62: #{tpu_custom_call.1} parent=51 // pred_check_branch
          %328 = sbr.rel (%p326) target = $region64
        $region63: #{tpu_custom_call.1} parent=51 // pred_region
          %329 = dma.done [#allocation6], 512
        $region64: #{tpu_custom_call.1} parent=51 // pred_fallthru
          _
        %s330 = sand.u32 %s34, 1
        %s331 = scalar_lea.sflag [#allocation3], %s330
        %s332 = sand.u32 %s34, 1
        %s333 = smul.addr %s332, 8
        %s334 = scalar_lea.vmem [#allocation2], %s333
        %p335 = pneg %p47
        %p336 = pneg %p44
        %p337 = scmp.lt.s32.totalorder %s26, 1
        %s338 = scalar_select %p337, %s26, 1
        %s339 = scalar_lea.vmem %s1, %s338
        %p340 = pneg %p73
        %p341 = pneg %p70
        %p342 = pneg %p94
        %p343 = pneg %p91
        %p344 = pneg %p115
        %p345 = pneg %p112
        %p346 = pneg %p136
        %p347 = pneg %p133
        %p348 = pneg %p157
        %p349 = pneg %p154
        %p350 = pneg %p178
        %p351 = pneg %p175
        %p352 = pneg %p199
        %p353 = pneg %p196
        %p354 = pneg %p225
        %p355 = pneg %p222
        %s356 = sand.u32 %s212, 1
        %s357 = scalar_lea.sflag [#allocation4], %s356
        %s358 = sand.u32 %s212, 1
        %s359 = smul.addr %s358, 8
        %s360 = scalar_lea.vmem [#allocation8], %s359
        %p361 = scmp.lt.s32.totalorder %s26, 1
        %s362 = scalar_select %p361, %s26, 1
        %s363 = scalar_lea.vmem %s1, %s362
        %v364 = vld [vmem:[%s317] sm:$0xff]
        %v365 = vld [vmem:[%s363] sm:$0x1]
        %v366 = vld [vmem:[#allocation5] sm:$0xff]
        %v367 = vld [vmem:[#allocation5 + $0x8] sm:$0xff]
        %v368 = vld [vmem:[#allocation5 + $0x10] sm:$0xff]
        %v369 = vld [vmem:[#allocation5 + $0x18] sm:$0xff]
        %v370 = vld [vmem:[%s3] sm:$0x1]
        %v372 = vlaneseq
        %v373 = vshrl.u32 %v372, 7
        %v374 = vsub.s32 0, %v373
        %v375 = vrot.slane %v370, %v374
        %vm377 = vcmask 261120
        %v379 = vsel %vm377, %v364, 0
        %381 = vmatprep.subr.mxu0 0.0
        %v382 = vand.u32 %v366, 4294901760
        %383 = vmatpush1.msra.mxu0 %v382
        %384 = vmatprep.subr.mxu0 0.0
        %v385 = vand.u32 %v367, 4294901760
        %386 = vmatpush1.msra.mxu0 %v385
        %387 = vmatprep.subr.mxu0 0.0
        %v388 = vand.u32 %v368, 4294901760
        %389 = vmatpush1.msra.mxu0 %v388
        %390 = vmatprep.subr.mxu0 0.0
        %v391 = vand.u32 %v369, 4294901760
        %392 = vmatpush1.msra.mxu0 %v391
        %393 = vmatprep.subr.mxu0 0.0
        %394 = vmatpush1.msra.mxu0 0.0
        %395 = vmatprep.subr.mxu0 0.0
        %396 = vmatpush1.msra.mxu0 0.0
        %397 = vmatprep.subr.mxu0 0.0
        %398 = vmatpush1.msra.mxu0 0.0
        %399 = vmatprep.subr.mxu0 0.0
        %400 = vmatpush1.msra.mxu0 0.0
        %401 = vmatprep.subr.mxu0 0.0
        %402 = vmatpush1.msra.mxu0 0.0
        %403 = vmatprep.subr.mxu0 0.0
        %404 = vmatpush1.msra.mxu0 0.0
        %405 = vmatprep.subr.mxu0 0.0
        %406 = vmatpush1.msra.mxu0 0.0
        %407 = vmatprep.subr.mxu0 0.0
        %408 = vmatpush1.msra.mxu0 0.0
        %409 = vmatprep.subr.mxu0 0.0
        %410 = vmatpush1.msra.mxu0 0.0
        %411 = vmatprep.subr.mxu0 0.0
        %412 = vmatpush1.msra.mxu0 0.0
        %413 = vmatprep.subr.mxu0 0.0
        %414 = vmatpush1.msra.mxu0 0.0
        %415 = vmatprep.subr.mxu0 0.0
        %416 = vmatpush1.msra.mxu0 0.0
        %417 = vmatprep.subr.mxu0 0.0
        %418 = vmatpush1.msra.mxu0 0.0
        %419 = vmatprep.subr.mxu0 0.0
        %420 = vmatpush1.msra.mxu0 0.0
        %421 = vmatprep.subr.mxu0 0.0
        %422 = vmatpush1.msra.mxu0 0.0
        %423 = vmatprep.subr.mxu0 0.0
        %424 = vmatpush1.msra.mxu0 0.0
        %425 = vmatprep.subr.mxu0 0.0
        %426 = vmatpush1.msra.mxu0 0.0
        %427 = vmatprep.subr.mxu0 0.0
        %428 = vmatpush1.msra.mxu0 0.0
        %429 = vmatprep.subr.mxu0 0.0
        %430 = vmatpush1.msra.mxu0 0.0
        %431 = vmatprep.subr.mxu0 0.0
        %432 = vmatpush1.msra.mxu0 0.0
        %433 = vmatprep.subr.mxu0 0.0
        %434 = vmatpush1.msra.mxu0 0.0
        %435 = vmatprep.subr.mxu0 0.0
        %436 = vmatpush1.msra.mxu0 0.0
        %437 = vmatprep.subr.mxu0 0.0
        %438 = vmatpush1.msra.mxu0 0.0
        %439 = vmatprep.subr.mxu0 0.0
        %440 = vmatpush1.msra.mxu0 0.0
        %441 = vmatprep.subr.mxu0 0.0
        %442 = vmatpush1.msra.mxu0 0.0
        %443 = vmatprep.subr.mxu0 0.0
        %444 = vmatpush1.msra.mxu0 0.0
        %445 = vmatprep.subr.mxu0 0.0
        %446 = vmatpush1.msra.mxu0 0.0
        %447 = vmatprep.subr.mxu0 0.0
        %448 = vmatpush1.msra.mxu0 0.0
        %449 = vmatprep.mubr.f32.mxu0 0.0
        %v450 = vand.u32 %v379, 4294901760
        %v451 = vsub.f32 %v379, %v450
        %v452 = vand.u32 %v451, 4294901760
        %v453 = vsub.f32 %v451, %v452
        %v454 = vand.u32 %v453, 4294901760
        %455 = vmatmul.mubr.f32.gmra.mrb[0].mxu0 %v454
        %v456 = vpop.f32.mrb[0].mxu0
        %v457 = vadd.f32 %v375, %v456
        %v458 = vpop.f32.mrb[0].mxu0
        %459 = vdwg.mxu0
        %460 = vmatprep.subr.mxu0 0.0
        %v461 = vand.u32 %v366, 4294901760
        %v462 = vsub.f32 %v366, %v461
        %v463 = vand.u32 %v462, 4294901760
        %v464 = vsub.f32 %v462, %v463
        %v465 = vand.u32 %v464, 4294901760
        %466 = vmatpush1.msra.mxu0 %v465
        %467 = vmatprep.subr.mxu0 0.0
        %v468 = vand.u32 %v367, 4294901760
        %v469 = vsub.f32 %v367, %v468
        %v470 = vand.u32 %v469, 4294901760
        %v471 = vsub.f32 %v469, %v470
        %v472 = vand.u32 %v471, 4294901760
        %473 = vmatpush1.msra.mxu0 %v472
        %474 = vmatprep.subr.mxu0 0.0
        %v475 = vand.u32 %v368, 4294901760
        %v476 = vsub.f32 %v368, %v475
        %v477 = vand.u32 %v476, 4294901760
        %v478 = vsub.f32 %v476, %v477
        %v479 = vand.u32 %v478, 4294901760
        %480 = vmatpush1.msra.mxu0 %v479
        %481 = vmatprep.subr.mxu0 0.0
        %v482 = vand.u32 %v369, 4294901760
        %v483 = vsub.f32 %v369, %v482
        %v484 = vand.u32 %v483, 4294901760
        %v485 = vsub.f32 %v483, %v484
        %v486 = vand.u32 %v485, 4294901760
        %487 = vmatpush1.msra.mxu0 %v486
        %488 = vmatprep.subr.mxu0 0.0
        %489 = vmatpush1.msra.mxu0 0.0
        %490 = vmatprep.subr.mxu0 0.0
        %491 = vmatpush1.msra.mxu0 0.0
        %492 = vmatprep.subr.mxu0 0.0
        %493 = vmatpush1.msra.mxu0 0.0
        %494 = vmatprep.subr.mxu0 0.0
        %495 = vmatpush1.msra.mxu0 0.0
        %496 = vmatprep.subr.mxu0 0.0
        %497 = vmatpush1.msra.mxu0 0.0
        %498 = vmatprep.subr.mxu0 0.0
        %499 = vmatpush1.msra.mxu0 0.0
        %500 = vmatprep.subr.mxu0 0.0
        %501 = vmatpush1.msra.mxu0 0.0
        %502 = vmatprep.subr.mxu0 0.0
        %503 = vmatpush1.msra.mxu0 0.0
        %504 = vmatprep.subr.mxu0 0.0
        %505 = vmatpush1.msra.mxu0 0.0
        %506 = vmatprep.subr.mxu0 0.0
        %507 = vmatpush1.msra.mxu0 0.0
        %508 = vmatprep.subr.mxu0 0.0
        %509 = vmatpush1.msra.mxu0 0.0
        %510 = vmatprep.subr.mxu0 0.0
        %511 = vmatpush1.msra.mxu0 0.0
        %512 = vmatprep.subr.mxu0 0.0
        %513 = vmatpush1.msra.mxu0 0.0
        %514 = vmatprep.subr.mxu0 0.0
        %515 = vmatpush1.msra.mxu0 0.0
        %516 = vmatprep.subr.mxu0 0.0
        %517 = vmatpush1.msra.mxu0 0.0
        %518 = vmatprep.subr.mxu0 0.0
        %519 = vmatpush1.msra.mxu0 0.0
        %520 = vmatprep.subr.mxu0 0.0
        %521 = vmatpush1.msra.mxu0 0.0
        %522 = vmatprep.subr.mxu0 0.0
        %523 = vmatpush1.msra.mxu0 0.0
        %524 = vmatprep.subr.mxu0 0.0
        %525 = vmatpush1.msra.mxu0 0.0
        %526 = vmatprep.subr.mxu0 0.0
        %527 = vmatpush1.msra.mxu0 0.0
        %528 = vmatprep.subr.mxu0 0.0
        %529 = vmatpush1.msra.mxu0 0.0
        %530 = vmatprep.subr.mxu0 0.0
        %531 = vmatpush1.msra.mxu0 0.0
        %532 = vmatprep.subr.mxu0 0.0
        %533 = vmatpush1.msra.mxu0 0.0
        %534 = vmatprep.subr.mxu0 0.0
        %535 = vmatpush1.msra.mxu0 0.0
        %536 = vmatprep.subr.mxu0 0.0
        %537 = vmatpush1.msra.mxu0 0.0
        %538 = vmatprep.subr.mxu0 0.0
        %539 = vmatpush1.msra.mxu0 0.0
        %540 = vmatprep.subr.mxu0 0.0
        %541 = vmatpush1.msra.mxu0 0.0
        %542 = vmatprep.subr.mxu0 0.0
        %543 = vmatpush1.msra.mxu0 0.0
        %544 = vmatprep.mubr.f32.mxu0 0.0
        %v545 = vand.u32 %v379, 4294901760
        %546 = vmatmul.mubr.f32.gmra.mrb[0].mxu0 %v545
        %v547 = vpop.f32.mrb[0].mxu0
        %v548 = vadd.f32 %v457, %v547
        %v549 = vpop.f32.mrb[0].mxu0
        %550 = vdwg.mxu0
        %551 = vmatprep.subr.mxu0 0.0
        %v552 = vand.u32 %v366, 4294901760
        %v553 = vsub.f32 %v366, %v552
        %554 = vmatpush1.msra.mxu0 %v553
        %555 = vmatprep.subr.mxu0 0.0
        %v556 = vand.u32 %v367, 4294901760
        %v557 = vsub.f32 %v367, %v556
        %558 = vmatpush1.msra.mxu0 %v557
        %559 = vmatprep.subr.mxu0 0.0
        %v560 = vand.u32 %v368, 4294901760
        %v561 = vsub.f32 %v368, %v560
        %562 = vmatpush1.msra.mxu0 %v561
        %563 = vmatprep.subr.mxu0 0.0
        %v564 = vand.u32 %v369, 4294901760
        %v565 = vsub.f32 %v369, %v564
        %566 = vmatpush1.msra.mxu0 %v565
        %567 = vmatprep.subr.mxu0 0.0
        %568 = vmatpush1.msra.mxu0 0.0
        %569 = vmatprep.subr.mxu0 0.0
        %570 = vmatpush1.msra.mxu0 0.0
        %571 = vmatprep.subr.mxu0 0.0
        %572 = vmatpush1.msra.mxu0 0.0
        %573 = vmatprep.subr.mxu0 0.0
        %574 = vmatpush1.msra.mxu0 0.0
        %575 = vmatprep.subr.mxu0 0.0
        %576 = vmatpush1.msra.mxu0 0.0
        %577 = vmatprep.subr.mxu0 0.0
        %578 = vmatpush1.msra.mxu0 0.0
        %579 = vmatprep.subr.mxu0 0.0
        %580 = vmatpush1.msra.mxu0 0.0
        %581 = vmatprep.subr.mxu0 0.0
        %582 = vmatpush1.msra.mxu0 0.0
        %583 = vmatprep.subr.mxu0 0.0
        %584 = vmatpush1.msra.mxu0 0.0
        %585 = vmatprep.subr.mxu0 0.0
        %586 = vmatpush1.msra.mxu0 0.0
        %587 = vmatprep.subr.mxu0 0.0
        %588 = vmatpush1.msra.mxu0 0.0
        %589 = vmatprep.subr.mxu0 0.0
        %590 = vmatpush1.msra.mxu0 0.0
        %591 = vmatprep.subr.mxu0 0.0
        %592 = vmatpush1.msra.mxu0 0.0
        %593 = vmatprep.subr.mxu0 0.0
        %594 = vmatpush1.msra.mxu0 0.0
        %595 = vmatprep.subr.mxu0 0.0
        %596 = vmatpush1.msra.mxu0 0.0
        %597 = vmatprep.subr.mxu0 0.0
        %598 = vmatpush1.msra.mxu0 0.0
        %599 = vmatprep.subr.mxu0 0.0
        %600 = vmatpush1.msra.mxu0 0.0
        %601 = vmatprep.subr.mxu0 0.0
        %602 = vmatpush1.msra.mxu0 0.0
        %603 = vmatprep.subr.mxu0 0.0
        %604 = vmatpush1.msra.mxu0 0.0
        %605 = vmatprep.subr.mxu0 0.0
        %606 = vmatpush1.msra.mxu0 0.0
        %607 = vmatprep.subr.mxu0 0.0
        %608 = vmatpush1.msra.mxu0 0.0
        %609 = vmatprep.subr.mxu0 0.0
        %610 = vmatpush1.msra.mxu0 0.0
        %611 = vmatprep.subr.mxu0 0.0
        %612 = vmatpush1.msra.mxu0 0.0
        %613 = vmatprep.subr.mxu0 0.0
        %614 = vmatpush1.msra.mxu0 0.0
        %615 = vmatprep.subr.mxu0 0.0
        %616 = vmatpush1.msra.mxu0 0.0
        %617 = vmatprep.subr.mxu0 0.0
        %618 = vmatpush1.msra.mxu0 0.0
        %619 = vmatprep.subr.mxu0 0.0
        %620 = vmatpush1.msra.mxu0 0.0
        %621 = vmatprep.subr.mxu0 0.0
        %622 = vmatpush1.msra.mxu0 0.0
        %623 = vmatprep.mubr.f32.mxu0 0.0
        %v624 = vand.u32 %v379, 4294901760
        %v625 = vsub.f32 %v379, %v624
        %626 = vmatmul.mubr.f32.gmra.mrb[0].mxu0 %v625
        %v627 = vpop.f32.mrb[0].mxu0
        %v628 = vadd.f32 %v548, %v627
        %v629 = vpop.f32.mrb[0].mxu0
        %630 = vdwg.mxu0
        %631 = vmatprep.subr.mxu0 0.0
        %v632 = vand.u32 %v366, 4294901760
        %633 = vmatpush1.msra.mxu0 %v632
        %634 = vmatprep.subr.mxu0 0.0
        %v635 = vand.u32 %v367, 4294901760
        %636 = vmatpush1.msra.mxu0 %v635
        %637 = vmatprep.subr.mxu0 0.0
        %v638 = vand.u32 %v368, 4294901760
        %639 = vmatpush1.msra.mxu0 %v638
        %640 = vmatprep.subr.mxu0 0.0
        %v641 = vand.u32 %v369, 4294901760
        %642 = vmatpush1.msra.mxu0 %v641
        %643 = vmatprep.subr.mxu0 0.0
        %644 = vmatpush1.msra.mxu0 0.0
        %645 = vmatprep.subr.mxu0 0.0
        %646 = vmatpush1.msra.mxu0 0.0
        %647 = vmatprep.subr.mxu0 0.0
        %648 = vmatpush1.msra.mxu0 0.0
        %649 = vmatprep.subr.mxu0 0.0
        %650 = vmatpush1.msra.mxu0 0.0
        %651 = vmatprep.subr.mxu0 0.0
        %652 = vmatpush1.msra.mxu0 0.0
        %653 = vmatprep.subr.mxu0 0.0
        %654 = vmatpush1.msra.mxu0 0.0
        %655 = vmatprep.subr.mxu0 0.0
        %656 = vmatpush1.msra.mxu0 0.0
        %657 = vmatprep.subr.mxu0 0.0
        %658 = vmatpush1.msra.mxu0 0.0
        %659 = vmatprep.subr.mxu0 0.0
        %660 = vmatpush1.msra.mxu0 0.0
        %661 = vmatprep.subr.mxu0 0.0
        %662 = vmatpush1.msra.mxu0 0.0
        %663 = vmatprep.subr.mxu0 0.0
        %664 = vmatpush1.msra.mxu0 0.0
        %665 = vmatprep.subr.mxu0 0.0
        %666 = vmatpush1.msra.mxu0 0.0
        %667 = vmatprep.subr.mxu0 0.0
        %668 = vmatpush1.msra.mxu0 0.0
        %669 = vmatprep.subr.mxu0 0.0
        %670 = vmatpush1.msra.mxu0 0.0
        %671 = vmatprep.subr.mxu0 0.0
        %672 = vmatpush1.msra.mxu0 0.0
        %673 = vmatprep.subr.mxu0 0.0
        %674 = vmatpush1.msra.mxu0 0.0
        %675 = vmatprep.subr.mxu0 0.0
        %676 = vmatpush1.msra.mxu0 0.0
        %677 = vmatprep.subr.mxu0 0.0
        %678 = vmatpush1.msra.mxu0 0.0
        %679 = vmatprep.subr.mxu0 0.0
        %680 = vmatpush1.msra.mxu0 0.0
        %681 = vmatprep.subr.mxu0 0.0
        %682 = vmatpush1.msra.mxu0 0.0
        %683 = vmatprep.subr.mxu0 0.0
        %684 = vmatpush1.msra.mxu0 0.0
        %685 = vmatprep.subr.mxu0 0.0
        %686 = vmatpush1.msra.mxu0 0.0
        %687 = vmatprep.subr.mxu0 0.0
        %688 = vmatpush1.msra.mxu0 0.0
        %689 = vmatprep.subr.mxu0 0.0
        %690 = vmatpush1.msra.mxu0 0.0
        %691 = vmatprep.subr.mxu0 0.0
        %692 = vmatpush1.msra.mxu0 0.0
        %693 = vmatprep.subr.mxu0 0.0
        %694 = vmatpush1.msra.mxu0 0.0
        %695 = vmatprep.subr.mxu0 0.0
        %696 = vmatpush1.msra.mxu0 0.0
        %697 = vmatprep.subr.mxu0 0.0
        %698 = vmatpush1.msra.mxu0 0.0
        %699 = vmatprep.mubr.f32.mxu0 0.0
        %v700 = vand.u32 %v379, 4294901760
        %v701 = vsub.f32 %v379, %v700
        %v702 = vand.u32 %v701, 4294901760
        %703 = vmatmul.mubr.f32.gmra.mrb[0].mxu0 %v702
        %v704 = vpop.f32.mrb[0].mxu0
        %v705 = vadd.f32 %v628, %v704
        %v706 = vpop.f32.mrb[0].mxu0
        %707 = vdwg.mxu0
        %708 = vmatprep.subr.mxu0 0.0
        %v709 = vand.u32 %v366, 4294901760
        %v710 = vsub.f32 %v366, %v709
        %v711 = vand.u32 %v710, 4294901760
        %712 = vmatpush1.msra.mxu0 %v711
        %713 = vmatprep.subr.mxu0 0.0
        %v714 = vand.u32 %v367, 4294901760
        %v715 = vsub.f32 %v367, %v714
        %v716 = vand.u32 %v715, 4294901760
        %717 = vmatpush1.msra.mxu0 %v716
        %718 = vmatprep.subr.mxu0 0.0
        %v719 = vand.u32 %v368, 4294901760
        %v720 = vsub.f32 %v368, %v719
        %v721 = vand.u32 %v720, 4294901760
        %722 = vmatpush1.msra.mxu0 %v721
        %723 = vmatprep.subr.mxu0 0.0
        %v724 = vand.u32 %v369, 4294901760
        %v725 = vsub.f32 %v369, %v724
        %v726 = vand.u32 %v725, 4294901760
        %727 = vmatpush1.msra.mxu0 %v726
        %728 = vmatprep.subr.mxu0 0.0
        %729 = vmatpush1.msra.mxu0 0.0
        %730 = vmatprep.subr.mxu0 0.0
        %731 = vmatpush1.msra.mxu0 0.0
        %732 = vmatprep.subr.mxu0 0.0
        %733 = vmatpush1.msra.mxu0 0.0
        %734 = vmatprep.subr.mxu0 0.0
        %735 = vmatpush1.msra.mxu0 0.0
        %736 = vmatprep.subr.mxu0 0.0
        %737 = vmatpush1.msra.mxu0 0.0
        %738 = vmatprep.subr.mxu0 0.0
        %739 = vmatpush1.msra.mxu0 0.0
        %740 = vmatprep.subr.mxu0 0.0
        %741 = vmatpush1.msra.mxu0 0.0
        %742 = vmatprep.subr.mxu0 0.0
        %743 = vmatpush1.msra.mxu0 0.0
        %744 = vmatprep.subr.mxu0 0.0
        %745 = vmatpush1.msra.mxu0 0.0
        %746 = vmatprep.subr.mxu0 0.0
        %747 = vmatpush1.msra.mxu0 0.0
        %748 = vmatprep.subr.mxu0 0.0
        %749 = vmatpush1.msra.mxu0 0.0
        %750 = vmatprep.subr.mxu0 0.0
        %751 = vmatpush1.msra.mxu0 0.0
        %752 = vmatprep.subr.mxu0 0.0
        %753 = vmatpush1.msra.mxu0 0.0
        %754 = vmatprep.subr.mxu0 0.0
        %755 = vmatpush1.msra.mxu0 0.0
        %756 = vmatprep.subr.mxu0 0.0
        %757 = vmatpush1.msra.mxu0 0.0
        %758 = vmatprep.subr.mxu0 0.0
        %759 = vmatpush1.msra.mxu0 0.0
        %760 = vmatprep.subr.mxu0 0.0
        %761 = vmatpush1.msra.mxu0 0.0
        %762 = vmatprep.subr.mxu0 0.0
        %763 = vmatpush1.msra.mxu0 0.0
        %764 = vmatprep.subr.mxu0 0.0
        %765 = vmatpush1.msra.mxu0 0.0
        %766 = vmatprep.subr.mxu0 0.0
        %767 = vmatpush1.msra.mxu0 0.0
        %768 = vmatprep.subr.mxu0 0.0
        %769 = vmatpush1.msra.mxu0 0.0
        %770 = vmatprep.subr.mxu0 0.0
        %771 = vmatpush1.msra.mxu0 0.0
        %772 = vmatprep.subr.mxu0 0.0
        %773 = vmatpush1.msra.mxu0 0.0
        %774 = vmatprep.subr.mxu0 0.0
        %775 = vmatpush1.msra.mxu0 0.0
        %776 = vmatprep.subr.mxu0 0.0
        %777 = vmatpush1.msra.mxu0 0.0
        %778 = vmatprep.subr.mxu0 0.0
        %779 = vmatpush1.msra.mxu0 0.0
        %780 = vmatprep.subr.mxu0 0.0
        %781 = vmatpush1.msra.mxu0 0.0
        %782 = vmatprep.subr.mxu0 0.0
        %783 = vmatpush1.msra.mxu0 0.0
        %784 = vmatprep.mubr.f32.mxu0 0.0
        %v785 = vand.u32 %v379, 4294901760
        %786 = vmatmul.mubr.f32.gmra.mrb[0].mxu0 %v785
        %v787 = vpop.f32.mrb[0].mxu0
        %v788 = vadd.f32 %v705, %v787
        %v789 = vpop.f32.mrb[0].mxu0
        %790 = vdwg.mxu0
        %791 = vmatprep.subr.mxu0 0.0
        %v792 = vand.u32 %v366, 4294901760
        %793 = vmatpush1.msra.mxu0 %v792
        %794 = vmatprep.subr.mxu0 0.0
        %v795 = vand.u32 %v367, 4294901760
        %796 = vmatpush1.msra.mxu0 %v795
        %797 = vmatprep.subr.mxu0 0.0
        %v798 = vand.u32 %v368, 4294901760
        %799 = vmatpush1.msra.mxu0 %v798
        %800 = vmatprep.subr.mxu0 0.0
        %v801 = vand.u32 %v369, 4294901760
        %802 = vmatpush1.msra.mxu0 %v801
        %803 = vmatprep.subr.mxu0 0.0
        %804 = vmatpush1.msra.mxu0 0.0
        %805 = vmatprep.subr.mxu0 0.0
        %806 = vmatpush1.msra.mxu0 0.0
        %807 = vmatprep.subr.mxu0 0.0
        %808 = vmatpush1.msra.mxu0 0.0
        %809 = vmatprep.subr.mxu0 0.0
        %810 = vmatpush1.msra.mxu0 0.0
        %811 = vmatprep.subr.mxu0 0.0
        %812 = vmatpush1.msra.mxu0 0.0
        %813 = vmatprep.subr.mxu0 0.0
        %814 = vmatpush1.msra.mxu0 0.0
        %815 = vmatprep.subr.mxu0 0.0
        %816 = vmatpush1.msra.mxu0 0.0
        %817 = vmatprep.subr.mxu0 0.0
        %818 = vmatpush1.msra.mxu0 0.0
        %819 = vmatprep.subr.mxu0 0.0
        %820 = vmatpush1.msra.mxu0 0.0
        %821 = vmatprep.subr.mxu0 0.0
        %822 = vmatpush1.msra.mxu0 0.0
        %823 = vmatprep.subr.mxu0 0.0
        %824 = vmatpush1.msra.mxu0 0.0
        %825 = vmatprep.subr.mxu0 0.0
        %826 = vmatpush1.msra.mxu0 0.0
        %827 = vmatprep.subr.mxu0 0.0
        %828 = vmatpush1.msra.mxu0 0.0
        %829 = vmatprep.subr.mxu0 0.0
        %830 = vmatpush1.msra.mxu0 0.0
        %831 = vmatprep.subr.mxu0 0.0
        %832 = vmatpush1.msra.mxu0 0.0
        %833 = vmatprep.subr.mxu0 0.0
        %834 = vmatpush1.msra.mxu0 0.0
        %835 = vmatprep.subr.mxu0 0.0
        %836 = vmatpush1.msra.mxu0 0.0
        %837 = vmatprep.subr.mxu0 0.0
        %838 = vmatpush1.msra.mxu0 0.0
        %839 = vmatprep.subr.mxu0 0.0
        %840 = vmatpush1.msra.mxu0 0.0
        %841 = vmatprep.subr.mxu0 0.0
        %842 = vmatpush1.msra.mxu0 0.0
        %843 = vmatprep.subr.mxu0 0.0
        %844 = vmatpush1.msra.mxu0 0.0
        %845 = vmatprep.subr.mxu0 0.0
        %846 = vmatpush1.msra.mxu0 0.0
        %847 = vmatprep.subr.mxu0 0.0
        %848 = vmatpush1.msra.mxu0 0.0
        %849 = vmatprep.subr.mxu0 0.0
        %850 = vmatpush1.msra.mxu0 0.0
        %851 = vmatprep.subr.mxu0 0.0
        %852 = vmatpush1.msra.mxu0 0.0
        %853 = vmatprep.subr.mxu0 0.0
        %854 = vmatpush1.msra.mxu0 0.0
        %855 = vmatprep.subr.mxu0 0.0
        %856 = vmatpush1.msra.mxu0 0.0
        %857 = vmatprep.subr.mxu0 0.0
        %858 = vmatpush1.msra.mxu0 0.0
        %859 = vmatprep.mubr.f32.mxu0 0.0
        %v860 = vand.u32 %v379, 4294901760
        %861 = vmatmul.mubr.f32.gmra.mrb[0].mxu0 %v860
        %v862 = vpop.f32.mrb[0].mxu0
        %v863 = vadd.f32 %v788, %v862
        %v864 = vpop.f32.mrb[0].mxu0
        %865 = vdwg.mxu0
        %v866 = vld [vmem:[#allocation7] sm:$0xff]
        %v867 = vld [vmem:[#allocation7 + $0x8] sm:$0xff]
        %v868 = vld [vmem:[#allocation7 + $0x10] sm:$0xff]
        %v869 = vld [vmem:[#allocation7 + $0x18] sm:$0xff]
        %871 = vrot.lane.b32.xlu0 %v863, 96
        %v872 = vpop.permute.xlu0 %871
        %vm873 = vcmask 64512
        %v874 = vsel %vm873, %v863, 0
        %v876 = vsel %vm873, %v872, 0
        %878 = vmatprep.subr.mxu0 0.0
        %v879 = vand.u32 %v876, 4294901760
        %880 = vmatpush1.xpose.msra.mxu0 %v879
        %881 = vmatprep.subr.mxu0 0.0
        %882 = vmatpush1.xpose.msra.mxu0 0.0
        %883 = vmatprep.subr.mxu0 0.0
        %884 = vmatpush1.xpose.msra.mxu0 0.0
        %885 = vmatprep.subr.mxu0 0.0
        %886 = vmatpush1.xpose.msra.mxu0 0.0
        %887 = vmatprep.subr.mxu0 0.0
        %888 = vmatpush1.xpose.msra.mxu0 0.0
        %889 = vmatprep.subr.mxu0 0.0
        %890 = vmatpush1.xpose.msra.mxu0 0.0
        %891 = vmatprep.subr.mxu0 0.0
        %892 = vmatpush1.xpose.msra.mxu0 0.0
        %893 = vmatprep.subr.mxu0 0.0
        %894 = vmatpush1.xpose.msra.mxu0 0.0
        %895 = vmatprep.subr.mxu0 0.0
        %896 = vmatpush1.xpose.msra.mxu0 0.0
        %897 = vmatprep.subr.mxu0 0.0
        %898 = vmatpush1.xpose.msra.mxu0 0.0
        %899 = vmatprep.subr.mxu0 0.0
        %900 = vmatpush1.xpose.msra.mxu0 0.0
        %901 = vmatprep.subr.mxu0 0.0
        %902 = vmatpush1.xpose.msra.mxu0 0.0
        %903 = vmatprep.subr.mxu0 0.0
        %904 = vmatpush1.xpose.msra.mxu0 0.0
        %905 = vmatprep.subr.mxu0 0.0
        %906 = vmatpush1.xpose.msra.mxu0 0.0
        %907 = vmatprep.subr.mxu0 0.0
        %908 = vmatpush1.xpose.msra.mxu0 0.0
        %909 = vmatprep.subr.mxu0 0.0
        %910 = vmatpush1.xpose.msra.mxu0 0.0
        %911 = vmatprep.subr.mxu0 0.0
        %912 = vmatpush1.xpose.msra.mxu0 0.0
        %913 = vmatprep.subr.mxu0 0.0
        %914 = vmatpush1.xpose.msra.mxu0 0.0
        %915 = vmatprep.subr.mxu0 0.0
        %916 = vmatpush1.xpose.msra.mxu0 0.0
        %917 = vmatprep.subr.mxu0 0.0
        %918 = vmatpush1.xpose.msra.mxu0 0.0
        %919 = vmatprep.subr.mxu0 0.0
        %920 = vmatpush1.xpose.msra.mxu0 0.0
        %921 = vmatprep.subr.mxu0 0.0
        %922 = vmatpush1.xpose.msra.mxu0 0.0
        %923 = vmatprep.subr.mxu0 0.0
        %924 = vmatpush1.xpose.msra.mxu0 0.0
        %925 = vmatprep.subr.mxu0 0.0
        %926 = vmatpush1.xpose.msra.mxu0 0.0
        %927 = vmatprep.subr.mxu0 0.0
        %928 = vmatpush1.xpose.msra.mxu0 0.0
        %929 = vmatprep.subr.mxu0 0.0
        %930 = vmatpush1.xpose.msra.mxu0 0.0
        %931 = vmatprep.subr.mxu0 0.0
        %932 = vmatpush1.xpose.msra.mxu0 0.0
        %933 = vmatprep.subr.mxu0 0.0
        %934 = vmatpush1.xpose.msra.mxu0 0.0
        %935 = vmatprep.subr.mxu0 0.0
        %936 = vmatpush1.xpose.msra.mxu0 0.0
        %937 = vmatprep.subr.mxu0 0.0
        %938 = vmatpush1.xpose.msra.mxu0 0.0
        %939 = vmatprep.subr.mxu0 0.0
        %940 = vmatpush1.xpose.msra.mxu0 0.0
        %941 = vmatprep.subr.mxu0 0.0
        %942 = vmatpush1.xpose.msra.mxu0 0.0
        %943 = vmatprep.mubr.f32.mxu0 0.0
        %v944 = vand.u32 %v874, 4294901760
        %v945 = vsub.f32 %v874, %v944
        %v946 = vand.u32 %v945, 4294901760
        %v947 = vsub.f32 %v945, %v946
        %v948 = vand.u32 %v947, 4294901760
        %949 = vmatmul.mubr.f32.gmra.mrb[0].mxu0 %v948
        %v950 = vpop.f32.mrb[0].mxu0
        %v951 = vadd.f32 0.0, %v950
        %v952 = vpop.f32.mrb[0].mxu0
        %953 = vdwg.mxu0
        %954 = vmatprep.subr.mxu0 0.0
        %v955 = vand.u32 %v876, 4294901760
        %v956 = vsub.f32 %v876, %v955
        %v957 = vand.u32 %v956, 4294901760
        %v958 = vsub.f32 %v956, %v957
        %v959 = vand.u32 %v958, 4294901760
        %960 = vmatpush1.xpose.msra.mxu0 %v959
        %961 = vmatprep.subr.mxu0 0.0
        %962 = vmatpush1.xpose.msra.mxu0 0.0
        %963 = vmatprep.subr.mxu0 0.0
        %964 = vmatpush1.xpose.msra.mxu0 0.0
        %965 = vmatprep.subr.mxu0 0.0
        %966 = vmatpush1.xpose.msra.mxu0 0.0
        %967 = vmatprep.subr.mxu0 0.0
        %968 = vmatpush1.xpose.msra.mxu0 0.0
        %969 = vmatprep.subr.mxu0 0.0
        %970 = vmatpush1.xpose.msra.mxu0 0.0
        %971 = vmatprep.subr.mxu0 0.0
        %972 = vmatpush1.xpose.msra.mxu0 0.0
        %973 = vmatprep.subr.mxu0 0.0
        %974 = vmatpush1.xpose.msra.mxu0 0.0
        %975 = vmatprep.subr.mxu0 0.0
        %976 = vmatpush1.xpose.msra.mxu0 0.0
        %977 = vmatprep.subr.mxu0 0.0
        %978 = vmatpush1.xpose.msra.mxu0 0.0
        %979 = vmatprep.subr.mxu0 0.0
        %980 = vmatpush1.xpose.msra.mxu0 0.0
        %981 = vmatprep.subr.mxu0 0.0
        %982 = vmatpush1.xpose.msra.mxu0 0.0
        %983 = vmatprep.subr.mxu0 0.0
        %984 = vmatpush1.xpose.msra.mxu0 0.0
        %985 = vmatprep.subr.mxu0 0.0
        %986 = vmatpush1.xpose.msra.mxu0 0.0
        %987 = vmatprep.subr.mxu0 0.0
        %988 = vmatpush1.xpose.msra.mxu0 0.0
        %989 = vmatprep.subr.mxu0 0.0
        %990 = vmatpush1.xpose.msra.mxu0 0.0
        %991 = vmatprep.subr.mxu0 0.0
        %992 = vmatpush1.xpose.msra.mxu0 0.0
        %993 = vmatprep.subr.mxu0 0.0
        %994 = vmatpush1.xpose.msra.mxu0 0.0
        %995 = vmatprep.subr.mxu0 0.0
        %996 = vmatpush1.xpose.msra.mxu0 0.0
        %997 = vmatprep.subr.mxu0 0.0
        %998 = vmatpush1.xpose.msra.mxu0 0.0
        %999 = vmatprep.subr.mxu0 0.0
        %1000 = vmatpush1.xpose.msra.mxu0 0.0
        %1001 = vmatprep.subr.mxu0 0.0
        %1002 = vmatpush1.xpose.msra.mxu0 0.0
        %1003 = vmatprep.subr.mxu0 0.0
        %1004 = vmatpush1.xpose.msra.mxu0 0.0
        %1005 = vmatprep.subr.mxu0 0.0
        %1006 = vmatpush1.xpose.msra.mxu0 0.0
        %1007 = vmatprep.subr.mxu0 0.0
        %1008 = vmatpush1.xpose.msra.mxu0 0.0
        %1009 = vmatprep.subr.mxu0 0.0
        %1010 = vmatpush1.xpose.msra.mxu0 0.0
        %1011 = vmatprep.subr.mxu0 0.0
        %1012 = vmatpush1.xpose.msra.mxu0 0.0
        %1013 = vmatprep.subr.mxu0 0.0
        %1014 = vmatpush1.xpose.msra.mxu0 0.0
        %1015 = vmatprep.subr.mxu0 0.0
        %1016 = vmatpush1.xpose.msra.mxu0 0.0
        %1017 = vmatprep.subr.mxu0 0.0
        %1018 = vmatpush1.xpose.msra.mxu0 0.0
        %1019 = vmatprep.subr.mxu0 0.0
        %1020 = vmatpush1.xpose.msra.mxu0 0.0
        %1021 = vmatprep.subr.mxu0 0.0
        %1022 = vmatpush1.xpose.msra.mxu0 0.0
        %1023 = vmatprep.mubr.f32.mxu0 0.0
        %v1024 = vand.u32 %v874, 4294901760
        %1025 = vmatmul.mubr.f32.gmra.mrb[0].mxu0 %v1024
        %v1026 = vpop.f32.mrb[0].mxu0
        %v1027 = vadd.f32 %v951, %v1026
        %v1028 = vpop.f32.mrb[0].mxu0
        %1029 = vdwg.mxu0
        %1030 = vmatprep.subr.mxu0 0.0
        %v1031 = vand.u32 %v876, 4294901760
        %v1032 = vsub.f32 %v876, %v1031
        %1033 = vmatpush1.xpose.msra.mxu0 %v1032
        %1034 = vmatprep.subr.mxu0 0.0
        %1035 = vmatpush1.xpose.msra.mxu0 0.0
        %1036 = vmatprep.subr.mxu0 0.0
        %1037 = vmatpush1.xpose.msra.mxu0 0.0
        %1038 = vmatprep.subr.mxu0 0.0
        %1039 = vmatpush1.xpose.msra.mxu0 0.0
        %1040 = vmatprep.subr.mxu0 0.0
        %1041 = vmatpush1.xpose.msra.mxu0 0.0
        %1042 = vmatprep.subr.mxu0 0.0
        %1043 = vmatpush1.xpose.msra.mxu0 0.0
        %1044 = vmatprep.subr.mxu0 0.0
        %1045 = vmatpush1.xpose.msra.mxu0 0.0
        %1046 = vmatprep.subr.mxu0 0.0
        %1047 = vmatpush1.xpose.msra.mxu0 0.0
        %1048 = vmatprep.subr.mxu0 0.0
        %1049 = vmatpush1.xpose.msra.mxu0 0.0
        %1050 = vmatprep.subr.mxu0 0.0
        %1051 = vmatpush1.xpose.msra.mxu0 0.0
        %1052 = vmatprep.subr.mxu0 0.0
        %1053 = vmatpush1.xpose.msra.mxu0 0.0
        %1054 = vmatprep.subr.mxu0 0.0
        %1055 = vmatpush1.xpose.msra.mxu0 0.0
        %1056 = vmatprep.subr.mxu0 0.0
        %1057 = vmatpush1.xpose.msra.mxu0 0.0
        %1058 = vmatprep.subr.mxu0 0.0
        %1059 = vmatpush1.xpose.msra.mxu0 0.0
        %1060 = vmatprep.subr.mxu0 0.0
        %1061 = vmatpush1.xpose.msra.mxu0 0.0
        %1062 = vmatprep.subr.mxu0 0.0
        %1063 = vmatpush1.xpose.msra.mxu0 0.0
        %1064 = vmatprep.subr.mxu0 0.0
        %1065 = vmatpush1.xpose.msra.mxu0 0.0
        %1066 = vmatprep.subr.mxu0 0.0
        %1067 = vmatpush1.xpose.msra.mxu0 0.0
        %1068 = vmatprep.subr.mxu0 0.0
        %1069 = vmatpush1.xpose.msra.mxu0 0.0
        %1070 = vmatprep.subr.mxu0 0.0
        %1071 = vmatpush1.xpose.msra.mxu0 0.0
        %1072 = vmatprep.subr.mxu0 0.0
        %1073 = vmatpush1.xpose.msra.mxu0 0.0
        %1074 = vmatprep.subr.mxu0 0.0
        %1075 = vmatpush1.xpose.msra.mxu0 0.0
        %1076 = vmatprep.subr.mxu0 0.0
        %1077 = vmatpush1.xpose.msra.mxu0 0.0
        %1078 = vmatprep.subr.mxu0 0.0
        %1079 = vmatpush1.xpose.msra.mxu0 0.0
        %1080 = vmatprep.subr.mxu0 0.0
        %1081 = vmatpush1.xpose.msra.mxu0 0.0
        %1082 = vmatprep.subr.mxu0 0.0
        %1083 = vmatpush1.xpose.msra.mxu0 0.0
        %1084 = vmatprep.subr.mxu0 0.0
        %1085 = vmatpush1.xpose.msra.mxu0 0.0
        %1086 = vmatprep.subr.mxu0 0.0
        %1087 = vmatpush1.xpose.msra.mxu0 0.0
        %1088 = vmatprep.subr.mxu0 0.0
        %1089 = vmatpush1.xpose.msra.mxu0 0.0
        %1090 = vmatprep.subr.mxu0 0.0
        %1091 = vmatpush1.xpose.msra.mxu0 0.0
        %1092 = vmatprep.subr.mxu0 0.0
        %1093 = vmatpush1.xpose.msra.mxu0 0.0
        %1094 = vmatprep.subr.mxu0 0.0
        %1095 = vmatpush1.xpose.msra.mxu0 0.0
        %1096 = vmatprep.mubr.f32.mxu0 0.0
        %v1097 = vand.u32 %v874, 4294901760
        %v1098 = vsub.f32 %v874, %v1097
        %1099 = vmatmul.mubr.f32.gmra.mrb[0].mxu0 %v1098
        %v1100 = vpop.f32.mrb[0].mxu0
        %v1101 = vadd.f32 %v1027, %v1100
        %v1102 = vpop.f32.mrb[0].mxu0
        %1103 = vdwg.mxu0
        %1104 = vmatprep.subr.mxu0 0.0
        %v1105 = vand.u32 %v876, 4294901760
        %1106 = vmatpush1.xpose.msra.mxu0 %v1105
        %1107 = vmatprep.subr.mxu0 0.0
        %1108 = vmatpush1.xpose.msra.mxu0 0.0
        %1109 = vmatprep.subr.mxu0 0.0
        %1110 = vmatpush1.xpose.msra.mxu0 0.0
        %1111 = vmatprep.subr.mxu0 0.0
        %1112 = vmatpush1.xpose.msra.mxu0 0.0
        %1113 = vmatprep.subr.mxu0 0.0
        %1114 = vmatpush1.xpose.msra.mxu0 0.0
        %1115 = vmatprep.subr.mxu0 0.0
        %1116 = vmatpush1.xpose.msra.mxu0 0.0
        %1117 = vmatprep.subr.mxu0 0.0
        %1118 = vmatpush1.xpose.msra.mxu0 0.0
        %1119 = vmatprep.subr.mxu0 0.0
        %1120 = vmatpush1.xpose.msra.mxu0 0.0
        %1121 = vmatprep.subr.mxu0 0.0
        %1122 = vmatpush1.xpose.msra.mxu0 0.0
        %1123 = vmatprep.subr.mxu0 0.0
        %1124 = vmatpush1.xpose.msra.mxu0 0.0
        %1125 = vmatprep.subr.mxu0 0.0
        %1126 = vmatpush1.xpose.msra.mxu0 0.0
        %1127 = vmatprep.subr.mxu0 0.0
        %1128 = vmatpush1.xpose.msra.mxu0 0.0
        %1129 = vmatprep.subr.mxu0 0.0
        %1130 = vmatpush1.xpose.msra.mxu0 0.0
        %1131 = vmatprep.subr.mxu0 0.0
        %1132 = vmatpush1.xpose.msra.mxu0 0.0
        %1133 = vmatprep.subr.mxu0 0.0
        %1134 = vmatpush1.xpose.msra.mxu0 0.0
        %1135 = vmatprep.subr.mxu0 0.0
        %1136 = vmatpush1.xpose.msra.mxu0 0.0
        %1137 = vmatprep.subr.mxu0 0.0
        %1138 = vmatpush1.xpose.msra.mxu0 0.0
        %1139 = vmatprep.subr.mxu0 0.0
        %1140 = vmatpush1.xpose.msra.mxu0 0.0
        %1141 = vmatprep.subr.mxu0 0.0
        %1142 = vmatpush1.xpose.msra.mxu0 0.0
        %1143 = vmatprep.subr.mxu0 0.0
        %1144 = vmatpush1.xpose.msra.mxu0 0.0
        %1145 = vmatprep.subr.mxu0 0.0
        %1146 = vmatpush1.xpose.msra.mxu0 0.0
        %1147 = vmatprep.subr.mxu0 0.0
        %1148 = vmatpush1.xpose.msra.mxu0 0.0
        %1149 = vmatprep.subr.mxu0 0.0
        %1150 = vmatpush1.xpose.msra.mxu0 0.0
        %1151 = vmatprep.subr.mxu0 0.0
        %1152 = vmatpush1.xpose.msra.mxu0 0.0
        %1153 = vmatprep.subr.mxu0 0.0
        %1154 = vmatpush1.xpose.msra.mxu0 0.0
        %1155 = vmatprep.subr.mxu0 0.0
        %1156 = vmatpush1.xpose.msra.mxu0 0.0
        %1157 = vmatprep.subr.mxu0 0.0
        %1158 = vmatpush1.xpose.msra.mxu0 0.0
        %1159 = vmatprep.subr.mxu0 0.0
        %1160 = vmatpush1.xpose.msra.mxu0 0.0
        %1161 = vmatprep.subr.mxu0 0.0
        %1162 = vmatpush1.xpose.msra.mxu0 0.0
        %1163 = vmatprep.subr.mxu0 0.0
        %1164 = vmatpush1.xpose.msra.mxu0 0.0
        %1165 = vmatprep.subr.mxu0 0.0
        %1166 = vmatpush1.xpose.msra.mxu0 0.0
        %1167 = vmatprep.subr.mxu0 0.0
        %1168 = vmatpush1.xpose.msra.mxu0 0.0
        %1169 = vmatprep.mubr.f32.mxu0 0.0
        %v1170 = vand.u32 %v874, 4294901760
        %v1171 = vsub.f32 %v874, %v1170
        %v1172 = vand.u32 %v1171, 4294901760
        %1173 = vmatmul.mubr.f32.gmra.mrb[0].mxu0 %v1172
        %v1174 = vpop.f32.mrb[0].mxu0
        %v1175 = vadd.f32 %v1101, %v1174
        %v1176 = vpop.f32.mrb[0].mxu0
        %1177 = vdwg.mxu0
        %1178 = vmatprep.subr.mxu0 0.0
        %v1179 = vand.u32 %v876, 4294901760
        %v1180 = vsub.f32 %v876, %v1179
        %v1181 = vand.u32 %v1180, 4294901760
        %1182 = vmatpush1.xpose.msra.mxu0 %v1181
        %1183 = vmatprep.subr.mxu0 0.0
        %1184 = vmatpush1.xpose.msra.mxu0 0.0
        %1185 = vmatprep.subr.mxu0 0.0
        %1186 = vmatpush1.xpose.msra.mxu0 0.0
        %1187 = vmatprep.subr.mxu0 0.0
        %1188 = vmatpush1.xpose.msra.mxu0 0.0
        %1189 = vmatprep.subr.mxu0 0.0
        %1190 = vmatpush1.xpose.msra.mxu0 0.0
        %1191 = vmatprep.subr.mxu0 0.0
        %1192 = vmatpush1.xpose.msra.mxu0 0.0
        %1193 = vmatprep.subr.mxu0 0.0
        %1194 = vmatpush1.xpose.msra.mxu0 0.0
        %1195 = vmatprep.subr.mxu0 0.0
        %1196 = vmatpush1.xpose.msra.mxu0 0.0
        %1197 = vmatprep.subr.mxu0 0.0
        %1198 = vmatpush1.xpose.msra.mxu0 0.0
        %1199 = vmatprep.subr.mxu0 0.0
        %1200 = vmatpush1.xpose.msra.mxu0 0.0
        %1201 = vmatprep.subr.mxu0 0.0
        %1202 = vmatpush1.xpose.msra.mxu0 0.0
        %1203 = vmatprep.subr.mxu0 0.0
        %1204 = vmatpush1.xpose.msra.mxu0 0.0
        %1205 = vmatprep.subr.mxu0 0.0
        %1206 = vmatpush1.xpose.msra.mxu0 0.0
        %1207 = vmatprep.subr.mxu0 0.0
        %1208 = vmatpush1.xpose.msra.mxu0 0.0
        %1209 = vmatprep.subr.mxu0 0.0
        %1210 = vmatpush1.xpose.msra.mxu0 0.0
        %1211 = vmatprep.subr.mxu0 0.0
        %1212 = vmatpush1.xpose.msra.mxu0 0.0
        %1213 = vmatprep.subr.mxu0 0.0
        %1214 = vmatpush1.xpose.msra.mxu0 0.0
        %1215 = vmatprep.subr.mxu0 0.0
        %1216 = vmatpush1.xpose.msra.mxu0 0.0
        %1217 = vmatprep.subr.mxu0 0.0
        %1218 = vmatpush1.xpose.msra.mxu0 0.0
        %1219 = vmatprep.subr.mxu0 0.0
        %1220 = vmatpush1.xpose.msra.mxu0 0.0
        %1221 = vmatprep.subr.mxu0 0.0
        %1222 = vmatpush1.xpose.msra.mxu0 0.0
        %1223 = vmatprep.subr.mxu0 0.0
        %1224 = vmatpush1.xpose.msra.mxu0 0.0
        %1225 = vmatprep.subr.mxu0 0.0
        %1226 = vmatpush1.xpose.msra.mxu0 0.0
        %1227 = vmatprep.subr.mxu0 0.0
        %1228 = vmatpush1.xpose.msra.mxu0 0.0
        %1229 = vmatprep.subr.mxu0 0.0
        %1230 = vmatpush1.xpose.msra.mxu0 0.0
        %1231 = vmatprep.subr.mxu0 0.0
        %1232 = vmatpush1.xpose.msra.mxu0 0.0
        %1233 = vmatprep.subr.mxu0 0.0
        %1234 = vmatpush1.xpose.msra.mxu0 0.0
        %1235 = vmatprep.subr.mxu0 0.0
        %1236 = vmatpush1.xpose.msra.mxu0 0.0
        %1237 = vmatprep.subr.mxu0 0.0
        %1238 = vmatpush1.xpose.msra.mxu0 0.0
        %1239 = vmatprep.subr.mxu0 0.0
        %1240 = vmatpush1.xpose.msra.mxu0 0.0
        %1241 = vmatprep.subr.mxu0 0.0
        %1242 = vmatpush1.xpose.msra.mxu0 0.0
        %1243 = vmatprep.subr.mxu0 0.0
        %1244 = vmatpush1.xpose.msra.mxu0 0.0
        %1245 = vmatprep.mubr.f32.mxu0 0.0
        %v1246 = vand.u32 %v874, 4294901760
        %1247 = vmatmul.mubr.f32.gmra.mrb[0].mxu0 %v1246
        %v1248 = vpop.f32.mrb[0].mxu0
        %v1249 = vadd.f32 %v1175, %v1248
        %v1250 = vpop.f32.mrb[0].mxu0
        %1251 = vdwg.mxu0
        %1252 = vmatprep.subr.mxu0 0.0
        %v1253 = vand.u32 %v876, 4294901760
        %1254 = vmatpush1.xpose.msra.mxu0 %v1253
        %1255 = vmatprep.subr.mxu0 0.0
        %1256 = vmatpush1.xpose.msra.mxu0 0.0
        %1257 = vmatprep.subr.mxu0 0.0
        %1258 = vmatpush1.xpose.msra.mxu0 0.0
        %1259 = vmatprep.subr.mxu0 0.0
        %1260 = vmatpush1.xpose.msra.mxu0 0.0
        %1261 = vmatprep.subr.mxu0 0.0
        %1262 = vmatpush1.xpose.msra.mxu0 0.0
        %1263 = vmatprep.subr.mxu0 0.0
        %1264 = vmatpush1.xpose.msra.mxu0 0.0
        %1265 = vmatprep.subr.mxu0 0.0
        %1266 = vmatpush1.xpose.msra.mxu0 0.0
        %1267 = vmatprep.subr.mxu0 0.0
        %1268 = vmatpush1.xpose.msra.mxu0 0.0
        %1269 = vmatprep.subr.mxu0 0.0
        %1270 = vmatpush1.xpose.msra.mxu0 0.0
        %1271 = vmatprep.subr.mxu0 0.0
        %1272 = vmatpush1.xpose.msra.mxu0 0.0
        %1273 = vmatprep.subr.mxu0 0.0
        %1274 = vmatpush1.xpose.msra.mxu0 0.0
        %1275 = vmatprep.subr.mxu0 0.0
        %1276 = vmatpush1.xpose.msra.mxu0 0.0
        %1277 = vmatprep.subr.mxu0 0.0
        %1278 = vmatpush1.xpose.msra.mxu0 0.0
        %1279 = vmatprep.subr.mxu0 0.0
        %1280 = vmatpush1.xpose.msra.mxu0 0.0
        %1281 = vmatprep.subr.mxu0 0.0
        %1282 = vmatpush1.xpose.msra.mxu0 0.0
        %1283 = vmatprep.subr.mxu0 0.0
        %1284 = vmatpush1.xpose.msra.mxu0 0.0
        %1285 = vmatprep.subr.mxu0 0.0
        %1286 = vmatpush1.xpose.msra.mxu0 0.0
        %1287 = vmatprep.subr.mxu0 0.0
        %1288 = vmatpush1.xpose.msra.mxu0 0.0
        %1289 = vmatprep.subr.mxu0 0.0
        %1290 = vmatpush1.xpose.msra.mxu0 0.0
        %1291 = vmatprep.subr.mxu0 0.0
        %1292 = vmatpush1.xpose.msra.mxu0 0.0
        %1293 = vmatprep.subr.mxu0 0.0
        %1294 = vmatpush1.xpose.msra.mxu0 0.0
        %1295 = vmatprep.subr.mxu0 0.0
        %1296 = vmatpush1.xpose.msra.mxu0 0.0
        %1297 = vmatprep.subr.mxu0 0.0
        %1298 = vmatpush1.xpose.msra.mxu0 0.0
        %1299 = vmatprep.subr.mxu0 0.0
        %1300 = vmatpush1.xpose.msra.mxu0 0.0
        %1301 = vmatprep.subr.mxu0 0.0
        %1302 = vmatpush1.xpose.msra.mxu0 0.0
        %1303 = vmatprep.subr.mxu0 0.0
        %1304 = vmatpush1.xpose.msra.mxu0 0.0
        %1305 = vmatprep.subr.mxu0 0.0
        %1306 = vmatpush1.xpose.msra.mxu0 0.0
        %1307 = vmatprep.subr.mxu0 0.0
        %1308 = vmatpush1.xpose.msra.mxu0 0.0
        %1309 = vmatprep.subr.mxu0 0.0
        %1310 = vmatpush1.xpose.msra.mxu0 0.0
        %1311 = vmatprep.subr.mxu0 0.0
        %1312 = vmatpush1.xpose.msra.mxu0 0.0
        %1313 = vmatprep.subr.mxu0 0.0
        %1314 = vmatpush1.xpose.msra.mxu0 0.0
        %1315 = vmatprep.subr.mxu0 0.0
        %1316 = vmatpush1.xpose.msra.mxu0 0.0
        %1317 = vmatprep.mubr.f32.mxu0 0.0
        %v1318 = vand.u32 %v874, 4294901760
        %1319 = vmatmul.mubr.f32.gmra.mrb[0].mxu0 %v1318
        %v1320 = vpop.f32.mrb[0].mxu0
        %v1321 = vadd.f32 %v1249, %v1320
        %v1322 = vpop.f32.mrb[0].mxu0
        %1323 = vdwg.mxu0
        %v1324 = vmul.f32 %v1321, 0.35355338
        %v1326 = vlaneseq
        %v1327 = vshrl.u32 %v1326, 7
        %v1328 = vsub.s32 0, %v1327
        %v1329 = vrot.slane %v365, %v1328
        %v1331 = vadd.f32 %v1324, %v1329
        %v1332 = vsel %vm873, %v1331, -inf
        %1333 = vmax.xlane.f32.xlu0 %v1332
        %v1334 = vpop.xlane.xlu0 %1333
        %v1335 = vsub.f32 %v1331, %v1334
        %v1336 = vmul.f32 %v1335, 1.442695
        %v1337 = vpow.pop %v1336
        %v1338 = vsel %vm873, %v1337, 0.0
        %1339 = vadd.xlane.f32.xlu0 %v1338
        %v1340 = vpop.xlane.xlu0 %1339
        %v1341 = vrcp.pop %v1340
        %v1342 = vmul.f32 %v1337, %v1341
        %1343 = vrot.lane.b32.xlu0 %v863, 64
        %v1344 = vpop.permute.xlu0 %1343
        %v1347 = vsel %vm873, %v1342, 0
        %1349 = vmatprep.subr.mxu0 0.0
        %v1350 = vand.u32 %v1344, 4294901760
        %1351 = vmatpush1.msra.mxu0 %v1350
        %1352 = vmatprep.subr.mxu0 0.0
        %1353 = vmatpush1.msra.mxu0 0.0
        %1354 = vmatprep.subr.mxu0 0.0
        %1355 = vmatpush1.msra.mxu0 0.0
        %1356 = vmatprep.subr.mxu0 0.0
        %1357 = vmatpush1.msra.mxu0 0.0
        %1358 = vmatprep.subr.mxu0 0.0
        %1359 = vmatpush1.msra.mxu0 0.0
        %1360 = vmatprep.subr.mxu0 0.0
        %1361 = vmatpush1.msra.mxu0 0.0
        %1362 = vmatprep.subr.mxu0 0.0
        %1363 = vmatpush1.msra.mxu0 0.0
        %1364 = vmatprep.subr.mxu0 0.0
        %1365 = vmatpush1.msra.mxu0 0.0
        %1366 = vmatprep.subr.mxu0 0.0
        %1367 = vmatpush1.msra.mxu0 0.0
        %1368 = vmatprep.subr.mxu0 0.0
        %1369 = vmatpush1.msra.mxu0 0.0
        %1370 = vmatprep.subr.mxu0 0.0
        %1371 = vmatpush1.msra.mxu0 0.0
        %1372 = vmatprep.subr.mxu0 0.0
        %1373 = vmatpush1.msra.mxu0 0.0
        %1374 = vmatprep.subr.mxu0 0.0
        %1375 = vmatpush1.msra.mxu0 0.0
        %1376 = vmatprep.subr.mxu0 0.0
        %1377 = vmatpush1.msra.mxu0 0.0
        %1378 = vmatprep.subr.mxu0 0.0
        %1379 = vmatpush1.msra.mxu0 0.0
        %1380 = vmatprep.subr.mxu0 0.0
        %1381 = vmatpush1.msra.mxu0 0.0
        %1382 = vmatprep.subr.mxu0 0.0
        %1383 = vmatpush1.msra.mxu0 0.0
        %1384 = vmatprep.subr.mxu0 0.0
        %1385 = vmatpush1.msra.mxu0 0.0
        %1386 = vmatprep.subr.mxu0 0.0
        %1387 = vmatpush1.msra.mxu0 0.0
        %1388 = vmatprep.subr.mxu0 0.0
        %1389 = vmatpush1.msra.mxu0 0.0
        %1390 = vmatprep.subr.mxu0 0.0
        %1391 = vmatpush1.msra.mxu0 0.0
        %1392 = vmatprep.subr.mxu0 0.0
        %1393 = vmatpush1.msra.mxu0 0.0
        %1394 = vmatprep.subr.mxu0 0.0
        %1395 = vmatpush1.msra.mxu0 0.0
        %1396 = vmatprep.subr.mxu0 0.0
        %1397 = vmatpush1.msra.mxu0 0.0
        %1398 = vmatprep.subr.mxu0 0.0
        %1399 = vmatpush1.msra.mxu0 0.0
        %1400 = vmatprep.subr.mxu0 0.0
        %1401 = vmatpush1.msra.mxu0 0.0
        %1402 = vmatprep.subr.mxu0 0.0
        %1403 = vmatpush1.msra.mxu0 0.0
        %1404 = vmatprep.subr.mxu0 0.0
        %1405 = vmatpush1.msra.mxu0 0.0
        %1406 = vmatprep.subr.mxu0 0.0
        %1407 = vmatpush1.msra.mxu0 0.0
        %1408 = vmatprep.subr.mxu0 0.0
        %1409 = vmatpush1.msra.mxu0 0.0
        %1410 = vmatprep.subr.mxu0 0.0
        %1411 = vmatpush1.msra.mxu0 0.0
        %1412 = vmatprep.subr.mxu0 0.0
        %1413 = vmatpush1.msra.mxu0 0.0
        %1414 = vmatprep.mubr.f32.mxu0 0.0
        %v1415 = vand.u32 %v1347, 4294901760
        %v1416 = vsub.f32 %v1347, %v1415
        %v1417 = vand.u32 %v1416, 4294901760
        %v1418 = vsub.f32 %v1416, %v1417
        %v1419 = vand.u32 %v1418, 4294901760
        %1420 = vmatmul.mubr.f32.gmra.mrb[0].mxu0 %v1419
        %v1421 = vpop.f32.mrb[0].mxu0
        %v1422 = vadd.f32 0.0, %v1421
        %v1423 = vpop.f32.mrb[0].mxu0
        %1424 = vdwg.mxu0
        %1425 = vmatprep.subr.mxu0 0.0
        %v1426 = vand.u32 %v1344, 4294901760
        %v1427 = vsub.f32 %v1344, %v1426
        %v1428 = vand.u32 %v1427, 4294901760
        %v1429 = vsub.f32 %v1427, %v1428
        %v1430 = vand.u32 %v1429, 4294901760
        %1431 = vmatpush1.msra.mxu0 %v1430
        %1432 = vmatprep.subr.mxu0 0.0
        %1433 = vmatpush1.msra.mxu0 0.0
        %1434 = vmatprep.subr.mxu0 0.0
        %1435 = vmatpush1.msra.mxu0 0.0
        %1436 = vmatprep.subr.mxu0 0.0
        %1437 = vmatpush1.msra.mxu0 0.0
        %1438 = vmatprep.subr.mxu0 0.0
        %1439 = vmatpush1.msra.mxu0 0.0
        %1440 = vmatprep.subr.mxu0 0.0
        %1441 = vmatpush1.msra.mxu0 0.0
        %1442 = vmatprep.subr.mxu0 0.0
        %1443 = vmatpush1.msra.mxu0 0.0
        %1444 = vmatprep.subr.mxu0 0.0
        %1445 = vmatpush1.msra.mxu0 0.0
        %1446 = vmatprep.subr.mxu0 0.0
        %1447 = vmatpush1.msra.mxu0 0.0
        %1448 = vmatprep.subr.mxu0 0.0
        %1449 = vmatpush1.msra.mxu0 0.0
        %1450 = vmatprep.subr.mxu0 0.0
        %1451 = vmatpush1.msra.mxu0 0.0
        %1452 = vmatprep.subr.mxu0 0.0
        %1453 = vmatpush1.msra.mxu0 0.0
        %1454 = vmatprep.subr.mxu0 0.0
        %1455 = vmatpush1.msra.mxu0 0.0
        %1456 = vmatprep.subr.mxu0 0.0
        %1457 = vmatpush1.msra.mxu0 0.0
        %1458 = vmatprep.subr.mxu0 0.0
        %1459 = vmatpush1.msra.mxu0 0.0
        %1460 = vmatprep.subr.mxu0 0.0
        %1461 = vmatpush1.msra.mxu0 0.0
        %1462 = vmatprep.subr.mxu0 0.0
        %1463 = vmatpush1.msra.mxu0 0.0
        %1464 = vmatprep.subr.mxu0 0.0
        %1465 = vmatpush1.msra.mxu0 0.0
        %1466 = vmatprep.subr.mxu0 0.0
        %1467 = vmatpush1.msra.mxu0 0.0
        %1468 = vmatprep.subr.mxu0 0.0
        %1469 = vmatpush1.msra.mxu0 0.0
        %1470 = vmatprep.subr.mxu0 0.0
        %1471 = vmatpush1.msra.mxu0 0.0
        %1472 = vmatprep.subr.mxu0 0.0
        %1473 = vmatpush1.msra.mxu0 0.0
        %1474 = vmatprep.subr.mxu0 0.0
        %1475 = vmatpush1.msra.mxu0 0.0
        %1476 = vmatprep.subr.mxu0 0.0
        %1477 = vmatpush1.msra.mxu0 0.0
        %1478 = vmatprep.subr.mxu0 0.0
        %1479 = vmatpush1.msra.mxu0 0.0
        %1480 = vmatprep.subr.mxu0 0.0
        %1481 = vmatpush1.msra.mxu0 0.0
        %1482 = vmatprep.subr.mxu0 0.0
        %1483 = vmatpush1.msra.mxu0 0.0
        %1484 = vmatprep.subr.mxu0 0.0
        %1485 = vmatpush1.msra.mxu0 0.0
        %1486 = vmatprep.subr.mxu0 0.0
        %1487 = vmatpush1.msra.mxu0 0.0
        %1488 = vmatprep.subr.mxu0 0.0
        %1489 = vmatpush1.msra.mxu0 0.0
        %1490 = vmatprep.subr.mxu0 0.0
        %1491 = vmatpush1.msra.mxu0 0.0
        %1492 = vmatprep.subr.mxu0 0.0
        %1493 = vmatpush1.msra.mxu0 0.0
        %1494 = vmatprep.mubr.f32.mxu0 0.0
        %v1495 = vand.u32 %v1347, 4294901760
        %1496 = vmatmul.mubr.f32.gmra.mrb[0].mxu0 %v1495
        %v1497 = vpop.f32.mrb[0].mxu0
        %v1498 = vadd.f32 %v1422, %v1497
        %v1499 = vpop.f32.mrb[0].mxu0
        %1500 = vdwg.mxu0
        %1501 = vmatprep.subr.mxu0 0.0
        %v1502 = vand.u32 %v1344, 4294901760
        %v1503 = vsub.f32 %v1344, %v1502
        %1504 = vmatpush1.msra.mxu0 %v1503
        %1505 = vmatprep.subr.mxu0 0.0
        %1506 = vmatpush1.msra.mxu0 0.0
        %1507 = vmatprep.subr.mxu0 0.0
        %1508 = vmatpush1.msra.mxu0 0.0
        %1509 = vmatprep.subr.mxu0 0.0
        %1510 = vmatpush1.msra.mxu0 0.0
        %1511 = vmatprep.subr.mxu0 0.0
        %1512 = vmatpush1.msra.mxu0 0.0
        %1513 = vmatprep.subr.mxu0 0.0
        %1514 = vmatpush1.msra.mxu0 0.0
        %1515 = vmatprep.subr.mxu0 0.0
        %1516 = vmatpush1.msra.mxu0 0.0
        %1517 = vmatprep.subr.mxu0 0.0
        %1518 = vmatpush1.msra.mxu0 0.0
        %1519 = vmatprep.subr.mxu0 0.0
        %1520 = vmatpush1.msra.mxu0 0.0
        %1521 = vmatprep.subr.mxu0 0.0
        %1522 = vmatpush1.msra.mxu0 0.0
        %1523 = vmatprep.subr.mxu0 0.0
        %1524 = vmatpush1.msra.mxu0 0.0
        %1525 = vmatprep.subr.mxu0 0.0
        %1526 = vmatpush1.msra.mxu0 0.0
        %1527 = vmatprep.subr.mxu0 0.0
        %1528 = vmatpush1.msra.mxu0 0.0
        %1529 = vmatprep.subr.mxu0 0.0
        %1530 = vmatpush1.msra.mxu0 0.0
        %1531 = vmatprep.subr.mxu0 0.0
        %1532 = vmatpush1.msra.mxu0 0.0
        %1533 = vmatprep.subr.mxu0 0.0
        %1534 = vmatpush1.msra.mxu0 0.0
        %1535 = vmatprep.subr.mxu0 0.0
        %1536 = vmatpush1.msra.mxu0 0.0
        %1537 = vmatprep.subr.mxu0 0.0
        %1538 = vmatpush1.msra.mxu0 0.0
        %1539 = vmatprep.subr.mxu0 0.0
        %1540 = vmatpush1.msra.mxu0 0.0
        %1541 = vmatprep.subr.mxu0 0.0
        %1542 = vmatpush1.msra.mxu0 0.0
        %1543 = vmatprep.subr.mxu0 0.0
        %1544 = vmatpush1.msra.mxu0 0.0
        %1545 = vmatprep.subr.mxu0 0.0
        %1546 = vmatpush1.msra.mxu0 0.0
        %1547 = vmatprep.subr.mxu0 0.0
        %1548 = vmatpush1.msra.mxu0 0.0
        %1549 = vmatprep.subr.mxu0 0.0
        %1550 = vmatpush1.msra.mxu0 0.0
        %1551 = vmatprep.subr.mxu0 0.0
        %1552 = vmatpush1.msra.mxu0 0.0
        %1553 = vmatprep.subr.mxu0 0.0
        %1554 = vmatpush1.msra.mxu0 0.0
        %1555 = vmatprep.subr.mxu0 0.0
        %1556 = vmatpush1.msra.mxu0 0.0
        %1557 = vmatprep.subr.mxu0 0.0
        %1558 = vmatpush1.msra.mxu0 0.0
        %1559 = vmatprep.subr.mxu0 0.0
        %1560 = vmatpush1.msra.mxu0 0.0
        %1561 = vmatprep.subr.mxu0 0.0
        %1562 = vmatpush1.msra.mxu0 0.0
        %1563 = vmatprep.subr.mxu0 0.0
        %1564 = vmatpush1.msra.mxu0 0.0
        %1565 = vmatprep.subr.mxu0 0.0
        %1566 = vmatpush1.msra.mxu0 0.0
        %1567 = vmatprep.mubr.f32.mxu0 0.0
        %v1568 = vand.u32 %v1347, 4294901760
        %v1569 = vsub.f32 %v1347, %v1568
        %1570 = vmatmul.mubr.f32.gmra.mrb[0].mxu0 %v1569
        %v1571 = vpop.f32.mrb[0].mxu0
        %v1572 = vadd.f32 %v1498, %v1571
        %v1573 = vpop.f32.mrb[0].mxu0
        %1574 = vdwg.mxu0
        %1575 = vmatprep.subr.mxu0 0.0
        %v1576 = vand.u32 %v1344, 4294901760
        %1577 = vmatpush1.msra.mxu0 %v1576
        %1578 = vmatprep.subr.mxu0 0.0
        %1579 = vmatpush1.msra.mxu0 0.0
        %1580 = vmatprep.subr.mxu0 0.0
        %1581 = vmatpush1.msra.mxu0 0.0
        %1582 = vmatprep.subr.mxu0 0.0
        %1583 = vmatpush1.msra.mxu0 0.0
        %1584 = vmatprep.subr.mxu0 0.0
        %1585 = vmatpush1.msra.mxu0 0.0
        %1586 = vmatprep.subr.mxu0 0.0
        %1587 = vmatpush1.msra.mxu0 0.0
        %1588 = vmatprep.subr.mxu0 0.0
        %1589 = vmatpush1.msra.mxu0 0.0
        %1590 = vmatprep.subr.mxu0 0.0
        %1591 = vmatpush1.msra.mxu0 0.0
        %1592 = vmatprep.subr.mxu0 0.0
        %1593 = vmatpush1.msra.mxu0 0.0
        %1594 = vmatprep.subr.mxu0 0.0
        %1595 = vmatpush1.msra.mxu0 0.0
        %1596 = vmatprep.subr.mxu0 0.0
        %1597 = vmatpush1.msra.mxu0 0.0
        %1598 = vmatprep.subr.mxu0 0.0
        %1599 = vmatpush1.msra.mxu0 0.0
        %1600 = vmatprep.subr.mxu0 0.0
        %1601 = vmatpush1.msra.mxu0 0.0
        %1602 = vmatprep.subr.mxu0 0.0
        %1603 = vmatpush1.msra.mxu0 0.0
        %1604 = vmatprep.subr.mxu0 0.0
        %1605 = vmatpush1.msra.mxu0 0.0
        %1606 = vmatprep.subr.mxu0 0.0
        %1607 = vmatpush1.msra.mxu0 0.0
        %1608 = vmatprep.subr.mxu0 0.0
        %1609 = vmatpush1.msra.mxu0 0.0
        %1610 = vmatprep.subr.mxu0 0.0
        %1611 = vmatpush1.msra.mxu0 0.0
        %1612 = vmatprep.subr.mxu0 0.0
        %1613 = vmatpush1.msra.mxu0 0.0
        %1614 = vmatprep.subr.mxu0 0.0
        %1615 = vmatpush1.msra.mxu0 0.0
        %1616 = vmatprep.subr.mxu0 0.0
        %1617 = vmatpush1.msra.mxu0 0.0
        %1618 = vmatprep.subr.mxu0 0.0
        %1619 = vmatpush1.msra.mxu0 0.0
        %1620 = vmatprep.subr.mxu0 0.0
        %1621 = vmatpush1.msra.mxu0 0.0
        %1622 = vmatprep.subr.mxu0 0.0
        %1623 = vmatpush1.msra.mxu0 0.0
        %1624 = vmatprep.subr.mxu0 0.0
        %1625 = vmatpush1.msra.mxu0 0.0
        %1626 = vmatprep.subr.mxu0 0.0
        %1627 = vmatpush1.msra.mxu0 0.0
        %1628 = vmatprep.subr.mxu0 0.0
        %1629 = vmatpush1.msra.mxu0 0.0
        %1630 = vmatprep.subr.mxu0 0.0
        %1631 = vmatpush1.msra.mxu0 0.0
        %1632 = vmatprep.subr.mxu0 0.0
        %1633 = vmatpush1.msra.mxu0 0.0
        %1634 = vmatprep.subr.mxu0 0.0
        %1635 = vmatpush1.msra.mxu0 0.0
        %1636 = vmatprep.subr.mxu0 0.0
        %1637 = vmatpush1.msra.mxu0 0.0
        %1638 = vmatprep.subr.mxu0 0.0
        %1639 = vmatpush1.msra.mxu0 0.0
        %1640 = vmatprep.mubr.f32.mxu0 0.0
        %v1641 = vand.u32 %v1347, 4294901760
        %v1642 = vsub.f32 %v1347, %v1641
        %v1643 = vand.u32 %v1642, 4294901760
        %1644 = vmatmul.mubr.f32.gmra.mrb[0].mxu0 %v1643
        %v1645 = vpop.f32.mrb[0].mxu0
        %v1646 = vadd.f32 %v1572, %v1645
        %v1647 = vpop.f32.mrb[0].mxu0
        %1648 = vdwg.mxu0
        %1649 = vmatprep.subr.mxu0 0.0
        %v1650 = vand.u32 %v1344, 4294901760
        %v1651 = vsub.f32 %v1344, %v1650
        %v1652 = vand.u32 %v1651, 4294901760
        %1653 = vmatpush1.msra.mxu0 %v1652
        %1654 = vmatprep.subr.mxu0 0.0
        %1655 = vmatpush1.msra.mxu0 0.0
        %1656 = vmatprep.subr.mxu0 0.0
        %1657 = vmatpush1.msra.mxu0 0.0
        %1658 = vmatprep.subr.mxu0 0.0
        %1659 = vmatpush1.msra.mxu0 0.0
        %1660 = vmatprep.subr.mxu0 0.0
        %1661 = vmatpush1.msra.mxu0 0.0
        %1662 = vmatprep.subr.mxu0 0.0
        %1663 = vmatpush1.msra.mxu0 0.0
        %1664 = vmatprep.subr.mxu0 0.0
        %1665 = vmatpush1.msra.mxu0 0.0
        %1666 = vmatprep.subr.mxu0 0.0
        %1667 = vmatpush1.msra.mxu0 0.0
        %1668 = vmatprep.subr.mxu0 0.0
        %1669 = vmatpush1.msra.mxu0 0.0
        %1670 = vmatprep.subr.mxu0 0.0
        %1671 = vmatpush1.msra.mxu0 0.0
        %1672 = vmatprep.subr.mxu0 0.0
        %1673 = vmatpush1.msra.mxu0 0.0
        %1674 = vmatprep.subr.mxu0 0.0
        %1675 = vmatpush1.msra.mxu0 0.0
        %1676 = vmatprep.subr.mxu0 0.0
        %1677 = vmatpush1.msra.mxu0 0.0
        %1678 = vmatprep.subr.mxu0 0.0
        %1679 = vmatpush1.msra.mxu0 0.0
        %1680 = vmatprep.subr.mxu0 0.0
        %1681 = vmatpush1.msra.mxu0 0.0
        %1682 = vmatprep.subr.mxu0 0.0
        %1683 = vmatpush1.msra.mxu0 0.0
        %1684 = vmatprep.subr.mxu0 0.0
        %1685 = vmatpush1.msra.mxu0 0.0
        %1686 = vmatprep.subr.mxu0 0.0
        %1687 = vmatpush1.msra.mxu0 0.0
        %1688 = vmatprep.subr.mxu0 0.0
        %1689 = vmatpush1.msra.mxu0 0.0
        %1690 = vmatprep.subr.mxu0 0.0
        %1691 = vmatpush1.msra.mxu0 0.0
        %1692 = vmatprep.subr.mxu0 0.0
        %1693 = vmatpush1.msra.mxu0 0.0
        %1694 = vmatprep.subr.mxu0 0.0
        %1695 = vmatpush1.msra.mxu0 0.0
        %1696 = vmatprep.subr.mxu0 0.0
        %1697 = vmatpush1.msra.mxu0 0.0
        %1698 = vmatprep.subr.mxu0 0.0
        %1699 = vmatpush1.msra.mxu0 0.0
        %1700 = vmatprep.subr.mxu0 0.0
        %1701 = vmatpush1.msra.mxu0 0.0
        %1702 = vmatprep.subr.mxu0 0.0
        %1703 = vmatpush1.msra.mxu0 0.0
        %1704 = vmatprep.subr.mxu0 0.0
        %1705 = vmatpush1.msra.mxu0 0.0
        %1706 = vmatprep.subr.mxu0 0.0
        %1707 = vmatpush1.msra.mxu0 0.0
        %1708 = vmatprep.subr.mxu0 0.0
        %1709 = vmatpush1.msra.mxu0 0.0
        %1710 = vmatprep.subr.mxu0 0.0
        %1711 = vmatpush1.msra.mxu0 0.0
        %1712 = vmatprep.subr.mxu0 0.0
        %1713 = vmatpush1.msra.mxu0 0.0
        %1714 = vmatprep.subr.mxu0 0.0
        %1715 = vmatpush1.msra.mxu0 0.0
        %1716 = vmatprep.mubr.f32.mxu0 0.0
        %v1717 = vand.u32 %v1347, 4294901760
        %1718 = vmatmul.mubr.f32.gmra.mrb[0].mxu0 %v1717
        %v1719 = vpop.f32.mrb[0].mxu0
        %v1720 = vadd.f32 %v1646, %v1719
        %v1721 = vpop.f32.mrb[0].mxu0
        %1722 = vdwg.mxu0
        %1723 = vmatprep.subr.mxu0 0.0
        %v1724 = vand.u32 %v1344, 4294901760
        %1725 = vmatpush1.msra.mxu0 %v1724
        %1726 = vmatprep.subr.mxu0 0.0
        %1727 = vmatpush1.msra.mxu0 0.0
        %1728 = vmatprep.subr.mxu0 0.0
        %1729 = vmatpush1.msra.mxu0 0.0
        %1730 = vmatprep.subr.mxu0 0.0
        %1731 = vmatpush1.msra.mxu0 0.0
        %1732 = vmatprep.subr.mxu0 0.0
        %1733 = vmatpush1.msra.mxu0 0.0
        %1734 = vmatprep.subr.mxu0 0.0
        %1735 = vmatpush1.msra.mxu0 0.0
        %1736 = vmatprep.subr.mxu0 0.0
        %1737 = vmatpush1.msra.mxu0 0.0
        %1738 = vmatprep.subr.mxu0 0.0
        %1739 = vmatpush1.msra.mxu0 0.0
        %1740 = vmatprep.subr.mxu0 0.0
        %1741 = vmatpush1.msra.mxu0 0.0
        %1742 = vmatprep.subr.mxu0 0.0
        %1743 = vmatpush1.msra.mxu0 0.0
        %1744 = vmatprep.subr.mxu0 0.0
        %1745 = vmatpush1.msra.mxu0 0.0
        %1746 = vmatprep.subr.mxu0 0.0
        %1747 = vmatpush1.msra.mxu0 0.0
        %1748 = vmatprep.subr.mxu0 0.0
        %1749 = vmatpush1.msra.mxu0 0.0
        %1750 = vmatprep.subr.mxu0 0.0
        %1751 = vmatpush1.msra.mxu0 0.0
        %1752 = vmatprep.subr.mxu0 0.0
        %1753 = vmatpush1.msra.mxu0 0.0
        %1754 = vmatprep.subr.mxu0 0.0
        %1755 = vmatpush1.msra.mxu0 0.0
        %1756 = vmatprep.subr.mxu0 0.0
        %1757 = vmatpush1.msra.mxu0 0.0
        %1758 = vmatprep.subr.mxu0 0.0
        %1759 = vmatpush1.msra.mxu0 0.0
        %1760 = vmatprep.subr.mxu0 0.0
        %1761 = vmatpush1.msra.mxu0 0.0
        %1762 = vmatprep.subr.mxu0 0.0
        %1763 = vmatpush1.msra.mxu0 0.0
        %1764 = vmatprep.subr.mxu0 0.0
        %1765 = vmatpush1.msra.mxu0 0.0
        %1766 = vmatprep.subr.mxu0 0.0
        %1767 = vmatpush1.msra.mxu0 0.0
        %1768 = vmatprep.subr.mxu0 0.0
        %1769 = vmatpush1.msra.mxu0 0.0
        %1770 = vmatprep.subr.mxu0 0.0
        %1771 = vmatpush1.msra.mxu0 0.0
        %1772 = vmatprep.subr.mxu0 0.0
        %1773 = vmatpush1.msra.mxu0 0.0
        %1774 = vmatprep.subr.mxu0 0.0
        %1775 = vmatpush1.msra.mxu0 0.0
        %1776 = vmatprep.subr.mxu0 0.0
        %1777 = vmatpush1.msra.mxu0 0.0
        %1778 = vmatprep.subr.mxu0 0.0
        %1779 = vmatpush1.msra.mxu0 0.0
        %1780 = vmatprep.subr.mxu0 0.0
        %1781 = vmatpush1.msra.mxu0 0.0
        %1782 = vmatprep.subr.mxu0 0.0
        %1783 = vmatpush1.msra.mxu0 0.0
        %1784 = vmatprep.subr.mxu0 0.0
        %1785 = vmatpush1.msra.mxu0 0.0
        %1786 = vmatprep.subr.mxu0 0.0
        %1787 = vmatpush1.msra.mxu0 0.0
        %1788 = vmatprep.mubr.f32.mxu0 0.0
        %v1789 = vand.u32 %v1347, 4294901760
        %1790 = vmatmul.mubr.f32.gmra.mrb[0].mxu0 %v1789
        %v1791 = vpop.f32.mrb[0].mxu0
        %v1792 = vadd.f32 %v1720, %v1791
        %v1793 = vpop.f32.mrb[0].mxu0
        %1794 = vdwg.mxu0
        %1795 = vrot.lane.b32.xlu0 %v863, 120
        %v1796 = vpop.permute.xlu0 %1795
        %1797 = vrot.lane.b32.xlu0 %v863, 88
        %v1798 = vpop.permute.xlu0 %1797
        %v1799 = vsel %vm873, %v1796, 0
        %v1801 = vsel %vm873, %v1798, 0
        %1803 = vmatprep.subr.mxu0 0.0
        %v1804 = vand.u32 %v1801, 4294901760
        %1805 = vmatpush1.xpose.msra.mxu0 %v1804
        %1806 = vmatprep.subr.mxu0 0.0
        %1807 = vmatpush1.xpose.msra.mxu0 0.0
        %1808 = vmatprep.subr.mxu0 0.0
        %1809 = vmatpush1.xpose.msra.mxu0 0.0
        %1810 = vmatprep.subr.mxu0 0.0
        %1811 = vmatpush1.xpose.msra.mxu0 0.0
        %1812 = vmatprep.subr.mxu0 0.0
        %1813 = vmatpush1.xpose.msra.mxu0 0.0
        %1814 = vmatprep.subr.mxu0 0.0
        %1815 = vmatpush1.xpose.msra.mxu0 0.0
        %1816 = vmatprep.subr.mxu0 0.0
        %1817 = vmatpush1.xpose.msra.mxu0 0.0
        %1818 = vmatprep.subr.mxu0 0.0
        %1819 = vmatpush1.xpose.msra.mxu0 0.0
        %1820 = vmatprep.subr.mxu0 0.0
        %1821 = vmatpush1.xpose.msra.mxu0 0.0
        %1822 = vmatprep.subr.mxu0 0.0
        %1823 = vmatpush1.xpose.msra.mxu0 0.0
        %1824 = vmatprep.subr.mxu0 0.0
        %1825 = vmatpush1.xpose.msra.mxu0 0.0
        %1826 = vmatprep.subr.mxu0 0.0
        %1827 = vmatpush1.xpose.msra.mxu0 0.0
        %1828 = vmatprep.subr.mxu0 0.0
        %1829 = vmatpush1.xpose.msra.mxu0 0.0
        %1830 = vmatprep.subr.mxu0 0.0
        %1831 = vmatpush1.xpose.msra.mxu0 0.0
        %1832 = vmatprep.subr.mxu0 0.0
        %1833 = vmatpush1.xpose.msra.mxu0 0.0
        %1834 = vmatprep.subr.mxu0 0.0
        %1835 = vmatpush1.xpose.msra.mxu0 0.0
        %1836 = vmatprep.subr.mxu0 0.0
        %1837 = vmatpush1.xpose.msra.mxu0 0.0
        %1838 = vmatprep.subr.mxu0 0.0
        %1839 = vmatpush1.xpose.msra.mxu0 0.0
        %1840 = vmatprep.subr.mxu0 0.0
        %1841 = vmatpush1.xpose.msra.mxu0 0.0
        %1842 = vmatprep.subr.mxu0 0.0
        %1843 = vmatpush1.xpose.msra.mxu0 0.0
        %1844 = vmatprep.subr.mxu0 0.0
        %1845 = vmatpush1.xpose.msra.mxu0 0.0
        %1846 = vmatprep.subr.mxu0 0.0
        %1847 = vmatpush1.xpose.msra.mxu0 0.0
        %1848 = vmatprep.subr.mxu0 0.0
        %1849 = vmatpush1.xpose.msra.mxu0 0.0
        %1850 = vmatprep.subr.mxu0 0.0
        %1851 = vmatpush1.xpose.msra.mxu0 0.0
        %1852 = vmatprep.subr.mxu0 0.0
        %1853 = vmatpush1.xpose.msra.mxu0 0.0
        %1854 = vmatprep.subr.mxu0 0.0
        %1855 = vmatpush1.xpose.msra.mxu0 0.0
        %1856 = vmatprep.subr.mxu0 0.0
        %1857 = vmatpush1.xpose.msra.mxu0 0.0
        %1858 = vmatprep.subr.mxu0 0.0
        %1859 = vmatpush1.xpose.msra.mxu0 0.0
        %1860 = vmatprep.subr.mxu0 0.0
        %1861 = vmatpush1.xpose.msra.mxu0 0.0
        %1862 = vmatprep.subr.mxu0 0.0
        %1863 = vmatpush1.xpose.msra.mxu0 0.0
        %1864 = vmatprep.subr.mxu0 0.0
        %1865 = vmatpush1.xpose.msra.mxu0 0.0
        %1866 = vmatprep.subr.mxu0 0.0
        %1867 = vmatpush1.xpose.msra.mxu0 0.0
        %1868 = vmatprep.mubr.f32.mxu0 0.0
        %v1869 = vand.u32 %v1799, 4294901760
        %v1870 = vsub.f32 %v1799, %v1869
        %v1871 = vand.u32 %v1870, 4294901760
        %v1872 = vsub.f32 %v1870, %v1871
        %v1873 = vand.u32 %v1872, 4294901760
        %1874 = vmatmul.mubr.f32.gmra.mrb[0].mxu0 %v1873
        %v1875 = vpop.f32.mrb[0].mxu0
        %v1876 = vadd.f32 0.0, %v1875
        %v1877 = vpop.f32.mrb[0].mxu0
        %1878 = vdwg.mxu0
        %1879 = vmatprep.subr.mxu0 0.0
        %v1880 = vand.u32 %v1801, 4294901760
        %v1881 = vsub.f32 %v1801, %v1880
        %v1882 = vand.u32 %v1881, 4294901760
        %v1883 = vsub.f32 %v1881, %v1882
        %v1884 = vand.u32 %v1883, 4294901760
        %1885 = vmatpush1.xpose.msra.mxu0 %v1884
        %1886 = vmatprep.subr.mxu0 0.0
        %1887 = vmatpush1.xpose.msra.mxu0 0.0
        %1888 = vmatprep.subr.mxu0 0.0
        %1889 = vmatpush1.xpose.msra.mxu0 0.0
        %1890 = vmatprep.subr.mxu0 0.0
        %1891 = vmatpush1.xpose.msra.mxu0 0.0
        %1892 = vmatprep.subr.mxu0 0.0
        %1893 = vmatpush1.xpose.msra.mxu0 0.0
        %1894 = vmatprep.subr.mxu0 0.0
        %1895 = vmatpush1.xpose.msra.mxu0 0.0
        %1896 = vmatprep.subr.mxu0 0.0
        %1897 = vmatpush1.xpose.msra.mxu0 0.0
        %1898 = vmatprep.subr.mxu0 0.0
        %1899 = vmatpush1.xpose.msra.mxu0 0.0
        %1900 = vmatprep.subr.mxu0 0.0
        %1901 = vmatpush1.xpose.msra.mxu0 0.0
        %1902 = vmatprep.subr.mxu0 0.0
        %1903 = vmatpush1.xpose.msra.mxu0 0.0
        %1904 = vmatprep.subr.mxu0 0.0
        %1905 = vmatpush1.xpose.msra.mxu0 0.0
        %1906 = vmatprep.subr.mxu0 0.0
        %1907 = vmatpush1.xpose.msra.mxu0 0.0
        %1908 = vmatprep.subr.mxu0 0.0
        %1909 = vmatpush1.xpose.msra.mxu0 0.0
        %1910 = vmatprep.subr.mxu0 0.0
        %1911 = vmatpush1.xpose.msra.mxu0 0.0
        %1912 = vmatprep.subr.mxu0 0.0
        %1913 = vmatpush1.xpose.msra.mxu0 0.0
        %1914 = vmatprep.subr.mxu0 0.0
        %1915 = vmatpush1.xpose.msra.mxu0 0.0
        %1916 = vmatprep.subr.mxu0 0.0
        %1917 = vmatpush1.xpose.msra.mxu0 0.0
        %1918 = vmatprep.subr.mxu0 0.0
        %1919 = vmatpush1.xpose.msra.mxu0 0.0
        %1920 = vmatprep.subr.mxu0 0.0
        %1921 = vmatpush1.xpose.msra.mxu0 0.0
        %1922 = vmatprep.subr.mxu0 0.0
        %1923 = vmatpush1.xpose.msra.mxu0 0.0
        %1924 = vmatprep.subr.mxu0 0.0
        %1925 = vmatpush1.xpose.msra.mxu0 0.0
        %1926 = vmatprep.subr.mxu0 0.0
        %1927 = vmatpush1.xpose.msra.mxu0 0.0
        %1928 = vmatprep.subr.mxu0 0.0
        %1929 = vmatpush1.xpose.msra.mxu0 0.0
        %1930 = vmatprep.subr.mxu0 0.0
        %1931 = vmatpush1.xpose.msra.mxu0 0.0
        %1932 = vmatprep.subr.mxu0 0.0
        %1933 = vmatpush1.xpose.msra.mxu0 0.0
        %1934 = vmatprep.subr.mxu0 0.0
        %1935 = vmatpush1.xpose.msra.mxu0 0.0
        %1936 = vmatprep.subr.mxu0 0.0
        %1937 = vmatpush1.xpose.msra.mxu0 0.0
        %1938 = vmatprep.subr.mxu0 0.0
        %1939 = vmatpush1.xpose.msra.mxu0 0.0
        %1940 = vmatprep.subr.mxu0 0.0
        %1941 = vmatpush1.xpose.msra.mxu0 0.0
        %1942 = vmatprep.subr.mxu0 0.0
        %1943 = vmatpush1.xpose.msra.mxu0 0.0
        %1944 = vmatprep.subr.mxu0 0.0
        %1945 = vmatpush1.xpose.msra.mxu0 0.0
        %1946 = vmatprep.subr.mxu0 0.0
        %1947 = vmatpush1.xpose.msra.mxu0 0.0
        %1948 = vmatprep.mubr.f32.mxu0 0.0
        %v1949 = vand.u32 %v1799, 4294901760
        %1950 = vmatmul.mubr.f32.gmra.mrb[0].mxu0 %v1949
        %v1951 = vpop.f32.mrb[0].mxu0
        %v1952 = vadd.f32 %v1876, %v1951
        %v1953 = vpop.f32.mrb[0].mxu0
        %1954 = vdwg.mxu0
        %1955 = vmatprep.subr.mxu0 0.0
        %v1956 = vand.u32 %v1801, 4294901760
        %v1957 = vsub.f32 %v1801, %v1956
        %1958 = vmatpush1.xpose.msra.mxu0 %v1957
        %1959 = vmatprep.subr.mxu0 0.0
        %1960 = vmatpush1.xpose.msra.mxu0 0.0
        %1961 = vmatprep.subr.mxu0 0.0
        %1962 = vmatpush1.xpose.msra.mxu0 0.0
        %1963 = vmatprep.subr.mxu0 0.0
        %1964 = vmatpush1.xpose.msra.mxu0 0.0
        %1965 = vmatprep.subr.mxu0 0.0
        %1966 = vmatpush1.xpose.msra.mxu0 0.0
        %1967 = vmatprep.subr.mxu0 0.0
        %1968 = vmatpush1.xpose.msra.mxu0 0.0
        %1969 = vmatprep.subr.mxu0 0.0
        %1970 = vmatpush1.xpose.msra.mxu0 0.0
        %1971 = vmatprep.subr.mxu0 0.0
        %1972 = vmatpush1.xpose.msra.mxu0 0.0
        %1973 = vmatprep.subr.mxu0 0.0
        %1974 = vmatpush1.xpose.msra.mxu0 0.0
        %1975 = vmatprep.subr.mxu0 0.0
        %1976 = vmatpush1.xpose.msra.mxu0 0.0
        %1977 = vmatprep.subr.mxu0 0.0
        %1978 = vmatpush1.xpose.msra.mxu0 0.0
        %1979 = vmatprep.subr.mxu0 0.0
        %1980 = vmatpush1.xpose.msra.mxu0 0.0
        %1981 = vmatprep.subr.mxu0 0.0
        %1982 = vmatpush1.xpose.msra.mxu0 0.0
        %1983 = vmatprep.subr.mxu0 0.0
        %1984 = vmatpush1.xpose.msra.mxu0 0.0
        %1985 = vmatprep.subr.mxu0 0.0
        %1986 = vmatpush1.xpose.msra.mxu0 0.0
        %1987 = vmatprep.subr.mxu0 0.0
        %1988 = vmatpush1.xpose.msra.mxu0 0.0
        %1989 = vmatprep.subr.mxu0 0.0
        %1990 = vmatpush1.xpose.msra.mxu0 0.0
        %1991 = vmatprep.subr.mxu0 0.0
        %1992 = vmatpush1.xpose.msra.mxu0 0.0
        %1993 = vmatprep.subr.mxu0 0.0
        %1994 = vmatpush1.xpose.msra.mxu0 0.0
        %1995 = vmatprep.subr.mxu0 0.0
        %1996 = vmatpush1.xpose.msra.mxu0 0.0
        %1997 = vmatprep.subr.mxu0 0.0
        %1998 = vmatpush1.xpose.msra.mxu0 0.0
        %1999 = vmatprep.subr.mxu0 0.0
        %2000 = vmatpush1.xpose.msra.mxu0 0.0
        %2001 = vmatprep.subr.mxu0 0.0
        %2002 = vmatpush1.xpose.msra.mxu0 0.0
        %2003 = vmatprep.subr.mxu0 0.0
        %2004 = vmatpush1.xpose.msra.mxu0 0.0
        %2005 = vmatprep.subr.mxu0 0.0
        %2006 = vmatpush1.xpose.msra.mxu0 0.0
        %2007 = vmatprep.subr.mxu0 0.0
        %2008 = vmatpush1.xpose.msra.mxu0 0.0
        %2009 = vmatprep.subr.mxu0 0.0
        %2010 = vmatpush1.xpose.msra.mxu0 0.0
        %2011 = vmatprep.subr.mxu0 0.0
        %2012 = vmatpush1.xpose.msra.mxu0 0.0
        %2013 = vmatprep.subr.mxu0 0.0
        %2014 = vmatpush1.xpose.msra.mxu0 0.0
        %2015 = vmatprep.subr.mxu0 0.0
        %2016 = vmatpush1.xpose.msra.mxu0 0.0
        %2017 = vmatprep.subr.mxu0 0.0
        %2018 = vmatpush1.xpose.msra.mxu0 0.0
        %2019 = vmatprep.subr.mxu0 0.0
        %2020 = vmatpush1.xpose.msra.mxu0 0.0
        %2021 = vmatprep.mubr.f32.mxu0 0.0
        %v2022 = vand.u32 %v1799, 4294901760
        %v2023 = vsub.f32 %v1799, %v2022
        %2024 = vmatmul.mubr.f32.gmra.mrb[0].mxu0 %v2023
        %v2025 = vpop.f32.mrb[0].mxu0
        %v2026 = vadd.f32 %v1952, %v2025
        %v2027 = vpop.f32.mrb[0].mxu0
        %2028 = vdwg.mxu0
        %2029 = vmatprep.subr.mxu0 0.0
        %v2030 = vand.u32 %v1801, 4294901760
        %2031 = vmatpush1.xpose.msra.mxu0 %v2030
        %2032 = vmatprep.subr.mxu0 0.0
        %2033 = vmatpush1.xpose.msra.mxu0 0.0
        %2034 = vmatprep.subr.mxu0 0.0
        %2035 = vmatpush1.xpose.msra.mxu0 0.0
        %2036 = vmatprep.subr.mxu0 0.0
        %2037 = vmatpush1.xpose.msra.mxu0 0.0
        %2038 = vmatprep.subr.mxu0 0.0
        %2039 = vmatpush1.xpose.msra.mxu0 0.0
        %2040 = vmatprep.subr.mxu0 0.0
        %2041 = vmatpush1.xpose.msra.mxu0 0.0
        %2042 = vmatprep.subr.mxu0 0.0
        %2043 = vmatpush1.xpose.msra.mxu0 0.0
        %2044 = vmatprep.subr.mxu0 0.0
        %2045 = vmatpush1.xpose.msra.mxu0 0.0
        %2046 = vmatprep.subr.mxu0 0.0
        %2047 = vmatpush1.xpose.msra.mxu0 0.0
        %2048 = vmatprep.subr.mxu0 0.0
        %2049 = vmatpush1.xpose.msra.mxu0 0.0
        %2050 = vmatprep.subr.mxu0 0.0
        %2051 = vmatpush1.xpose.msra.mxu0 0.0
        %2052 = vmatprep.subr.mxu0 0.0
        %2053 = vmatpush1.xpose.msra.mxu0 0.0
        %2054 = vmatprep.subr.mxu0 0.0
        %2055 = vmatpush1.xpose.msra.mxu0 0.0
        %2056 = vmatprep.subr.mxu0 0.0
        %2057 = vmatpush1.xpose.msra.mxu0 0.0
        %2058 = vmatprep.subr.mxu0 0.0
        %2059 = vmatpush1.xpose.msra.mxu0 0.0
        %2060 = vmatprep.subr.mxu0 0.0
        %2061 = vmatpush1.xpose.msra.mxu0 0.0
        %2062 = vmatprep.subr.mxu0 0.0
        %2063 = vmatpush1.xpose.msra.mxu0 0.0
        %2064 = vmatprep.subr.mxu0 0.0
        %2065 = vmatpush1.xpose.msra.mxu0 0.0
        %2066 = vmatprep.subr.mxu0 0.0
        %2067 = vmatpush1.xpose.msra.mxu0 0.0
        %2068 = vmatprep.subr.mxu0 0.0
        %2069 = vmatpush1.xpose.msra.mxu0 0.0
        %2070 = vmatprep.subr.mxu0 0.0
        %2071 = vmatpush1.xpose.msra.mxu0 0.0
        %2072 = vmatprep.subr.mxu0 0.0
        %2073 = vmatpush1.xpose.msra.mxu0 0.0
        %2074 = vmatprep.subr.mxu0 0.0
        %2075 = vmatpush1.xpose.msra.mxu0 0.0
        %2076 = vmatprep.subr.mxu0 0.0
        %2077 = vmatpush1.xpose.msra.mxu0 0.0
        %2078 = vmatprep.subr.mxu0 0.0
        %2079 = vmatpush1.xpose.msra.mxu0 0.0
        %2080 = vmatprep.subr.mxu0 0.0
        %2081 = vmatpush1.xpose.msra.mxu0 0.0
        %2082 = vmatprep.subr.mxu0 0.0
        %2083 = vmatpush1.xpose.msra.mxu0 0.0
        %2084 = vmatprep.subr.mxu0 0.0
        %2085 = vmatpush1.xpose.msra.mxu0 0.0
        %2086 = vmatprep.subr.mxu0 0.0
        %2087 = vmatpush1.xpose.msra.mxu0 0.0
        %2088 = vmatprep.subr.mxu0 0.0
        %2089 = vmatpush1.xpose.msra.mxu0 0.0
        %2090 = vmatprep.subr.mxu0 0.0
        %2091 = vmatpush1.xpose.msra.mxu0 0.0
        %2092 = vmatprep.subr.mxu0 0.0
        %2093 = vmatpush1.xpose.msra.mxu0 0.0
        %2094 = vmatprep.mubr.f32.mxu0 0.0
        %v2095 = vand.u32 %v1799, 4294901760
        %v2096 = vsub.f32 %v1799, %v2095
        %v2097 = vand.u32 %v2096, 4294901760
        %2098 = vmatmul.mubr.f32.gmra.mrb[0].mxu0 %v2097
        %v2099 = vpop.f32.mrb[0].mxu0
        %v2100 = vadd.f32 %v2026, %v2099
        %v2101 = vpop.f32.mrb[0].mxu0
        %2102 = vdwg.mxu0
        %2103 = vmatprep.subr.mxu0 0.0
        %v2104 = vand.u32 %v1801, 4294901760
        %v2105 = vsub.f32 %v1801, %v2104
        %v2106 = vand.u32 %v2105, 4294901760
        %2107 = vmatpush1.xpose.msra.mxu0 %v2106
        %2108 = vmatprep.subr.mxu0 0.0
        %2109 = vmatpush1.xpose.msra.mxu0 0.0
        %2110 = vmatprep.subr.mxu0 0.0
        %2111 = vmatpush1.xpose.msra.mxu0 0.0
        %2112 = vmatprep.subr.mxu0 0.0
        %2113 = vmatpush1.xpose.msra.mxu0 0.0
        %2114 = vmatprep.subr.mxu0 0.0
        %2115 = vmatpush1.xpose.msra.mxu0 0.0
        %2116 = vmatprep.subr.mxu0 0.0
        %2117 = vmatpush1.xpose.msra.mxu0 0.0
        %2118 = vmatprep.subr.mxu0 0.0
        %2119 = vmatpush1.xpose.msra.mxu0 0.0
        %2120 = vmatprep.subr.mxu0 0.0
        %2121 = vmatpush1.xpose.msra.mxu0 0.0
        %2122 = vmatprep.subr.mxu0 0.0
        %2123 = vmatpush1.xpose.msra.mxu0 0.0
        %2124 = vmatprep.subr.mxu0 0.0
        %2125 = vmatpush1.xpose.msra.mxu0 0.0
        %2126 = vmatprep.subr.mxu0 0.0
        %2127 = vmatpush1.xpose.msra.mxu0 0.0
        %2128 = vmatprep.subr.mxu0 0.0
        %2129 = vmatpush1.xpose.msra.mxu0 0.0
        %2130 = vmatprep.subr.mxu0 0.0
        %2131 = vmatpush1.xpose.msra.mxu0 0.0
        %2132 = vmatprep.subr.mxu0 0.0
        %2133 = vmatpush1.xpose.msra.mxu0 0.0
        %2134 = vmatprep.subr.mxu0 0.0
        %2135 = vmatpush1.xpose.msra.mxu0 0.0
        %2136 = vmatprep.subr.mxu0 0.0
        %2137 = vmatpush1.xpose.msra.mxu0 0.0
        %2138 = vmatprep.subr.mxu0 0.0
        %2139 = vmatpush1.xpose.msra.mxu0 0.0
        %2140 = vmatprep.subr.mxu0 0.0
        %2141 = vmatpush1.xpose.msra.mxu0 0.0
        %2142 = vmatprep.subr.mxu0 0.0
        %2143 = vmatpush1.xpose.msra.mxu0 0.0
        %2144 = vmatprep.subr.mxu0 0.0
        %2145 = vmatpush1.xpose.msra.mxu0 0.0
        %2146 = vmatprep.subr.mxu0 0.0
        %2147 = vmatpush1.xpose.msra.mxu0 0.0
        %2148 = vmatprep.subr.mxu0 0.0
        %2149 = vmatpush1.xpose.msra.mxu0 0.0
        %2150 = vmatprep.subr.mxu0 0.0
        %2151 = vmatpush1.xpose.msra.mxu0 0.0
        %2152 = vmatprep.subr.mxu0 0.0
        %2153 = vmatpush1.xpose.msra.mxu0 0.0
        %2154 = vmatprep.subr.mxu0 0.0
        %2155 = vmatpush1.xpose.msra.mxu0 0.0
        %2156 = vmatprep.subr.mxu0 0.0
        %2157 = vmatpush1.xpose.msra.mxu0 0.0
        %2158 = vmatprep.subr.mxu0 0.0
        %2159 = vmatpush1.xpose.msra.mxu0 0.0
        %2160 = vmatprep.subr.mxu0 0.0
        %2161 = vmatpush1.xpose.msra.mxu0 0.0
        %2162 = vmatprep.subr.mxu0 0.0
        %2163 = vmatpush1.xpose.msra.mxu0 0.0
        %2164 = vmatprep.subr.mxu0 0.0
        %2165 = vmatpush1.xpose.msra.mxu0 0.0
        %2166 = vmatprep.subr.mxu0 0.0
        %2167 = vmatpush1.xpose.msra.mxu0 0.0
        %2168 = vmatprep.subr.mxu0 0.0
        %2169 = vmatpush1.xpose.msra.mxu0 0.0
        %2170 = vmatprep.mubr.f32.mxu0 0.0
        %v2171 = vand.u32 %v1799, 4294901760
        %2172 = vmatmul.mubr.f32.gmra.mrb[0].mxu0 %v2171
        %v2173 = vpop.f32.mrb[0].mxu0
        %v2174 = vadd.f32 %v2100, %v2173
        %v2175 = vpop.f32.mrb[0].mxu0
        %2176 = vdwg.mxu0
        %2177 = vmatprep.subr.mxu0 0.0
        %v2178 = vand.u32 %v1801, 4294901760
        %2179 = vmatpush1.xpose.msra.mxu0 %v2178
        %2180 = vmatprep.subr.mxu0 0.0
        %2181 = vmatpush1.xpose.msra.mxu0 0.0
        %2182 = vmatprep.subr.mxu0 0.0
        %2183 = vmatpush1.xpose.msra.mxu0 0.0
        %2184 = vmatprep.subr.mxu0 0.0
        %2185 = vmatpush1.xpose.msra.mxu0 0.0
        %2186 = vmatprep.subr.mxu0 0.0
        %2187 = vmatpush1.xpose.msra.mxu0 0.0
        %2188 = vmatprep.subr.mxu0 0.0
        %2189 = vmatpush1.xpose.msra.mxu0 0.0
        %2190 = vmatprep.subr.mxu0 0.0
        %2191 = vmatpush1.xpose.msra.mxu0 0.0
        %2192 = vmatprep.subr.mxu0 0.0
        %2193 = vmatpush1.xpose.msra.mxu0 0.0
        %2194 = vmatprep.subr.mxu0 0.0
        %2195 = vmatpush1.xpose.msra.mxu0 0.0
        %2196 = vmatprep.subr.mxu0 0.0
        %2197 = vmatpush1.xpose.msra.mxu0 0.0
        %2198 = vmatprep.subr.mxu0 0.0
        %2199 = vmatpush1.xpose.msra.mxu0 0.0
        %2200 = vmatprep.subr.mxu0 0.0
        %2201 = vmatpush1.xpose.msra.mxu0 0.0
        %2202 = vmatprep.subr.mxu0 0.0
        %2203 = vmatpush1.xpose.msra.mxu0 0.0
        %2204 = vmatprep.subr.mxu0 0.0
        %2205 = vmatpush1.xpose.msra.mxu0 0.0
        %2206 = vmatprep.subr.mxu0 0.0
        %2207 = vmatpush1.xpose.msra.mxu0 0.0
        %2208 = vmatprep.subr.mxu0 0.0
        %2209 = vmatpush1.xpose.msra.mxu0 0.0
        %2210 = vmatprep.subr.mxu0 0.0
        %2211 = vmatpush1.xpose.msra.mxu0 0.0
        %2212 = vmatprep.subr.mxu0 0.0
        %2213 = vmatpush1.xpose.msra.mxu0 0.0
        %2214 = vmatprep.subr.mxu0 0.0
        %2215 = vmatpush1.xpose.msra.mxu0 0.0
        %2216 = vmatprep.subr.mxu0 0.0
        %2217 = vmatpush1.xpose.msra.mxu0 0.0
        %2218 = vmatprep.subr.mxu0 0.0
        %2219 = vmatpush1.xpose.msra.mxu0 0.0
        %2220 = vmatprep.subr.mxu0 0.0
        %2221 = vmatpush1.xpose.msra.mxu0 0.0
        %2222 = vmatprep.subr.mxu0 0.0
        %2223 = vmatpush1.xpose.msra.mxu0 0.0
        %2224 = vmatprep.subr.mxu0 0.0
        %2225 = vmatpush1.xpose.msra.mxu0 0.0
        %2226 = vmatprep.subr.mxu0 0.0
        %2227 = vmatpush1.xpose.msra.mxu0 0.0
        %2228 = vmatprep.subr.mxu0 0.0
        %2229 = vmatpush1.xpose.msra.mxu0 0.0
        %2230 = vmatprep.subr.mxu0 0.0
        %2231 = vmatpush1.xpose.msra.mxu0 0.0
        %2232 = vmatprep.subr.mxu0 0.0
        %2233 = vmatpush1.xpose.msra.mxu0 0.0
        %2234 = vmatprep.subr.mxu0 0.0
        %2235 = vmatpush1.xpose.msra.mxu0 0.0
        %2236 = vmatprep.subr.mxu0 0.0
        %2237 = vmatpush1.xpose.msra.mxu0 0.0
        %2238 = vmatprep.subr.mxu0 0.0
        %2239 = vmatpush1.xpose.msra.mxu0 0.0
        %2240 = vmatprep.subr.mxu0 0.0
        %2241 = vmatpush1.xpose.msra.mxu0 0.0
        %2242 = vmatprep.mubr.f32.mxu0 0.0
        %v2243 = vand.u32 %v1799, 4294901760
        %2244 = vmatmul.mubr.f32.gmra.mrb[0].mxu0 %v2243
        %v2245 = vpop.f32.mrb[0].mxu0
        %v2246 = vadd.f32 %v2174, %v2245
        %v2247 = vpop.f32.mrb[0].mxu0
        %2248 = vdwg.mxu0
        %v2249 = vmul.f32 %v2246, 0.35355338
        %v2250 = vadd.f32 %v2249, %v1329
        %v2251 = vsel %vm873, %v2250, -inf
        %2252 = vmax.xlane.f32.xlu0 %v2251
        %v2253 = vpop.xlane.xlu0 %2252
        %v2254 = vsub.f32 %v2250, %v2253
        %v2255 = vmul.f32 %v2254, 1.442695
        %v2256 = vpow.pop %v2255
        %v2257 = vsel %vm873, %v2256, 0.0
        %2258 = vadd.xlane.f32.xlu0 %v2257
        %v2259 = vpop.xlane.xlu0 %2258
        %v2260 = vrcp.pop %v2259
        %v2261 = vmul.f32 %v2256, %v2260
        %2262 = vrot.lane.b32.xlu0 %v863, 56
        %v2263 = vpop.permute.xlu0 %2262
        %v2266 = vsel %vm873, %v2261, 0
        %2268 = vmatprep.subr.mxu0 0.0
        %v2269 = vand.u32 %v2263, 4294901760
        %2270 = vmatpush1.msra.mxu0 %v2269
        %2271 = vmatprep.subr.mxu0 0.0
        %2272 = vmatpush1.msra.mxu0 0.0
        %2273 = vmatprep.subr.mxu0 0.0
        %2274 = vmatpush1.msra.mxu0 0.0
        %2275 = vmatprep.subr.mxu0 0.0
        %2276 = vmatpush1.msra.mxu0 0.0
        %2277 = vmatprep.subr.mxu0 0.0
        %2278 = vmatpush1.msra.mxu0 0.0
        %2279 = vmatprep.subr.mxu0 0.0
        %2280 = vmatpush1.msra.mxu0 0.0
        %2281 = vmatprep.subr.mxu0 0.0
        %2282 = vmatpush1.msra.mxu0 0.0
        %2283 = vmatprep.subr.mxu0 0.0
        %2284 = vmatpush1.msra.mxu0 0.0
        %2285 = vmatprep.subr.mxu0 0.0
        %2286 = vmatpush1.msra.mxu0 0.0
        %2287 = vmatprep.subr.mxu0 0.0
        %2288 = vmatpush1.msra.mxu0 0.0
        %2289 = vmatprep.subr.mxu0 0.0
        %2290 = vmatpush1.msra.mxu0 0.0
        %2291 = vmatprep.subr.mxu0 0.0
        %2292 = vmatpush1.msra.mxu0 0.0
        %2293 = vmatprep.subr.mxu0 0.0
        %2294 = vmatpush1.msra.mxu0 0.0
        %2295 = vmatprep.subr.mxu0 0.0
        %2296 = vmatpush1.msra.mxu0 0.0
        %2297 = vmatprep.subr.mxu0 0.0
        %2298 = vmatpush1.msra.mxu0 0.0
        %2299 = vmatprep.subr.mxu0 0.0
        %2300 = vmatpush1.msra.mxu0 0.0
        %2301 = vmatprep.subr.mxu0 0.0
        %2302 = vmatpush1.msra.mxu0 0.0
        %2303 = vmatprep.subr.mxu0 0.0
        %2304 = vmatpush1.msra.mxu0 0.0
        %2305 = vmatprep.subr.mxu0 0.0
        %2306 = vmatpush1.msra.mxu0 0.0
        %2307 = vmatprep.subr.mxu0 0.0
        %2308 = vmatpush1.msra.mxu0 0.0
        %2309 = vmatprep.subr.mxu0 0.0
        %2310 = vmatpush1.msra.mxu0 0.0
        %2311 = vmatprep.subr.mxu0 0.0
        %2312 = vmatpush1.msra.mxu0 0.0
        %2313 = vmatprep.subr.mxu0 0.0
        %2314 = vmatpush1.msra.mxu0 0.0
        %2315 = vmatprep.subr.mxu0 0.0
        %2316 = vmatpush1.msra.mxu0 0.0
        %2317 = vmatprep.subr.mxu0 0.0
        %2318 = vmatpush1.msra.mxu0 0.0
        %2319 = vmatprep.subr.mxu0 0.0
        %2320 = vmatpush1.msra.mxu0 0.0
        %2321 = vmatprep.subr.mxu0 0.0
        %2322 = vmatpush1.msra.mxu0 0.0
        %2323 = vmatprep.subr.mxu0 0.0
        %2324 = vmatpush1.msra.mxu0 0.0
        %2325 = vmatprep.subr.mxu0 0.0
        %2326 = vmatpush1.msra.mxu0 0.0
        %2327 = vmatprep.subr.mxu0 0.0
        %2328 = vmatpush1.msra.mxu0 0.0
        %2329 = vmatprep.subr.mxu0 0.0
        %2330 = vmatpush1.msra.mxu0 0.0
        %2331 = vmatprep.subr.mxu0 0.0
        %2332 = vmatpush1.msra.mxu0 0.0
        %2333 = vmatprep.mubr.f32.mxu0 0.0
        %v2334 = vand.u32 %v2266, 4294901760
        %v2335 = vsub.f32 %v2266, %v2334
        %v2336 = vand.u32 %v2335, 4294901760
        %v2337 = vsub.f32 %v2335, %v2336
        %v2338 = vand.u32 %v2337, 4294901760
        %2339 = vmatmul.mubr.f32.gmra.mrb[0].mxu0 %v2338
        %v2340 = vpop.f32.mrb[0].mxu0
        %v2341 = vadd.f32 0.0, %v2340
        %v2342 = vpop.f32.mrb[0].mxu0
        %2343 = vdwg.mxu0
        %2344 = vmatprep.subr.mxu0 0.0
        %v2345 = vand.u32 %v2263, 4294901760
        %v2346 = vsub.f32 %v2263, %v2345
        %v2347 = vand.u32 %v2346, 4294901760
        %v2348 = vsub.f32 %v2346, %v2347
        %v2349 = vand.u32 %v2348, 4294901760
        %2350 = vmatpush1.msra.mxu0 %v2349
        %2351 = vmatprep.subr.mxu0 0.0
        %2352 = vmatpush1.msra.mxu0 0.0
        %2353 = vmatprep.subr.mxu0 0.0
        %2354 = vmatpush1.msra.mxu0 0.0
        %2355 = vmatprep.subr.mxu0 0.0
        %2356 = vmatpush1.msra.mxu0 0.0
        %2357 = vmatprep.subr.mxu0 0.0
        %2358 = vmatpush1.msra.mxu0 0.0
        %2359 = vmatprep.subr.mxu0 0.0
        %2360 = vmatpush1.msra.mxu0 0.0
        %2361 = vmatprep.subr.mxu0 0.0
        %2362 = vmatpush1.msra.mxu0 0.0
        %2363 = vmatprep.subr.mxu0 0.0
        %2364 = vmatpush1.msra.mxu0 0.0
        %2365 = vmatprep.subr.mxu0 0.0
        %2366 = vmatpush1.msra.mxu0 0.0
        %2367 = vmatprep.subr.mxu0 0.0
        %2368 = vmatpush1.msra.mxu0 0.0
        %2369 = vmatprep.subr.mxu0 0.0
        %2370 = vmatpush1.msra.mxu0 0.0
        %2371 = vmatprep.subr.mxu0 0.0
        %2372 = vmatpush1.msra.mxu0 0.0
        %2373 = vmatprep.subr.mxu0 0.0
        %2374 = vmatpush1.msra.mxu0 0.0
        %2375 = vmatprep.subr.mxu0 0.0
        %2376 = vmatpush1.msra.mxu0 0.0
        %2377 = vmatprep.subr.mxu0 0.0
        %2378 = vmatpush1.msra.mxu0 0.0
        %2379 = vmatprep.subr.mxu0 0.0
        %2380 = vmatpush1.msra.mxu0 0.0
        %2381 = vmatprep.subr.mxu0 0.0
        %2382 = vmatpush1.msra.mxu0 0.0
        %2383 = vmatprep.subr.mxu0 0.0
        %2384 = vmatpush1.msra.mxu0 0.0
        %2385 = vmatprep.subr.mxu0 0.0
        %2386 = vmatpush1.msra.mxu0 0.0
        %2387 = vmatprep.subr.mxu0 0.0
        %2388 = vmatpush1.msra.mxu0 0.0
        %2389 = vmatprep.subr.mxu0 0.0
        %2390 = vmatpush1.msra.mxu0 0.0
        %2391 = vmatprep.subr.mxu0 0.0
        %2392 = vmatpush1.msra.mxu0 0.0
        %2393 = vmatprep.subr.mxu0 0.0
        %2394 = vmatpush1.msra.mxu0 0.0
        %2395 = vmatprep.subr.mxu0 0.0
        %2396 = vmatpush1.msra.mxu0 0.0
        %2397 = vmatprep.subr.mxu0 0.0
        %2398 = vmatpush1.msra.mxu0 0.0
        %2399 = vmatprep.subr.mxu0 0.0
        %2400 = vmatpush1.msra.mxu0 0.0
        %2401 = vmatprep.subr.mxu0 0.0
        %2402 = vmatpush1.msra.mxu0 0.0
        %2403 = vmatprep.subr.mxu0 0.0
        %2404 = vmatpush1.msra.mxu0 0.0
        %2405 = vmatprep.subr.mxu0 0.0
        %2406 = vmatpush1.msra.mxu0 0.0
        %2407 = vmatprep.subr.mxu0 0.0
        %2408 = vmatpush1.msra.mxu0 0.0
        %2409 = vmatprep.subr.mxu0 0.0
        %2410 = vmatpush1.msra.mxu0 0.0
        %2411 = vmatprep.subr.mxu0 0.0
        %2412 = vmatpush1.msra.mxu0 0.0
        %2413 = vmatprep.mubr.f32.mxu0 0.0
        %v2414 = vand.u32 %v2266, 4294901760
        %2415 = vmatmul.mubr.f32.gmra.mrb[0].mxu0 %v2414
        %v2416 = vpop.f32.mrb[0].mxu0
        %v2417 = vadd.f32 %v2341, %v2416
        %v2418 = vpop.f32.mrb[0].mxu0
        %2419 = vdwg.mxu0
        %2420 = vmatprep.subr.mxu0 0.0
        %v2421 = vand.u32 %v2263, 4294901760
        %v2422 = vsub.f32 %v2263, %v2421
        %2423 = vmatpush1.msra.mxu0 %v2422
        %2424 = vmatprep.subr.mxu0 0.0
        %2425 = vmatpush1.msra.mxu0 0.0
        %2426 = vmatprep.subr.mxu0 0.0
        %2427 = vmatpush1.msra.mxu0 0.0
        %2428 = vmatprep.subr.mxu0 0.0
        %2429 = vmatpush1.msra.mxu0 0.0
        %2430 = vmatprep.subr.mxu0 0.0
        %2431 = vmatpush1.msra.mxu0 0.0
        %2432 = vmatprep.subr.mxu0 0.0
        %2433 = vmatpush1.msra.mxu0 0.0
        %2434 = vmatprep.subr.mxu0 0.0
        %2435 = vmatpush1.msra.mxu0 0.0
        %2436 = vmatprep.subr.mxu0 0.0
        %2437 = vmatpush1.msra.mxu0 0.0
        %2438 = vmatprep.subr.mxu0 0.0
        %2439 = vmatpush1.msra.mxu0 0.0
        %2440 = vmatprep.subr.mxu0 0.0
        %2441 = vmatpush1.msra.mxu0 0.0
        %2442 = vmatprep.subr.mxu0 0.0
        %2443 = vmatpush1.msra.mxu0 0.0
        %2444 = vmatprep.subr.mxu0 0.0
        %2445 = vmatpush1.msra.mxu0 0.0
        %2446 = vmatprep.subr.mxu0 0.0
        %2447 = vmatpush1.msra.mxu0 0.0
        %2448 = vmatprep.subr.mxu0 0.0
        %2449 = vmatpush1.msra.mxu0 0.0
        %2450 = vmatprep.subr.mxu0 0.0
        %2451 = vmatpush1.msra.mxu0 0.0
        %2452 = vmatprep.subr.mxu0 0.0
        %2453 = vmatpush1.msra.mxu0 0.0
        %2454 = vmatprep.subr.mxu0 0.0
        %2455 = vmatpush1.msra.mxu0 0.0
        %2456 = vmatprep.subr.mxu0 0.0
        %2457 = vmatpush1.msra.mxu0 0.0
        %2458 = vmatprep.subr.mxu0 0.0
        %2459 = vmatpush1.msra.mxu0 0.0
        %2460 = vmatprep.subr.mxu0 0.0
        %2461 = vmatpush1.msra.mxu0 0.0
        %2462 = vmatprep.subr.mxu0 0.0
        %2463 = vmatpush1.msra.mxu0 0.0
        %2464 = vmatprep.subr.mxu0 0.0
        %2465 = vmatpush1.msra.mxu0 0.0
        %2466 = vmatprep.subr.mxu0 0.0
        %2467 = vmatpush1.msra.mxu0 0.0
        %2468 = vmatprep.subr.mxu0 0.0
        %2469 = vmatpush1.msra.mxu0 0.0
        %2470 = vmatprep.subr.mxu0 0.0
        %2471 = vmatpush1.msra.mxu0 0.0
        %2472 = vmatprep.subr.mxu0 0.0
        %2473 = vmatpush1.msra.mxu0 0.0
        %2474 = vmatprep.subr.mxu0 0.0
        %2475 = vmatpush1.msra.mxu0 0.0
        %2476 = vmatprep.subr.mxu0 0.0
        %2477 = vmatpush1.msra.mxu0 0.0
        %2478 = vmatprep.subr.mxu0 0.0
        %2479 = vmatpush1.msra.mxu0 0.0
        %2480 = vmatprep.subr.mxu0 0.0
        %2481 = vmatpush1.msra.mxu0 0.0
        %2482 = vmatprep.subr.mxu0 0.0
        %2483 = vmatpush1.msra.mxu0 0.0
        %2484 = vmatprep.subr.mxu0 0.0
        %2485 = vmatpush1.msra.mxu0 0.0
        %2486 = vmatprep.mubr.f32.mxu0 0.0
        %v2487 = vand.u32 %v2266, 4294901760
        %v2488 = vsub.f32 %v2266, %v2487
        %2489 = vmatmul.mubr.f32.gmra.mrb[0].mxu0 %v2488
        %v2490 = vpop.f32.mrb[0].mxu0
        %v2491 = vadd.f32 %v2417, %v2490
        %v2492 = vpop.f32.mrb[0].mxu0
        %2493 = vdwg.mxu0
        %2494 = vmatprep.subr.mxu0 0.0
        %v2495 = vand.u32 %v2263, 4294901760
        %2496 = vmatpush1.msra.mxu0 %v2495
        %2497 = vmatprep.subr.mxu0 0.0
        %2498 = vmatpush1.msra.mxu0 0.0
        %2499 = vmatprep.subr.mxu0 0.0
        %2500 = vmatpush1.msra.mxu0 0.0
        %2501 = vmatprep.subr.mxu0 0.0
        %2502 = vmatpush1.msra.mxu0 0.0
        %2503 = vmatprep.subr.mxu0 0.0
        %2504 = vmatpush1.msra.mxu0 0.0
        %2505 = vmatprep.subr.mxu0 0.0
        %2506 = vmatpush1.msra.mxu0 0.0
        %2507 = vmatprep.subr.mxu0 0.0
        %2508 = vmatpush1.msra.mxu0 0.0
        %2509 = vmatprep.subr.mxu0 0.0
        %2510 = vmatpush1.msra.mxu0 0.0
        %2511 = vmatprep.subr.mxu0 0.0
        %2512 = vmatpush1.msra.mxu0 0.0
        %2513 = vmatprep.subr.mxu0 0.0
        %2514 = vmatpush1.msra.mxu0 0.0
        %2515 = vmatprep.subr.mxu0 0.0
        %2516 = vmatpush1.msra.mxu0 0.0
        %2517 = vmatprep.subr.mxu0 0.0
        %2518 = vmatpush1.msra.mxu0 0.0
        %2519 = vmatprep.subr.mxu0 0.0
        %2520 = vmatpush1.msra.mxu0 0.0
        %2521 = vmatprep.subr.mxu0 0.0
        %2522 = vmatpush1.msra.mxu0 0.0
        %2523 = vmatprep.subr.mxu0 0.0
        %2524 = vmatpush1.msra.mxu0 0.0
        %2525 = vmatprep.subr.mxu0 0.0
        %2526 = vmatpush1.msra.mxu0 0.0
        %2527 = vmatprep.subr.mxu0 0.0
        %2528 = vmatpush1.msra.mxu0 0.0
        %2529 = vmatprep.subr.mxu0 0.0
        %2530 = vmatpush1.msra.mxu0 0.0
        %2531 = vmatprep.subr.mxu0 0.0
        %2532 = vmatpush1.msra.mxu0 0.0
        %2533 = vmatprep.subr.mxu0 0.0
        %2534 = vmatpush1.msra.mxu0 0.0
        %2535 = vmatprep.subr.mxu0 0.0
        %2536 = vmatpush1.msra.mxu0 0.0
        %2537 = vmatprep.subr.mxu0 0.0
        %2538 = vmatpush1.msra.mxu0 0.0
        %2539 = vmatprep.subr.mxu0 0.0
        %2540 = vmatpush1.msra.mxu0 0.0
        %2541 = vmatprep.subr.mxu0 0.0
        %2542 = vmatpush1.msra.mxu0 0.0
        %2543 = vmatprep.subr.mxu0 0.0
        %2544 = vmatpush1.msra.mxu0 0.0
        %2545 = vmatprep.subr.mxu0 0.0
        %2546 = vmatpush1.msra.mxu0 0.0
        %2547 = vmatprep.subr.mxu0 0.0
        %2548 = vmatpush1.msra.mxu0 0.0
        %2549 = vmatprep.subr.mxu0 0.0
        %2550 = vmatpush1.msra.mxu0 0.0
        %2551 = vmatprep.subr.mxu0 0.0
        %2552 = vmatpush1.msra.mxu0 0.0
        %2553 = vmatprep.subr.mxu0 0.0
        %2554 = vmatpush1.msra.mxu0 0.0
        %2555 = vmatprep.subr.mxu0 0.0
        %2556 = vmatpush1.msra.mxu0 0.0
        %2557 = vmatprep.subr.mxu0 0.0
        %2558 = vmatpush1.msra.mxu0 0.0
        %2559 = vmatprep.mubr.f32.mxu0 0.0
        %v2560 = vand.u32 %v2266, 4294901760
        %v2561 = vsub.f32 %v2266, %v2560
        %v2562 = vand.u32 %v2561, 4294901760
        %2563 = vmatmul.mubr.f32.gmra.mrb[0].mxu0 %v2562
        %v2564 = vpop.f32.mrb[0].mxu0
        %v2565 = vadd.f32 %v2491, %v2564
        %v2566 = vpop.f32.mrb[0].mxu0
        %2567 = vdwg.mxu0
        %2568 = vmatprep.subr.mxu0 0.0
        %v2569 = vand.u32 %v2263, 4294901760
        %v2570 = vsub.f32 %v2263, %v2569
        %v2571 = vand.u32 %v2570, 4294901760
        %2572 = vmatpush1.msra.mxu0 %v2571
        %2573 = vmatprep.subr.mxu0 0.0
        %2574 = vmatpush1.msra.mxu0 0.0
        %2575 = vmatprep.subr.mxu0 0.0
        %2576 = vmatpush1.msra.mxu0 0.0
        %2577 = vmatprep.subr.mxu0 0.0
        %2578 = vmatpush1.msra.mxu0 0.0
        %2579 = vmatprep.subr.mxu0 0.0
        %2580 = vmatpush1.msra.mxu0 0.0
        %2581 = vmatprep.subr.mxu0 0.0
        %2582 = vmatpush1.msra.mxu0 0.0
        %2583 = vmatprep.subr.mxu0 0.0
        %2584 = vmatpush1.msra.mxu0 0.0
        %2585 = vmatprep.subr.mxu0 0.0
        %2586 = vmatpush1.msra.mxu0 0.0
        %2587 = vmatprep.subr.mxu0 0.0
        %2588 = vmatpush1.msra.mxu0 0.0
        %2589 = vmatprep.subr.mxu0 0.0
        %2590 = vmatpush1.msra.mxu0 0.0
        %2591 = vmatprep.subr.mxu0 0.0
        %2592 = vmatpush1.msra.mxu0 0.0
        %2593 = vmatprep.subr.mxu0 0.0
        %2594 = vmatpush1.msra.mxu0 0.0
        %2595 = vmatprep.subr.mxu0 0.0
        %2596 = vmatpush1.msra.mxu0 0.0
        %2597 = vmatprep.subr.mxu0 0.0
        %2598 = vmatpush1.msra.mxu0 0.0
        %2599 = vmatprep.subr.mxu0 0.0
        %2600 = vmatpush1.msra.mxu0 0.0
        %2601 = vmatprep.subr.mxu0 0.0
        %2602 = vmatpush1.msra.mxu0 0.0
        %2603 = vmatprep.subr.mxu0 0.0
        %2604 = vmatpush1.msra.mxu0 0.0
        %2605 = vmatprep.subr.mxu0 0.0
        %2606 = vmatpush1.msra.mxu0 0.0
        %2607 = vmatprep.subr.mxu0 0.0
        %2608 = vmatpush1.msra.mxu0 0.0
        %2609 = vmatprep.subr.mxu0 0.0
        %2610 = vmatpush1.msra.mxu0 0.0
        %2611 = vmatprep.subr.mxu0 0.0
        %2612 = vmatpush1.msra.mxu0 0.0
        %2613 = vmatprep.subr.mxu0 0.0
        %2614 = vmatpush1.msra.mxu0 0.0
        %2615 = vmatprep.subr.mxu0 0.0
        %2616 = vmatpush1.msra.mxu0 0.0
        %2617 = vmatprep.subr.mxu0 0.0
        %2618 = vmatpush1.msra.mxu0 0.0
        %2619 = vmatprep.subr.mxu0 0.0
        %2620 = vmatpush1.msra.mxu0 0.0
        %2621 = vmatprep.subr.mxu0 0.0
        %2622 = vmatpush1.msra.mxu0 0.0
        %2623 = vmatprep.subr.mxu0 0.0
        %2624 = vmatpush1.msra.mxu0 0.0
        %2625 = vmatprep.subr.mxu0 0.0
        %2626 = vmatpush1.msra.mxu0 0.0
        %2627 = vmatprep.subr.mxu0 0.0
        %2628 = vmatpush1.msra.mxu0 0.0
        %2629 = vmatprep.subr.mxu0 0.0
        %2630 = vmatpush1.msra.mxu0 0.0
        %2631 = vmatprep.subr.mxu0 0.0
        %2632 = vmatpush1.msra.mxu0 0.0
        %2633 = vmatprep.subr.mxu0 0.0
        %2634 = vmatpush1.msra.mxu0 0.0
        %2635 = vmatprep.mubr.f32.mxu0 0.0
        %v2636 = vand.u32 %v2266, 4294901760
        %2637 = vmatmul.mubr.f32.gmra.mrb[0].mxu0 %v2636
        %v2638 = vpop.f32.mrb[0].mxu0
        %v2639 = vadd.f32 %v2565, %v2638
        %v2640 = vpop.f32.mrb[0].mxu0
        %2641 = vdwg.mxu0
        %2642 = vmatprep.subr.mxu0 0.0
        %v2643 = vand.u32 %v2263, 4294901760
        %2644 = vmatpush1.msra.mxu0 %v2643
        %2645 = vmatprep.subr.mxu0 0.0
        %2646 = vmatpush1.msra.mxu0 0.0
        %2647 = vmatprep.subr.mxu0 0.0
        %2648 = vmatpush1.msra.mxu0 0.0
        %2649 = vmatprep.subr.mxu0 0.0
        %2650 = vmatpush1.msra.mxu0 0.0
        %2651 = vmatprep.subr.mxu0 0.0
        %2652 = vmatpush1.msra.mxu0 0.0
        %2653 = vmatprep.subr.mxu0 0.0
        %2654 = vmatpush1.msra.mxu0 0.0
        %2655 = vmatprep.subr.mxu0 0.0
        %2656 = vmatpush1.msra.mxu0 0.0
        %2657 = vmatprep.subr.mxu0 0.0
        %2658 = vmatpush1.msra.mxu0 0.0
        %2659 = vmatprep.subr.mxu0 0.0
        %2660 = vmatpush1.msra.mxu0 0.0
        %2661 = vmatprep.subr.mxu0 0.0
        %2662 = vmatpush1.msra.mxu0 0.0
        %2663 = vmatprep.subr.mxu0 0.0
        %2664 = vmatpush1.msra.mxu0 0.0
        %2665 = vmatprep.subr.mxu0 0.0
        %2666 = vmatpush1.msra.mxu0 0.0
        %2667 = vmatprep.subr.mxu0 0.0
        %2668 = vmatpush1.msra.mxu0 0.0
        %2669 = vmatprep.subr.mxu0 0.0
        %2670 = vmatpush1.msra.mxu0 0.0
        %2671 = vmatprep.subr.mxu0 0.0
        %2672 = vmatpush1.msra.mxu0 0.0
        %2673 = vmatprep.subr.mxu0 0.0
        %2674 = vmatpush1.msra.mxu0 0.0
        %2675 = vmatprep.subr.mxu0 0.0
        %2676 = vmatpush1.msra.mxu0 0.0
        %2677 = vmatprep.subr.mxu0 0.0
        %2678 = vmatpush1.msra.mxu0 0.0
        %2679 = vmatprep.subr.mxu0 0.0
        %2680 = vmatpush1.msra.mxu0 0.0
        %2681 = vmatprep.subr.mxu0 0.0
        %2682 = vmatpush1.msra.mxu0 0.0
        %2683 = vmatprep.subr.mxu0 0.0
        %2684 = vmatpush1.msra.mxu0 0.0
        %2685 = vmatprep.subr.mxu0 0.0
        %2686 = vmatpush1.msra.mxu0 0.0
        %2687 = vmatprep.subr.mxu0 0.0
        %2688 = vmatpush1.msra.mxu0 0.0
        %2689 = vmatprep.subr.mxu0 0.0
        %2690 = vmatpush1.msra.mxu0 0.0
        %2691 = vmatprep.subr.mxu0 0.0
        %2692 = vmatpush1.msra.mxu0 0.0
        %2693 = vmatprep.subr.mxu0 0.0
        %2694 = vmatpush1.msra.mxu0 0.0
        %2695 = vmatprep.subr.mxu0 0.0
        %2696 = vmatpush1.msra.mxu0 0.0
        %2697 = vmatprep.subr.mxu0 0.0
        %2698 = vmatpush1.msra.mxu0 0.0
        %2699 = vmatprep.subr.mxu0 0.0
        %2700 = vmatpush1.msra.mxu0 0.0
        %2701 = vmatprep.subr.mxu0 0.0
        %2702 = vmatpush1.msra.mxu0 0.0
        %2703 = vmatprep.subr.mxu0 0.0
        %2704 = vmatpush1.msra.mxu0 0.0
        %2705 = vmatprep.subr.mxu0 0.0
        %2706 = vmatpush1.msra.mxu0 0.0
        %2707 = vmatprep.mubr.f32.mxu0 0.0
        %v2708 = vand.u32 %v2266, 4294901760
        %2709 = vmatmul.mubr.f32.gmra.mrb[0].mxu0 %v2708
        %v2710 = vpop.f32.mrb[0].mxu0
        %v2711 = vadd.f32 %v2639, %v2710
        %v2712 = vpop.f32.mrb[0].mxu0
        %2713 = vdwg.mxu0
        %v2715 = vsel %vm873, %v2711, 0
        %2717 = vmatprep.subr.mxu0 0.0
        %v2718 = vand.u32 %v867, 4294901760
        %2719 = vmatpush1.msra.mxu0 %v2718
        %2720 = vmatprep.subr.mxu0 0.0
        %2721 = vmatpush1.msra.mxu0 0.0
        %2722 = vmatprep.subr.mxu0 0.0
        %2723 = vmatpush1.msra.mxu0 0.0
        %2724 = vmatprep.subr.mxu0 0.0
        %2725 = vmatpush1.msra.mxu0 0.0
        %2726 = vmatprep.subr.mxu0 0.0
        %2727 = vmatpush1.msra.mxu0 0.0
        %2728 = vmatprep.subr.mxu0 0.0
        %2729 = vmatpush1.msra.mxu0 0.0
        %2730 = vmatprep.subr.mxu0 0.0
        %2731 = vmatpush1.msra.mxu0 0.0
        %2732 = vmatprep.subr.mxu0 0.0
        %2733 = vmatpush1.msra.mxu0 0.0
        %2734 = vmatprep.subr.mxu0 0.0
        %2735 = vmatpush1.msra.mxu0 0.0
        %2736 = vmatprep.subr.mxu0 0.0
        %2737 = vmatpush1.msra.mxu0 0.0
        %2738 = vmatprep.subr.mxu0 0.0
        %2739 = vmatpush1.msra.mxu0 0.0
        %2740 = vmatprep.subr.mxu0 0.0
        %2741 = vmatpush1.msra.mxu0 0.0
        %2742 = vmatprep.subr.mxu0 0.0
        %2743 = vmatpush1.msra.mxu0 0.0
        %2744 = vmatprep.subr.mxu0 0.0
        %2745 = vmatpush1.msra.mxu0 0.0
        %2746 = vmatprep.subr.mxu0 0.0
        %2747 = vmatpush1.msra.mxu0 0.0
        %2748 = vmatprep.subr.mxu0 0.0
        %2749 = vmatpush1.msra.mxu0 0.0
        %2750 = vmatprep.subr.mxu0 0.0
        %2751 = vmatpush1.msra.mxu0 0.0
        %2752 = vmatprep.subr.mxu0 0.0
        %2753 = vmatpush1.msra.mxu0 0.0
        %2754 = vmatprep.subr.mxu0 0.0
        %2755 = vmatpush1.msra.mxu0 0.0
        %2756 = vmatprep.subr.mxu0 0.0
        %2757 = vmatpush1.msra.mxu0 0.0
        %2758 = vmatprep.subr.mxu0 0.0
        %2759 = vmatpush1.msra.mxu0 0.0
        %2760 = vmatprep.subr.mxu0 0.0
        %2761 = vmatpush1.msra.mxu0 0.0
        %2762 = vmatprep.subr.mxu0 0.0
        %2763 = vmatpush1.msra.mxu0 0.0
        %2764 = vmatprep.subr.mxu0 0.0
        %2765 = vmatpush1.msra.mxu0 0.0
        %2766 = vmatprep.subr.mxu0 0.0
        %2767 = vmatpush1.msra.mxu0 0.0
        %2768 = vmatprep.subr.mxu0 0.0
        %2769 = vmatpush1.msra.mxu0 0.0
        %2770 = vmatprep.subr.mxu0 0.0
        %2771 = vmatpush1.msra.mxu0 0.0
        %2772 = vmatprep.subr.mxu0 0.0
        %2773 = vmatpush1.msra.mxu0 0.0
        %2774 = vmatprep.subr.mxu0 0.0
        %2775 = vmatpush1.msra.mxu0 0.0
        %2776 = vmatprep.subr.mxu0 0.0
        %2777 = vmatpush1.msra.mxu0 0.0
        %2778 = vmatprep.subr.mxu0 0.0
        %2779 = vmatpush1.msra.mxu0 0.0
        %2780 = vmatprep.subr.mxu0 0.0
        %2781 = vmatpush1.msra.mxu0 0.0
        %2782 = vmatprep.mubr.f32.mxu0 0.0
        %v2783 = vand.u32 %v2715, 4294901760
        %v2784 = vsub.f32 %v2715, %v2783
        %v2785 = vand.u32 %v2784, 4294901760
        %v2786 = vsub.f32 %v2784, %v2785
        %v2787 = vand.u32 %v2786, 4294901760
        %2788 = vmatmul.mubr.f32.gmra.mrb[0].mxu0 %v2787
        %v2789 = vpop.f32.mrb[0].mxu0
        %v2790 = vadd.f32 0.0, %v2789
        %v2791 = vpop.f32.mrb[0].mxu0
        %2792 = vdwg.mxu0
        %2793 = vmatprep.subr.mxu0 0.0
        %v2794 = vand.u32 %v867, 4294901760
        %v2795 = vsub.f32 %v867, %v2794
        %v2796 = vand.u32 %v2795, 4294901760
        %v2797 = vsub.f32 %v2795, %v2796
        %v2798 = vand.u32 %v2797, 4294901760
        %2799 = vmatpush1.msra.mxu0 %v2798
        %2800 = vmatprep.subr.mxu0 0.0
        %2801 = vmatpush1.msra.mxu0 0.0
        %2802 = vmatprep.subr.mxu0 0.0
        %2803 = vmatpush1.msra.mxu0 0.0
        %2804 = vmatprep.subr.mxu0 0.0
        %2805 = vmatpush1.msra.mxu0 0.0
        %2806 = vmatprep.subr.mxu0 0.0
        %2807 = vmatpush1.msra.mxu0 0.0
        %2808 = vmatprep.subr.mxu0 0.0
        %2809 = vmatpush1.msra.mxu0 0.0
        %2810 = vmatprep.subr.mxu0 0.0
        %2811 = vmatpush1.msra.mxu0 0.0
        %2812 = vmatprep.subr.mxu0 0.0
        %2813 = vmatpush1.msra.mxu0 0.0
        %2814 = vmatprep.subr.mxu0 0.0
        %2815 = vmatpush1.msra.mxu0 0.0
        %2816 = vmatprep.subr.mxu0 0.0
        %2817 = vmatpush1.msra.mxu0 0.0
        %2818 = vmatprep.subr.mxu0 0.0
        %2819 = vmatpush1.msra.mxu0 0.0
        %2820 = vmatprep.subr.mxu0 0.0
        %2821 = vmatpush1.msra.mxu0 0.0
        %2822 = vmatprep.subr.mxu0 0.0
        %2823 = vmatpush1.msra.mxu0 0.0
        %2824 = vmatprep.subr.mxu0 0.0
        %2825 = vmatpush1.msra.mxu0 0.0
        %2826 = vmatprep.subr.mxu0 0.0
        %2827 = vmatpush1.msra.mxu0 0.0
        %2828 = vmatprep.subr.mxu0 0.0
        %2829 = vmatpush1.msra.mxu0 0.0
        %2830 = vmatprep.subr.mxu0 0.0
        %2831 = vmatpush1.msra.mxu0 0.0
        %2832 = vmatprep.subr.mxu0 0.0
        %2833 = vmatpush1.msra.mxu0 0.0
        %2834 = vmatprep.subr.mxu0 0.0
        %2835 = vmatpush1.msra.mxu0 0.0
        %2836 = vmatprep.subr.mxu0 0.0
        %2837 = vmatpush1.msra.mxu0 0.0
        %2838 = vmatprep.subr.mxu0 0.0
        %2839 = vmatpush1.msra.mxu0 0.0
        %2840 = vmatprep.subr.mxu0 0.0
        %2841 = vmatpush1.msra.mxu0 0.0
        %2842 = vmatprep.subr.mxu0 0.0
        %2843 = vmatpush1.msra.mxu0 0.0
        %2844 = vmatprep.subr.mxu0 0.0
        %2845 = vmatpush1.msra.mxu0 0.0
        %2846 = vmatprep.subr.mxu0 0.0
        %2847 = vmatpush1.msra.mxu0 0.0
        %2848 = vmatprep.subr.mxu0 0.0
        %2849 = vmatpush1.msra.mxu0 0.0
        %2850 = vmatprep.subr.mxu0 0.0
        %2851 = vmatpush1.msra.mxu0 0.0
        %2852 = vmatprep.subr.mxu0 0.0
        %2853 = vmatpush1.msra.mxu0 0.0
        %2854 = vmatprep.subr.mxu0 0.0
        %2855 = vmatpush1.msra.mxu0 0.0
        %2856 = vmatprep.subr.mxu0 0.0
        %2857 = vmatpush1.msra.mxu0 0.0
        %2858 = vmatprep.subr.mxu0 0.0
        %2859 = vmatpush1.msra.mxu0 0.0
        %2860 = vmatprep.subr.mxu0 0.0
        %2861 = vmatpush1.msra.mxu0 0.0
        %2862 = vmatprep.mubr.f32.mxu0 0.0
        %v2863 = vand.u32 %v2715, 4294901760
        %2864 = vmatmul.mubr.f32.gmra.mrb[0].mxu0 %v2863
        %v2865 = vpop.f32.mrb[0].mxu0
        %v2866 = vadd.f32 %v2790, %v2865
        %v2867 = vpop.f32.mrb[0].mxu0
        %2868 = vdwg.mxu0
        %2869 = vmatprep.subr.mxu0 0.0
        %v2870 = vand.u32 %v867, 4294901760
        %v2871 = vsub.f32 %v867, %v2870
        %2872 = vmatpush1.msra.mxu0 %v2871
        %2873 = vmatprep.subr.mxu0 0.0
        %2874 = vmatpush1.msra.mxu0 0.0
        %2875 = vmatprep.subr.mxu0 0.0
        %2876 = vmatpush1.msra.mxu0 0.0
        %2877 = vmatprep.subr.mxu0 0.0
        %2878 = vmatpush1.msra.mxu0 0.0
        %2879 = vmatprep.subr.mxu0 0.0
        %2880 = vmatpush1.msra.mxu0 0.0
        %2881 = vmatprep.subr.mxu0 0.0
        %2882 = vmatpush1.msra.mxu0 0.0
        %2883 = vmatprep.subr.mxu0 0.0
        %2884 = vmatpush1.msra.mxu0 0.0
        %2885 = vmatprep.subr.mxu0 0.0
        %2886 = vmatpush1.msra.mxu0 0.0
        %2887 = vmatprep.subr.mxu0 0.0
        %2888 = vmatpush1.msra.mxu0 0.0
        %2889 = vmatprep.subr.mxu0 0.0
        %2890 = vmatpush1.msra.mxu0 0.0
        %2891 = vmatprep.subr.mxu0 0.0
        %2892 = vmatpush1.msra.mxu0 0.0
        %2893 = vmatprep.subr.mxu0 0.0
        %2894 = vmatpush1.msra.mxu0 0.0
        %2895 = vmatprep.subr.mxu0 0.0
        %2896 = vmatpush1.msra.mxu0 0.0
        %2897 = vmatprep.subr.mxu0 0.0
        %2898 = vmatpush1.msra.mxu0 0.0
        %2899 = vmatprep.subr.mxu0 0.0
        %2900 = vmatpush1.msra.mxu0 0.0
        %2901 = vmatprep.subr.mxu0 0.0
        %2902 = vmatpush1.msra.mxu0 0.0
        %2903 = vmatprep.subr.mxu0 0.0
        %2904 = vmatpush1.msra.mxu0 0.0
        %2905 = vmatprep.subr.mxu0 0.0
        %2906 = vmatpush1.msra.mxu0 0.0
        %2907 = vmatprep.subr.mxu0 0.0
        %2908 = vmatpush1.msra.mxu0 0.0
        %2909 = vmatprep.subr.mxu0 0.0
        %2910 = vmatpush1.msra.mxu0 0.0
        %2911 = vmatprep.subr.mxu0 0.0
        %2912 = vmatpush1.msra.mxu0 0.0
        %2913 = vmatprep.subr.mxu0 0.0
        %2914 = vmatpush1.msra.mxu0 0.0
        %2915 = vmatprep.subr.mxu0 0.0
        %2916 = vmatpush1.msra.mxu0 0.0
        %2917 = vmatprep.subr.mxu0 0.0
        %2918 = vmatpush1.msra.mxu0 0.0
        %2919 = vmatprep.subr.mxu0 0.0
        %2920 = vmatpush1.msra.mxu0 0.0
        %2921 = vmatprep.subr.mxu0 0.0
        %2922 = vmatpush1.msra.mxu0 0.0
        %2923 = vmatprep.subr.mxu0 0.0
        %2924 = vmatpush1.msra.mxu0 0.0
        %2925 = vmatprep.subr.mxu0 0.0
        %2926 = vmatpush1.msra.mxu0 0.0
        %2927 = vmatprep.subr.mxu0 0.0
        %2928 = vmatpush1.msra.mxu0 0.0
        %2929 = vmatprep.subr.mxu0 0.0
        %2930 = vmatpush1.msra.mxu0 0.0
        %2931 = vmatprep.subr.mxu0 0.0
        %2932 = vmatpush1.msra.mxu0 0.0
        %2933 = vmatprep.subr.mxu0 0.0
        %2934 = vmatpush1.msra.mxu0 0.0
        %2935 = vmatprep.mubr.f32.mxu0 0.0
        %v2936 = vand.u32 %v2715, 4294901760
        %v2937 = vsub.f32 %v2715, %v2936
        %2938 = vmatmul.mubr.f32.gmra.mrb[0].mxu0 %v2937
        %v2939 = vpop.f32.mrb[0].mxu0
        %v2940 = vadd.f32 %v2866, %v2939
        %v2941 = vpop.f32.mrb[0].mxu0
        %2942 = vdwg.mxu0
        %2943 = vmatprep.subr.mxu0 0.0
        %v2944 = vand.u32 %v867, 4294901760
        %2945 = vmatpush1.msra.mxu0 %v2944
        %2946 = vmatprep.subr.mxu0 0.0
        %2947 = vmatpush1.msra.mxu0 0.0
        %2948 = vmatprep.subr.mxu0 0.0
        %2949 = vmatpush1.msra.mxu0 0.0
        %2950 = vmatprep.subr.mxu0 0.0
        %2951 = vmatpush1.msra.mxu0 0.0
        %2952 = vmatprep.subr.mxu0 0.0
        %2953 = vmatpush1.msra.mxu0 0.0
        %2954 = vmatprep.subr.mxu0 0.0
        %2955 = vmatpush1.msra.mxu0 0.0
        %2956 = vmatprep.subr.mxu0 0.0
        %2957 = vmatpush1.msra.mxu0 0.0
        %2958 = vmatprep.subr.mxu0 0.0
        %2959 = vmatpush1.msra.mxu0 0.0
        %2960 = vmatprep.subr.mxu0 0.0
        %2961 = vmatpush1.msra.mxu0 0.0
        %2962 = vmatprep.subr.mxu0 0.0
        %2963 = vmatpush1.msra.mxu0 0.0
        %2964 = vmatprep.subr.mxu0 0.0
        %2965 = vmatpush1.msra.mxu0 0.0
        %2966 = vmatprep.subr.mxu0 0.0
        %2967 = vmatpush1.msra.mxu0 0.0
        %2968 = vmatprep.subr.mxu0 0.0
        %2969 = vmatpush1.msra.mxu0 0.0
        %2970 = vmatprep.subr.mxu0 0.0
        %2971 = vmatpush1.msra.mxu0 0.0
        %2972 = vmatprep.subr.mxu0 0.0
        %2973 = vmatpush1.msra.mxu0 0.0
        %2974 = vmatprep.subr.mxu0 0.0
        %2975 = vmatpush1.msra.mxu0 0.0
        %2976 = vmatprep.subr.mxu0 0.0
        %2977 = vmatpush1.msra.mxu0 0.0
        %2978 = vmatprep.subr.mxu0 0.0
        %2979 = vmatpush1.msra.mxu0 0.0
        %2980 = vmatprep.subr.mxu0 0.0
        %2981 = vmatpush1.msra.mxu0 0.0
        %2982 = vmatprep.subr.mxu0 0.0
        %2983 = vmatpush1.msra.mxu0 0.0
        %2984 = vmatprep.subr.mxu0 0.0
        %2985 = vmatpush1.msra.mxu0 0.0
        %2986 = vmatprep.subr.mxu0 0.0
        %2987 = vmatpush1.msra.mxu0 0.0
        %2988 = vmatprep.subr.mxu0 0.0
        %2989 = vmatpush1.msra.mxu0 0.0
        %2990 = vmatprep.subr.mxu0 0.0
        %2991 = vmatpush1.msra.mxu0 0.0
        %2992 = vmatprep.subr.mxu0 0.0
        %2993 = vmatpush1.msra.mxu0 0.0
        %2994 = vmatprep.subr.mxu0 0.0
        %2995 = vmatpush1.msra.mxu0 0.0
        %2996 = vmatprep.subr.mxu0 0.0
        %2997 = vmatpush1.msra.mxu0 0.0
        %2998 = vmatprep.subr.mxu0 0.0
        %2999 = vmatpush1.msra.mxu0 0.0
        %3000 = vmatprep.subr.mxu0 0.0
        %3001 = vmatpush1.msra.mxu0 0.0
        %3002 = vmatprep.subr.mxu0 0.0
        %3003 = vmatpush1.msra.mxu0 0.0
        %3004 = vmatprep.subr.mxu0 0.0
        %3005 = vmatpush1.msra.mxu0 0.0
        %3006 = vmatprep.subr.mxu0 0.0
        %3007 = vmatpush1.msra.mxu0 0.0
        %3008 = vmatprep.mubr.f32.mxu0 0.0
        %v3009 = vand.u32 %v2715, 4294901760
        %v3010 = vsub.f32 %v2715, %v3009
        %v3011 = vand.u32 %v3010, 4294901760
        %3012 = vmatmul.mubr.f32.gmra.mrb[0].mxu0 %v3011
        %v3013 = vpop.f32.mrb[0].mxu0
        %v3014 = vadd.f32 %v2940, %v3013
        %v3015 = vpop.f32.mrb[0].mxu0
        %3016 = vdwg.mxu0
        %3017 = vmatprep.subr.mxu0 0.0
        %v3018 = vand.u32 %v867, 4294901760
        %v3019 = vsub.f32 %v867, %v3018
        %v3020 = vand.u32 %v3019, 4294901760
        %3021 = vmatpush1.msra.mxu0 %v3020
        %3022 = vmatprep.subr.mxu0 0.0
        %3023 = vmatpush1.msra.mxu0 0.0
        %3024 = vmatprep.subr.mxu0 0.0
        %3025 = vmatpush1.msra.mxu0 0.0
        %3026 = vmatprep.subr.mxu0 0.0
        %3027 = vmatpush1.msra.mxu0 0.0
        %3028 = vmatprep.subr.mxu0 0.0
        %3029 = vmatpush1.msra.mxu0 0.0
        %3030 = vmatprep.subr.mxu0 0.0
        %3031 = vmatpush1.msra.mxu0 0.0
        %3032 = vmatprep.subr.mxu0 0.0
        %3033 = vmatpush1.msra.mxu0 0.0
        %3034 = vmatprep.subr.mxu0 0.0
        %3035 = vmatpush1.msra.mxu0 0.0
        %3036 = vmatprep.subr.mxu0 0.0
        %3037 = vmatpush1.msra.mxu0 0.0
        %3038 = vmatprep.subr.mxu0 0.0
        %3039 = vmatpush1.msra.mxu0 0.0
        %3040 = vmatprep.subr.mxu0 0.0
        %3041 = vmatpush1.msra.mxu0 0.0
        %3042 = vmatprep.subr.mxu0 0.0
        %3043 = vmatpush1.msra.mxu0 0.0
        %3044 = vmatprep.subr.mxu0 0.0
        %3045 = vmatpush1.msra.mxu0 0.0
        %3046 = vmatprep.subr.mxu0 0.0
        %3047 = vmatpush1.msra.mxu0 0.0
        %3048 = vmatprep.subr.mxu0 0.0
        %3049 = vmatpush1.msra.mxu0 0.0
        %3050 = vmatprep.subr.mxu0 0.0
        %3051 = vmatpush1.msra.mxu0 0.0
        %3052 = vmatprep.subr.mxu0 0.0
        %3053 = vmatpush1.msra.mxu0 0.0
        %3054 = vmatprep.subr.mxu0 0.0
        %3055 = vmatpush1.msra.mxu0 0.0
        %3056 = vmatprep.subr.mxu0 0.0
        %3057 = vmatpush1.msra.mxu0 0.0
        %3058 = vmatprep.subr.mxu0 0.0
        %3059 = vmatpush1.msra.mxu0 0.0
        %3060 = vmatprep.subr.mxu0 0.0
        %3061 = vmatpush1.msra.mxu0 0.0
        %3062 = vmatprep.subr.mxu0 0.0
        %3063 = vmatpush1.msra.mxu0 0.0
        %3064 = vmatprep.subr.mxu0 0.0
        %3065 = vmatpush1.msra.mxu0 0.0
        %3066 = vmatprep.subr.mxu0 0.0
        %3067 = vmatpush1.msra.mxu0 0.0
        %3068 = vmatprep.subr.mxu0 0.0
        %3069 = vmatpush1.msra.mxu0 0.0
        %3070 = vmatprep.subr.mxu0 0.0
        %3071 = vmatpush1.msra.mxu0 0.0
        %3072 = vmatprep.subr.mxu0 0.0
        %3073 = vmatpush1.msra.mxu0 0.0
        %3074 = vmatprep.subr.mxu0 0.0
        %3075 = vmatpush1.msra.mxu0 0.0
        %3076 = vmatprep.subr.mxu0 0.0
        %3077 = vmatpush1.msra.mxu0 0.0
        %3078 = vmatprep.subr.mxu0 0.0
        %3079 = vmatpush1.msra.mxu0 0.0
        %3080 = vmatprep.subr.mxu0 0.0
        %3081 = vmatpush1.msra.mxu0 0.0
        %3082 = vmatprep.subr.mxu0 0.0
        %3083 = vmatpush1.msra.mxu0 0.0
        %3084 = vmatprep.mubr.f32.mxu0 0.0
        %v3085 = vand.u32 %v2715, 4294901760
        %3086 = vmatmul.mubr.f32.gmra.mrb[0].mxu0 %v3085
        %v3087 = vpop.f32.mrb[0].mxu0
        %v3088 = vadd.f32 %v3014, %v3087
        %v3089 = vpop.f32.mrb[0].mxu0
        %3090 = vdwg.mxu0
        %3091 = vmatprep.subr.mxu0 0.0
        %v3092 = vand.u32 %v867, 4294901760
        %3093 = vmatpush1.msra.mxu0 %v3092
        %3094 = vmatprep.subr.mxu0 0.0
        %3095 = vmatpush1.msra.mxu0 0.0
        %3096 = vmatprep.subr.mxu0 0.0
        %3097 = vmatpush1.msra.mxu0 0.0
        %3098 = vmatprep.subr.mxu0 0.0
        %3099 = vmatpush1.msra.mxu0 0.0
        %3100 = vmatprep.subr.mxu0 0.0
        %3101 = vmatpush1.msra.mxu0 0.0
        %3102 = vmatprep.subr.mxu0 0.0
        %3103 = vmatpush1.msra.mxu0 0.0
        %3104 = vmatprep.subr.mxu0 0.0
        %3105 = vmatpush1.msra.mxu0 0.0
        %3106 = vmatprep.subr.mxu0 0.0
        %3107 = vmatpush1.msra.mxu0 0.0
        %3108 = vmatprep.subr.mxu0 0.0
        %3109 = vmatpush1.msra.mxu0 0.0
        %3110 = vmatprep.subr.mxu0 0.0
        %3111 = vmatpush1.msra.mxu0 0.0
        %3112 = vmatprep.subr.mxu0 0.0
        %3113 = vmatpush1.msra.mxu0 0.0
        %3114 = vmatprep.subr.mxu0 0.0
        %3115 = vmatpush1.msra.mxu0 0.0
        %3116 = vmatprep.subr.mxu0 0.0
        %3117 = vmatpush1.msra.mxu0 0.0
        %3118 = vmatprep.subr.mxu0 0.0
        %3119 = vmatpush1.msra.mxu0 0.0
        %3120 = vmatprep.subr.mxu0 0.0
        %3121 = vmatpush1.msra.mxu0 0.0
        %3122 = vmatprep.subr.mxu0 0.0
        %3123 = vmatpush1.msra.mxu0 0.0
        %3124 = vmatprep.subr.mxu0 0.0
        %3125 = vmatpush1.msra.mxu0 0.0
        %3126 = vmatprep.subr.mxu0 0.0
        %3127 = vmatpush1.msra.mxu0 0.0
        %3128 = vmatprep.subr.mxu0 0.0
        %3129 = vmatpush1.msra.mxu0 0.0
        %3130 = vmatprep.subr.mxu0 0.0
        %3131 = vmatpush1.msra.mxu0 0.0
        %3132 = vmatprep.subr.mxu0 0.0
        %3133 = vmatpush1.msra.mxu0 0.0
        %3134 = vmatprep.subr.mxu0 0.0
        %3135 = vmatpush1.msra.mxu0 0.0
        %3136 = vmatprep.subr.mxu0 0.0
        %3137 = vmatpush1.msra.mxu0 0.0
        %3138 = vmatprep.subr.mxu0 0.0
        %3139 = vmatpush1.msra.mxu0 0.0
        %3140 = vmatprep.subr.mxu0 0.0
        %3141 = vmatpush1.msra.mxu0 0.0
        %3142 = vmatprep.subr.mxu0 0.0
        %3143 = vmatpush1.msra.mxu0 0.0
        %3144 = vmatprep.subr.mxu0 0.0
        %3145 = vmatpush1.msra.mxu0 0.0
        %3146 = vmatprep.subr.mxu0 0.0
        %3147 = vmatpush1.msra.mxu0 0.0
        %3148 = vmatprep.subr.mxu0 0.0
        %3149 = vmatpush1.msra.mxu0 0.0
        %3150 = vmatprep.subr.mxu0 0.0
        %3151 = vmatpush1.msra.mxu0 0.0
        %3152 = vmatprep.subr.mxu0 0.0
        %3153 = vmatpush1.msra.mxu0 0.0
        %3154 = vmatprep.subr.mxu0 0.0
        %3155 = vmatpush1.msra.mxu0 0.0
        %3156 = vmatprep.mubr.f32.mxu0 0.0
        %v3157 = vand.u32 %v2715, 4294901760
        %3158 = vmatmul.mubr.f32.gmra.mrb[0].mxu0 %v3157
        %v3159 = vpop.f32.mrb[0].mxu0
        %v3160 = vadd.f32 %v3088, %v3159
        %v3161 = vpop.f32.mrb[0].mxu0
        %3162 = vdwg.mxu0
        %v3164 = vsel %vm873, %v1792, 0
        %3166 = vmatprep.subr.mxu0 0.0
        %v3167 = vand.u32 %v866, 4294901760
        %3168 = vmatpush1.msra.mxu0 %v3167
        %3169 = vmatprep.subr.mxu0 0.0
        %3170 = vmatpush1.msra.mxu0 0.0
        %3171 = vmatprep.subr.mxu0 0.0
        %3172 = vmatpush1.msra.mxu0 0.0
        %3173 = vmatprep.subr.mxu0 0.0
        %3174 = vmatpush1.msra.mxu0 0.0
        %3175 = vmatprep.subr.mxu0 0.0
        %3176 = vmatpush1.msra.mxu0 0.0
        %3177 = vmatprep.subr.mxu0 0.0
        %3178 = vmatpush1.msra.mxu0 0.0
        %3179 = vmatprep.subr.mxu0 0.0
        %3180 = vmatpush1.msra.mxu0 0.0
        %3181 = vmatprep.subr.mxu0 0.0
        %3182 = vmatpush1.msra.mxu0 0.0
        %3183 = vmatprep.subr.mxu0 0.0
        %3184 = vmatpush1.msra.mxu0 0.0
        %3185 = vmatprep.subr.mxu0 0.0
        %3186 = vmatpush1.msra.mxu0 0.0
        %3187 = vmatprep.subr.mxu0 0.0
        %3188 = vmatpush1.msra.mxu0 0.0
        %3189 = vmatprep.subr.mxu0 0.0
        %3190 = vmatpush1.msra.mxu0 0.0
        %3191 = vmatprep.subr.mxu0 0.0
        %3192 = vmatpush1.msra.mxu0 0.0
        %3193 = vmatprep.subr.mxu0 0.0
        %3194 = vmatpush1.msra.mxu0 0.0
        %3195 = vmatprep.subr.mxu0 0.0
        %3196 = vmatpush1.msra.mxu0 0.0
        %3197 = vmatprep.subr.mxu0 0.0
        %3198 = vmatpush1.msra.mxu0 0.0
        %3199 = vmatprep.subr.mxu0 0.0
        %3200 = vmatpush1.msra.mxu0 0.0
        %3201 = vmatprep.subr.mxu0 0.0
        %3202 = vmatpush1.msra.mxu0 0.0
        %3203 = vmatprep.subr.mxu0 0.0
        %3204 = vmatpush1.msra.mxu0 0.0
        %3205 = vmatprep.subr.mxu0 0.0
        %3206 = vmatpush1.msra.mxu0 0.0
        %3207 = vmatprep.subr.mxu0 0.0
        %3208 = vmatpush1.msra.mxu0 0.0
        %3209 = vmatprep.subr.mxu0 0.0
        %3210 = vmatpush1.msra.mxu0 0.0
        %3211 = vmatprep.subr.mxu0 0.0
        %3212 = vmatpush1.msra.mxu0 0.0
        %3213 = vmatprep.subr.mxu0 0.0
        %3214 = vmatpush1.msra.mxu0 0.0
        %3215 = vmatprep.subr.mxu0 0.0
        %3216 = vmatpush1.msra.mxu0 0.0
        %3217 = vmatprep.subr.mxu0 0.0
        %3218 = vmatpush1.msra.mxu0 0.0
        %3219 = vmatprep.subr.mxu0 0.0
        %3220 = vmatpush1.msra.mxu0 0.0
        %3221 = vmatprep.subr.mxu0 0.0
        %3222 = vmatpush1.msra.mxu0 0.0
        %3223 = vmatprep.subr.mxu0 0.0
        %3224 = vmatpush1.msra.mxu0 0.0
        %3225 = vmatprep.subr.mxu0 0.0
        %3226 = vmatpush1.msra.mxu0 0.0
        %3227 = vmatprep.subr.mxu0 0.0
        %3228 = vmatpush1.msra.mxu0 0.0
        %3229 = vmatprep.subr.mxu0 0.0
        %3230 = vmatpush1.msra.mxu0 0.0
        %3231 = vmatprep.mubr.f32.mxu0 0.0
        %v3232 = vand.u32 %v3164, 4294901760
        %v3233 = vsub.f32 %v3164, %v3232
        %v3234 = vand.u32 %v3233, 4294901760
        %v3235 = vsub.f32 %v3233, %v3234
        %v3236 = vand.u32 %v3235, 4294901760
        %3237 = vmatmul.mubr.f32.gmra.mrb[0].mxu0 %v3236
        %v3238 = vpop.f32.mrb[0].mxu0
        %v3239 = vadd.f32 %v3160, %v3238
        %v3240 = vpop.f32.mrb[0].mxu0
        %3241 = vdwg.mxu0
        %3242 = vmatprep.subr.mxu0 0.0
        %v3243 = vand.u32 %v866, 4294901760
        %v3244 = vsub.f32 %v866, %v3243
        %v3245 = vand.u32 %v3244, 4294901760
        %v3246 = vsub.f32 %v3244, %v3245
        %v3247 = vand.u32 %v3246, 4294901760
        %3248 = vmatpush1.msra.mxu0 %v3247
        %3249 = vmatprep.subr.mxu0 0.0
        %3250 = vmatpush1.msra.mxu0 0.0
        %3251 = vmatprep.subr.mxu0 0.0
        %3252 = vmatpush1.msra.mxu0 0.0
        %3253 = vmatprep.subr.mxu0 0.0
        %3254 = vmatpush1.msra.mxu0 0.0
        %3255 = vmatprep.subr.mxu0 0.0
        %3256 = vmatpush1.msra.mxu0 0.0
        %3257 = vmatprep.subr.mxu0 0.0
        %3258 = vmatpush1.msra.mxu0 0.0
        %3259 = vmatprep.subr.mxu0 0.0
        %3260 = vmatpush1.msra.mxu0 0.0
        %3261 = vmatprep.subr.mxu0 0.0
        %3262 = vmatpush1.msra.mxu0 0.0
        %3263 = vmatprep.subr.mxu0 0.0
        %3264 = vmatpush1.msra.mxu0 0.0
        %3265 = vmatprep.subr.mxu0 0.0
        %3266 = vmatpush1.msra.mxu0 0.0
        %3267 = vmatprep.subr.mxu0 0.0
        %3268 = vmatpush1.msra.mxu0 0.0
        %3269 = vmatprep.subr.mxu0 0.0
        %3270 = vmatpush1.msra.mxu0 0.0
        %3271 = vmatprep.subr.mxu0 0.0
        %3272 = vmatpush1.msra.mxu0 0.0
        %3273 = vmatprep.subr.mxu0 0.0
        %3274 = vmatpush1.msra.mxu0 0.0
        %3275 = vmatprep.subr.mxu0 0.0
        %3276 = vmatpush1.msra.mxu0 0.0
        %3277 = vmatprep.subr.mxu0 0.0
        %3278 = vmatpush1.msra.mxu0 0.0
        %3279 = vmatprep.subr.mxu0 0.0
        %3280 = vmatpush1.msra.mxu0 0.0
        %3281 = vmatprep.subr.mxu0 0.0
        %3282 = vmatpush1.msra.mxu0 0.0
        %3283 = vmatprep.subr.mxu0 0.0
        %3284 = vmatpush1.msra.mxu0 0.0
        %3285 = vmatprep.subr.mxu0 0.0
        %3286 = vmatpush1.msra.mxu0 0.0
        %3287 = vmatprep.subr.mxu0 0.0
        %3288 = vmatpush1.msra.mxu0 0.0
        %3289 = vmatprep.subr.mxu0 0.0
        %3290 = vmatpush1.msra.mxu0 0.0
        %3291 = vmatprep.subr.mxu0 0.0
        %3292 = vmatpush1.msra.mxu0 0.0
        %3293 = vmatprep.subr.mxu0 0.0
        %3294 = vmatpush1.msra.mxu0 0.0
        %3295 = vmatprep.subr.mxu0 0.0
        %3296 = vmatpush1.msra.mxu0 0.0
        %3297 = vmatprep.subr.mxu0 0.0
        %3298 = vmatpush1.msra.mxu0 0.0
        %3299 = vmatprep.subr.mxu0 0.0
        %3300 = vmatpush1.msra.mxu0 0.0
        %3301 = vmatprep.subr.mxu0 0.0
        %3302 = vmatpush1.msra.mxu0 0.0
        %3303 = vmatprep.subr.mxu0 0.0
        %3304 = vmatpush1.msra.mxu0 0.0
        %3305 = vmatprep.subr.mxu0 0.0
        %3306 = vmatpush1.msra.mxu0 0.0
        %3307 = vmatprep.subr.mxu0 0.0
        %3308 = vmatpush1.msra.mxu0 0.0
        %3309 = vmatprep.subr.mxu0 0.0
        %3310 = vmatpush1.msra.mxu0 0.0
        %3311 = vmatprep.mubr.f32.mxu0 0.0
        %v3312 = vand.u32 %v3164, 4294901760
        %3313 = vmatmul.mubr.f32.gmra.mrb[0].mxu0 %v3312
        %v3314 = vpop.f32.mrb[0].mxu0
        %v3315 = vadd.f32 %v3239, %v3314
        %v3316 = vpop.f32.mrb[0].mxu0
        %3317 = vdwg.mxu0
        %3318 = vmatprep.subr.mxu0 0.0
        %v3319 = vand.u32 %v866, 4294901760
        %v3320 = vsub.f32 %v866, %v3319
        %3321 = vmatpush1.msra.mxu0 %v3320
        %3322 = vmatprep.subr.mxu0 0.0
        %3323 = vmatpush1.msra.mxu0 0.0
        %3324 = vmatprep.subr.mxu0 0.0
        %3325 = vmatpush1.msra.mxu0 0.0
        %3326 = vmatprep.subr.mxu0 0.0
        %3327 = vmatpush1.msra.mxu0 0.0
        %3328 = vmatprep.subr.mxu0 0.0
        %3329 = vmatpush1.msra.mxu0 0.0
        %3330 = vmatprep.subr.mxu0 0.0
        %3331 = vmatpush1.msra.mxu0 0.0
        %3332 = vmatprep.subr.mxu0 0.0
        %3333 = vmatpush1.msra.mxu0 0.0
        %3334 = vmatprep.subr.mxu0 0.0
        %3335 = vmatpush1.msra.mxu0 0.0
        %3336 = vmatprep.subr.mxu0 0.0
        %3337 = vmatpush1.msra.mxu0 0.0
        %3338 = vmatprep.subr.mxu0 0.0
        %3339 = vmatpush1.msra.mxu0 0.0
        %3340 = vmatprep.subr.mxu0 0.0
        %3341 = vmatpush1.msra.mxu0 0.0
        %3342 = vmatprep.subr.mxu0 0.0
        %3343 = vmatpush1.msra.mxu0 0.0
        %3344 = vmatprep.subr.mxu0 0.0
        %3345 = vmatpush1.msra.mxu0 0.0
        %3346 = vmatprep.subr.mxu0 0.0
        %3347 = vmatpush1.msra.mxu0 0.0
        %3348 = vmatprep.subr.mxu0 0.0
        %3349 = vmatpush1.msra.mxu0 0.0
        %3350 = vmatprep.subr.mxu0 0.0
        %3351 = vmatpush1.msra.mxu0 0.0
        %3352 = vmatprep.subr.mxu0 0.0
        %3353 = vmatpush1.msra.mxu0 0.0
        %3354 = vmatprep.subr.mxu0 0.0
        %3355 = vmatpush1.msra.mxu0 0.0
        %3356 = vmatprep.subr.mxu0 0.0
        %3357 = vmatpush1.msra.mxu0 0.0
        %3358 = vmatprep.subr.mxu0 0.0
        %3359 = vmatpush1.msra.mxu0 0.0
        %3360 = vmatprep.subr.mxu0 0.0
        %3361 = vmatpush1.msra.mxu0 0.0
        %3362 = vmatprep.subr.mxu0 0.0
        %3363 = vmatpush1.msra.mxu0 0.0
        %3364 = vmatprep.subr.mxu0 0.0
        %3365 = vmatpush1.msra.mxu0 0.0
        %3366 = vmatprep.subr.mxu0 0.0
        %3367 = vmatpush1.msra.mxu0 0.0
        %3368 = vmatprep.subr.mxu0 0.0
        %3369 = vmatpush1.msra.mxu0 0.0
        %3370 = vmatprep.subr.mxu0 0.0
        %3371 = vmatpush1.msra.mxu0 0.0
        %3372 = vmatprep.subr.mxu0 0.0
        %3373 = vmatpush1.msra.mxu0 0.0
        %3374 = vmatprep.subr.mxu0 0.0
        %3375 = vmatpush1.msra.mxu0 0.0
        %3376 = vmatprep.subr.mxu0 0.0
        %3377 = vmatpush1.msra.mxu0 0.0
        %3378 = vmatprep.subr.mxu0 0.0
        %3379 = vmatpush1.msra.mxu0 0.0
        %3380 = vmatprep.subr.mxu0 0.0
        %3381 = vmatpush1.msra.mxu0 0.0
        %3382 = vmatprep.subr.mxu0 0.0
        %3383 = vmatpush1.msra.mxu0 0.0
        %3384 = vmatprep.mubr.f32.mxu0 0.0
        %v3385 = vand.u32 %v3164, 4294901760
        %v3386 = vsub.f32 %v3164, %v3385
        %3387 = vmatmul.mubr.f32.gmra.mrb[0].mxu0 %v3386
        %v3388 = vpop.f32.mrb[0].mxu0
        %v3389 = vadd.f32 %v3315, %v3388
        %v3390 = vpop.f32.mrb[0].mxu0
        %3391 = vdwg.mxu0
        %3392 = vmatprep.subr.mxu0 0.0
        %v3393 = vand.u32 %v866, 4294901760
        %3394 = vmatpush1.msra.mxu0 %v3393
        %3395 = vmatprep.subr.mxu0 0.0
        %3396 = vmatpush1.msra.mxu0 0.0
        %3397 = vmatprep.subr.mxu0 0.0
        %3398 = vmatpush1.msra.mxu0 0.0
        %3399 = vmatprep.subr.mxu0 0.0
        %3400 = vmatpush1.msra.mxu0 0.0
        %3401 = vmatprep.subr.mxu0 0.0
        %3402 = vmatpush1.msra.mxu0 0.0
        %3403 = vmatprep.subr.mxu0 0.0
        %3404 = vmatpush1.msra.mxu0 0.0
        %3405 = vmatprep.subr.mxu0 0.0
        %3406 = vmatpush1.msra.mxu0 0.0
        %3407 = vmatprep.subr.mxu0 0.0
        %3408 = vmatpush1.msra.mxu0 0.0
        %3409 = vmatprep.subr.mxu0 0.0
        %3410 = vmatpush1.msra.mxu0 0.0
        %3411 = vmatprep.subr.mxu0 0.0
        %3412 = vmatpush1.msra.mxu0 0.0
        %3413 = vmatprep.subr.mxu0 0.0
        %3414 = vmatpush1.msra.mxu0 0.0
        %3415 = vmatprep.subr.mxu0 0.0
        %3416 = vmatpush1.msra.mxu0 0.0
        %3417 = vmatprep.subr.mxu0 0.0
        %3418 = vmatpush1.msra.mxu0 0.0
        %3419 = vmatprep.subr.mxu0 0.0
        %3420 = vmatpush1.msra.mxu0 0.0
        %3421 = vmatprep.subr.mxu0 0.0
        %3422 = vmatpush1.msra.mxu0 0.0
        %3423 = vmatprep.subr.mxu0 0.0
        %3424 = vmatpush1.msra.mxu0 0.0
        %3425 = vmatprep.subr.mxu0 0.0
        %3426 = vmatpush1.msra.mxu0 0.0
        %3427 = vmatprep.subr.mxu0 0.0
        %3428 = vmatpush1.msra.mxu0 0.0
        %3429 = vmatprep.subr.mxu0 0.0
        %3430 = vmatpush1.msra.mxu0 0.0
        %3431 = vmatprep.subr.mxu0 0.0
        %3432 = vmatpush1.msra.mxu0 0.0
        %3433 = vmatprep.subr.mxu0 0.0
        %3434 = vmatpush1.msra.mxu0 0.0
        %3435 = vmatprep.subr.mxu0 0.0
        %3436 = vmatpush1.msra.mxu0 0.0
        %3437 = vmatprep.subr.mxu0 0.0
        %3438 = vmatpush1.msra.mxu0 0.0
        %3439 = vmatprep.subr.mxu0 0.0
        %3440 = vmatpush1.msra.mxu0 0.0
        %3441 = vmatprep.subr.mxu0 0.0
        %3442 = vmatpush1.msra.mxu0 0.0
        %3443 = vmatprep.subr.mxu0 0.0
        %3444 = vmatpush1.msra.mxu0 0.0
        %3445 = vmatprep.subr.mxu0 0.0
        %3446 = vmatpush1.msra.mxu0 0.0
        %3447 = vmatprep.subr.mxu0 0.0
        %3448 = vmatpush1.msra.mxu0 0.0
        %3449 = vmatprep.subr.mxu0 0.0
        %3450 = vmatpush1.msra.mxu0 0.0
        %3451 = vmatprep.subr.mxu0 0.0
        %3452 = vmatpush1.msra.mxu0 0.0
        %3453 = vmatprep.subr.mxu0 0.0
        %3454 = vmatpush1.msra.mxu0 0.0
        %3455 = vmatprep.subr.mxu0 0.0
        %3456 = vmatpush1.msra.mxu0 0.0
        %3457 = vmatprep.mubr.f32.mxu0 0.0
        %v3458 = vand.u32 %v3164, 4294901760
        %v3459 = vsub.f32 %v3164, %v3458
        %v3460 = vand.u32 %v3459, 4294901760
        %3461 = vmatmul.mubr.f32.gmra.mrb[0].mxu0 %v3460
        %v3462 = vpop.f32.mrb[0].mxu0
        %v3463 = vadd.f32 %v3389, %v3462
        %v3464 = vpop.f32.mrb[0].mxu0
        %3465 = vdwg.mxu0
        %3466 = vmatprep.subr.mxu0 0.0
        %v3467 = vand.u32 %v866, 4294901760
        %v3468 = vsub.f32 %v866, %v3467
        %v3469 = vand.u32 %v3468, 4294901760
        %3470 = vmatpush1.msra.mxu0 %v3469
        %3471 = vmatprep.subr.mxu0 0.0
        %3472 = vmatpush1.msra.mxu0 0.0
        %3473 = vmatprep.subr.mxu0 0.0
        %3474 = vmatpush1.msra.mxu0 0.0
        %3475 = vmatprep.subr.mxu0 0.0
        %3476 = vmatpush1.msra.mxu0 0.0
        %3477 = vmatprep.subr.mxu0 0.0
        %3478 = vmatpush1.msra.mxu0 0.0
        %3479 = vmatprep.subr.mxu0 0.0
        %3480 = vmatpush1.msra.mxu0 0.0
        %3481 = vmatprep.subr.mxu0 0.0
        %3482 = vmatpush1.msra.mxu0 0.0
        %3483 = vmatprep.subr.mxu0 0.0
        %3484 = vmatpush1.msra.mxu0 0.0
        %3485 = vmatprep.subr.mxu0 0.0
        %3486 = vmatpush1.msra.mxu0 0.0
        %3487 = vmatprep.subr.mxu0 0.0
        %3488 = vmatpush1.msra.mxu0 0.0
        %3489 = vmatprep.subr.mxu0 0.0
        %3490 = vmatpush1.msra.mxu0 0.0
        %3491 = vmatprep.subr.mxu0 0.0
        %3492 = vmatpush1.msra.mxu0 0.0
        %3493 = vmatprep.subr.mxu0 0.0
        %3494 = vmatpush1.msra.mxu0 0.0
        %3495 = vmatprep.subr.mxu0 0.0
        %3496 = vmatpush1.msra.mxu0 0.0
        %3497 = vmatprep.subr.mxu0 0.0
        %3498 = vmatpush1.msra.mxu0 0.0
        %3499 = vmatprep.subr.mxu0 0.0
        %3500 = vmatpush1.msra.mxu0 0.0
        %3501 = vmatprep.subr.mxu0 0.0
        %3502 = vmatpush1.msra.mxu0 0.0
        %3503 = vmatprep.subr.mxu0 0.0
        %3504 = vmatpush1.msra.mxu0 0.0
        %3505 = vmatprep.subr.mxu0 0.0
        %3506 = vmatpush1.msra.mxu0 0.0
        %3507 = vmatprep.subr.mxu0 0.0
        %3508 = vmatpush1.msra.mxu0 0.0
        %3509 = vmatprep.subr.mxu0 0.0
        %3510 = vmatpush1.msra.mxu0 0.0
        %3511 = vmatprep.subr.mxu0 0.0
        %3512 = vmatpush1.msra.mxu0 0.0
        %3513 = vmatprep.subr.mxu0 0.0
        %3514 = vmatpush1.msra.mxu0 0.0
        %3515 = vmatprep.subr.mxu0 0.0
        %3516 = vmatpush1.msra.mxu0 0.0
        %3517 = vmatprep.subr.mxu0 0.0
        %3518 = vmatpush1.msra.mxu0 0.0
        %3519 = vmatprep.subr.mxu0 0.0
        %3520 = vmatpush1.msra.mxu0 0.0
        %3521 = vmatprep.subr.mxu0 0.0
        %3522 = vmatpush1.msra.mxu0 0.0
        %3523 = vmatprep.subr.mxu0 0.0
        %3524 = vmatpush1.msra.mxu0 0.0
        %3525 = vmatprep.subr.mxu0 0.0
        %3526 = vmatpush1.msra.mxu0 0.0
        %3527 = vmatprep.subr.mxu0 0.0
        %3528 = vmatpush1.msra.mxu0 0.0
        %3529 = vmatprep.subr.mxu0 0.0
        %3530 = vmatpush1.msra.mxu0 0.0
        %3531 = vmatprep.subr.mxu0 0.0
        %3532 = vmatpush1.msra.mxu0 0.0
        %3533 = vmatprep.mubr.f32.mxu0 0.0
        %v3534 = vand.u32 %v3164, 4294901760
        %3535 = vmatmul.mubr.f32.gmra.mrb[0].mxu0 %v3534
        %v3536 = vpop.f32.mrb[0].mxu0
        %v3537 = vadd.f32 %v3463, %v3536
        %v3538 = vpop.f32.mrb[0].mxu0
        %3539 = vdwg.mxu0
        %3540 = vmatprep.subr.mxu0 0.0
        %v3541 = vand.u32 %v866, 4294901760
        %3542 = vmatpush1.msra.mxu0 %v3541
        %3543 = vmatprep.subr.mxu0 0.0
        %3544 = vmatpush1.msra.mxu0 0.0
        %3545 = vmatprep.subr.mxu0 0.0
        %3546 = vmatpush1.msra.mxu0 0.0
        %3547 = vmatprep.subr.mxu0 0.0
        %3548 = vmatpush1.msra.mxu0 0.0
        %3549 = vmatprep.subr.mxu0 0.0
        %3550 = vmatpush1.msra.mxu0 0.0
        %3551 = vmatprep.subr.mxu0 0.0
        %3552 = vmatpush1.msra.mxu0 0.0
        %3553 = vmatprep.subr.mxu0 0.0
        %3554 = vmatpush1.msra.mxu0 0.0
        %3555 = vmatprep.subr.mxu0 0.0
        %3556 = vmatpush1.msra.mxu0 0.0
        %3557 = vmatprep.subr.mxu0 0.0
        %3558 = vmatpush1.msra.mxu0 0.0
        %3559 = vmatprep.subr.mxu0 0.0
        %3560 = vmatpush1.msra.mxu0 0.0
        %3561 = vmatprep.subr.mxu0 0.0
        %3562 = vmatpush1.msra.mxu0 0.0
        %3563 = vmatprep.subr.mxu0 0.0
        %3564 = vmatpush1.msra.mxu0 0.0
        %3565 = vmatprep.subr.mxu0 0.0
        %3566 = vmatpush1.msra.mxu0 0.0
        %3567 = vmatprep.subr.mxu0 0.0
        %3568 = vmatpush1.msra.mxu0 0.0
        %3569 = vmatprep.subr.mxu0 0.0
        %3570 = vmatpush1.msra.mxu0 0.0
        %3571 = vmatprep.subr.mxu0 0.0
        %3572 = vmatpush1.msra.mxu0 0.0
        %3573 = vmatprep.subr.mxu0 0.0
        %3574 = vmatpush1.msra.mxu0 0.0
        %3575 = vmatprep.subr.mxu0 0.0
        %3576 = vmatpush1.msra.mxu0 0.0
        %3577 = vmatprep.subr.mxu0 0.0
        %3578 = vmatpush1.msra.mxu0 0.0
        %3579 = vmatprep.subr.mxu0 0.0
        %3580 = vmatpush1.msra.mxu0 0.0
        %3581 = vmatprep.subr.mxu0 0.0
        %3582 = vmatpush1.msra.mxu0 0.0
        %3583 = vmatprep.subr.mxu0 0.0
        %3584 = vmatpush1.msra.mxu0 0.0
        %3585 = vmatprep.subr.mxu0 0.0
        %3586 = vmatpush1.msra.mxu0 0.0
        %3587 = vmatprep.subr.mxu0 0.0
        %3588 = vmatpush1.msra.mxu0 0.0
        %3589 = vmatprep.subr.mxu0 0.0
        %3590 = vmatpush1.msra.mxu0 0.0
        %3591 = vmatprep.subr.mxu0 0.0
        %3592 = vmatpush1.msra.mxu0 0.0
        %3593 = vmatprep.subr.mxu0 0.0
        %3594 = vmatpush1.msra.mxu0 0.0
        %3595 = vmatprep.subr.mxu0 0.0
        %3596 = vmatpush1.msra.mxu0 0.0
        %3597 = vmatprep.subr.mxu0 0.0
        %3598 = vmatpush1.msra.mxu0 0.0
        %3599 = vmatprep.subr.mxu0 0.0
        %3600 = vmatpush1.msra.mxu0 0.0
        %3601 = vmatprep.subr.mxu0 0.0
        %3602 = vmatpush1.msra.mxu0 0.0
        %3603 = vmatprep.subr.mxu0 0.0
        %3604 = vmatpush1.msra.mxu0 0.0
        %3605 = vmatprep.mubr.f32.mxu0 0.0
        %v3606 = vand.u32 %v3164, 4294901760
        %3607 = vmatmul.mubr.f32.gmra.mrb[0].mxu0 %v3606
        %v3608 = vpop.f32.mrb[0].mxu0
        %v3609 = vadd.f32 %v3537, %v3608
        %v3610 = vpop.f32.mrb[0].mxu0
        %3611 = vdwg.mxu0
        %3612 = vrot.lane.b32.xlu0 %v863, 112
        %v3613 = vpop.permute.xlu0 %3612
        %3614 = vrot.lane.b32.xlu0 %v863, 80
        %v3615 = vpop.permute.xlu0 %3614
        %v3616 = vsel %vm873, %v3613, 0
        %v3618 = vsel %vm873, %v3615, 0
        %3620 = vmatprep.subr.mxu0 0.0
        %v3621 = vand.u32 %v3618, 4294901760
        %3622 = vmatpush1.xpose.msra.mxu0 %v3621
        %3623 = vmatprep.subr.mxu0 0.0
        %3624 = vmatpush1.xpose.msra.mxu0 0.0
        %3625 = vmatprep.subr.mxu0 0.0
        %3626 = vmatpush1.xpose.msra.mxu0 0.0
        %3627 = vmatprep.subr.mxu0 0.0
        %3628 = vmatpush1.xpose.msra.mxu0 0.0
        %3629 = vmatprep.subr.mxu0 0.0
        %3630 = vmatpush1.xpose.msra.mxu0 0.0
        %3631 = vmatprep.subr.mxu0 0.0
        %3632 = vmatpush1.xpose.msra.mxu0 0.0
        %3633 = vmatprep.subr.mxu0 0.0
        %3634 = vmatpush1.xpose.msra.mxu0 0.0
        %3635 = vmatprep.subr.mxu0 0.0
        %3636 = vmatpush1.xpose.msra.mxu0 0.0
        %3637 = vmatprep.subr.mxu0 0.0
        %3638 = vmatpush1.xpose.msra.mxu0 0.0
        %3639 = vmatprep.subr.mxu0 0.0
        %3640 = vmatpush1.xpose.msra.mxu0 0.0
        %3641 = vmatprep.subr.mxu0 0.0
        %3642 = vmatpush1.xpose.msra.mxu0 0.0
        %3643 = vmatprep.subr.mxu0 0.0
        %3644 = vmatpush1.xpose.msra.mxu0 0.0
        %3645 = vmatprep.subr.mxu0 0.0
        %3646 = vmatpush1.xpose.msra.mxu0 0.0
        %3647 = vmatprep.subr.mxu0 0.0
        %3648 = vmatpush1.xpose.msra.mxu0 0.0
        %3649 = vmatprep.subr.mxu0 0.0
        %3650 = vmatpush1.xpose.msra.mxu0 0.0
        %3651 = vmatprep.subr.mxu0 0.0
        %3652 = vmatpush1.xpose.msra.mxu0 0.0
        %3653 = vmatprep.subr.mxu0 0.0
        %3654 = vmatpush1.xpose.msra.mxu0 0.0
        %3655 = vmatprep.subr.mxu0 0.0
        %3656 = vmatpush1.xpose.msra.mxu0 0.0
        %3657 = vmatprep.subr.mxu0 0.0
        %3658 = vmatpush1.xpose.msra.mxu0 0.0
        %3659 = vmatprep.subr.mxu0 0.0
        %3660 = vmatpush1.xpose.msra.mxu0 0.0
        %3661 = vmatprep.subr.mxu0 0.0
        %3662 = vmatpush1.xpose.msra.mxu0 0.0
        %3663 = vmatprep.subr.mxu0 0.0
        %3664 = vmatpush1.xpose.msra.mxu0 0.0
        %3665 = vmatprep.subr.mxu0 0.0
        %3666 = vmatpush1.xpose.msra.mxu0 0.0
        %3667 = vmatprep.subr.mxu0 0.0
        %3668 = vmatpush1.xpose.msra.mxu0 0.0
        %3669 = vmatprep.subr.mxu0 0.0
        %3670 = vmatpush1.xpose.msra.mxu0 0.0
        %3671 = vmatprep.subr.mxu0 0.0
        %3672 = vmatpush1.xpose.msra.mxu0 0.0
        %3673 = vmatprep.subr.mxu0 0.0
        %3674 = vmatpush1.xpose.msra.mxu0 0.0
        %3675 = vmatprep.subr.mxu0 0.0
        %3676 = vmatpush1.xpose.msra.mxu0 0.0
        %3677 = vmatprep.subr.mxu0 0.0
        %3678 = vmatpush1.xpose.msra.mxu0 0.0
        %3679 = vmatprep.subr.mxu0 0.0
        %3680 = vmatpush1.xpose.msra.mxu0 0.0
        %3681 = vmatprep.subr.mxu0 0.0
        %3682 = vmatpush1.xpose.msra.mxu0 0.0
        %3683 = vmatprep.subr.mxu0 0.0
        %3684 = vmatpush1.xpose.msra.mxu0 0.0
        %3685 = vmatprep.mubr.f32.mxu0 0.0
        %v3686 = vand.u32 %v3616, 4294901760
        %v3687 = vsub.f32 %v3616, %v3686
        %v3688 = vand.u32 %v3687, 4294901760
        %v3689 = vsub.f32 %v3687, %v3688
        %v3690 = vand.u32 %v3689, 4294901760
        %3691 = vmatmul.mubr.f32.gmra.mrb[0].mxu0 %v3690
        %v3692 = vpop.f32.mrb[0].mxu0
        %v3693 = vadd.f32 0.0, %v3692
        %v3694 = vpop.f32.mrb[0].mxu0
        %3695 = vdwg.mxu0
        %3696 = vmatprep.subr.mxu0 0.0
        %v3697 = vand.u32 %v3618, 4294901760
        %v3698 = vsub.f32 %v3618, %v3697
        %v3699 = vand.u32 %v3698, 4294901760
        %v3700 = vsub.f32 %v3698, %v3699
        %v3701 = vand.u32 %v3700, 4294901760
        %3702 = vmatpush1.xpose.msra.mxu0 %v3701
        %3703 = vmatprep.subr.mxu0 0.0
        %3704 = vmatpush1.xpose.msra.mxu0 0.0
        %3705 = vmatprep.subr.mxu0 0.0
        %3706 = vmatpush1.xpose.msra.mxu0 0.0
        %3707 = vmatprep.subr.mxu0 0.0
        %3708 = vmatpush1.xpose.msra.mxu0 0.0
        %3709 = vmatprep.subr.mxu0 0.0
        %3710 = vmatpush1.xpose.msra.mxu0 0.0
        %3711 = vmatprep.subr.mxu0 0.0
        %3712 = vmatpush1.xpose.msra.mxu0 0.0
        %3713 = vmatprep.subr.mxu0 0.0
        %3714 = vmatpush1.xpose.msra.mxu0 0.0
        %3715 = vmatprep.subr.mxu0 0.0
        %3716 = vmatpush1.xpose.msra.mxu0 0.0
        %3717 = vmatprep.subr.mxu0 0.0
        %3718 = vmatpush1.xpose.msra.mxu0 0.0
        %3719 = vmatprep.subr.mxu0 0.0
        %3720 = vmatpush1.xpose.msra.mxu0 0.0
        %3721 = vmatprep.subr.mxu0 0.0
        %3722 = vmatpush1.xpose.msra.mxu0 0.0
        %3723 = vmatprep.subr.mxu0 0.0
        %3724 = vmatpush1.xpose.msra.mxu0 0.0
        %3725 = vmatprep.subr.mxu0 0.0
        %3726 = vmatpush1.xpose.msra.mxu0 0.0
        %3727 = vmatprep.subr.mxu0 0.0
        %3728 = vmatpush1.xpose.msra.mxu0 0.0
        %3729 = vmatprep.subr.mxu0 0.0
        %3730 = vmatpush1.xpose.msra.mxu0 0.0
        %3731 = vmatprep.subr.mxu0 0.0
        %3732 = vmatpush1.xpose.msra.mxu0 0.0
        %3733 = vmatprep.subr.mxu0 0.0
        %3734 = vmatpush1.xpose.msra.mxu0 0.0
        %3735 = vmatprep.subr.mxu0 0.0
        %3736 = vmatpush1.xpose.msra.mxu0 0.0
        %3737 = vmatprep.subr.mxu0 0.0
        %3738 = vmatpush1.xpose.msra.mxu0 0.0
        %3739 = vmatprep.subr.mxu0 0.0
        %3740 = vmatpush1.xpose.msra.mxu0 0.0
        %3741 = vmatprep.subr.mxu0 0.0
        %3742 = vmatpush1.xpose.msra.mxu0 0.0
        %3743 = vmatprep.subr.mxu0 0.0
        %3744 = vmatpush1.xpose.msra.mxu0 0.0
        %3745 = vmatprep.subr.mxu0 0.0
        %3746 = vmatpush1.xpose.msra.mxu0 0.0
        %3747 = vmatprep.subr.mxu0 0.0
        %3748 = vmatpush1.xpose.msra.mxu0 0.0
        %3749 = vmatprep.subr.mxu0 0.0
        %3750 = vmatpush1.xpose.msra.mxu0 0.0
        %3751 = vmatprep.subr.mxu0 0.0
        %3752 = vmatpush1.xpose.msra.mxu0 0.0
        %3753 = vmatprep.subr.mxu0 0.0
        %3754 = vmatpush1.xpose.msra.mxu0 0.0
        %3755 = vmatprep.subr.mxu0 0.0
        %3756 = vmatpush1.xpose.msra.mxu0 0.0
        %3757 = vmatprep.subr.mxu0 0.0
        %3758 = vmatpush1.xpose.msra.mxu0 0.0
        %3759 = vmatprep.subr.mxu0 0.0
        %3760 = vmatpush1.xpose.msra.mxu0 0.0
        %3761 = vmatprep.subr.mxu0 0.0
        %3762 = vmatpush1.xpose.msra.mxu0 0.0
        %3763 = vmatprep.subr.mxu0 0.0
        %3764 = vmatpush1.xpose.msra.mxu0 0.0
        %3765 = vmatprep.mubr.f32.mxu0 0.0
        %v3766 = vand.u32 %v3616, 4294901760
        %3767 = vmatmul.mubr.f32.gmra.mrb[0].mxu0 %v3766
        %v3768 = vpop.f32.mrb[0].mxu0
        %v3769 = vadd.f32 %v3693, %v3768
        %v3770 = vpop.f32.mrb[0].mxu0
        %3771 = vdwg.mxu0
        %3772 = vmatprep.subr.mxu0 0.0
        %v3773 = vand.u32 %v3618, 4294901760
        %v3774 = vsub.f32 %v3618, %v3773
        %3775 = vmatpush1.xpose.msra.mxu0 %v3774
        %3776 = vmatprep.subr.mxu0 0.0
        %3777 = vmatpush1.xpose.msra.mxu0 0.0
        %3778 = vmatprep.subr.mxu0 0.0
        %3779 = vmatpush1.xpose.msra.mxu0 0.0
        %3780 = vmatprep.subr.mxu0 0.0
        %3781 = vmatpush1.xpose.msra.mxu0 0.0
        %3782 = vmatprep.subr.mxu0 0.0
        %3783 = vmatpush1.xpose.msra.mxu0 0.0
        %3784 = vmatprep.subr.mxu0 0.0
        %3785 = vmatpush1.xpose.msra.mxu0 0.0
        %3786 = vmatprep.subr.mxu0 0.0
        %3787 = vmatpush1.xpose.msra.mxu0 0.0
        %3788 = vmatprep.subr.mxu0 0.0
        %3789 = vmatpush1.xpose.msra.mxu0 0.0
        %3790 = vmatprep.subr.mxu0 0.0
        %3791 = vmatpush1.xpose.msra.mxu0 0.0
        %3792 = vmatprep.subr.mxu0 0.0
        %3793 = vmatpush1.xpose.msra.mxu0 0.0
        %3794 = vmatprep.subr.mxu0 0.0
        %3795 = vmatpush1.xpose.msra.mxu0 0.0
        %3796 = vmatprep.subr.mxu0 0.0
        %3797 = vmatpush1.xpose.msra.mxu0 0.0
        %3798 = vmatprep.subr.mxu0 0.0
        %3799 = vmatpush1.xpose.msra.mxu0 0.0
        %3800 = vmatprep.subr.mxu0 0.0
        %3801 = vmatpush1.xpose.msra.mxu0 0.0
        %3802 = vmatprep.subr.mxu0 0.0
        %3803 = vmatpush1.xpose.msra.mxu0 0.0
        %3804 = vmatprep.subr.mxu0 0.0
        %3805 = vmatpush1.xpose.msra.mxu0 0.0
        %3806 = vmatprep.subr.mxu0 0.0
        %3807 = vmatpush1.xpose.msra.mxu0 0.0
        %3808 = vmatprep.subr.mxu0 0.0
        %3809 = vmatpush1.xpose.msra.mxu0 0.0
        %3810 = vmatprep.subr.mxu0 0.0
        %3811 = vmatpush1.xpose.msra.mxu0 0.0
        %3812 = vmatprep.subr.mxu0 0.0
        %3813 = vmatpush1.xpose.msra.mxu0 0.0
        %3814 = vmatprep.subr.mxu0 0.0
        %3815 = vmatpush1.xpose.msra.mxu0 0.0
        %3816 = vmatprep.subr.mxu0 0.0
        %3817 = vmatpush1.xpose.msra.mxu0 0.0
        %3818 = vmatprep.subr.mxu0 0.0
        %3819 = vmatpush1.xpose.msra.mxu0 0.0
        %3820 = vmatprep.subr.mxu0 0.0
        %3821 = vmatpush1.xpose.msra.mxu0 0.0
        %3822 = vmatprep.subr.mxu0 0.0
        %3823 = vmatpush1.xpose.msra.mxu0 0.0
        %3824 = vmatprep.subr.mxu0 0.0
        %3825 = vmatpush1.xpose.msra.mxu0 0.0
        %3826 = vmatprep.subr.mxu0 0.0
        %3827 = vmatpush1.xpose.msra.mxu0 0.0
        %3828 = vmatprep.subr.mxu0 0.0
        %3829 = vmatpush1.xpose.msra.mxu0 0.0
        %3830 = vmatprep.subr.mxu0 0.0
        %3831 = vmatpush1.xpose.msra.mxu0 0.0
        %3832 = vmatprep.subr.mxu0 0.0
        %3833 = vmatpush1.xpose.msra.mxu0 0.0
        %3834 = vmatprep.subr.mxu0 0.0
        %3835 = vmatpush1.xpose.msra.mxu0 0.0
        %3836 = vmatprep.subr.mxu0 0.0
        %3837 = vmatpush1.xpose.msra.mxu0 0.0
        %3838 = vmatprep.mubr.f32.mxu0 0.0
        %v3839 = vand.u32 %v3616, 4294901760
        %v3840 = vsub.f32 %v3616, %v3839
        %3841 = vmatmul.mubr.f32.gmra.mrb[0].mxu0 %v3840
        %v3842 = vpop.f32.mrb[0].mxu0
        %v3843 = vadd.f32 %v3769, %v3842
        %v3844 = vpop.f32.mrb[0].mxu0
        %3845 = vdwg.mxu0
        %3846 = vmatprep.subr.mxu0 0.0
        %v3847 = vand.u32 %v3618, 4294901760
        %3848 = vmatpush1.xpose.msra.mxu0 %v3847
        %3849 = vmatprep.subr.mxu0 0.0
        %3850 = vmatpush1.xpose.msra.mxu0 0.0
        %3851 = vmatprep.subr.mxu0 0.0
        %3852 = vmatpush1.xpose.msra.mxu0 0.0
        %3853 = vmatprep.subr.mxu0 0.0
        %3854 = vmatpush1.xpose.msra.mxu0 0.0
        %3855 = vmatprep.subr.mxu0 0.0
        %3856 = vmatpush1.xpose.msra.mxu0 0.0
        %3857 = vmatprep.subr.mxu0 0.0
        %3858 = vmatpush1.xpose.msra.mxu0 0.0
        %3859 = vmatprep.subr.mxu0 0.0
        %3860 = vmatpush1.xpose.msra.mxu0 0.0
        %3861 = vmatprep.subr.mxu0 0.0
        %3862 = vmatpush1.xpose.msra.mxu0 0.0
        %3863 = vmatprep.subr.mxu0 0.0
        %3864 = vmatpush1.xpose.msra.mxu0 0.0
        %3865 = vmatprep.subr.mxu0 0.0
        %3866 = vmatpush1.xpose.msra.mxu0 0.0
        %3867 = vmatprep.subr.mxu0 0.0
        %3868 = vmatpush1.xpose.msra.mxu0 0.0
        %3869 = vmatprep.subr.mxu0 0.0
        %3870 = vmatpush1.xpose.msra.mxu0 0.0
        %3871 = vmatprep.subr.mxu0 0.0
        %3872 = vmatpush1.xpose.msra.mxu0 0.0
        %3873 = vmatprep.subr.mxu0 0.0
        %3874 = vmatpush1.xpose.msra.mxu0 0.0
        %3875 = vmatprep.subr.mxu0 0.0
        %3876 = vmatpush1.xpose.msra.mxu0 0.0
        %3877 = vmatprep.subr.mxu0 0.0
        %3878 = vmatpush1.xpose.msra.mxu0 0.0
        %3879 = vmatprep.subr.mxu0 0.0
        %3880 = vmatpush1.xpose.msra.mxu0 0.0
        %3881 = vmatprep.subr.mxu0 0.0
        %3882 = vmatpush1.xpose.msra.mxu0 0.0
        %3883 = vmatprep.subr.mxu0 0.0
        %3884 = vmatpush1.xpose.msra.mxu0 0.0
        %3885 = vmatprep.subr.mxu0 0.0
        %3886 = vmatpush1.xpose.msra.mxu0 0.0
        %3887 = vmatprep.subr.mxu0 0.0
        %3888 = vmatpush1.xpose.msra.mxu0 0.0
        %3889 = vmatprep.subr.mxu0 0.0
        %3890 = vmatpush1.xpose.msra.mxu0 0.0
        %3891 = vmatprep.subr.mxu0 0.0
        %3892 = vmatpush1.xpose.msra.mxu0 0.0
        %3893 = vmatprep.subr.mxu0 0.0
        %3894 = vmatpush1.xpose.msra.mxu0 0.0
        %3895 = vmatprep.subr.mxu0 0.0
        %3896 = vmatpush1.xpose.msra.mxu0 0.0
        %3897 = vmatprep.subr.mxu0 0.0
        %3898 = vmatpush1.xpose.msra.mxu0 0.0
        %3899 = vmatprep.subr.mxu0 0.0
        %3900 = vmatpush1.xpose.msra.mxu0 0.0
        %3901 = vmatprep.subr.mxu0 0.0
        %3902 = vmatpush1.xpose.msra.mxu0 0.0
        %3903 = vmatprep.subr.mxu0 0.0
        %3904 = vmatpush1.xpose.msra.mxu0 0.0
        %3905 = vmatprep.subr.mxu0 0.0
        %3906 = vmatpush1.xpose.msra.mxu0 0.0
        %3907 = vmatprep.subr.mxu0 0.0
        %3908 = vmatpush1.xpose.msra.mxu0 0.0
        %3909 = vmatprep.subr.mxu0 0.0
        %3910 = vmatpush1.xpose.msra.mxu0 0.0
        %3911 = vmatprep.mubr.f32.mxu0 0.0
        %v3912 = vand.u32 %v3616, 4294901760
        %v3913 = vsub.f32 %v3616, %v3912
        %v3914 = vand.u32 %v3913, 4294901760
        %3915 = vmatmul.mubr.f32.gmra.mrb[0].mxu0 %v3914
        %v3916 = vpop.f32.mrb[0].mxu0
        %v3917 = vadd.f32 %v3843, %v3916
        %v3918 = vpop.f32.mrb[0].mxu0
        %3919 = vdwg.mxu0
        %3920 = vmatprep.subr.mxu0 0.0
        %v3921 = vand.u32 %v3618, 4294901760
        %v3922 = vsub.f32 %v3618, %v3921
        %v3923 = vand.u32 %v3922, 4294901760
        %3924 = vmatpush1.xpose.msra.mxu0 %v3923
        %3925 = vmatprep.subr.mxu0 0.0
        %3926 = vmatpush1.xpose.msra.mxu0 0.0
        %3927 = vmatprep.subr.mxu0 0.0
        %3928 = vmatpush1.xpose.msra.mxu0 0.0
        %3929 = vmatprep.subr.mxu0 0.0
        %3930 = vmatpush1.xpose.msra.mxu0 0.0
        %3931 = vmatprep.subr.mxu0 0.0
        %3932 = vmatpush1.xpose.msra.mxu0 0.0
        %3933 = vmatprep.subr.mxu0 0.0
        %3934 = vmatpush1.xpose.msra.mxu0 0.0
        %3935 = vmatprep.subr.mxu0 0.0
        %3936 = vmatpush1.xpose.msra.mxu0 0.0
        %3937 = vmatprep.subr.mxu0 0.0
        %3938 = vmatpush1.xpose.msra.mxu0 0.0
        %3939 = vmatprep.subr.mxu0 0.0
        %3940 = vmatpush1.xpose.msra.mxu0 0.0
        %3941 = vmatprep.subr.mxu0 0.0
        %3942 = vmatpush1.xpose.msra.mxu0 0.0
        %3943 = vmatprep.subr.mxu0 0.0
        %3944 = vmatpush1.xpose.msra.mxu0 0.0
        %3945 = vmatprep.subr.mxu0 0.0
        %3946 = vmatpush1.xpose.msra.mxu0 0.0
        %3947 = vmatprep.subr.mxu0 0.0
        %3948 = vmatpush1.xpose.msra.mxu0 0.0
        %3949 = vmatprep.subr.mxu0 0.0
        %3950 = vmatpush1.xpose.msra.mxu0 0.0
        %3951 = vmatprep.subr.mxu0 0.0
        %3952 = vmatpush1.xpose.msra.mxu0 0.0
        %3953 = vmatprep.subr.mxu0 0.0
        %3954 = vmatpush1.xpose.msra.mxu0 0.0
        %3955 = vmatprep.subr.mxu0 0.0
        %3956 = vmatpush1.xpose.msra.mxu0 0.0
        %3957 = vmatprep.subr.mxu0 0.0
        %3958 = vmatpush1.xpose.msra.mxu0 0.0
        %3959 = vmatprep.subr.mxu0 0.0
        %3960 = vmatpush1.xpose.msra.mxu0 0.0
        %3961 = vmatprep.subr.mxu0 0.0
        %3962 = vmatpush1.xpose.msra.mxu0 0.0
        %3963 = vmatprep.subr.mxu0 0.0
        %3964 = vmatpush1.xpose.msra.mxu0 0.0
        %3965 = vmatprep.subr.mxu0 0.0
        %3966 = vmatpush1.xpose.msra.mxu0 0.0
        %3967 = vmatprep.subr.mxu0 0.0
        %3968 = vmatpush1.xpose.msra.mxu0 0.0
        %3969 = vmatprep.subr.mxu0 0.0
        %3970 = vmatpush1.xpose.msra.mxu0 0.0
        %3971 = vmatprep.subr.mxu0 0.0
        %3972 = vmatpush1.xpose.msra.mxu0 0.0
        %3973 = vmatprep.subr.mxu0 0.0
        %3974 = vmatpush1.xpose.msra.mxu0 0.0
        %3975 = vmatprep.subr.mxu0 0.0
        %3976 = vmatpush1.xpose.msra.mxu0 0.0
        %3977 = vmatprep.subr.mxu0 0.0
        %3978 = vmatpush1.xpose.msra.mxu0 0.0
        %3979 = vmatprep.subr.mxu0 0.0
        %3980 = vmatpush1.xpose.msra.mxu0 0.0
        %3981 = vmatprep.subr.mxu0 0.0
        %3982 = vmatpush1.xpose.msra.mxu0 0.0
        %3983 = vmatprep.subr.mxu0 0.0
        %3984 = vmatpush1.xpose.msra.mxu0 0.0
        %3985 = vmatprep.subr.mxu0 0.0
        %3986 = vmatpush1.xpose.msra.mxu0 0.0
        %3987 = vmatprep.mubr.f32.mxu0 0.0
        %v3988 = vand.u32 %v3616, 4294901760
        %3989 = vmatmul.mubr.f32.gmra.mrb[0].mxu0 %v3988
        %v3990 = vpop.f32.mrb[0].mxu0
        %v3991 = vadd.f32 %v3917, %v3990
        %v3992 = vpop.f32.mrb[0].mxu0
        %3993 = vdwg.mxu0
        %3994 = vmatprep.subr.mxu0 0.0
        %v3995 = vand.u32 %v3618, 4294901760
        %3996 = vmatpush1.xpose.msra.mxu0 %v3995
        %3997 = vmatprep.subr.mxu0 0.0
        %3998 = vmatpush1.xpose.msra.mxu0 0.0
        %3999 = vmatprep.subr.mxu0 0.0
        %4000 = vmatpush1.xpose.msra.mxu0 0.0
        %4001 = vmatprep.subr.mxu0 0.0
        %4002 = vmatpush1.xpose.msra.mxu0 0.0
        %4003 = vmatprep.subr.mxu0 0.0
        %4004 = vmatpush1.xpose.msra.mxu0 0.0
        %4005 = vmatprep.subr.mxu0 0.0
        %4006 = vmatpush1.xpose.msra.mxu0 0.0
        %4007 = vmatprep.subr.mxu0 0.0
        %4008 = vmatpush1.xpose.msra.mxu0 0.0
        %4009 = vmatprep.subr.mxu0 0.0
        %4010 = vmatpush1.xpose.msra.mxu0 0.0
        %4011 = vmatprep.subr.mxu0 0.0
        %4012 = vmatpush1.xpose.msra.mxu0 0.0
        %4013 = vmatprep.subr.mxu0 0.0
        %4014 = vmatpush1.xpose.msra.mxu0 0.0
        %4015 = vmatprep.subr.mxu0 0.0
        %4016 = vmatpush1.xpose.msra.mxu0 0.0
        %4017 = vmatprep.subr.mxu0 0.0
        %4018 = vmatpush1.xpose.msra.mxu0 0.0
        %4019 = vmatprep.subr.mxu0 0.0
        %4020 = vmatpush1.xpose.msra.mxu0 0.0
        %4021 = vmatprep.subr.mxu0 0.0
        %4022 = vmatpush1.xpose.msra.mxu0 0.0
        %4023 = vmatprep.subr.mxu0 0.0
        %4024 = vmatpush1.xpose.msra.mxu0 0.0
        %4025 = vmatprep.subr.mxu0 0.0
        %4026 = vmatpush1.xpose.msra.mxu0 0.0
        %4027 = vmatprep.subr.mxu0 0.0
        %4028 = vmatpush1.xpose.msra.mxu0 0.0
        %4029 = vmatprep.subr.mxu0 0.0
        %4030 = vmatpush1.xpose.msra.mxu0 0.0
        %4031 = vmatprep.subr.mxu0 0.0
        %4032 = vmatpush1.xpose.msra.mxu0 0.0
        %4033 = vmatprep.subr.mxu0 0.0
        %4034 = vmatpush1.xpose.msra.mxu0 0.0
        %4035 = vmatprep.subr.mxu0 0.0
        %4036 = vmatpush1.xpose.msra.mxu0 0.0
        %4037 = vmatprep.subr.mxu0 0.0
        %4038 = vmatpush1.xpose.msra.mxu0 0.0
        %4039 = vmatprep.subr.mxu0 0.0
        %4040 = vmatpush1.xpose.msra.mxu0 0.0
        %4041 = vmatprep.subr.mxu0 0.0
        %4042 = vmatpush1.xpose.msra.mxu0 0.0
        %4043 = vmatprep.subr.mxu0 0.0
        %4044 = vmatpush1.xpose.msra.mxu0 0.0
        %4045 = vmatprep.subr.mxu0 0.0
        %4046 = vmatpush1.xpose.msra.mxu0 0.0
        %4047 = vmatprep.subr.mxu0 0.0
        %4048 = vmatpush1.xpose.msra.mxu0 0.0
        %4049 = vmatprep.subr.mxu0 0.0
        %4050 = vmatpush1.xpose.msra.mxu0 0.0
        %4051 = vmatprep.subr.mxu0 0.0
        %4052 = vmatpush1.xpose.msra.mxu0 0.0
        %4053 = vmatprep.subr.mxu0 0.0
        %4054 = vmatpush1.xpose.msra.mxu0 0.0
        %4055 = vmatprep.subr.mxu0 0.0
        %4056 = vmatpush1.xpose.msra.mxu0 0.0
        %4057 = vmatprep.subr.mxu0 0.0
        %4058 = vmatpush1.xpose.msra.mxu0 0.0
        %4059 = vmatprep.mubr.f32.mxu0 0.0
        %v4060 = vand.u32 %v3616, 4294901760
        %4061 = vmatmul.mubr.f32.gmra.mrb[0].mxu0 %v4060
        %v4062 = vpop.f32.mrb[0].mxu0
        %v4063 = vadd.f32 %v3991, %v4062
        %v4064 = vpop.f32.mrb[0].mxu0
        %4065 = vdwg.mxu0
        %v4066 = vmul.f32 %v4063, 0.35355338
        %v4067 = vadd.f32 %v4066, %v1329
        %v4068 = vsel %vm873, %v4067, -inf
        %4069 = vmax.xlane.f32.xlu0 %v4068
        %v4070 = vpop.xlane.xlu0 %4069
        %v4071 = vsub.f32 %v4067, %v4070
        %v4072 = vmul.f32 %v4071, 1.442695
        %v4073 = vpow.pop %v4072
        %v4074 = vsel %vm873, %v4073, 0.0
        %4075 = vadd.xlane.f32.xlu0 %v4074
        %v4076 = vpop.xlane.xlu0 %4075
        %v4077 = vrcp.pop %v4076
        %v4078 = vmul.f32 %v4073, %v4077
        %4079 = vrot.lane.b32.xlu0 %v863, 48
        %v4080 = vpop.permute.xlu0 %4079
        %v4083 = vsel %vm873, %v4078, 0
        %4085 = vmatprep.subr.mxu0 0.0
        %v4086 = vand.u32 %v4080, 4294901760
        %4087 = vmatpush1.msra.mxu0 %v4086
        %4088 = vmatprep.subr.mxu0 0.0
        %4089 = vmatpush1.msra.mxu0 0.0
        %4090 = vmatprep.subr.mxu0 0.0
        %4091 = vmatpush1.msra.mxu0 0.0
        %4092 = vmatprep.subr.mxu0 0.0
        %4093 = vmatpush1.msra.mxu0 0.0
        %4094 = vmatprep.subr.mxu0 0.0
        %4095 = vmatpush1.msra.mxu0 0.0
        %4096 = vmatprep.subr.mxu0 0.0
        %4097 = vmatpush1.msra.mxu0 0.0
        %4098 = vmatprep.subr.mxu0 0.0
        %4099 = vmatpush1.msra.mxu0 0.0
        %4100 = vmatprep.subr.mxu0 0.0
        %4101 = vmatpush1.msra.mxu0 0.0
        %4102 = vmatprep.subr.mxu0 0.0
        %4103 = vmatpush1.msra.mxu0 0.0
        %4104 = vmatprep.subr.mxu0 0.0
        %4105 = vmatpush1.msra.mxu0 0.0
        %4106 = vmatprep.subr.mxu0 0.0
        %4107 = vmatpush1.msra.mxu0 0.0
        %4108 = vmatprep.subr.mxu0 0.0
        %4109 = vmatpush1.msra.mxu0 0.0
        %4110 = vmatprep.subr.mxu0 0.0
        %4111 = vmatpush1.msra.mxu0 0.0
        %4112 = vmatprep.subr.mxu0 0.0
        %4113 = vmatpush1.msra.mxu0 0.0
        %4114 = vmatprep.subr.mxu0 0.0
        %4115 = vmatpush1.msra.mxu0 0.0
        %4116 = vmatprep.subr.mxu0 0.0
        %4117 = vmatpush1.msra.mxu0 0.0
        %4118 = vmatprep.subr.mxu0 0.0
        %4119 = vmatpush1.msra.mxu0 0.0
        %4120 = vmatprep.subr.mxu0 0.0
        %4121 = vmatpush1.msra.mxu0 0.0
        %4122 = vmatprep.subr.mxu0 0.0
        %4123 = vmatpush1.msra.mxu0 0.0
        %4124 = vmatprep.subr.mxu0 0.0
        %4125 = vmatpush1.msra.mxu0 0.0
        %4126 = vmatprep.subr.mxu0 0.0
        %4127 = vmatpush1.msra.mxu0 0.0
        %4128 = vmatprep.subr.mxu0 0.0
        %4129 = vmatpush1.msra.mxu0 0.0
        %4130 = vmatprep.subr.mxu0 0.0
        %4131 = vmatpush1.msra.mxu0 0.0
        %4132 = vmatprep.subr.mxu0 0.0
        %4133 = vmatpush1.msra.mxu0 0.0
        %4134 = vmatprep.subr.mxu0 0.0
        %4135 = vmatpush1.msra.mxu0 0.0
        %4136 = vmatprep.subr.mxu0 0.0
        %4137 = vmatpush1.msra.mxu0 0.0
        %4138 = vmatprep.subr.mxu0 0.0
        %4139 = vmatpush1.msra.mxu0 0.0
        %4140 = vmatprep.subr.mxu0 0.0
        %4141 = vmatpush1.msra.mxu0 0.0
        %4142 = vmatprep.subr.mxu0 0.0
        %4143 = vmatpush1.msra.mxu0 0.0
        %4144 = vmatprep.subr.mxu0 0.0
        %4145 = vmatpush1.msra.mxu0 0.0
        %4146 = vmatprep.subr.mxu0 0.0
        %4147 = vmatpush1.msra.mxu0 0.0
        %4148 = vmatprep.subr.mxu0 0.0
        %4149 = vmatpush1.msra.mxu0 0.0
        %4150 = vmatprep.mubr.f32.mxu0 0.0
        %v4151 = vand.u32 %v4083, 4294901760
        %v4152 = vsub.f32 %v4083, %v4151
        %v4153 = vand.u32 %v4152, 4294901760
        %v4154 = vsub.f32 %v4152, %v4153
        %v4155 = vand.u32 %v4154, 4294901760
        %4156 = vmatmul.mubr.f32.gmra.mrb[0].mxu0 %v4155
        %v4157 = vpop.f32.mrb[0].mxu0
        %v4158 = vadd.f32 0.0, %v4157
        %v4159 = vpop.f32.mrb[0].mxu0
        %4160 = vdwg.mxu0
        %4161 = vmatprep.subr.mxu0 0.0
        %v4162 = vand.u32 %v4080, 4294901760
        %v4163 = vsub.f32 %v4080, %v4162
        %v4164 = vand.u32 %v4163, 4294901760
        %v4165 = vsub.f32 %v4163, %v4164
        %v4166 = vand.u32 %v4165, 4294901760
        %4167 = vmatpush1.msra.mxu0 %v4166
        %4168 = vmatprep.subr.mxu0 0.0
        %4169 = vmatpush1.msra.mxu0 0.0
        %4170 = vmatprep.subr.mxu0 0.0
        %4171 = vmatpush1.msra.mxu0 0.0
        %4172 = vmatprep.subr.mxu0 0.0
        %4173 = vmatpush1.msra.mxu0 0.0
        %4174 = vmatprep.subr.mxu0 0.0
        %4175 = vmatpush1.msra.mxu0 0.0
        %4176 = vmatprep.subr.mxu0 0.0
        %4177 = vmatpush1.msra.mxu0 0.0
        %4178 = vmatprep.subr.mxu0 0.0
        %4179 = vmatpush1.msra.mxu0 0.0
        %4180 = vmatprep.subr.mxu0 0.0
        %4181 = vmatpush1.msra.mxu0 0.0
        %4182 = vmatprep.subr.mxu0 0.0
        %4183 = vmatpush1.msra.mxu0 0.0
        %4184 = vmatprep.subr.mxu0 0.0
        %4185 = vmatpush1.msra.mxu0 0.0
        %4186 = vmatprep.subr.mxu0 0.0
        %4187 = vmatpush1.msra.mxu0 0.0
        %4188 = vmatprep.subr.mxu0 0.0
        %4189 = vmatpush1.msra.mxu0 0.0
        %4190 = vmatprep.subr.mxu0 0.0
        %4191 = vmatpush1.msra.mxu0 0.0
        %4192 = vmatprep.subr.mxu0 0.0
        %4193 = vmatpush1.msra.mxu0 0.0
        %4194 = vmatprep.subr.mxu0 0.0
        %4195 = vmatpush1.msra.mxu0 0.0
        %4196 = vmatprep.subr.mxu0 0.0
        %4197 = vmatpush1.msra.mxu0 0.0
        %4198 = vmatprep.subr.mxu0 0.0
        %4199 = vmatpush1.msra.mxu0 0.0
        %4200 = vmatprep.subr.mxu0 0.0
        %4201 = vmatpush1.msra.mxu0 0.0
        %4202 = vmatprep.subr.mxu0 0.0
        %4203 = vmatpush1.msra.mxu0 0.0
        %4204 = vmatprep.subr.mxu0 0.0
        %4205 = vmatpush1.msra.mxu0 0.0
        %4206 = vmatprep.subr.mxu0 0.0
        %4207 = vmatpush1.msra.mxu0 0.0
        %4208 = vmatprep.subr.mxu0 0.0
        %4209 = vmatpush1.msra.mxu0 0.0
        %4210 = vmatprep.subr.mxu0 0.0
        %4211 = vmatpush1.msra.mxu0 0.0
        %4212 = vmatprep.subr.mxu0 0.0
        %4213 = vmatpush1.msra.mxu0 0.0
        %4214 = vmatprep.subr.mxu0 0.0
        %4215 = vmatpush1.msra.mxu0 0.0
        %4216 = vmatprep.subr.mxu0 0.0
        %4217 = vmatpush1.msra.mxu0 0.0
        %4218 = vmatprep.subr.mxu0 0.0
        %4219 = vmatpush1.msra.mxu0 0.0
        %4220 = vmatprep.subr.mxu0 0.0
        %4221 = vmatpush1.msra.mxu0 0.0
        %4222 = vmatprep.subr.mxu0 0.0
        %4223 = vmatpush1.msra.mxu0 0.0
        %4224 = vmatprep.subr.mxu0 0.0
        %4225 = vmatpush1.msra.mxu0 0.0
        %4226 = vmatprep.subr.mxu0 0.0
        %4227 = vmatpush1.msra.mxu0 0.0
        %4228 = vmatprep.subr.mxu0 0.0
        %4229 = vmatpush1.msra.mxu0 0.0
        %4230 = vmatprep.mubr.f32.mxu0 0.0
        %v4231 = vand.u32 %v4083, 4294901760
        %4232 = vmatmul.mubr.f32.gmra.mrb[0].mxu0 %v4231
        %v4233 = vpop.f32.mrb[0].mxu0
        %v4234 = vadd.f32 %v4158, %v4233
        %v4235 = vpop.f32.mrb[0].mxu0
        %4236 = vdwg.mxu0
        %4237 = vmatprep.subr.mxu0 0.0
        %v4238 = vand.u32 %v4080, 4294901760
        %v4239 = vsub.f32 %v4080, %v4238
        %4240 = vmatpush1.msra.mxu0 %v4239
        %4241 = vmatprep.subr.mxu0 0.0
        %4242 = vmatpush1.msra.mxu0 0.0
        %4243 = vmatprep.subr.mxu0 0.0
        %4244 = vmatpush1.msra.mxu0 0.0
        %4245 = vmatprep.subr.mxu0 0.0
        %4246 = vmatpush1.msra.mxu0 0.0
        %4247 = vmatprep.subr.mxu0 0.0
        %4248 = vmatpush1.msra.mxu0 0.0
        %4249 = vmatprep.subr.mxu0 0.0
        %4250 = vmatpush1.msra.mxu0 0.0
        %4251 = vmatprep.subr.mxu0 0.0
        %4252 = vmatpush1.msra.mxu0 0.0
        %4253 = vmatprep.subr.mxu0 0.0
        %4254 = vmatpush1.msra.mxu0 0.0
        %4255 = vmatprep.subr.mxu0 0.0
        %4256 = vmatpush1.msra.mxu0 0.0
        %4257 = vmatprep.subr.mxu0 0.0
        %4258 = vmatpush1.msra.mxu0 0.0
        %4259 = vmatprep.subr.mxu0 0.0
        %4260 = vmatpush1.msra.mxu0 0.0
        %4261 = vmatprep.subr.mxu0 0.0
        %4262 = vmatpush1.msra.mxu0 0.0
        %4263 = vmatprep.subr.mxu0 0.0
        %4264 = vmatpush1.msra.mxu0 0.0
        %4265 = vmatprep.subr.mxu0 0.0
        %4266 = vmatpush1.msra.mxu0 0.0
        %4267 = vmatprep.subr.mxu0 0.0
        %4268 = vmatpush1.msra.mxu0 0.0
        %4269 = vmatprep.subr.mxu0 0.0
        %4270 = vmatpush1.msra.mxu0 0.0
        %4271 = vmatprep.subr.mxu0 0.0
        %4272 = vmatpush1.msra.mxu0 0.0
        %4273 = vmatprep.subr.mxu0 0.0
        %4274 = vmatpush1.msra.mxu0 0.0
        %4275 = vmatprep.subr.mxu0 0.0
        %4276 = vmatpush1.msra.mxu0 0.0
        %4277 = vmatprep.subr.mxu0 0.0
        %4278 = vmatpush1.msra.mxu0 0.0
        %4279 = vmatprep.subr.mxu0 0.0
        %4280 = vmatpush1.msra.mxu0 0.0
        %4281 = vmatprep.subr.mxu0 0.0
        %4282 = vmatpush1.msra.mxu0 0.0
        %4283 = vmatprep.subr.mxu0 0.0
        %4284 = vmatpush1.msra.mxu0 0.0
        %4285 = vmatprep.subr.mxu0 0.0
        %4286 = vmatpush1.msra.mxu0 0.0
        %4287 = vmatprep.subr.mxu0 0.0
        %4288 = vmatpush1.msra.mxu0 0.0
        %4289 = vmatprep.subr.mxu0 0.0
        %4290 = vmatpush1.msra.mxu0 0.0
        %4291 = vmatprep.subr.mxu0 0.0
        %4292 = vmatpush1.msra.mxu0 0.0
        %4293 = vmatprep.subr.mxu0 0.0
        %4294 = vmatpush1.msra.mxu0 0.0
        %4295 = vmatprep.subr.mxu0 0.0
        %4296 = vmatpush1.msra.mxu0 0.0
        %4297 = vmatprep.subr.mxu0 0.0
        %4298 = vmatpush1.msra.mxu0 0.0
        %4299 = vmatprep.subr.mxu0 0.0
        %4300 = vmatpush1.msra.mxu0 0.0
        %4301 = vmatprep.subr.mxu0 0.0
        %4302 = vmatpush1.msra.mxu0 0.0
        %4303 = vmatprep.mubr.f32.mxu0 0.0
        %v4304 = vand.u32 %v4083, 4294901760
        %v4305 = vsub.f32 %v4083, %v4304
        %4306 = vmatmul.mubr.f32.gmra.mrb[0].mxu0 %v4305
        %v4307 = vpop.f32.mrb[0].mxu0
        %v4308 = vadd.f32 %v4234, %v4307
        %v4309 = vpop.f32.mrb[0].mxu0
        %4310 = vdwg.mxu0
        %4311 = vmatprep.subr.mxu0 0.0
        %v4312 = vand.u32 %v4080, 4294901760
        %4313 = vmatpush1.msra.mxu0 %v4312
        %4314 = vmatprep.subr.mxu0 0.0
        %4315 = vmatpush1.msra.mxu0 0.0
        %4316 = vmatprep.subr.mxu0 0.0
        %4317 = vmatpush1.msra.mxu0 0.0
        %4318 = vmatprep.subr.mxu0 0.0
        %4319 = vmatpush1.msra.mxu0 0.0
        %4320 = vmatprep.subr.mxu0 0.0
        %4321 = vmatpush1.msra.mxu0 0.0
        %4322 = vmatprep.subr.mxu0 0.0
        %4323 = vmatpush1.msra.mxu0 0.0
        %4324 = vmatprep.subr.mxu0 0.0
        %4325 = vmatpush1.msra.mxu0 0.0
        %4326 = vmatprep.subr.mxu0 0.0
        %4327 = vmatpush1.msra.mxu0 0.0
        %4328 = vmatprep.subr.mxu0 0.0
        %4329 = vmatpush1.msra.mxu0 0.0
        %4330 = vmatprep.subr.mxu0 0.0
        %4331 = vmatpush1.msra.mxu0 0.0
        %4332 = vmatprep.subr.mxu0 0.0
        %4333 = vmatpush1.msra.mxu0 0.0
        %4334 = vmatprep.subr.mxu0 0.0
        %4335 = vmatpush1.msra.mxu0 0.0
        %4336 = vmatprep.subr.mxu0 0.0
        %4337 = vmatpush1.msra.mxu0 0.0
        %4338 = vmatprep.subr.mxu0 0.0
        %4339 = vmatpush1.msra.mxu0 0.0
        %4340 = vmatprep.subr.mxu0 0.0
        %4341 = vmatpush1.msra.mxu0 0.0
        %4342 = vmatprep.subr.mxu0 0.0
        %4343 = vmatpush1.msra.mxu0 0.0
        %4344 = vmatprep.subr.mxu0 0.0
        %4345 = vmatpush1.msra.mxu0 0.0
        %4346 = vmatprep.subr.mxu0 0.0
        %4347 = vmatpush1.msra.mxu0 0.0
        %4348 = vmatprep.subr.mxu0 0.0
        %4349 = vmatpush1.msra.mxu0 0.0
        %4350 = vmatprep.subr.mxu0 0.0
        %4351 = vmatpush1.msra.mxu0 0.0
        %4352 = vmatprep.subr.mxu0 0.0
        %4353 = vmatpush1.msra.mxu0 0.0
        %4354 = vmatprep.subr.mxu0 0.0
        %4355 = vmatpush1.msra.mxu0 0.0
        %4356 = vmatprep.subr.mxu0 0.0
        %4357 = vmatpush1.msra.mxu0 0.0
        %4358 = vmatprep.subr.mxu0 0.0
        %4359 = vmatpush1.msra.mxu0 0.0
        %4360 = vmatprep.subr.mxu0 0.0
        %4361 = vmatpush1.msra.mxu0 0.0
        %4362 = vmatprep.subr.mxu0 0.0
        %4363 = vmatpush1.msra.mxu0 0.0
        %4364 = vmatprep.subr.mxu0 0.0
        %4365 = vmatpush1.msra.mxu0 0.0
        %4366 = vmatprep.subr.mxu0 0.0
        %4367 = vmatpush1.msra.mxu0 0.0
        %4368 = vmatprep.subr.mxu0 0.0
        %4369 = vmatpush1.msra.mxu0 0.0
        %4370 = vmatprep.subr.mxu0 0.0
        %4371 = vmatpush1.msra.mxu0 0.0
        %4372 = vmatprep.subr.mxu0 0.0
        %4373 = vmatpush1.msra.mxu0 0.0
        %4374 = vmatprep.subr.mxu0 0.0
        %4375 = vmatpush1.msra.mxu0 0.0
        %4376 = vmatprep.mubr.f32.mxu0 0.0
        %v4377 = vand.u32 %v4083, 4294901760
        %v4378 = vsub.f32 %v4083, %v4377
        %v4379 = vand.u32 %v4378, 4294901760
        %4380 = vmatmul.mubr.f32.gmra.mrb[0].mxu0 %v4379
        %v4381 = vpop.f32.mrb[0].mxu0
        %v4382 = vadd.f32 %v4308, %v4381
        %v4383 = vpop.f32.mrb[0].mxu0
        %4384 = vdwg.mxu0
        %4385 = vmatprep.subr.mxu0 0.0
        %v4386 = vand.u32 %v4080, 4294901760
        %v4387 = vsub.f32 %v4080, %v4386
        %v4388 = vand.u32 %v4387, 4294901760
        %4389 = vmatpush1.msra.mxu0 %v4388
        %4390 = vmatprep.subr.mxu0 0.0
        %4391 = vmatpush1.msra.mxu0 0.0
        %4392 = vmatprep.subr.mxu0 0.0
        %4393 = vmatpush1.msra.mxu0 0.0
        %4394 = vmatprep.subr.mxu0 0.0
        %4395 = vmatpush1.msra.mxu0 0.0
        %4396 = vmatprep.subr.mxu0 0.0
        %4397 = vmatpush1.msra.mxu0 0.0
        %4398 = vmatprep.subr.mxu0 0.0
        %4399 = vmatpush1.msra.mxu0 0.0
        %4400 = vmatprep.subr.mxu0 0.0
        %4401 = vmatpush1.msra.mxu0 0.0
        %4402 = vmatprep.subr.mxu0 0.0
        %4403 = vmatpush1.msra.mxu0 0.0
        %4404 = vmatprep.subr.mxu0 0.0
        %4405 = vmatpush1.msra.mxu0 0.0
        %4406 = vmatprep.subr.mxu0 0.0
        %4407 = vmatpush1.msra.mxu0 0.0
        %4408 = vmatprep.subr.mxu0 0.0
        %4409 = vmatpush1.msra.mxu0 0.0
        %4410 = vmatprep.subr.mxu0 0.0
        %4411 = vmatpush1.msra.mxu0 0.0
        %4412 = vmatprep.subr.mxu0 0.0
        %4413 = vmatpush1.msra.mxu0 0.0
        %4414 = vmatprep.subr.mxu0 0.0
        %4415 = vmatpush1.msra.mxu0 0.0
        %4416 = vmatprep.subr.mxu0 0.0
        %4417 = vmatpush1.msra.mxu0 0.0
        %4418 = vmatprep.subr.mxu0 0.0
        %4419 = vmatpush1.msra.mxu0 0.0
        %4420 = vmatprep.subr.mxu0 0.0
        %4421 = vmatpush1.msra.mxu0 0.0
        %4422 = vmatprep.subr.mxu0 0.0
        %4423 = vmatpush1.msra.mxu0 0.0
        %4424 = vmatprep.subr.mxu0 0.0
        %4425 = vmatpush1.msra.mxu0 0.0
        %4426 = vmatprep.subr.mxu0 0.0
        %4427 = vmatpush1.msra.mxu0 0.0
        %4428 = vmatprep.subr.mxu0 0.0
        %4429 = vmatpush1.msra.mxu0 0.0
        %4430 = vmatprep.subr.mxu0 0.0
        %4431 = vmatpush1.msra.mxu0 0.0
        %4432 = vmatprep.subr.mxu0 0.0
        %4433 = vmatpush1.msra.mxu0 0.0
        %4434 = vmatprep.subr.mxu0 0.0
        %4435 = vmatpush1.msra.mxu0 0.0
        %4436 = vmatprep.subr.mxu0 0.0
        %4437 = vmatpush1.msra.mxu0 0.0
        %4438 = vmatprep.subr.mxu0 0.0
        %4439 = vmatpush1.msra.mxu0 0.0
        %4440 = vmatprep.subr.mxu0 0.0
        %4441 = vmatpush1.msra.mxu0 0.0
        %4442 = vmatprep.subr.mxu0 0.0
        %4443 = vmatpush1.msra.mxu0 0.0
        %4444 = vmatprep.subr.mxu0 0.0
        %4445 = vmatpush1.msra.mxu0 0.0
        %4446 = vmatprep.subr.mxu0 0.0
        %4447 = vmatpush1.msra.mxu0 0.0
        %4448 = vmatprep.subr.mxu0 0.0
        %4449 = vmatpush1.msra.mxu0 0.0
        %4450 = vmatprep.subr.mxu0 0.0
        %4451 = vmatpush1.msra.mxu0 0.0
        %4452 = vmatprep.mubr.f32.mxu0 0.0
        %v4453 = vand.u32 %v4083, 4294901760
        %4454 = vmatmul.mubr.f32.gmra.mrb[0].mxu0 %v4453
        %v4455 = vpop.f32.mrb[0].mxu0
        %v4456 = vadd.f32 %v4382, %v4455
        %v4457 = vpop.f32.mrb[0].mxu0
        %4458 = vdwg.mxu0
        %4459 = vmatprep.subr.mxu0 0.0
        %v4460 = vand.u32 %v4080, 4294901760
        %4461 = vmatpush1.msra.mxu0 %v4460
        %4462 = vmatprep.subr.mxu0 0.0
        %4463 = vmatpush1.msra.mxu0 0.0
        %4464 = vmatprep.subr.mxu0 0.0
        %4465 = vmatpush1.msra.mxu0 0.0
        %4466 = vmatprep.subr.mxu0 0.0
        %4467 = vmatpush1.msra.mxu0 0.0
        %4468 = vmatprep.subr.mxu0 0.0
        %4469 = vmatpush1.msra.mxu0 0.0
        %4470 = vmatprep.subr.mxu0 0.0
        %4471 = vmatpush1.msra.mxu0 0.0
        %4472 = vmatprep.subr.mxu0 0.0
        %4473 = vmatpush1.msra.mxu0 0.0
        %4474 = vmatprep.subr.mxu0 0.0
        %4475 = vmatpush1.msra.mxu0 0.0
        %4476 = vmatprep.subr.mxu0 0.0
        %4477 = vmatpush1.msra.mxu0 0.0
        %4478 = vmatprep.subr.mxu0 0.0
        %4479 = vmatpush1.msra.mxu0 0.0
        %4480 = vmatprep.subr.mxu0 0.0
        %4481 = vmatpush1.msra.mxu0 0.0
        %4482 = vmatprep.subr.mxu0 0.0
        %4483 = vmatpush1.msra.mxu0 0.0
        %4484 = vmatprep.subr.mxu0 0.0
        %4485 = vmatpush1.msra.mxu0 0.0
        %4486 = vmatprep.subr.mxu0 0.0
        %4487 = vmatpush1.msra.mxu0 0.0
        %4488 = vmatprep.subr.mxu0 0.0
        %4489 = vmatpush1.msra.mxu0 0.0
        %4490 = vmatprep.subr.mxu0 0.0
        %4491 = vmatpush1.msra.mxu0 0.0
        %4492 = vmatprep.subr.mxu0 0.0
        %4493 = vmatpush1.msra.mxu0 0.0
        %4494 = vmatprep.subr.mxu0 0.0
        %4495 = vmatpush1.msra.mxu0 0.0
        %4496 = vmatprep.subr.mxu0 0.0
        %4497 = vmatpush1.msra.mxu0 0.0
        %4498 = vmatprep.subr.mxu0 0.0
        %4499 = vmatpush1.msra.mxu0 0.0
        %4500 = vmatprep.subr.mxu0 0.0
        %4501 = vmatpush1.msra.mxu0 0.0
        %4502 = vmatprep.subr.mxu0 0.0
        %4503 = vmatpush1.msra.mxu0 0.0
        %4504 = vmatprep.subr.mxu0 0.0
        %4505 = vmatpush1.msra.mxu0 0.0
        %4506 = vmatprep.subr.mxu0 0.0
        %4507 = vmatpush1.msra.mxu0 0.0
        %4508 = vmatprep.subr.mxu0 0.0
        %4509 = vmatpush1.msra.mxu0 0.0
        %4510 = vmatprep.subr.mxu0 0.0
        %4511 = vmatpush1.msra.mxu0 0.0
        %4512 = vmatprep.subr.mxu0 0.0
        %4513 = vmatpush1.msra.mxu0 0.0
        %4514 = vmatprep.subr.mxu0 0.0
        %4515 = vmatpush1.msra.mxu0 0.0
        %4516 = vmatprep.subr.mxu0 0.0
        %4517 = vmatpush1.msra.mxu0 0.0
        %4518 = vmatprep.subr.mxu0 0.0
        %4519 = vmatpush1.msra.mxu0 0.0
        %4520 = vmatprep.subr.mxu0 0.0
        %4521 = vmatpush1.msra.mxu0 0.0
        %4522 = vmatprep.subr.mxu0 0.0
        %4523 = vmatpush1.msra.mxu0 0.0
        %4524 = vmatprep.mubr.f32.mxu0 0.0
        %v4525 = vand.u32 %v4083, 4294901760
        %4526 = vmatmul.mubr.f32.gmra.mrb[0].mxu0 %v4525
        %v4527 = vpop.f32.mrb[0].mxu0
        %v4528 = vadd.f32 %v4456, %v4527
        %v4529 = vpop.f32.mrb[0].mxu0
        %4530 = vdwg.mxu0
        %v4532 = vsel %vm873, %v4528, 0
        %4534 = vmatprep.subr.mxu0 0.0
        %v4535 = vand.u32 %v868, 4294901760
        %4536 = vmatpush1.msra.mxu0 %v4535
        %4537 = vmatprep.subr.mxu0 0.0
        %4538 = vmatpush1.msra.mxu0 0.0
        %4539 = vmatprep.subr.mxu0 0.0
        %4540 = vmatpush1.msra.mxu0 0.0
        %4541 = vmatprep.subr.mxu0 0.0
        %4542 = vmatpush1.msra.mxu0 0.0
        %4543 = vmatprep.subr.mxu0 0.0
        %4544 = vmatpush1.msra.mxu0 0.0
        %4545 = vmatprep.subr.mxu0 0.0
        %4546 = vmatpush1.msra.mxu0 0.0
        %4547 = vmatprep.subr.mxu0 0.0
        %4548 = vmatpush1.msra.mxu0 0.0
        %4549 = vmatprep.subr.mxu0 0.0
        %4550 = vmatpush1.msra.mxu0 0.0
        %4551 = vmatprep.subr.mxu0 0.0
        %4552 = vmatpush1.msra.mxu0 0.0
        %4553 = vmatprep.subr.mxu0 0.0
        %4554 = vmatpush1.msra.mxu0 0.0
        %4555 = vmatprep.subr.mxu0 0.0
        %4556 = vmatpush1.msra.mxu0 0.0
        %4557 = vmatprep.subr.mxu0 0.0
        %4558 = vmatpush1.msra.mxu0 0.0
        %4559 = vmatprep.subr.mxu0 0.0
        %4560 = vmatpush1.msra.mxu0 0.0
        %4561 = vmatprep.subr.mxu0 0.0
        %4562 = vmatpush1.msra.mxu0 0.0
        %4563 = vmatprep.subr.mxu0 0.0
        %4564 = vmatpush1.msra.mxu0 0.0
        %4565 = vmatprep.subr.mxu0 0.0
        %4566 = vmatpush1.msra.mxu0 0.0
        %4567 = vmatprep.subr.mxu0 0.0
        %4568 = vmatpush1.msra.mxu0 0.0
        %4569 = vmatprep.subr.mxu0 0.0
        %4570 = vmatpush1.msra.mxu0 0.0
        %4571 = vmatprep.subr.mxu0 0.0
        %4572 = vmatpush1.msra.mxu0 0.0
        %4573 = vmatprep.subr.mxu0 0.0
        %4574 = vmatpush1.msra.mxu0 0.0
        %4575 = vmatprep.subr.mxu0 0.0
        %4576 = vmatpush1.msra.mxu0 0.0
        %4577 = vmatprep.subr.mxu0 0.0
        %4578 = vmatpush1.msra.mxu0 0.0
        %4579 = vmatprep.subr.mxu0 0.0
        %4580 = vmatpush1.msra.mxu0 0.0
        %4581 = vmatprep.subr.mxu0 0.0
        %4582 = vmatpush1.msra.mxu0 0.0
        %4583 = vmatprep.subr.mxu0 0.0
        %4584 = vmatpush1.msra.mxu0 0.0
        %4585 = vmatprep.subr.mxu0 0.0
        %4586 = vmatpush1.msra.mxu0 0.0
        %4587 = vmatprep.subr.mxu0 0.0
        %4588 = vmatpush1.msra.mxu0 0.0
        %4589 = vmatprep.subr.mxu0 0.0
        %4590 = vmatpush1.msra.mxu0 0.0
        %4591 = vmatprep.subr.mxu0 0.0
        %4592 = vmatpush1.msra.mxu0 0.0
        %4593 = vmatprep.subr.mxu0 0.0
        %4594 = vmatpush1.msra.mxu0 0.0
        %4595 = vmatprep.subr.mxu0 0.0
        %4596 = vmatpush1.msra.mxu0 0.0
        %4597 = vmatprep.subr.mxu0 0.0
        %4598 = vmatpush1.msra.mxu0 0.0
        %4599 = vmatprep.mubr.f32.mxu0 0.0
        %v4600 = vand.u32 %v4532, 4294901760
        %v4601 = vsub.f32 %v4532, %v4600
        %v4602 = vand.u32 %v4601, 4294901760
        %v4603 = vsub.f32 %v4601, %v4602
        %v4604 = vand.u32 %v4603, 4294901760
        %4605 = vmatmul.mubr.f32.gmra.mrb[0].mxu0 %v4604
        %v4606 = vpop.f32.mrb[0].mxu0
        %v4607 = vadd.f32 0.0, %v4606
        %v4608 = vpop.f32.mrb[0].mxu0
        %4609 = vdwg.mxu0
        %4610 = vmatprep.subr.mxu0 0.0
        %v4611 = vand.u32 %v868, 4294901760
        %v4612 = vsub.f32 %v868, %v4611
        %v4613 = vand.u32 %v4612, 4294901760
        %v4614 = vsub.f32 %v4612, %v4613
        %v4615 = vand.u32 %v4614, 4294901760
        %4616 = vmatpush1.msra.mxu0 %v4615
        %4617 = vmatprep.subr.mxu0 0.0
        %4618 = vmatpush1.msra.mxu0 0.0
        %4619 = vmatprep.subr.mxu0 0.0
        %4620 = vmatpush1.msra.mxu0 0.0
        %4621 = vmatprep.subr.mxu0 0.0
        %4622 = vmatpush1.msra.mxu0 0.0
        %4623 = vmatprep.subr.mxu0 0.0
        %4624 = vmatpush1.msra.mxu0 0.0
        %4625 = vmatprep.subr.mxu0 0.0
        %4626 = vmatpush1.msra.mxu0 0.0
        %4627 = vmatprep.subr.mxu0 0.0
        %4628 = vmatpush1.msra.mxu0 0.0
        %4629 = vmatprep.subr.mxu0 0.0
        %4630 = vmatpush1.msra.mxu0 0.0
        %4631 = vmatprep.subr.mxu0 0.0
        %4632 = vmatpush1.msra.mxu0 0.0
        %4633 = vmatprep.subr.mxu0 0.0
        %4634 = vmatpush1.msra.mxu0 0.0
        %4635 = vmatprep.subr.mxu0 0.0
        %4636 = vmatpush1.msra.mxu0 0.0
        %4637 = vmatprep.subr.mxu0 0.0
        %4638 = vmatpush1.msra.mxu0 0.0
        %4639 = vmatprep.subr.mxu0 0.0
        %4640 = vmatpush1.msra.mxu0 0.0
        %4641 = vmatprep.subr.mxu0 0.0
        %4642 = vmatpush1.msra.mxu0 0.0
        %4643 = vmatprep.subr.mxu0 0.0
        %4644 = vmatpush1.msra.mxu0 0.0
        %4645 = vmatprep.subr.mxu0 0.0
        %4646 = vmatpush1.msra.mxu0 0.0
        %4647 = vmatprep.subr.mxu0 0.0
        %4648 = vmatpush1.msra.mxu0 0.0
        %4649 = vmatprep.subr.mxu0 0.0
        %4650 = vmatpush1.msra.mxu0 0.0
        %4651 = vmatprep.subr.mxu0 0.0
        %4652 = vmatpush1.msra.mxu0 0.0
        %4653 = vmatprep.subr.mxu0 0.0
        %4654 = vmatpush1.msra.mxu0 0.0
        %4655 = vmatprep.subr.mxu0 0.0
        %4656 = vmatpush1.msra.mxu0 0.0
        %4657 = vmatprep.subr.mxu0 0.0
        %4658 = vmatpush1.msra.mxu0 0.0
        %4659 = vmatprep.subr.mxu0 0.0
        %4660 = vmatpush1.msra.mxu0 0.0
        %4661 = vmatprep.subr.mxu0 0.0
        %4662 = vmatpush1.msra.mxu0 0.0
        %4663 = vmatprep.subr.mxu0 0.0
        %4664 = vmatpush1.msra.mxu0 0.0
        %4665 = vmatprep.subr.mxu0 0.0
        %4666 = vmatpush1.msra.mxu0 0.0
        %4667 = vmatprep.subr.mxu0 0.0
        %4668 = vmatpush1.msra.mxu0 0.0
        %4669 = vmatprep.subr.mxu0 0.0
        %4670 = vmatpush1.msra.mxu0 0.0
        %4671 = vmatprep.subr.mxu0 0.0
        %4672 = vmatpush1.msra.mxu0 0.0
        %4673 = vmatprep.subr.mxu0 0.0
        %4674 = vmatpush1.msra.mxu0 0.0
        %4675 = vmatprep.subr.mxu0 0.0
        %4676 = vmatpush1.msra.mxu0 0.0
        %4677 = vmatprep.subr.mxu0 0.0
        %4678 = vmatpush1.msra.mxu0 0.0
        %4679 = vmatprep.mubr.f32.mxu0 0.0
        %v4680 = vand.u32 %v4532, 4294901760
        %4681 = vmatmul.mubr.f32.gmra.mrb[0].mxu0 %v4680
        %v4682 = vpop.f32.mrb[0].mxu0
        %v4683 = vadd.f32 %v4607, %v4682
        %v4684 = vpop.f32.mrb[0].mxu0
        %4685 = vdwg.mxu0
        %4686 = vmatprep.subr.mxu0 0.0
        %v4687 = vand.u32 %v868, 4294901760
        %v4688 = vsub.f32 %v868, %v4687
        %4689 = vmatpush1.msra.mxu0 %v4688
        %4690 = vmatprep.subr.mxu0 0.0
        %4691 = vmatpush1.msra.mxu0 0.0
        %4692 = vmatprep.subr.mxu0 0.0
        %4693 = vmatpush1.msra.mxu0 0.0
        %4694 = vmatprep.subr.mxu0 0.0
        %4695 = vmatpush1.msra.mxu0 0.0
        %4696 = vmatprep.subr.mxu0 0.0
        %4697 = vmatpush1.msra.mxu0 0.0
        %4698 = vmatprep.subr.mxu0 0.0
        %4699 = vmatpush1.msra.mxu0 0.0
        %4700 = vmatprep.subr.mxu0 0.0
        %4701 = vmatpush1.msra.mxu0 0.0
        %4702 = vmatprep.subr.mxu0 0.0
        %4703 = vmatpush1.msra.mxu0 0.0
        %4704 = vmatprep.subr.mxu0 0.0
        %4705 = vmatpush1.msra.mxu0 0.0
        %4706 = vmatprep.subr.mxu0 0.0
        %4707 = vmatpush1.msra.mxu0 0.0
        %4708 = vmatprep.subr.mxu0 0.0
        %4709 = vmatpush1.msra.mxu0 0.0
        %4710 = vmatprep.subr.mxu0 0.0
        %4711 = vmatpush1.msra.mxu0 0.0
        %4712 = vmatprep.subr.mxu0 0.0
        %4713 = vmatpush1.msra.mxu0 0.0
        %4714 = vmatprep.subr.mxu0 0.0
        %4715 = vmatpush1.msra.mxu0 0.0
        %4716 = vmatprep.subr.mxu0 0.0
        %4717 = vmatpush1.msra.mxu0 0.0
        %4718 = vmatprep.subr.mxu0 0.0
        %4719 = vmatpush1.msra.mxu0 0.0
        %4720 = vmatprep.subr.mxu0 0.0
        %4721 = vmatpush1.msra.mxu0 0.0
        %4722 = vmatprep.subr.mxu0 0.0
        %4723 = vmatpush1.msra.mxu0 0.0
        %4724 = vmatprep.subr.mxu0 0.0
        %4725 = vmatpush1.msra.mxu0 0.0
        %4726 = vmatprep.subr.mxu0 0.0
        %4727 = vmatpush1.msra.mxu0 0.0
        %4728 = vmatprep.subr.mxu0 0.0
        %4729 = vmatpush1.msra.mxu0 0.0
        %4730 = vmatprep.subr.mxu0 0.0
        %4731 = vmatpush1.msra.mxu0 0.0
        %4732 = vmatprep.subr.mxu0 0.0
        %4733 = vmatpush1.msra.mxu0 0.0
        %4734 = vmatprep.subr.mxu0 0.0
        %4735 = vmatpush1.msra.mxu0 0.0
        %4736 = vmatprep.subr.mxu0 0.0
        %4737 = vmatpush1.msra.mxu0 0.0
        %4738 = vmatprep.subr.mxu0 0.0
        %4739 = vmatpush1.msra.mxu0 0.0
        %4740 = vmatprep.subr.mxu0 0.0
        %4741 = vmatpush1.msra.mxu0 0.0
        %4742 = vmatprep.subr.mxu0 0.0
        %4743 = vmatpush1.msra.mxu0 0.0
        %4744 = vmatprep.subr.mxu0 0.0
        %4745 = vmatpush1.msra.mxu0 0.0
        %4746 = vmatprep.subr.mxu0 0.0
        %4747 = vmatpush1.msra.mxu0 0.0
        %4748 = vmatprep.subr.mxu0 0.0
        %4749 = vmatpush1.msra.mxu0 0.0
        %4750 = vmatprep.subr.mxu0 0.0
        %4751 = vmatpush1.msra.mxu0 0.0
        %4752 = vmatprep.mubr.f32.mxu0 0.0
        %v4753 = vand.u32 %v4532, 4294901760
        %v4754 = vsub.f32 %v4532, %v4753
        %4755 = vmatmul.mubr.f32.gmra.mrb[0].mxu0 %v4754
        %v4756 = vpop.f32.mrb[0].mxu0
        %v4757 = vadd.f32 %v4683, %v4756
        %v4758 = vpop.f32.mrb[0].mxu0
        %4759 = vdwg.mxu0
        %4760 = vmatprep.subr.mxu0 0.0
        %v4761 = vand.u32 %v868, 4294901760
        %4762 = vmatpush1.msra.mxu0 %v4761
        %4763 = vmatprep.subr.mxu0 0.0
        %4764 = vmatpush1.msra.mxu0 0.0
        %4765 = vmatprep.subr.mxu0 0.0
        %4766 = vmatpush1.msra.mxu0 0.0
        %4767 = vmatprep.subr.mxu0 0.0
        %4768 = vmatpush1.msra.mxu0 0.0
        %4769 = vmatprep.subr.mxu0 0.0
        %4770 = vmatpush1.msra.mxu0 0.0
        %4771 = vmatprep.subr.mxu0 0.0
        %4772 = vmatpush1.msra.mxu0 0.0
        %4773 = vmatprep.subr.mxu0 0.0
        %4774 = vmatpush1.msra.mxu0 0.0
        %4775 = vmatprep.subr.mxu0 0.0
        %4776 = vmatpush1.msra.mxu0 0.0
        %4777 = vmatprep.subr.mxu0 0.0
        %4778 = vmatpush1.msra.mxu0 0.0
        %4779 = vmatprep.subr.mxu0 0.0
        %4780 = vmatpush1.msra.mxu0 0.0
        %4781 = vmatprep.subr.mxu0 0.0
        %4782 = vmatpush1.msra.mxu0 0.0
        %4783 = vmatprep.subr.mxu0 0.0
        %4784 = vmatpush1.msra.mxu0 0.0
        %4785 = vmatprep.subr.mxu0 0.0
        %4786 = vmatpush1.msra.mxu0 0.0
        %4787 = vmatprep.subr.mxu0 0.0
        %4788 = vmatpush1.msra.mxu0 0.0
        %4789 = vmatprep.subr.mxu0 0.0
        %4790 = vmatpush1.msra.mxu0 0.0
        %4791 = vmatprep.subr.mxu0 0.0
        %4792 = vmatpush1.msra.mxu0 0.0
        %4793 = vmatprep.subr.mxu0 0.0
        %4794 = vmatpush1.msra.mxu0 0.0
        %4795 = vmatprep.subr.mxu0 0.0
        %4796 = vmatpush1.msra.mxu0 0.0
        %4797 = vmatprep.subr.mxu0 0.0
        %4798 = vmatpush1.msra.mxu0 0.0
        %4799 = vmatprep.subr.mxu0 0.0
        %4800 = vmatpush1.msra.mxu0 0.0
        %4801 = vmatprep.subr.mxu0 0.0
        %4802 = vmatpush1.msra.mxu0 0.0
        %4803 = vmatprep.subr.mxu0 0.0
        %4804 = vmatpush1.msra.mxu0 0.0
        %4805 = vmatprep.subr.mxu0 0.0
        %4806 = vmatpush1.msra.mxu0 0.0
        %4807 = vmatprep.subr.mxu0 0.0
        %4808 = vmatpush1.msra.mxu0 0.0
        %4809 = vmatprep.subr.mxu0 0.0
        %4810 = vmatpush1.msra.mxu0 0.0
        %4811 = vmatprep.subr.mxu0 0.0
        %4812 = vmatpush1.msra.mxu0 0.0
        %4813 = vmatprep.subr.mxu0 0.0
        %4814 = vmatpush1.msra.mxu0 0.0
        %4815 = vmatprep.subr.mxu0 0.0
        %4816 = vmatpush1.msra.mxu0 0.0
        %4817 = vmatprep.subr.mxu0 0.0
        %4818 = vmatpush1.msra.mxu0 0.0
        %4819 = vmatprep.subr.mxu0 0.0
        %4820 = vmatpush1.msra.mxu0 0.0
        %4821 = vmatprep.subr.mxu0 0.0
        %4822 = vmatpush1.msra.mxu0 0.0
        %4823 = vmatprep.subr.mxu0 0.0
        %4824 = vmatpush1.msra.mxu0 0.0
        %4825 = vmatprep.mubr.f32.mxu0 0.0
        %v4826 = vand.u32 %v4532, 4294901760
        %v4827 = vsub.f32 %v4532, %v4826
        %v4828 = vand.u32 %v4827, 4294901760
        %4829 = vmatmul.mubr.f32.gmra.mrb[0].mxu0 %v4828
        %v4830 = vpop.f32.mrb[0].mxu0
        %v4831 = vadd.f32 %v4757, %v4830
        %v4832 = vpop.f32.mrb[0].mxu0
        %4833 = vdwg.mxu0
        %4834 = vmatprep.subr.mxu0 0.0
        %v4835 = vand.u32 %v868, 4294901760
        %v4836 = vsub.f32 %v868, %v4835
        %v4837 = vand.u32 %v4836, 4294901760
        %4838 = vmatpush1.msra.mxu0 %v4837
        %4839 = vmatprep.subr.mxu0 0.0
        %4840 = vmatpush1.msra.mxu0 0.0
        %4841 = vmatprep.subr.mxu0 0.0
        %4842 = vmatpush1.msra.mxu0 0.0
        %4843 = vmatprep.subr.mxu0 0.0
        %4844 = vmatpush1.msra.mxu0 0.0
        %4845 = vmatprep.subr.mxu0 0.0
        %4846 = vmatpush1.msra.mxu0 0.0
        %4847 = vmatprep.subr.mxu0 0.0
        %4848 = vmatpush1.msra.mxu0 0.0
        %4849 = vmatprep.subr.mxu0 0.0
        %4850 = vmatpush1.msra.mxu0 0.0
        %4851 = vmatprep.subr.mxu0 0.0
        %4852 = vmatpush1.msra.mxu0 0.0
        %4853 = vmatprep.subr.mxu0 0.0
        %4854 = vmatpush1.msra.mxu0 0.0
        %4855 = vmatprep.subr.mxu0 0.0
        %4856 = vmatpush1.msra.mxu0 0.0
        %4857 = vmatprep.subr.mxu0 0.0
        %4858 = vmatpush1.msra.mxu0 0.0
        %4859 = vmatprep.subr.mxu0 0.0
        %4860 = vmatpush1.msra.mxu0 0.0
        %4861 = vmatprep.subr.mxu0 0.0
        %4862 = vmatpush1.msra.mxu0 0.0
        %4863 = vmatprep.subr.mxu0 0.0
        %4864 = vmatpush1.msra.mxu0 0.0
        %4865 = vmatprep.subr.mxu0 0.0
        %4866 = vmatpush1.msra.mxu0 0.0
        %4867 = vmatprep.subr.mxu0 0.0
        %4868 = vmatpush1.msra.mxu0 0.0
        %4869 = vmatprep.subr.mxu0 0.0
        %4870 = vmatpush1.msra.mxu0 0.0
        %4871 = vmatprep.subr.mxu0 0.0
        %4872 = vmatpush1.msra.mxu0 0.0
        %4873 = vmatprep.subr.mxu0 0.0
        %4874 = vmatpush1.msra.mxu0 0.0
        %4875 = vmatprep.subr.mxu0 0.0
        %4876 = vmatpush1.msra.mxu0 0.0
        %4877 = vmatprep.subr.mxu0 0.0
        %4878 = vmatpush1.msra.mxu0 0.0
        %4879 = vmatprep.subr.mxu0 0.0
        %4880 = vmatpush1.msra.mxu0 0.0
        %4881 = vmatprep.subr.mxu0 0.0
        %4882 = vmatpush1.msra.mxu0 0.0
        %4883 = vmatprep.subr.mxu0 0.0
        %4884 = vmatpush1.msra.mxu0 0.0
        %4885 = vmatprep.subr.mxu0 0.0
        %4886 = vmatpush1.msra.mxu0 0.0
        %4887 = vmatprep.subr.mxu0 0.0
        %4888 = vmatpush1.msra.mxu0 0.0
        %4889 = vmatprep.subr.mxu0 0.0
        %4890 = vmatpush1.msra.mxu0 0.0
        %4891 = vmatprep.subr.mxu0 0.0
        %4892 = vmatpush1.msra.mxu0 0.0
        %4893 = vmatprep.subr.mxu0 0.0
        %4894 = vmatpush1.msra.mxu0 0.0
        %4895 = vmatprep.subr.mxu0 0.0
        %4896 = vmatpush1.msra.mxu0 0.0
        %4897 = vmatprep.subr.mxu0 0.0
        %4898 = vmatpush1.msra.mxu0 0.0
        %4899 = vmatprep.subr.mxu0 0.0
        %4900 = vmatpush1.msra.mxu0 0.0
        %4901 = vmatprep.mubr.f32.mxu0 0.0
        %v4902 = vand.u32 %v4532, 4294901760
        %4903 = vmatmul.mubr.f32.gmra.mrb[0].mxu0 %v4902
        %v4904 = vpop.f32.mrb[0].mxu0
        %v4905 = vadd.f32 %v4831, %v4904
        %v4906 = vpop.f32.mrb[0].mxu0
        %4907 = vdwg.mxu0
        %4908 = vmatprep.subr.mxu0 0.0
        %v4909 = vand.u32 %v868, 4294901760
        %4910 = vmatpush1.msra.mxu0 %v4909
        %4911 = vmatprep.subr.mxu0 0.0
        %4912 = vmatpush1.msra.mxu0 0.0
        %4913 = vmatprep.subr.mxu0 0.0
        %4914 = vmatpush1.msra.mxu0 0.0
        %4915 = vmatprep.subr.mxu0 0.0
        %4916 = vmatpush1.msra.mxu0 0.0
        %4917 = vmatprep.subr.mxu0 0.0
        %4918 = vmatpush1.msra.mxu0 0.0
        %4919 = vmatprep.subr.mxu0 0.0
        %4920 = vmatpush1.msra.mxu0 0.0
        %4921 = vmatprep.subr.mxu0 0.0
        %4922 = vmatpush1.msra.mxu0 0.0
        %4923 = vmatprep.subr.mxu0 0.0
        %4924 = vmatpush1.msra.mxu0 0.0
        %4925 = vmatprep.subr.mxu0 0.0
        %4926 = vmatpush1.msra.mxu0 0.0
        %4927 = vmatprep.subr.mxu0 0.0
        %4928 = vmatpush1.msra.mxu0 0.0
        %4929 = vmatprep.subr.mxu0 0.0
        %4930 = vmatpush1.msra.mxu0 0.0
        %4931 = vmatprep.subr.mxu0 0.0
        %4932 = vmatpush1.msra.mxu0 0.0
        %4933 = vmatprep.subr.mxu0 0.0
        %4934 = vmatpush1.msra.mxu0 0.0
        %4935 = vmatprep.subr.mxu0 0.0
        %4936 = vmatpush1.msra.mxu0 0.0
        %4937 = vmatprep.subr.mxu0 0.0
        %4938 = vmatpush1.msra.mxu0 0.0
        %4939 = vmatprep.subr.mxu0 0.0
        %4940 = vmatpush1.msra.mxu0 0.0
        %4941 = vmatprep.subr.mxu0 0.0
        %4942 = vmatpush1.msra.mxu0 0.0
        %4943 = vmatprep.subr.mxu0 0.0
        %4944 = vmatpush1.msra.mxu0 0.0
        %4945 = vmatprep.subr.mxu0 0.0
        %4946 = vmatpush1.msra.mxu0 0.0
        %4947 = vmatprep.subr.mxu0 0.0
        %4948 = vmatpush1.msra.mxu0 0.0
        %4949 = vmatprep.subr.mxu0 0.0
        %4950 = vmatpush1.msra.mxu0 0.0
        %4951 = vmatprep.subr.mxu0 0.0
        %4952 = vmatpush1.msra.mxu0 0.0
        %4953 = vmatprep.subr.mxu0 0.0
        %4954 = vmatpush1.msra.mxu0 0.0
        %4955 = vmatprep.subr.mxu0 0.0
        %4956 = vmatpush1.msra.mxu0 0.0
        %4957 = vmatprep.subr.mxu0 0.0
        %4958 = vmatpush1.msra.mxu0 0.0
        %4959 = vmatprep.subr.mxu0 0.0
        %4960 = vmatpush1.msra.mxu0 0.0
        %4961 = vmatprep.subr.mxu0 0.0
        %4962 = vmatpush1.msra.mxu0 0.0
        %4963 = vmatprep.subr.mxu0 0.0
        %4964 = vmatpush1.msra.mxu0 0.0
        %4965 = vmatprep.subr.mxu0 0.0
        %4966 = vmatpush1.msra.mxu0 0.0
        %4967 = vmatprep.subr.mxu0 0.0
        %4968 = vmatpush1.msra.mxu0 0.0
        %4969 = vmatprep.subr.mxu0 0.0
        %4970 = vmatpush1.msra.mxu0 0.0
        %4971 = vmatprep.subr.mxu0 0.0
        %4972 = vmatpush1.msra.mxu0 0.0
        %4973 = vmatprep.mubr.f32.mxu0 0.0
        %v4974 = vand.u32 %v4532, 4294901760
        %4975 = vmatmul.mubr.f32.gmra.mrb[0].mxu0 %v4974
        %v4976 = vpop.f32.mrb[0].mxu0
        %v4977 = vadd.f32 %v4905, %v4976
        %v4978 = vpop.f32.mrb[0].mxu0
        %4979 = vdwg.mxu0
        %v4980 = vadd.f32 %v3609, %v4977
        %4981 = vrot.lane.b32.xlu0 %v863, 104
        %v4982 = vpop.permute.xlu0 %4981
        %4983 = vrot.lane.b32.xlu0 %v863, 72
        %v4984 = vpop.permute.xlu0 %4983
        %v4985 = vsel %vm873, %v4982, 0
        %v4987 = vsel %vm873, %v4984, 0
        %4989 = vmatprep.subr.mxu0 0.0
        %v4990 = vand.u32 %v4987, 4294901760
        %4991 = vmatpush1.xpose.msra.mxu0 %v4990
        %4992 = vmatprep.subr.mxu0 0.0
        %4993 = vmatpush1.xpose.msra.mxu0 0.0
        %4994 = vmatprep.subr.mxu0 0.0
        %4995 = vmatpush1.xpose.msra.mxu0 0.0
        %4996 = vmatprep.subr.mxu0 0.0
        %4997 = vmatpush1.xpose.msra.mxu0 0.0
        %4998 = vmatprep.subr.mxu0 0.0
        %4999 = vmatpush1.xpose.msra.mxu0 0.0
        %5000 = vmatprep.subr.mxu0 0.0
        %5001 = vmatpush1.xpose.msra.mxu0 0.0
        %5002 = vmatprep.subr.mxu0 0.0
        %5003 = vmatpush1.xpose.msra.mxu0 0.0
        %5004 = vmatprep.subr.mxu0 0.0
        %5005 = vmatpush1.xpose.msra.mxu0 0.0
        %5006 = vmatprep.subr.mxu0 0.0
        %5007 = vmatpush1.xpose.msra.mxu0 0.0
        %5008 = vmatprep.subr.mxu0 0.0
        %5009 = vmatpush1.xpose.msra.mxu0 0.0
        %5010 = vmatprep.subr.mxu0 0.0
        %5011 = vmatpush1.xpose.msra.mxu0 0.0
        %5012 = vmatprep.subr.mxu0 0.0
        %5013 = vmatpush1.xpose.msra.mxu0 0.0
        %5014 = vmatprep.subr.mxu0 0.0
        %5015 = vmatpush1.xpose.msra.mxu0 0.0
        %5016 = vmatprep.subr.mxu0 0.0
        %5017 = vmatpush1.xpose.msra.mxu0 0.0
        %5018 = vmatprep.subr.mxu0 0.0
        %5019 = vmatpush1.xpose.msra.mxu0 0.0
        %5020 = vmatprep.subr.mxu0 0.0
        %5021 = vmatpush1.xpose.msra.mxu0 0.0
        %5022 = vmatprep.subr.mxu0 0.0
        %5023 = vmatpush1.xpose.msra.mxu0 0.0
        %5024 = vmatprep.subr.mxu0 0.0
        %5025 = vmatpush1.xpose.msra.mxu0 0.0
        %5026 = vmatprep.subr.mxu0 0.0
        %5027 = vmatpush1.xpose.msra.mxu0 0.0
        %5028 = vmatprep.subr.mxu0 0.0
        %5029 = vmatpush1.xpose.msra.mxu0 0.0
        %5030 = vmatprep.subr.mxu0 0.0
        %5031 = vmatpush1.xpose.msra.mxu0 0.0
        %5032 = vmatprep.subr.mxu0 0.0
        %5033 = vmatpush1.xpose.msra.mxu0 0.0
        %5034 = vmatprep.subr.mxu0 0.0
        %5035 = vmatpush1.xpose.msra.mxu0 0.0
        %5036 = vmatprep.subr.mxu0 0.0
        %5037 = vmatpush1.xpose.msra.mxu0 0.0
        %5038 = vmatprep.subr.mxu0 0.0
        %5039 = vmatpush1.xpose.msra.mxu0 0.0
        %5040 = vmatprep.subr.mxu0 0.0
        %5041 = vmatpush1.xpose.msra.mxu0 0.0
        %5042 = vmatprep.subr.mxu0 0.0
        %5043 = vmatpush1.xpose.msra.mxu0 0.0
        %5044 = vmatprep.subr.mxu0 0.0
        %5045 = vmatpush1.xpose.msra.mxu0 0.0
        %5046 = vmatprep.subr.mxu0 0.0
        %5047 = vmatpush1.xpose.msra.mxu0 0.0
        %5048 = vmatprep.subr.mxu0 0.0
        %5049 = vmatpush1.xpose.msra.mxu0 0.0
        %5050 = vmatprep.subr.mxu0 0.0
        %5051 = vmatpush1.xpose.msra.mxu0 0.0
        %5052 = vmatprep.subr.mxu0 0.0
        %5053 = vmatpush1.xpose.msra.mxu0 0.0
        %5054 = vmatprep.mubr.f32.mxu0 0.0
        %v5055 = vand.u32 %v4985, 4294901760
        %v5056 = vsub.f32 %v4985, %v5055
        %v5057 = vand.u32 %v5056, 4294901760
        %v5058 = vsub.f32 %v5056, %v5057
        %v5059 = vand.u32 %v5058, 4294901760
        %5060 = vmatmul.mubr.f32.gmra.mrb[0].mxu0 %v5059
        %v5061 = vpop.f32.mrb[0].mxu0
        %v5062 = vadd.f32 0.0, %v5061
        %v5063 = vpop.f32.mrb[0].mxu0
        %5064 = vdwg.mxu0
        %5065 = vmatprep.subr.mxu0 0.0
        %v5066 = vand.u32 %v4987, 4294901760
        %v5067 = vsub.f32 %v4987, %v5066
        %v5068 = vand.u32 %v5067, 4294901760
        %v5069 = vsub.f32 %v5067, %v5068
        %v5070 = vand.u32 %v5069, 4294901760
        %5071 = vmatpush1.xpose.msra.mxu0 %v5070
        %5072 = vmatprep.subr.mxu0 0.0
        %5073 = vmatpush1.xpose.msra.mxu0 0.0
        %5074 = vmatprep.subr.mxu0 0.0
        %5075 = vmatpush1.xpose.msra.mxu0 0.0
        %5076 = vmatprep.subr.mxu0 0.0
        %5077 = vmatpush1.xpose.msra.mxu0 0.0
        %5078 = vmatprep.subr.mxu0 0.0
        %5079 = vmatpush1.xpose.msra.mxu0 0.0
        %5080 = vmatprep.subr.mxu0 0.0
        %5081 = vmatpush1.xpose.msra.mxu0 0.0
        %5082 = vmatprep.subr.mxu0 0.0
        %5083 = vmatpush1.xpose.msra.mxu0 0.0
        %5084 = vmatprep.subr.mxu0 0.0
        %5085 = vmatpush1.xpose.msra.mxu0 0.0
        %5086 = vmatprep.subr.mxu0 0.0
        %5087 = vmatpush1.xpose.msra.mxu0 0.0
        %5088 = vmatprep.subr.mxu0 0.0
        %5089 = vmatpush1.xpose.msra.mxu0 0.0
        %5090 = vmatprep.subr.mxu0 0.0
        %5091 = vmatpush1.xpose.msra.mxu0 0.0
        %5092 = vmatprep.subr.mxu0 0.0
        %5093 = vmatpush1.xpose.msra.mxu0 0.0
        %5094 = vmatprep.subr.mxu0 0.0
        %5095 = vmatpush1.xpose.msra.mxu0 0.0
        %5096 = vmatprep.subr.mxu0 0.0
        %5097 = vmatpush1.xpose.msra.mxu0 0.0
        %5098 = vmatprep.subr.mxu0 0.0
        %5099 = vmatpush1.xpose.msra.mxu0 0.0
        %5100 = vmatprep.subr.mxu0 0.0
        %5101 = vmatpush1.xpose.msra.mxu0 0.0
        %5102 = vmatprep.subr.mxu0 0.0
        %5103 = vmatpush1.xpose.msra.mxu0 0.0
        %5104 = vmatprep.subr.mxu0 0.0
        %5105 = vmatpush1.xpose.msra.mxu0 0.0
        %5106 = vmatprep.subr.mxu0 0.0
        %5107 = vmatpush1.xpose.msra.mxu0 0.0
        %5108 = vmatprep.subr.mxu0 0.0
        %5109 = vmatpush1.xpose.msra.mxu0 0.0
        %5110 = vmatprep.subr.mxu0 0.0
        %5111 = vmatpush1.xpose.msra.mxu0 0.0
        %5112 = vmatprep.subr.mxu0 0.0
        %5113 = vmatpush1.xpose.msra.mxu0 0.0
        %5114 = vmatprep.subr.mxu0 0.0
        %5115 = vmatpush1.xpose.msra.mxu0 0.0
        %5116 = vmatprep.subr.mxu0 0.0
        %5117 = vmatpush1.xpose.msra.mxu0 0.0
        %5118 = vmatprep.subr.mxu0 0.0
        %5119 = vmatpush1.xpose.msra.mxu0 0.0
        %5120 = vmatprep.subr.mxu0 0.0
        %5121 = vmatpush1.xpose.msra.mxu0 0.0
        %5122 = vmatprep.subr.mxu0 0.0
        %5123 = vmatpush1.xpose.msra.mxu0 0.0
        %5124 = vmatprep.subr.mxu0 0.0
        %5125 = vmatpush1.xpose.msra.mxu0 0.0
        %5126 = vmatprep.subr.mxu0 0.0
        %5127 = vmatpush1.xpose.msra.mxu0 0.0
        %5128 = vmatprep.subr.mxu0 0.0
        %5129 = vmatpush1.xpose.msra.mxu0 0.0
        %5130 = vmatprep.subr.mxu0 0.0
        %5131 = vmatpush1.xpose.msra.mxu0 0.0
        %5132 = vmatprep.subr.mxu0 0.0
        %5133 = vmatpush1.xpose.msra.mxu0 0.0
        %5134 = vmatprep.mubr.f32.mxu0 0.0
        %v5135 = vand.u32 %v4985, 4294901760
        %5136 = vmatmul.mubr.f32.gmra.mrb[0].mxu0 %v5135
        %v5137 = vpop.f32.mrb[0].mxu0
        %v5138 = vadd.f32 %v5062, %v5137
        %v5139 = vpop.f32.mrb[0].mxu0
        %5140 = vdwg.mxu0
        %5141 = vmatprep.subr.mxu0 0.0
        %v5142 = vand.u32 %v4987, 4294901760
        %v5143 = vsub.f32 %v4987, %v5142
        %5144 = vmatpush1.xpose.msra.mxu0 %v5143
        %5145 = vmatprep.subr.mxu0 0.0
        %5146 = vmatpush1.xpose.msra.mxu0 0.0
        %5147 = vmatprep.subr.mxu0 0.0
        %5148 = vmatpush1.xpose.msra.mxu0 0.0
        %5149 = vmatprep.subr.mxu0 0.0
        %5150 = vmatpush1.xpose.msra.mxu0 0.0
        %5151 = vmatprep.subr.mxu0 0.0
        %5152 = vmatpush1.xpose.msra.mxu0 0.0
        %5153 = vmatprep.subr.mxu0 0.0
        %5154 = vmatpush1.xpose.msra.mxu0 0.0
        %5155 = vmatprep.subr.mxu0 0.0
        %5156 = vmatpush1.xpose.msra.mxu0 0.0
        %5157 = vmatprep.subr.mxu0 0.0
        %5158 = vmatpush1.xpose.msra.mxu0 0.0
        %5159 = vmatprep.subr.mxu0 0.0
        %5160 = vmatpush1.xpose.msra.mxu0 0.0
        %5161 = vmatprep.subr.mxu0 0.0
        %5162 = vmatpush1.xpose.msra.mxu0 0.0
        %5163 = vmatprep.subr.mxu0 0.0
        %5164 = vmatpush1.xpose.msra.mxu0 0.0
        %5165 = vmatprep.subr.mxu0 0.0
        %5166 = vmatpush1.xpose.msra.mxu0 0.0
        %5167 = vmatprep.subr.mxu0 0.0
        %5168 = vmatpush1.xpose.msra.mxu0 0.0
        %5169 = vmatprep.subr.mxu0 0.0
        %5170 = vmatpush1.xpose.msra.mxu0 0.0
        %5171 = vmatprep.subr.mxu0 0.0
        %5172 = vmatpush1.xpose.msra.mxu0 0.0
        %5173 = vmatprep.subr.mxu0 0.0
        %5174 = vmatpush1.xpose.msra.mxu0 0.0
        %5175 = vmatprep.subr.mxu0 0.0
        %5176 = vmatpush1.xpose.msra.mxu0 0.0
        %5177 = vmatprep.subr.mxu0 0.0
        %5178 = vmatpush1.xpose.msra.mxu0 0.0
        %5179 = vmatprep.subr.mxu0 0.0
        %5180 = vmatpush1.xpose.msra.mxu0 0.0
        %5181 = vmatprep.subr.mxu0 0.0
        %5182 = vmatpush1.xpose.msra.mxu0 0.0
        %5183 = vmatprep.subr.mxu0 0.0
        %5184 = vmatpush1.xpose.msra.mxu0 0.0
        %5185 = vmatprep.subr.mxu0 0.0
        %5186 = vmatpush1.xpose.msra.mxu0 0.0
        %5187 = vmatprep.subr.mxu0 0.0
        %5188 = vmatpush1.xpose.msra.mxu0 0.0
        %5189 = vmatprep.subr.mxu0 0.0
        %5190 = vmatpush1.xpose.msra.mxu0 0.0
        %5191 = vmatprep.subr.mxu0 0.0
        %5192 = vmatpush1.xpose.msra.mxu0 0.0
        %5193 = vmatprep.subr.mxu0 0.0
        %5194 = vmatpush1.xpose.msra.mxu0 0.0
        %5195 = vmatprep.subr.mxu0 0.0
        %5196 = vmatpush1.xpose.msra.mxu0 0.0
        %5197 = vmatprep.subr.mxu0 0.0
        %5198 = vmatpush1.xpose.msra.mxu0 0.0
        %5199 = vmatprep.subr.mxu0 0.0
        %5200 = vmatpush1.xpose.msra.mxu0 0.0
        %5201 = vmatprep.subr.mxu0 0.0
        %5202 = vmatpush1.xpose.msra.mxu0 0.0
        %5203 = vmatprep.subr.mxu0 0.0
        %5204 = vmatpush1.xpose.msra.mxu0 0.0
        %5205 = vmatprep.subr.mxu0 0.0
        %5206 = vmatpush1.xpose.msra.mxu0 0.0
        %5207 = vmatprep.mubr.f32.mxu0 0.0
        %v5208 = vand.u32 %v4985, 4294901760
        %v5209 = vsub.f32 %v4985, %v5208
        %5210 = vmatmul.mubr.f32.gmra.mrb[0].mxu0 %v5209
        %v5211 = vpop.f32.mrb[0].mxu0
        %v5212 = vadd.f32 %v5138, %v5211
        %v5213 = vpop.f32.mrb[0].mxu0
        %5214 = vdwg.mxu0
        %5215 = vmatprep.subr.mxu0 0.0
        %v5216 = vand.u32 %v4987, 4294901760
        %5217 = vmatpush1.xpose.msra.mxu0 %v5216
        %5218 = vmatprep.subr.mxu0 0.0
        %5219 = vmatpush1.xpose.msra.mxu0 0.0
        %5220 = vmatprep.subr.mxu0 0.0
        %5221 = vmatpush1.xpose.msra.mxu0 0.0
        %5222 = vmatprep.subr.mxu0 0.0
        %5223 = vmatpush1.xpose.msra.mxu0 0.0
        %5224 = vmatprep.subr.mxu0 0.0
        %5225 = vmatpush1.xpose.msra.mxu0 0.0
        %5226 = vmatprep.subr.mxu0 0.0
        %5227 = vmatpush1.xpose.msra.mxu0 0.0
        %5228 = vmatprep.subr.mxu0 0.0
        %5229 = vmatpush1.xpose.msra.mxu0 0.0
        %5230 = vmatprep.subr.mxu0 0.0
        %5231 = vmatpush1.xpose.msra.mxu0 0.0
        %5232 = vmatprep.subr.mxu0 0.0
        %5233 = vmatpush1.xpose.msra.mxu0 0.0
        %5234 = vmatprep.subr.mxu0 0.0
        %5235 = vmatpush1.xpose.msra.mxu0 0.0
        %5236 = vmatprep.subr.mxu0 0.0
        %5237 = vmatpush1.xpose.msra.mxu0 0.0
        %5238 = vmatprep.subr.mxu0 0.0
        %5239 = vmatpush1.xpose.msra.mxu0 0.0
        %5240 = vmatprep.subr.mxu0 0.0
        %5241 = vmatpush1.xpose.msra.mxu0 0.0
        %5242 = vmatprep.subr.mxu0 0.0
        %5243 = vmatpush1.xpose.msra.mxu0 0.0
        %5244 = vmatprep.subr.mxu0 0.0
        %5245 = vmatpush1.xpose.msra.mxu0 0.0
        %5246 = vmatprep.subr.mxu0 0.0
        %5247 = vmatpush1.xpose.msra.mxu0 0.0
        %5248 = vmatprep.subr.mxu0 0.0
        %5249 = vmatpush1.xpose.msra.mxu0 0.0
        %5250 = vmatprep.subr.mxu0 0.0
        %5251 = vmatpush1.xpose.msra.mxu0 0.0
        %5252 = vmatprep.subr.mxu0 0.0
        %5253 = vmatpush1.xpose.msra.mxu0 0.0
        %5254 = vmatprep.subr.mxu0 0.0
        %5255 = vmatpush1.xpose.msra.mxu0 0.0
        %5256 = vmatprep.subr.mxu0 0.0
        %5257 = vmatpush1.xpose.msra.mxu0 0.0
        %5258 = vmatprep.subr.mxu0 0.0
        %5259 = vmatpush1.xpose.msra.mxu0 0.0
        %5260 = vmatprep.subr.mxu0 0.0
        %5261 = vmatpush1.xpose.msra.mxu0 0.0
        %5262 = vmatprep.subr.mxu0 0.0
        %5263 = vmatpush1.xpose.msra.mxu0 0.0
        %5264 = vmatprep.subr.mxu0 0.0
        %5265 = vmatpush1.xpose.msra.mxu0 0.0
        %5266 = vmatprep.subr.mxu0 0.0
        %5267 = vmatpush1.xpose.msra.mxu0 0.0
        %5268 = vmatprep.subr.mxu0 0.0
        %5269 = vmatpush1.xpose.msra.mxu0 0.0
        %5270 = vmatprep.subr.mxu0 0.0
        %5271 = vmatpush1.xpose.msra.mxu0 0.0
        %5272 = vmatprep.subr.mxu0 0.0
        %5273 = vmatpush1.xpose.msra.mxu0 0.0
        %5274 = vmatprep.subr.mxu0 0.0
        %5275 = vmatpush1.xpose.msra.mxu0 0.0
        %5276 = vmatprep.subr.mxu0 0.0
        %5277 = vmatpush1.xpose.msra.mxu0 0.0
        %5278 = vmatprep.subr.mxu0 0.0
        %5279 = vmatpush1.xpose.msra.mxu0 0.0
        %5280 = vmatprep.mubr.f32.mxu0 0.0
        %v5281 = vand.u32 %v4985, 4294901760
        %v5282 = vsub.f32 %v4985, %v5281
        %v5283 = vand.u32 %v5282, 4294901760
        %5284 = vmatmul.mubr.f32.gmra.mrb[0].mxu0 %v5283
        %v5285 = vpop.f32.mrb[0].mxu0
        %v5286 = vadd.f32 %v5212, %v5285
        %v5287 = vpop.f32.mrb[0].mxu0
        %5288 = vdwg.mxu0
        %5289 = vmatprep.subr.mxu0 0.0
        %v5290 = vand.u32 %v4987, 4294901760
        %v5291 = vsub.f32 %v4987, %v5290
        %v5292 = vand.u32 %v5291, 4294901760
        %5293 = vmatpush1.xpose.msra.mxu0 %v5292
        %5294 = vmatprep.subr.mxu0 0.0
        %5295 = vmatpush1.xpose.msra.mxu0 0.0
        %5296 = vmatprep.subr.mxu0 0.0
        %5297 = vmatpush1.xpose.msra.mxu0 0.0
        %5298 = vmatprep.subr.mxu0 0.0
        %5299 = vmatpush1.xpose.msra.mxu0 0.0
        %5300 = vmatprep.subr.mxu0 0.0
        %5301 = vmatpush1.xpose.msra.mxu0 0.0
        %5302 = vmatprep.subr.mxu0 0.0
        %5303 = vmatpush1.xpose.msra.mxu0 0.0
        %5304 = vmatprep.subr.mxu0 0.0
        %5305 = vmatpush1.xpose.msra.mxu0 0.0
        %5306 = vmatprep.subr.mxu0 0.0
        %5307 = vmatpush1.xpose.msra.mxu0 0.0
        %5308 = vmatprep.subr.mxu0 0.0
        %5309 = vmatpush1.xpose.msra.mxu0 0.0
        %5310 = vmatprep.subr.mxu0 0.0
        %5311 = vmatpush1.xpose.msra.mxu0 0.0
        %5312 = vmatprep.subr.mxu0 0.0
        %5313 = vmatpush1.xpose.msra.mxu0 0.0
        %5314 = vmatprep.subr.mxu0 0.0
        %5315 = vmatpush1.xpose.msra.mxu0 0.0
        %5316 = vmatprep.subr.mxu0 0.0
        %5317 = vmatpush1.xpose.msra.mxu0 0.0
        %5318 = vmatprep.subr.mxu0 0.0
        %5319 = vmatpush1.xpose.msra.mxu0 0.0
        %5320 = vmatprep.subr.mxu0 0.0
        %5321 = vmatpush1.xpose.msra.mxu0 0.0
        %5322 = vmatprep.subr.mxu0 0.0
        %5323 = vmatpush1.xpose.msra.mxu0 0.0
        %5324 = vmatprep.subr.mxu0 0.0
        %5325 = vmatpush1.xpose.msra.mxu0 0.0
        %5326 = vmatprep.subr.mxu0 0.0
        %5327 = vmatpush1.xpose.msra.mxu0 0.0
        %5328 = vmatprep.subr.mxu0 0.0
        %5329 = vmatpush1.xpose.msra.mxu0 0.0
        %5330 = vmatprep.subr.mxu0 0.0
        %5331 = vmatpush1.xpose.msra.mxu0 0.0
        %5332 = vmatprep.subr.mxu0 0.0
        %5333 = vmatpush1.xpose.msra.mxu0 0.0
        %5334 = vmatprep.subr.mxu0 0.0
        %5335 = vmatpush1.xpose.msra.mxu0 0.0
        %5336 = vmatprep.subr.mxu0 0.0
        %5337 = vmatpush1.xpose.msra.mxu0 0.0
        %5338 = vmatprep.subr.mxu0 0.0
        %5339 = vmatpush1.xpose.msra.mxu0 0.0
        %5340 = vmatprep.subr.mxu0 0.0
        %5341 = vmatpush1.xpose.msra.mxu0 0.0
        %5342 = vmatprep.subr.mxu0 0.0
        %5343 = vmatpush1.xpose.msra.mxu0 0.0
        %5344 = vmatprep.subr.mxu0 0.0
        %5345 = vmatpush1.xpose.msra.mxu0 0.0
        %5346 = vmatprep.subr.mxu0 0.0
        %5347 = vmatpush1.xpose.msra.mxu0 0.0
        %5348 = vmatprep.subr.mxu0 0.0
        %5349 = vmatpush1.xpose.msra.mxu0 0.0
        %5350 = vmatprep.subr.mxu0 0.0
        %5351 = vmatpush1.xpose.msra.mxu0 0.0
        %5352 = vmatprep.subr.mxu0 0.0
        %5353 = vmatpush1.xpose.msra.mxu0 0.0
        %5354 = vmatprep.subr.mxu0 0.0
        %5355 = vmatpush1.xpose.msra.mxu0 0.0
        %5356 = vmatprep.mubr.f32.mxu0 0.0
        %v5357 = vand.u32 %v4985, 4294901760
        %5358 = vmatmul.mubr.f32.gmra.mrb[0].mxu0 %v5357
        %v5359 = vpop.f32.mrb[0].mxu0
        %v5360 = vadd.f32 %v5286, %v5359
        %v5361 = vpop.f32.mrb[0].mxu0
        %5362 = vdwg.mxu0
        %5363 = vmatprep.subr.mxu0 0.0
        %v5364 = vand.u32 %v4987, 4294901760
        %5365 = vmatpush1.xpose.msra.mxu0 %v5364
        %5366 = vmatprep.subr.mxu0 0.0
        %5367 = vmatpush1.xpose.msra.mxu0 0.0
        %5368 = vmatprep.subr.mxu0 0.0
        %5369 = vmatpush1.xpose.msra.mxu0 0.0
        %5370 = vmatprep.subr.mxu0 0.0
        %5371 = vmatpush1.xpose.msra.mxu0 0.0
        %5372 = vmatprep.subr.mxu0 0.0
        %5373 = vmatpush1.xpose.msra.mxu0 0.0
        %5374 = vmatprep.subr.mxu0 0.0
        %5375 = vmatpush1.xpose.msra.mxu0 0.0
        %5376 = vmatprep.subr.mxu0 0.0
        %5377 = vmatpush1.xpose.msra.mxu0 0.0
        %5378 = vmatprep.subr.mxu0 0.0
        %5379 = vmatpush1.xpose.msra.mxu0 0.0
        %5380 = vmatprep.subr.mxu0 0.0
        %5381 = vmatpush1.xpose.msra.mxu0 0.0
        %5382 = vmatprep.subr.mxu0 0.0
        %5383 = vmatpush1.xpose.msra.mxu0 0.0
        %5384 = vmatprep.subr.mxu0 0.0
        %5385 = vmatpush1.xpose.msra.mxu0 0.0
        %5386 = vmatprep.subr.mxu0 0.0
        %5387 = vmatpush1.xpose.msra.mxu0 0.0
        %5388 = vmatprep.subr.mxu0 0.0
        %5389 = vmatpush1.xpose.msra.mxu0 0.0
        %5390 = vmatprep.subr.mxu0 0.0
        %5391 = vmatpush1.xpose.msra.mxu0 0.0
        %5392 = vmatprep.subr.mxu0 0.0
        %5393 = vmatpush1.xpose.msra.mxu0 0.0
        %5394 = vmatprep.subr.mxu0 0.0
        %5395 = vmatpush1.xpose.msra.mxu0 0.0
        %5396 = vmatprep.subr.mxu0 0.0
        %5397 = vmatpush1.xpose.msra.mxu0 0.0
        %5398 = vmatprep.subr.mxu0 0.0
        %5399 = vmatpush1.xpose.msra.mxu0 0.0
        %5400 = vmatprep.subr.mxu0 0.0
        %5401 = vmatpush1.xpose.msra.mxu0 0.0
        %5402 = vmatprep.subr.mxu0 0.0
        %5403 = vmatpush1.xpose.msra.mxu0 0.0
        %5404 = vmatprep.subr.mxu0 0.0
        %5405 = vmatpush1.xpose.msra.mxu0 0.0
        %5406 = vmatprep.subr.mxu0 0.0
        %5407 = vmatpush1.xpose.msra.mxu0 0.0
        %5408 = vmatprep.subr.mxu0 0.0
        %5409 = vmatpush1.xpose.msra.mxu0 0.0
        %5410 = vmatprep.subr.mxu0 0.0
        %5411 = vmatpush1.xpose.msra.mxu0 0.0
        %5412 = vmatprep.subr.mxu0 0.0
        %5413 = vmatpush1.xpose.msra.mxu0 0.0
        %5414 = vmatprep.subr.mxu0 0.0
        %5415 = vmatpush1.xpose.msra.mxu0 0.0
        %5416 = vmatprep.subr.mxu0 0.0
        %5417 = vmatpush1.xpose.msra.mxu0 0.0
        %5418 = vmatprep.subr.mxu0 0.0
        %5419 = vmatpush1.xpose.msra.mxu0 0.0
        %5420 = vmatprep.subr.mxu0 0.0
        %5421 = vmatpush1.xpose.msra.mxu0 0.0
        %5422 = vmatprep.subr.mxu0 0.0
        %5423 = vmatpush1.xpose.msra.mxu0 0.0
        %5424 = vmatprep.subr.mxu0 0.0
        %5425 = vmatpush1.xpose.msra.mxu0 0.0
        %5426 = vmatprep.subr.mxu0 0.0
        %5427 = vmatpush1.xpose.msra.mxu0 0.0
        %5428 = vmatprep.mubr.f32.mxu0 0.0
        %v5429 = vand.u32 %v4985, 4294901760
        %5430 = vmatmul.mubr.f32.gmra.mrb[0].mxu0 %v5429
        %v5431 = vpop.f32.mrb[0].mxu0
        %v5432 = vadd.f32 %v5360, %v5431
        %v5433 = vpop.f32.mrb[0].mxu0
        %5434 = vdwg.mxu0
        %v5435 = vmul.f32 %v5432, 0.35355338
        %v5436 = vadd.f32 %v5435, %v1329
        %v5437 = vsel %vm873, %v5436, -inf
        %5438 = vmax.xlane.f32.xlu0 %v5437
        %v5439 = vpop.xlane.xlu0 %5438
        %v5440 = vsub.f32 %v5436, %v5439
        %v5441 = vmul.f32 %v5440, 1.442695
        %v5442 = vpow.pop %v5441
        %v5443 = vsel %vm873, %v5442, 0.0
        %5444 = vadd.xlane.f32.xlu0 %v5443
        %v5445 = vpop.xlane.xlu0 %5444
        %v5446 = vrcp.pop %v5445
        %v5447 = vmul.f32 %v5442, %v5446
        %5448 = vrot.lane.b32.xlu0 %v863, 40
        %v5449 = vpop.permute.xlu0 %5448
        %v5452 = vsel %vm873, %v5447, 0
        %5454 = vmatprep.subr.mxu0 0.0
        %v5455 = vand.u32 %v5449, 4294901760
        %5456 = vmatpush1.msra.mxu0 %v5455
        %5457 = vmatprep.subr.mxu0 0.0
        %5458 = vmatpush1.msra.mxu0 0.0
        %5459 = vmatprep.subr.mxu0 0.0
        %5460 = vmatpush1.msra.mxu0 0.0
        %5461 = vmatprep.subr.mxu0 0.0
        %5462 = vmatpush1.msra.mxu0 0.0
        %5463 = vmatprep.subr.mxu0 0.0
        %5464 = vmatpush1.msra.mxu0 0.0
        %5465 = vmatprep.subr.mxu0 0.0
        %5466 = vmatpush1.msra.mxu0 0.0
        %5467 = vmatprep.subr.mxu0 0.0
        %5468 = vmatpush1.msra.mxu0 0.0
        %5469 = vmatprep.subr.mxu0 0.0
        %5470 = vmatpush1.msra.mxu0 0.0
        %5471 = vmatprep.subr.mxu0 0.0
        %5472 = vmatpush1.msra.mxu0 0.0
        %5473 = vmatprep.subr.mxu0 0.0
        %5474 = vmatpush1.msra.mxu0 0.0
        %5475 = vmatprep.subr.mxu0 0.0
        %5476 = vmatpush1.msra.mxu0 0.0
        %5477 = vmatprep.subr.mxu0 0.0
        %5478 = vmatpush1.msra.mxu0 0.0
        %5479 = vmatprep.subr.mxu0 0.0
        %5480 = vmatpush1.msra.mxu0 0.0
        %5481 = vmatprep.subr.mxu0 0.0
        %5482 = vmatpush1.msra.mxu0 0.0
        %5483 = vmatprep.subr.mxu0 0.0
        %5484 = vmatpush1.msra.mxu0 0.0
        %5485 = vmatprep.subr.mxu0 0.0
        %5486 = vmatpush1.msra.mxu0 0.0
        %5487 = vmatprep.subr.mxu0 0.0
        %5488 = vmatpush1.msra.mxu0 0.0
        %5489 = vmatprep.subr.mxu0 0.0
        %5490 = vmatpush1.msra.mxu0 0.0
        %5491 = vmatprep.subr.mxu0 0.0
        %5492 = vmatpush1.msra.mxu0 0.0
        %5493 = vmatprep.subr.mxu0 0.0
        %5494 = vmatpush1.msra.mxu0 0.0
        %5495 = vmatprep.subr.mxu0 0.0
        %5496 = vmatpush1.msra.mxu0 0.0
        %5497 = vmatprep.subr.mxu0 0.0
        %5498 = vmatpush1.msra.mxu0 0.0
        %5499 = vmatprep.subr.mxu0 0.0
        %5500 = vmatpush1.msra.mxu0 0.0
        %5501 = vmatprep.subr.mxu0 0.0
        %5502 = vmatpush1.msra.mxu0 0.0
        %5503 = vmatprep.subr.mxu0 0.0
        %5504 = vmatpush1.msra.mxu0 0.0
        %5505 = vmatprep.subr.mxu0 0.0
        %5506 = vmatpush1.msra.mxu0 0.0
        %5507 = vmatprep.subr.mxu0 0.0
        %5508 = vmatpush1.msra.mxu0 0.0
        %5509 = vmatprep.subr.mxu0 0.0
        %5510 = vmatpush1.msra.mxu0 0.0
        %5511 = vmatprep.subr.mxu0 0.0
        %5512 = vmatpush1.msra.mxu0 0.0
        %5513 = vmatprep.subr.mxu0 0.0
        %5514 = vmatpush1.msra.mxu0 0.0
        %5515 = vmatprep.subr.mxu0 0.0
        %5516 = vmatpush1.msra.mxu0 0.0
        %5517 = vmatprep.subr.mxu0 0.0
        %5518 = vmatpush1.msra.mxu0 0.0
        %5519 = vmatprep.mubr.f32.mxu0 0.0
        %v5520 = vand.u32 %v5452, 4294901760
        %v5521 = vsub.f32 %v5452, %v5520
        %v5522 = vand.u32 %v5521, 4294901760
        %v5523 = vsub.f32 %v5521, %v5522
        %v5524 = vand.u32 %v5523, 4294901760
        %5525 = vmatmul.mubr.f32.gmra.mrb[0].mxu0 %v5524
        %v5526 = vpop.f32.mrb[0].mxu0
        %v5527 = vadd.f32 0.0, %v5526
        %v5528 = vpop.f32.mrb[0].mxu0
        %5529 = vdwg.mxu0
        %5530 = vmatprep.subr.mxu0 0.0
        %v5531 = vand.u32 %v5449, 4294901760
        %v5532 = vsub.f32 %v5449, %v5531
        %v5533 = vand.u32 %v5532, 4294901760
        %v5534 = vsub.f32 %v5532, %v5533
        %v5535 = vand.u32 %v5534, 4294901760
        %5536 = vmatpush1.msra.mxu0 %v5535
        %5537 = vmatprep.subr.mxu0 0.0
        %5538 = vmatpush1.msra.mxu0 0.0
        %5539 = vmatprep.subr.mxu0 0.0
        %5540 = vmatpush1.msra.mxu0 0.0
        %5541 = vmatprep.subr.mxu0 0.0
        %5542 = vmatpush1.msra.mxu0 0.0
        %5543 = vmatprep.subr.mxu0 0.0
        %5544 = vmatpush1.msra.mxu0 0.0
        %5545 = vmatprep.subr.mxu0 0.0
        %5546 = vmatpush1.msra.mxu0 0.0
        %5547 = vmatprep.subr.mxu0 0.0
        %5548 = vmatpush1.msra.mxu0 0.0
        %5549 = vmatprep.subr.mxu0 0.0
        %5550 = vmatpush1.msra.mxu0 0.0
        %5551 = vmatprep.subr.mxu0 0.0
        %5552 = vmatpush1.msra.mxu0 0.0
        %5553 = vmatprep.subr.mxu0 0.0
        %5554 = vmatpush1.msra.mxu0 0.0
        %5555 = vmatprep.subr.mxu0 0.0
        %5556 = vmatpush1.msra.mxu0 0.0
        %5557 = vmatprep.subr.mxu0 0.0
        %5558 = vmatpush1.msra.mxu0 0.0
        %5559 = vmatprep.subr.mxu0 0.0
        %5560 = vmatpush1.msra.mxu0 0.0
        %5561 = vmatprep.subr.mxu0 0.0
        %5562 = vmatpush1.msra.mxu0 0.0
        %5563 = vmatprep.subr.mxu0 0.0
        %5564 = vmatpush1.msra.mxu0 0.0
        %5565 = vmatprep.subr.mxu0 0.0
        %5566 = vmatpush1.msra.mxu0 0.0
        %5567 = vmatprep.subr.mxu0 0.0
        %5568 = vmatpush1.msra.mxu0 0.0
        %5569 = vmatprep.subr.mxu0 0.0
        %5570 = vmatpush1.msra.mxu0 0.0
        %5571 = vmatprep.subr.mxu0 0.0
        %5572 = vmatpush1.msra.mxu0 0.0
        %5573 = vmatprep.subr.mxu0 0.0
        %5574 = vmatpush1.msra.mxu0 0.0
        %5575 = vmatprep.subr.mxu0 0.0
        %5576 = vmatpush1.msra.mxu0 0.0
        %5577 = vmatprep.subr.mxu0 0.0
        %5578 = vmatpush1.msra.mxu0 0.0
        %5579 = vmatprep.subr.mxu0 0.0
        %5580 = vmatpush1.msra.mxu0 0.0
        %5581 = vmatprep.subr.mxu0 0.0
        %5582 = vmatpush1.msra.mxu0 0.0
        %5583 = vmatprep.subr.mxu0 0.0
        %5584 = vmatpush1.msra.mxu0 0.0
        %5585 = vmatprep.subr.mxu0 0.0
        %5586 = vmatpush1.msra.mxu0 0.0
        %5587 = vmatprep.subr.mxu0 0.0
        %5588 = vmatpush1.msra.mxu0 0.0
        %5589 = vmatprep.subr.mxu0 0.0
        %5590 = vmatpush1.msra.mxu0 0.0
        %5591 = vmatprep.subr.mxu0 0.0
        %5592 = vmatpush1.msra.mxu0 0.0
        %5593 = vmatprep.subr.mxu0 0.0
        %5594 = vmatpush1.msra.mxu0 0.0
        %5595 = vmatprep.subr.mxu0 0.0
        %5596 = vmatpush1.msra.mxu0 0.0
        %5597 = vmatprep.subr.mxu0 0.0
        %5598 = vmatpush1.msra.mxu0 0.0
        %5599 = vmatprep.mubr.f32.mxu0 0.0
        %v5600 = vand.u32 %v5452, 4294901760
        %5601 = vmatmul.mubr.f32.gmra.mrb[0].mxu0 %v5600
        %v5602 = vpop.f32.mrb[0].mxu0
        %v5603 = vadd.f32 %v5527, %v5602
        %v5604 = vpop.f32.mrb[0].mxu0
        %5605 = vdwg.mxu0
        %5606 = vmatprep.subr.mxu0 0.0
        %v5607 = vand.u32 %v5449, 4294901760
        %v5608 = vsub.f32 %v5449, %v5607
        %5609 = vmatpush1.msra.mxu0 %v5608
        %5610 = vmatprep.subr.mxu0 0.0
        %5611 = vmatpush1.msra.mxu0 0.0
        %5612 = vmatprep.subr.mxu0 0.0
        %5613 = vmatpush1.msra.mxu0 0.0
        %5614 = vmatprep.subr.mxu0 0.0
        %5615 = vmatpush1.msra.mxu0 0.0
        %5616 = vmatprep.subr.mxu0 0.0
        %5617 = vmatpush1.msra.mxu0 0.0
        %5618 = vmatprep.subr.mxu0 0.0
        %5619 = vmatpush1.msra.mxu0 0.0
        %5620 = vmatprep.subr.mxu0 0.0
        %5621 = vmatpush1.msra.mxu0 0.0
        %5622 = vmatprep.subr.mxu0 0.0
        %5623 = vmatpush1.msra.mxu0 0.0
        %5624 = vmatprep.subr.mxu0 0.0
        %5625 = vmatpush1.msra.mxu0 0.0
        %5626 = vmatprep.subr.mxu0 0.0
        %5627 = vmatpush1.msra.mxu0 0.0
        %5628 = vmatprep.subr.mxu0 0.0
        %5629 = vmatpush1.msra.mxu0 0.0
        %5630 = vmatprep.subr.mxu0 0.0
        %5631 = vmatpush1.msra.mxu0 0.0
        %5632 = vmatprep.subr.mxu0 0.0
        %5633 = vmatpush1.msra.mxu0 0.0
        %5634 = vmatprep.subr.mxu0 0.0
        %5635 = vmatpush1.msra.mxu0 0.0
        %5636 = vmatprep.subr.mxu0 0.0
        %5637 = vmatpush1.msra.mxu0 0.0
        %5638 = vmatprep.subr.mxu0 0.0
        %5639 = vmatpush1.msra.mxu0 0.0
        %5640 = vmatprep.subr.mxu0 0.0
        %5641 = vmatpush1.msra.mxu0 0.0
        %5642 = vmatprep.subr.mxu0 0.0
        %5643 = vmatpush1.msra.mxu0 0.0
        %5644 = vmatprep.subr.mxu0 0.0
        %5645 = vmatpush1.msra.mxu0 0.0
        %5646 = vmatprep.subr.mxu0 0.0
        %5647 = vmatpush1.msra.mxu0 0.0
        %5648 = vmatprep.subr.mxu0 0.0
        %5649 = vmatpush1.msra.mxu0 0.0
        %5650 = vmatprep.subr.mxu0 0.0
        %5651 = vmatpush1.msra.mxu0 0.0
        %5652 = vmatprep.subr.mxu0 0.0
        %5653 = vmatpush1.msra.mxu0 0.0
        %5654 = vmatprep.subr.mxu0 0.0
        %5655 = vmatpush1.msra.mxu0 0.0
        %5656 = vmatprep.subr.mxu0 0.0
        %5657 = vmatpush1.msra.mxu0 0.0
        %5658 = vmatprep.subr.mxu0 0.0
        %5659 = vmatpush1.msra.mxu0 0.0
        %5660 = vmatprep.subr.mxu0 0.0
        %5661 = vmatpush1.msra.mxu0 0.0
        %5662 = vmatprep.subr.mxu0 0.0
        %5663 = vmatpush1.msra.mxu0 0.0
        %5664 = vmatprep.subr.mxu0 0.0
        %5665 = vmatpush1.msra.mxu0 0.0
        %5666 = vmatprep.subr.mxu0 0.0
        %5667 = vmatpush1.msra.mxu0 0.0
        %5668 = vmatprep.subr.mxu0 0.0
        %5669 = vmatpush1.msra.mxu0 0.0
        %5670 = vmatprep.subr.mxu0 0.0
        %5671 = vmatpush1.msra.mxu0 0.0
        %5672 = vmatprep.mubr.f32.mxu0 0.0
        %v5673 = vand.u32 %v5452, 4294901760
        %v5674 = vsub.f32 %v5452, %v5673
        %5675 = vmatmul.mubr.f32.gmra.mrb[0].mxu0 %v5674
        %v5676 = vpop.f32.mrb[0].mxu0
        %v5677 = vadd.f32 %v5603, %v5676
        %v5678 = vpop.f32.mrb[0].mxu0
        %5679 = vdwg.mxu0
        %5680 = vmatprep.subr.mxu0 0.0
        %v5681 = vand.u32 %v5449, 4294901760
        %5682 = vmatpush1.msra.mxu0 %v5681
        %5683 = vmatprep.subr.mxu0 0.0
        %5684 = vmatpush1.msra.mxu0 0.0
        %5685 = vmatprep.subr.mxu0 0.0
        %5686 = vmatpush1.msra.mxu0 0.0
        %5687 = vmatprep.subr.mxu0 0.0
        %5688 = vmatpush1.msra.mxu0 0.0
        %5689 = vmatprep.subr.mxu0 0.0
        %5690 = vmatpush1.msra.mxu0 0.0
        %5691 = vmatprep.subr.mxu0 0.0
        %5692 = vmatpush1.msra.mxu0 0.0
        %5693 = vmatprep.subr.mxu0 0.0
        %5694 = vmatpush1.msra.mxu0 0.0
        %5695 = vmatprep.subr.mxu0 0.0
        %5696 = vmatpush1.msra.mxu0 0.0
        %5697 = vmatprep.subr.mxu0 0.0
        %5698 = vmatpush1.msra.mxu0 0.0
        %5699 = vmatprep.subr.mxu0 0.0
        %5700 = vmatpush1.msra.mxu0 0.0
        %5701 = vmatprep.subr.mxu0 0.0
        %5702 = vmatpush1.msra.mxu0 0.0
        %5703 = vmatprep.subr.mxu0 0.0
        %5704 = vmatpush1.msra.mxu0 0.0
        %5705 = vmatprep.subr.mxu0 0.0
        %5706 = vmatpush1.msra.mxu0 0.0
        %5707 = vmatprep.subr.mxu0 0.0
        %5708 = vmatpush1.msra.mxu0 0.0
        %5709 = vmatprep.subr.mxu0 0.0
        %5710 = vmatpush1.msra.mxu0 0.0
        %5711 = vmatprep.subr.mxu0 0.0
        %5712 = vmatpush1.msra.mxu0 0.0
        %5713 = vmatprep.subr.mxu0 0.0
        %5714 = vmatpush1.msra.mxu0 0.0
        %5715 = vmatprep.subr.mxu0 0.0
        %5716 = vmatpush1.msra.mxu0 0.0
        %5717 = vmatprep.subr.mxu0 0.0
        %5718 = vmatpush1.msra.mxu0 0.0
        %5719 = vmatprep.subr.mxu0 0.0
        %5720 = vmatpush1.msra.mxu0 0.0
        %5721 = vmatprep.subr.mxu0 0.0
        %5722 = vmatpush1.msra.mxu0 0.0
        %5723 = vmatprep.subr.mxu0 0.0
        %5724 = vmatpush1.msra.mxu0 0.0
        %5725 = vmatprep.subr.mxu0 0.0
        %5726 = vmatpush1.msra.mxu0 0.0
        %5727 = vmatprep.subr.mxu0 0.0
        %5728 = vmatpush1.msra.mxu0 0.0
        %5729 = vmatprep.subr.mxu0 0.0
        %5730 = vmatpush1.msra.mxu0 0.0
        %5731 = vmatprep.subr.mxu0 0.0
        %5732 = vmatpush1.msra.mxu0 0.0
        %5733 = vmatprep.subr.mxu0 0.0
        %5734 = vmatpush1.msra.mxu0 0.0
        %5735 = vmatprep.subr.mxu0 0.0
        %5736 = vmatpush1.msra.mxu0 0.0
        %5737 = vmatprep.subr.mxu0 0.0
        %5738 = vmatpush1.msra.mxu0 0.0
        %5739 = vmatprep.subr.mxu0 0.0
        %5740 = vmatpush1.msra.mxu0 0.0
        %5741 = vmatprep.subr.mxu0 0.0
        %5742 = vmatpush1.msra.mxu0 0.0
        %5743 = vmatprep.subr.mxu0 0.0
        %5744 = vmatpush1.msra.mxu0 0.0
        %5745 = vmatprep.mubr.f32.mxu0 0.0
        %v5746 = vand.u32 %v5452, 4294901760
        %v5747 = vsub.f32 %v5452, %v5746
        %v5748 = vand.u32 %v5747, 4294901760
        %5749 = vmatmul.mubr.f32.gmra.mrb[0].mxu0 %v5748
        %v5750 = vpop.f32.mrb[0].mxu0
        %v5751 = vadd.f32 %v5677, %v5750
        %v5752 = vpop.f32.mrb[0].mxu0
        %5753 = vdwg.mxu0
        %5754 = vmatprep.subr.mxu0 0.0
        %v5755 = vand.u32 %v5449, 4294901760
        %v5756 = vsub.f32 %v5449, %v5755
        %v5757 = vand.u32 %v5756, 4294901760
        %5758 = vmatpush1.msra.mxu0 %v5757
        %5759 = vmatprep.subr.mxu0 0.0
        %5760 = vmatpush1.msra.mxu0 0.0
        %5761 = vmatprep.subr.mxu0 0.0
        %5762 = vmatpush1.msra.mxu0 0.0
        %5763 = vmatprep.subr.mxu0 0.0
        %5764 = vmatpush1.msra.mxu0 0.0
        %5765 = vmatprep.subr.mxu0 0.0
        %5766 = vmatpush1.msra.mxu0 0.0
        %5767 = vmatprep.subr.mxu0 0.0
        %5768 = vmatpush1.msra.mxu0 0.0
        %5769 = vmatprep.subr.mxu0 0.0
        %5770 = vmatpush1.msra.mxu0 0.0
        %5771 = vmatprep.subr.mxu0 0.0
        %5772 = vmatpush1.msra.mxu0 0.0
        %5773 = vmatprep.subr.mxu0 0.0
        %5774 = vmatpush1.msra.mxu0 0.0
        %5775 = vmatprep.subr.mxu0 0.0
        %5776 = vmatpush1.msra.mxu0 0.0
        %5777 = vmatprep.subr.mxu0 0.0
        %5778 = vmatpush1.msra.mxu0 0.0
        %5779 = vmatprep.subr.mxu0 0.0
        %5780 = vmatpush1.msra.mxu0 0.0
        %5781 = vmatprep.subr.mxu0 0.0
        %5782 = vmatpush1.msra.mxu0 0.0
        %5783 = vmatprep.subr.mxu0 0.0
        %5784 = vmatpush1.msra.mxu0 0.0
        %5785 = vmatprep.subr.mxu0 0.0
        %5786 = vmatpush1.msra.mxu0 0.0
        %5787 = vmatprep.subr.mxu0 0.0
        %5788 = vmatpush1.msra.mxu0 0.0
        %5789 = vmatprep.subr.mxu0 0.0
        %5790 = vmatpush1.msra.mxu0 0.0
        %5791 = vmatprep.subr.mxu0 0.0
        %5792 = vmatpush1.msra.mxu0 0.0
        %5793 = vmatprep.subr.mxu0 0.0
        %5794 = vmatpush1.msra.mxu0 0.0
        %5795 = vmatprep.subr.mxu0 0.0
        %5796 = vmatpush1.msra.mxu0 0.0
        %5797 = vmatprep.subr.mxu0 0.0
        %5798 = vmatpush1.msra.mxu0 0.0
        %5799 = vmatprep.subr.mxu0 0.0
        %5800 = vmatpush1.msra.mxu0 0.0
        %5801 = vmatprep.subr.mxu0 0.0
        %5802 = vmatpush1.msra.mxu0 0.0
        %5803 = vmatprep.subr.mxu0 0.0
        %5804 = vmatpush1.msra.mxu0 0.0
        %5805 = vmatprep.subr.mxu0 0.0
        %5806 = vmatpush1.msra.mxu0 0.0
        %5807 = vmatprep.subr.mxu0 0.0
        %5808 = vmatpush1.msra.mxu0 0.0
        %5809 = vmatprep.subr.mxu0 0.0
        %5810 = vmatpush1.msra.mxu0 0.0
        %5811 = vmatprep.subr.mxu0 0.0
        %5812 = vmatpush1.msra.mxu0 0.0
        %5813 = vmatprep.subr.mxu0 0.0
        %5814 = vmatpush1.msra.mxu0 0.0
        %5815 = vmatprep.subr.mxu0 0.0
        %5816 = vmatpush1.msra.mxu0 0.0
        %5817 = vmatprep.subr.mxu0 0.0
        %5818 = vmatpush1.msra.mxu0 0.0
        %5819 = vmatprep.subr.mxu0 0.0
        %5820 = vmatpush1.msra.mxu0 0.0
        %5821 = vmatprep.mubr.f32.mxu0 0.0
        %v5822 = vand.u32 %v5452, 4294901760
        %5823 = vmatmul.mubr.f32.gmra.mrb[0].mxu0 %v5822
        %v5824 = vpop.f32.mrb[0].mxu0
        %v5825 = vadd.f32 %v5751, %v5824
        %v5826 = vpop.f32.mrb[0].mxu0
        %5827 = vdwg.mxu0
        %5828 = vmatprep.subr.mxu0 0.0
        %v5829 = vand.u32 %v5449, 4294901760
        %5830 = vmatpush1.msra.mxu0 %v5829
        %5831 = vmatprep.subr.mxu0 0.0
        %5832 = vmatpush1.msra.mxu0 0.0
        %5833 = vmatprep.subr.mxu0 0.0
        %5834 = vmatpush1.msra.mxu0 0.0
        %5835 = vmatprep.subr.mxu0 0.0
        %5836 = vmatpush1.msra.mxu0 0.0
        %5837 = vmatprep.subr.mxu0 0.0
        %5838 = vmatpush1.msra.mxu0 0.0
        %5839 = vmatprep.subr.mxu0 0.0
        %5840 = vmatpush1.msra.mxu0 0.0
        %5841 = vmatprep.subr.mxu0 0.0
        %5842 = vmatpush1.msra.mxu0 0.0
        %5843 = vmatprep.subr.mxu0 0.0
        %5844 = vmatpush1.msra.mxu0 0.0
        %5845 = vmatprep.subr.mxu0 0.0
        %5846 = vmatpush1.msra.mxu0 0.0
        %5847 = vmatprep.subr.mxu0 0.0
        %5848 = vmatpush1.msra.mxu0 0.0
        %5849 = vmatprep.subr.mxu0 0.0
        %5850 = vmatpush1.msra.mxu0 0.0
        %5851 = vmatprep.subr.mxu0 0.0
        %5852 = vmatpush1.msra.mxu0 0.0
        %5853 = vmatprep.subr.mxu0 0.0
        %5854 = vmatpush1.msra.mxu0 0.0
        %5855 = vmatprep.subr.mxu0 0.0
        %5856 = vmatpush1.msra.mxu0 0.0
        %5857 = vmatprep.subr.mxu0 0.0
        %5858 = vmatpush1.msra.mxu0 0.0
        %5859 = vmatprep.subr.mxu0 0.0
        %5860 = vmatpush1.msra.mxu0 0.0
        %5861 = vmatprep.subr.mxu0 0.0
        %5862 = vmatpush1.msra.mxu0 0.0
        %5863 = vmatprep.subr.mxu0 0.0
        %5864 = vmatpush1.msra.mxu0 0.0
        %5865 = vmatprep.subr.mxu0 0.0
        %5866 = vmatpush1.msra.mxu0 0.0
        %5867 = vmatprep.subr.mxu0 0.0
        %5868 = vmatpush1.msra.mxu0 0.0
        %5869 = vmatprep.subr.mxu0 0.0
        %5870 = vmatpush1.msra.mxu0 0.0
        %5871 = vmatprep.subr.mxu0 0.0
        %5872 = vmatpush1.msra.mxu0 0.0
        %5873 = vmatprep.subr.mxu0 0.0
        %5874 = vmatpush1.msra.mxu0 0.0
        %5875 = vmatprep.subr.mxu0 0.0
        %5876 = vmatpush1.msra.mxu0 0.0
        %5877 = vmatprep.subr.mxu0 0.0
        %5878 = vmatpush1.msra.mxu0 0.0
        %5879 = vmatprep.subr.mxu0 0.0
        %5880 = vmatpush1.msra.mxu0 0.0
        %5881 = vmatprep.subr.mxu0 0.0
        %5882 = vmatpush1.msra.mxu0 0.0
        %5883 = vmatprep.subr.mxu0 0.0
        %5884 = vmatpush1.msra.mxu0 0.0
        %5885 = vmatprep.subr.mxu0 0.0
        %5886 = vmatpush1.msra.mxu0 0.0
        %5887 = vmatprep.subr.mxu0 0.0
        %5888 = vmatpush1.msra.mxu0 0.0
        %5889 = vmatprep.subr.mxu0 0.0
        %5890 = vmatpush1.msra.mxu0 0.0
        %5891 = vmatprep.subr.mxu0 0.0
        %5892 = vmatpush1.msra.mxu0 0.0
        %5893 = vmatprep.mubr.f32.mxu0 0.0
        %v5894 = vand.u32 %v5452, 4294901760
        %5895 = vmatmul.mubr.f32.gmra.mrb[0].mxu0 %v5894
        %v5896 = vpop.f32.mrb[0].mxu0
        %v5897 = vadd.f32 %v5825, %v5896
        %v5898 = vpop.f32.mrb[0].mxu0
        %5899 = vdwg.mxu0
        %v5901 = vsel %vm873, %v5897, 0
        %5903 = vmatprep.subr.mxu0 0.0
        %v5904 = vand.u32 %v869, 4294901760
        %5905 = vmatpush1.msra.mxu0 %v5904
        %5906 = vmatprep.subr.mxu0 0.0
        %5907 = vmatpush1.msra.mxu0 0.0
        %5908 = vmatprep.subr.mxu0 0.0
        %5909 = vmatpush1.msra.mxu0 0.0
        %5910 = vmatprep.subr.mxu0 0.0
        %5911 = vmatpush1.msra.mxu0 0.0
        %5912 = vmatprep.subr.mxu0 0.0
        %5913 = vmatpush1.msra.mxu0 0.0
        %5914 = vmatprep.subr.mxu0 0.0
        %5915 = vmatpush1.msra.mxu0 0.0
        %5916 = vmatprep.subr.mxu0 0.0
        %5917 = vmatpush1.msra.mxu0 0.0
        %5918 = vmatprep.subr.mxu0 0.0
        %5919 = vmatpush1.msra.mxu0 0.0
        %5920 = vmatprep.subr.mxu0 0.0
        %5921 = vmatpush1.msra.mxu0 0.0
        %5922 = vmatprep.subr.mxu0 0.0
        %5923 = vmatpush1.msra.mxu0 0.0
        %5924 = vmatprep.subr.mxu0 0.0
        %5925 = vmatpush1.msra.mxu0 0.0
        %5926 = vmatprep.subr.mxu0 0.0
        %5927 = vmatpush1.msra.mxu0 0.0
        %5928 = vmatprep.subr.mxu0 0.0
        %5929 = vmatpush1.msra.mxu0 0.0
        %5930 = vmatprep.subr.mxu0 0.0
        %5931 = vmatpush1.msra.mxu0 0.0
        %5932 = vmatprep.subr.mxu0 0.0
        %5933 = vmatpush1.msra.mxu0 0.0
        %5934 = vmatprep.subr.mxu0 0.0
        %5935 = vmatpush1.msra.mxu0 0.0
        %5936 = vmatprep.subr.mxu0 0.0
        %5937 = vmatpush1.msra.mxu0 0.0
        %5938 = vmatprep.subr.mxu0 0.0
        %5939 = vmatpush1.msra.mxu0 0.0
        %5940 = vmatprep.subr.mxu0 0.0
        %5941 = vmatpush1.msra.mxu0 0.0
        %5942 = vmatprep.subr.mxu0 0.0
        %5943 = vmatpush1.msra.mxu0 0.0
        %5944 = vmatprep.subr.mxu0 0.0
        %5945 = vmatpush1.msra.mxu0 0.0
        %5946 = vmatprep.subr.mxu0 0.0
        %5947 = vmatpush1.msra.mxu0 0.0
        %5948 = vmatprep.subr.mxu0 0.0
        %5949 = vmatpush1.msra.mxu0 0.0
        %5950 = vmatprep.subr.mxu0 0.0
        %5951 = vmatpush1.msra.mxu0 0.0
        %5952 = vmatprep.subr.mxu0 0.0
        %5953 = vmatpush1.msra.mxu0 0.0
        %5954 = vmatprep.subr.mxu0 0.0
        %5955 = vmatpush1.msra.mxu0 0.0
        %5956 = vmatprep.subr.mxu0 0.0
        %5957 = vmatpush1.msra.mxu0 0.0
        %5958 = vmatprep.subr.mxu0 0.0
        %5959 = vmatpush1.msra.mxu0 0.0
        %5960 = vmatprep.subr.mxu0 0.0
        %5961 = vmatpush1.msra.mxu0 0.0
        %5962 = vmatprep.subr.mxu0 0.0
        %5963 = vmatpush1.msra.mxu0 0.0
        %5964 = vmatprep.subr.mxu0 0.0
        %5965 = vmatpush1.msra.mxu0 0.0
        %5966 = vmatprep.subr.mxu0 0.0
        %5967 = vmatpush1.msra.mxu0 0.0
        %5968 = vmatprep.mubr.f32.mxu0 0.0
        %v5969 = vand.u32 %v5901, 4294901760
        %v5970 = vsub.f32 %v5901, %v5969
        %v5971 = vand.u32 %v5970, 4294901760
        %v5972 = vsub.f32 %v5970, %v5971
        %v5973 = vand.u32 %v5972, 4294901760
        %5974 = vmatmul.mubr.f32.gmra.mrb[0].mxu0 %v5973
        %v5975 = vpop.f32.mrb[0].mxu0
        %v5976 = vadd.f32 0.0, %v5975
        %v5977 = vpop.f32.mrb[0].mxu0
        %5978 = vdwg.mxu0
        %5979 = vmatprep.subr.mxu0 0.0
        %v5980 = vand.u32 %v869, 4294901760
        %v5981 = vsub.f32 %v869, %v5980
        %v5982 = vand.u32 %v5981, 4294901760
        %v5983 = vsub.f32 %v5981, %v5982
        %v5984 = vand.u32 %v5983, 4294901760
        %5985 = vmatpush1.msra.mxu0 %v5984
        %5986 = vmatprep.subr.mxu0 0.0
        %5987 = vmatpush1.msra.mxu0 0.0
        %5988 = vmatprep.subr.mxu0 0.0
        %5989 = vmatpush1.msra.mxu0 0.0
        %5990 = vmatprep.subr.mxu0 0.0
        %5991 = vmatpush1.msra.mxu0 0.0
        %5992 = vmatprep.subr.mxu0 0.0
        %5993 = vmatpush1.msra.mxu0 0.0
        %5994 = vmatprep.subr.mxu0 0.0
        %5995 = vmatpush1.msra.mxu0 0.0
        %5996 = vmatprep.subr.mxu0 0.0
        %5997 = vmatpush1.msra.mxu0 0.0
        %5998 = vmatprep.subr.mxu0 0.0
        %5999 = vmatpush1.msra.mxu0 0.0
        %6000 = vmatprep.subr.mxu0 0.0
        %6001 = vmatpush1.msra.mxu0 0.0
        %6002 = vmatprep.subr.mxu0 0.0
        %6003 = vmatpush1.msra.mxu0 0.0
        %6004 = vmatprep.subr.mxu0 0.0
        %6005 = vmatpush1.msra.mxu0 0.0
        %6006 = vmatprep.subr.mxu0 0.0
        %6007 = vmatpush1.msra.mxu0 0.0
        %6008 = vmatprep.subr.mxu0 0.0
        %6009 = vmatpush1.msra.mxu0 0.0
        %6010 = vmatprep.subr.mxu0 0.0
        %6011 = vmatpush1.msra.mxu0 0.0
        %6012 = vmatprep.subr.mxu0 0.0
        %6013 = vmatpush1.msra.mxu0 0.0
        %6014 = vmatprep.subr.mxu0 0.0
        %6015 = vmatpush1.msra.mxu0 0.0
        %6016 = vmatprep.subr.mxu0 0.0
        %6017 = vmatpush1.msra.mxu0 0.0
        %6018 = vmatprep.subr.mxu0 0.0
        %6019 = vmatpush1.msra.mxu0 0.0
        %6020 = vmatprep.subr.mxu0 0.0
        %6021 = vmatpush1.msra.mxu0 0.0
        %6022 = vmatprep.subr.mxu0 0.0
        %6023 = vmatpush1.msra.mxu0 0.0
        %6024 = vmatprep.subr.mxu0 0.0
        %6025 = vmatpush1.msra.mxu0 0.0
        %6026 = vmatprep.subr.mxu0 0.0
        %6027 = vmatpush1.msra.mxu0 0.0
        %6028 = vmatprep.subr.mxu0 0.0
        %6029 = vmatpush1.msra.mxu0 0.0
        %6030 = vmatprep.subr.mxu0 0.0
        %6031 = vmatpush1.msra.mxu0 0.0
        %6032 = vmatprep.subr.mxu0 0.0
        %6033 = vmatpush1.msra.mxu0 0.0
        %6034 = vmatprep.subr.mxu0 0.0
        %6035 = vmatpush1.msra.mxu0 0.0
        %6036 = vmatprep.subr.mxu0 0.0
        %6037 = vmatpush1.msra.mxu0 0.0
        %6038 = vmatprep.subr.mxu0 0.0
        %6039 = vmatpush1.msra.mxu0 0.0
        %6040 = vmatprep.subr.mxu0 0.0
        %6041 = vmatpush1.msra.mxu0 0.0
        %6042 = vmatprep.subr.mxu0 0.0
        %6043 = vmatpush1.msra.mxu0 0.0
        %6044 = vmatprep.subr.mxu0 0.0
        %6045 = vmatpush1.msra.mxu0 0.0
        %6046 = vmatprep.subr.mxu0 0.0
        %6047 = vmatpush1.msra.mxu0 0.0
        %6048 = vmatprep.mubr.f32.mxu0 0.0
        %v6049 = vand.u32 %v5901, 4294901760
        %6050 = vmatmul.mubr.f32.gmra.mrb[0].mxu0 %v6049
        %v6051 = vpop.f32.mrb[0].mxu0
        %v6052 = vadd.f32 %v5976, %v6051
        %v6053 = vpop.f32.mrb[0].mxu0
        %6054 = vdwg.mxu0
        %6055 = vmatprep.subr.mxu0 0.0
        %v6056 = vand.u32 %v869, 4294901760
        %v6057 = vsub.f32 %v869, %v6056
        %6058 = vmatpush1.msra.mxu0 %v6057
        %6059 = vmatprep.subr.mxu0 0.0
        %6060 = vmatpush1.msra.mxu0 0.0
        %6061 = vmatprep.subr.mxu0 0.0
        %6062 = vmatpush1.msra.mxu0 0.0
        %6063 = vmatprep.subr.mxu0 0.0
        %6064 = vmatpush1.msra.mxu0 0.0
        %6065 = vmatprep.subr.mxu0 0.0
        %6066 = vmatpush1.msra.mxu0 0.0
        %6067 = vmatprep.subr.mxu0 0.0
        %6068 = vmatpush1.msra.mxu0 0.0
        %6069 = vmatprep.subr.mxu0 0.0
        %6070 = vmatpush1.msra.mxu0 0.0
        %6071 = vmatprep.subr.mxu0 0.0
        %6072 = vmatpush1.msra.mxu0 0.0
        %6073 = vmatprep.subr.mxu0 0.0
        %6074 = vmatpush1.msra.mxu0 0.0
        %6075 = vmatprep.subr.mxu0 0.0
        %6076 = vmatpush1.msra.mxu0 0.0
        %6077 = vmatprep.subr.mxu0 0.0
        %6078 = vmatpush1.msra.mxu0 0.0
        %6079 = vmatprep.subr.mxu0 0.0
        %6080 = vmatpush1.msra.mxu0 0.0
        %6081 = vmatprep.subr.mxu0 0.0
        %6082 = vmatpush1.msra.mxu0 0.0
        %6083 = vmatprep.subr.mxu0 0.0
        %6084 = vmatpush1.msra.mxu0 0.0
        %6085 = vmatprep.subr.mxu0 0.0
        %6086 = vmatpush1.msra.mxu0 0.0
        %6087 = vmatprep.subr.mxu0 0.0
        %6088 = vmatpush1.msra.mxu0 0.0
        %6089 = vmatprep.subr.mxu0 0.0
        %6090 = vmatpush1.msra.mxu0 0.0
        %6091 = vmatprep.subr.mxu0 0.0
        %6092 = vmatpush1.msra.mxu0 0.0
        %6093 = vmatprep.subr.mxu0 0.0
        %6094 = vmatpush1.msra.mxu0 0.0
        %6095 = vmatprep.subr.mxu0 0.0
        %6096 = vmatpush1.msra.mxu0 0.0
        %6097 = vmatprep.subr.mxu0 0.0
        %6098 = vmatpush1.msra.mxu0 0.0
        %6099 = vmatprep.subr.mxu0 0.0
        %6100 = vmatpush1.msra.mxu0 0.0
        %6101 = vmatprep.subr.mxu0 0.0
        %6102 = vmatpush1.msra.mxu0 0.0
        %6103 = vmatprep.subr.mxu0 0.0
        %6104 = vmatpush1.msra.mxu0 0.0
        %6105 = vmatprep.subr.mxu0 0.0
        %6106 = vmatpush1.msra.mxu0 0.0
        %6107 = vmatprep.subr.mxu0 0.0
        %6108 = vmatpush1.msra.mxu0 0.0
        %6109 = vmatprep.subr.mxu0 0.0
        %6110 = vmatpush1.msra.mxu0 0.0
        %6111 = vmatprep.subr.mxu0 0.0
        %6112 = vmatpush1.msra.mxu0 0.0
        %6113 = vmatprep.subr.mxu0 0.0
        %6114 = vmatpush1.msra.mxu0 0.0
        %6115 = vmatprep.subr.mxu0 0.0
        %6116 = vmatpush1.msra.mxu0 0.0
        %6117 = vmatprep.subr.mxu0 0.0
        %6118 = vmatpush1.msra.mxu0 0.0
        %6119 = vmatprep.subr.mxu0 0.0
        %6120 = vmatpush1.msra.mxu0 0.0
        %6121 = vmatprep.mubr.f32.mxu0 0.0
        %v6122 = vand.u32 %v5901, 4294901760
        %v6123 = vsub.f32 %v5901, %v6122
        %6124 = vmatmul.mubr.f32.gmra.mrb[0].mxu0 %v6123
        %v6125 = vpop.f32.mrb[0].mxu0
        %v6126 = vadd.f32 %v6052, %v6125
        %v6127 = vpop.f32.mrb[0].mxu0
        %6128 = vdwg.mxu0
        %6129 = vmatprep.subr.mxu0 0.0
        %v6130 = vand.u32 %v869, 4294901760
        %6131 = vmatpush1.msra.mxu0 %v6130
        %6132 = vmatprep.subr.mxu0 0.0
        %6133 = vmatpush1.msra.mxu0 0.0
        %6134 = vmatprep.subr.mxu0 0.0
        %6135 = vmatpush1.msra.mxu0 0.0
        %6136 = vmatprep.subr.mxu0 0.0
        %6137 = vmatpush1.msra.mxu0 0.0
        %6138 = vmatprep.subr.mxu0 0.0
        %6139 = vmatpush1.msra.mxu0 0.0
        %6140 = vmatprep.subr.mxu0 0.0
        %6141 = vmatpush1.msra.mxu0 0.0
        %6142 = vmatprep.subr.mxu0 0.0
        %6143 = vmatpush1.msra.mxu0 0.0
        %6144 = vmatprep.subr.mxu0 0.0
        %6145 = vmatpush1.msra.mxu0 0.0
        %6146 = vmatprep.subr.mxu0 0.0
        %6147 = vmatpush1.msra.mxu0 0.0
        %6148 = vmatprep.subr.mxu0 0.0
        %6149 = vmatpush1.msra.mxu0 0.0
        %6150 = vmatprep.subr.mxu0 0.0
        %6151 = vmatpush1.msra.mxu0 0.0
        %6152 = vmatprep.subr.mxu0 0.0
        %6153 = vmatpush1.msra.mxu0 0.0
        %6154 = vmatprep.subr.mxu0 0.0
        %6155 = vmatpush1.msra.mxu0 0.0
        %6156 = vmatprep.subr.mxu0 0.0
        %6157 = vmatpush1.msra.mxu0 0.0
        %6158 = vmatprep.subr.mxu0 0.0
        %6159 = vmatpush1.msra.mxu0 0.0
        %6160 = vmatprep.subr.mxu0 0.0
        %6161 = vmatpush1.msra.mxu0 0.0
        %6162 = vmatprep.subr.mxu0 0.0
        %6163 = vmatpush1.msra.mxu0 0.0
        %6164 = vmatprep.subr.mxu0 0.0
        %6165 = vmatpush1.msra.mxu0 0.0
        %6166 = vmatprep.subr.mxu0 0.0
        %6167 = vmatpush1.msra.mxu0 0.0
        %6168 = vmatprep.subr.mxu0 0.0
        %6169 = vmatpush1.msra.mxu0 0.0
        %6170 = vmatprep.subr.mxu0 0.0
        %6171 = vmatpush1.msra.mxu0 0.0
        %6172 = vmatprep.subr.mxu0 0.0
        %6173 = vmatpush1.msra.mxu0 0.0
        %6174 = vmatprep.subr.mxu0 0.0
        %6175 = vmatpush1.msra.mxu0 0.0
        %6176 = vmatprep.subr.mxu0 0.0
        %6177 = vmatpush1.msra.mxu0 0.0
        %6178 = vmatprep.subr.mxu0 0.0
        %6179 = vmatpush1.msra.mxu0 0.0
        %6180 = vmatprep.subr.mxu0 0.0
        %6181 = vmatpush1.msra.mxu0 0.0
        %6182 = vmatprep.subr.mxu0 0.0
        %6183 = vmatpush1.msra.mxu0 0.0
        %6184 = vmatprep.subr.mxu0 0.0
        %6185 = vmatpush1.msra.mxu0 0.0
        %6186 = vmatprep.subr.mxu0 0.0
        %6187 = vmatpush1.msra.mxu0 0.0
        %6188 = vmatprep.subr.mxu0 0.0
        %6189 = vmatpush1.msra.mxu0 0.0
        %6190 = vmatprep.subr.mxu0 0.0
        %6191 = vmatpush1.msra.mxu0 0.0
        %6192 = vmatprep.subr.mxu0 0.0
        %6193 = vmatpush1.msra.mxu0 0.0
        %6194 = vmatprep.mubr.f32.mxu0 0.0
        %v6195 = vand.u32 %v5901, 4294901760
        %v6196 = vsub.f32 %v5901, %v6195
        %v6197 = vand.u32 %v6196, 4294901760
        %6198 = vmatmul.mubr.f32.gmra.mrb[0].mxu0 %v6197
        %v6199 = vpop.f32.mrb[0].mxu0
        %v6200 = vadd.f32 %v6126, %v6199
        %v6201 = vpop.f32.mrb[0].mxu0
        %6202 = vdwg.mxu0
        %6203 = vmatprep.subr.mxu0 0.0
        %v6204 = vand.u32 %v869, 4294901760
        %v6205 = vsub.f32 %v869, %v6204
        %v6206 = vand.u32 %v6205, 4294901760
        %6207 = vmatpush1.msra.mxu0 %v6206
        %6208 = vmatprep.subr.mxu0 0.0
        %6209 = vmatpush1.msra.mxu0 0.0
        %6210 = vmatprep.subr.mxu0 0.0
        %6211 = vmatpush1.msra.mxu0 0.0
        %6212 = vmatprep.subr.mxu0 0.0
        %6213 = vmatpush1.msra.mxu0 0.0
        %6214 = vmatprep.subr.mxu0 0.0
        %6215 = vmatpush1.msra.mxu0 0.0
        %6216 = vmatprep.subr.mxu0 0.0
        %6217 = vmatpush1.msra.mxu0 0.0
        %6218 = vmatprep.subr.mxu0 0.0
        %6219 = vmatpush1.msra.mxu0 0.0
        %6220 = vmatprep.subr.mxu0 0.0
        %6221 = vmatpush1.msra.mxu0 0.0
        %6222 = vmatprep.subr.mxu0 0.0
        %6223 = vmatpush1.msra.mxu0 0.0
        %6224 = vmatprep.subr.mxu0 0.0
        %6225 = vmatpush1.msra.mxu0 0.0
        %6226 = vmatprep.subr.mxu0 0.0
        %6227 = vmatpush1.msra.mxu0 0.0
        %6228 = vmatprep.subr.mxu0 0.0
        %6229 = vmatpush1.msra.mxu0 0.0
        %6230 = vmatprep.subr.mxu0 0.0
        %6231 = vmatpush1.msra.mxu0 0.0
        %6232 = vmatprep.subr.mxu0 0.0
        %6233 = vmatpush1.msra.mxu0 0.0
        %6234 = vmatprep.subr.mxu0 0.0
        %6235 = vmatpush1.msra.mxu0 0.0
        %6236 = vmatprep.subr.mxu0 0.0
        %6237 = vmatpush1.msra.mxu0 0.0
        %6238 = vmatprep.subr.mxu0 0.0
        %6239 = vmatpush1.msra.mxu0 0.0
        %6240 = vmatprep.subr.mxu0 0.0
        %6241 = vmatpush1.msra.mxu0 0.0
        %6242 = vmatprep.subr.mxu0 0.0
        %6243 = vmatpush1.msra.mxu0 0.0
        %6244 = vmatprep.subr.mxu0 0.0
        %6245 = vmatpush1.msra.mxu0 0.0
        %6246 = vmatprep.subr.mxu0 0.0
        %6247 = vmatpush1.msra.mxu0 0.0
        %6248 = vmatprep.subr.mxu0 0.0
        %6249 = vmatpush1.msra.mxu0 0.0
        %6250 = vmatprep.subr.mxu0 0.0
        %6251 = vmatpush1.msra.mxu0 0.0
        %6252 = vmatprep.subr.mxu0 0.0
        %6253 = vmatpush1.msra.mxu0 0.0
        %6254 = vmatprep.subr.mxu0 0.0
        %6255 = vmatpush1.msra.mxu0 0.0
        %6256 = vmatprep.subr.mxu0 0.0
        %6257 = vmatpush1.msra.mxu0 0.0
        %6258 = vmatprep.subr.mxu0 0.0
        %6259 = vmatpush1.msra.mxu0 0.0
        %6260 = vmatprep.subr.mxu0 0.0
        %6261 = vmatpush1.msra.mxu0 0.0
        %6262 = vmatprep.subr.mxu0 0.0
        %6263 = vmatpush1.msra.mxu0 0.0
        %6264 = vmatprep.subr.mxu0 0.0
        %6265 = vmatpush1.msra.mxu0 0.0
        %6266 = vmatprep.subr.mxu0 0.0
        %6267 = vmatpush1.msra.mxu0 0.0
        %6268 = vmatprep.subr.mxu0 0.0
        %6269 = vmatpush1.msra.mxu0 0.0
        %6270 = vmatprep.mubr.f32.mxu0 0.0
        %v6271 = vand.u32 %v5901, 4294901760
        %6272 = vmatmul.mubr.f32.gmra.mrb[0].mxu0 %v6271
        %v6273 = vpop.f32.mrb[0].mxu0
        %v6274 = vadd.f32 %v6200, %v6273
        %v6275 = vpop.f32.mrb[0].mxu0
        %6276 = vdwg.mxu0
        %6277 = vmatprep.subr.mxu0 0.0
        %v6278 = vand.u32 %v869, 4294901760
        %6279 = vmatpush1.msra.mxu0 %v6278
        %6280 = vmatprep.subr.mxu0 0.0
        %6281 = vmatpush1.msra.mxu0 0.0
        %6282 = vmatprep.subr.mxu0 0.0
        %6283 = vmatpush1.msra.mxu0 0.0
        %6284 = vmatprep.subr.mxu0 0.0
        %6285 = vmatpush1.msra.mxu0 0.0
        %6286 = vmatprep.subr.mxu0 0.0
        %6287 = vmatpush1.msra.mxu0 0.0
        %6288 = vmatprep.subr.mxu0 0.0
        %6289 = vmatpush1.msra.mxu0 0.0
        %6290 = vmatprep.subr.mxu0 0.0
        %6291 = vmatpush1.msra.mxu0 0.0
        %6292 = vmatprep.subr.mxu0 0.0
        %6293 = vmatpush1.msra.mxu0 0.0
        %6294 = vmatprep.subr.mxu0 0.0
        %6295 = vmatpush1.msra.mxu0 0.0
        %6296 = vmatprep.subr.mxu0 0.0
        %6297 = vmatpush1.msra.mxu0 0.0
        %6298 = vmatprep.subr.mxu0 0.0
        %6299 = vmatpush1.msra.mxu0 0.0
        %6300 = vmatprep.subr.mxu0 0.0
        %6301 = vmatpush1.msra.mxu0 0.0
        %6302 = vmatprep.subr.mxu0 0.0
        %6303 = vmatpush1.msra.mxu0 0.0
        %6304 = vmatprep.subr.mxu0 0.0
        %6305 = vmatpush1.msra.mxu0 0.0
        %6306 = vmatprep.subr.mxu0 0.0
        %6307 = vmatpush1.msra.mxu0 0.0
        %6308 = vmatprep.subr.mxu0 0.0
        %6309 = vmatpush1.msra.mxu0 0.0
        %6310 = vmatprep.subr.mxu0 0.0
        %6311 = vmatpush1.msra.mxu0 0.0
        %6312 = vmatprep.subr.mxu0 0.0
        %6313 = vmatpush1.msra.mxu0 0.0
        %6314 = vmatprep.subr.mxu0 0.0
        %6315 = vmatpush1.msra.mxu0 0.0
        %6316 = vmatprep.subr.mxu0 0.0
        %6317 = vmatpush1.msra.mxu0 0.0
        %6318 = vmatprep.subr.mxu0 0.0
        %6319 = vmatpush1.msra.mxu0 0.0
        %6320 = vmatprep.subr.mxu0 0.0
        %6321 = vmatpush1.msra.mxu0 0.0
        %6322 = vmatprep.subr.mxu0 0.0
        %6323 = vmatpush1.msra.mxu0 0.0
        %6324 = vmatprep.subr.mxu0 0.0
        %6325 = vmatpush1.msra.mxu0 0.0
        %6326 = vmatprep.subr.mxu0 0.0
        %6327 = vmatpush1.msra.mxu0 0.0
        %6328 = vmatprep.subr.mxu0 0.0
        %6329 = vmatpush1.msra.mxu0 0.0
        %6330 = vmatprep.subr.mxu0 0.0
        %6331 = vmatpush1.msra.mxu0 0.0
        %6332 = vmatprep.subr.mxu0 0.0
        %6333 = vmatpush1.msra.mxu0 0.0
        %6334 = vmatprep.subr.mxu0 0.0
        %6335 = vmatpush1.msra.mxu0 0.0
        %6336 = vmatprep.subr.mxu0 0.0
        %6337 = vmatpush1.msra.mxu0 0.0
        %6338 = vmatprep.subr.mxu0 0.0
        %6339 = vmatpush1.msra.mxu0 0.0
        %6340 = vmatprep.subr.mxu0 0.0
        %6341 = vmatpush1.msra.mxu0 0.0
        %6342 = vmatprep.mubr.f32.mxu0 0.0
        %v6343 = vand.u32 %v5901, 4294901760
        %6344 = vmatmul.mubr.f32.gmra.mrb[0].mxu0 %v6343
        %v6345 = vpop.f32.mrb[0].mxu0
        %v6346 = vadd.f32 %v6274, %v6345
        %v6347 = vpop.f32.mrb[0].mxu0
        %6348 = vdwg.mxu0
        %v6349 = vadd.f32 %v4980, %v6346
        %v6350 = vld [vmem:[%s5] sm:$0x1]
        %v6352 = vlaneseq
        %v6353 = vshrl.u32 %v6352, 7
        %v6354 = vsub.s32 0, %v6353
        %v6355 = vrot.slane %v6350, %v6354
        %v6357 = vadd.f32 %v6349, %v6355
        %v6358 = vadd.f32 %v6357, %v364
        %v6359 = vsel %vm377, %v6358, 0.0
        %6360 = vadd.xlane.f32.xlu0 %v6359
        %v6361 = vpop.xlane.xlu0 %6360
        %v6362 = vrcp.pop 32.0
        %v6363 = vmul.f32 %v6361, %v6362
        %v6364 = vsub.f32 %v6358, %v6363
        %v6365 = vmul.f32 %v6364, %v6364
        %v6366 = vsel %vm377, %v6365, 0.0
        %6367 = vadd.xlane.f32.xlu0 %v6366
        %v6368 = vpop.xlane.xlu0 %6367
        %v6369 = vmul.f32 %v6368, %v6362
        %v6370 = vadd.f32 %v6369, 1e-12
        %v6371 = vrsqrt.pop %v6370
        %v6372 = vmul.f32 %v6364, %v6371
        %v6373 = vld [vmem:[%s6] sm:$0x1]
        %v6375 = vlaneseq
        %v6376 = vshrl.u32 %v6375, 7
        %v6377 = vsub.s32 0, %v6376
        %v6378 = vrot.slane %v6373, %v6377
        %v6380 = vmul.f32 %v6372, %v6378
        %v6381 = vld [vmem:[%s7] sm:$0x1]
        %v6383 = vlaneseq
        %v6384 = vshrl.u32 %v6383, 7
        %v6385 = vsub.s32 0, %v6384
        %v6386 = vrot.slane %v6381, %v6385
        %v6388 = vadd.f32 %v6380, %v6386
        %6389 = vst.msk [vmem:[%s360] sm:$0xff] %vm377, %v6388
        %s6390 = sand.u32 %s212, 1
        %s6391 = scalar_lea.sflag [#allocation4], %s6390
        %s6392 = sand.u32 %s212, 1
        %s6393 = smul.addr %s6392, 8
        %s6394 = scalar_lea.vmem [#allocation8], %s6393
        // Predicated region
        $region65: #{tpu_custom_call.1} parent=51 // pred_check
          %p6395 = pneg %p222
        $region66: #{tpu_custom_call.1} parent=51 // pred_check_branch
          %6397 = sbr.rel (%p6395) target = $region68
        $region67: #{tpu_custom_call.1} parent=51 // pred_region
          %s6399 = ssub.s32 128, 128
          %6400 = vsyncadd %s6391, %s6399
          %s6401 = smul.addr %s26, 128
          %s6402 = scalar_lea.hbm %s8, %s6401
          %s6404 = sshll.u32 %s6394, 4
          %s6405 = int_to_ptr.vmem [resolvable:$true] %s6404
          %6407 = dma.vmem_to_hbm [thread:$0]  %s6405, 128, %s6402, %s6391
        $region68: #{tpu_custom_call.1} parent=51 // pred_fallthru
          _
      $region52: #{tpu_custom_call.1} parent=5 // pred_fallthru
        _
      %p6408 = scmp.le.s32.totalorder 2, %s21
      // Predicated region
      $region69: #{tpu_custom_call.1} parent=5 // pred_check
        %p6409 = pneg %p6408
      $region70: #{tpu_custom_call.1} parent=5 // pred_check_branch
        %6411 = sbr.rel (%p6409) target = $region72
      $region71: #{tpu_custom_call.1} parent=5 // pred_region
        %s6412 = ssub.s32 %s21, 2
        // Predicated region
        $region73: #{tpu_custom_call.1} parent=71 // pred_check
          %p6413 = pneg %p228
        $region74: #{tpu_custom_call.1} parent=71 // pred_check_branch
          %6415 = sbr.rel (%p6413) target = $region76
        $region75: #{tpu_custom_call.1} parent=71 // pred_region
          %s6416 = sand.u32 %s213, 1
          %s6417 = scalar_lea.sflag [#allocation4], %s6416
          %s6418 = sand.u32 %s213, 1
          %s6419 = smul.addr %s6418, 8
          %s6420 = scalar_lea.vmem [#allocation8], %s6419
          %6421 = dma.done %s6417, 128
        $region76: #{tpu_custom_call.1} parent=71 // pred_fallthru
          _
      $region72: #{tpu_custom_call.1} parent=5 // pred_fallthru
        _
    $region6: #{tpu_custom_call.1} parent=1 // loop_footer
      %s25 = sadd.s32 1, %s21
    $region7: #{tpu_custom_call.1} parent=1 // loop_footer_branch
      %20 = sbr.rel target = $region3
    $region8: #{tpu_custom_call.1} parent=1 // loop_exit
      _
    %6422 = vsyncpa [#allocation3], 1
    %s6423 = scalar_lea.sflag [#allocation3], 1
    %6424 = vsyncpa %s6423, 1
    %6425 = vsyncpa [#allocation6], 1
    %6426 = vsyncpa [#allocation4], 1
    %s6427 = scalar_lea.sflag [#allocation4], 1
    %6428 = vsyncpa %s6427, 1

</llo_original>
